<compile_context>
chip_gen: v7x
topology: tpu7x:2x2x1
jax: 0.10.0
libtpu: 0.0.40
codegen_flags: <defaults>
</compile_context>

<pallas_src>
import jax
import jax.numpy as jnp
from jax import lax
from jax.experimental import pallas as pl
from jax.experimental.pallas import tpu as pltpu


def _subsample_hw(v, H, W, C, stride):
    """(H*W, C) -> (Ho*Wo, C), keeping every `stride`-th row/col (top-left).

    Implemented with split-reshapes + basic slices only (no strided vector
    slices), which lower cleanly in Mosaic.  Also works on a batch-flattened
    (Nb*H*W, C) input by passing H := Nb*H (requires H % stride == 0).
    """
    if stride == 1:
        return v
    Ho, Wo = H // stride, W // stride
    v = v.reshape(Ho, stride, W, C)[:, 0]        # row subsample  -> (Ho, W, C)
    v = v.reshape(Ho, Wo, stride, C)[:, :, 0]    # col subsample  -> (Ho, Wo, C)
    return v.reshape(Ho * Wo, C)


def _make_kernel(Nb, H, W, Cin, Cb, Cout, stride, identity, fused):
    Ho, Wo = H // stride, W // stride

    def kernel(*refs):
        if identity:
            (x_ref, w1_ref, s1_ref, b1_ref,
             w2_ref, s2_ref, b2_ref,
             w3_ref, s3_ref, b3_ref,
             o_ref) = refs[:11]
            scratch = refs[11:]
        else:
            (x_ref, w1_ref, s1_ref, b1_ref,
             w2_ref, s2_ref, b2_ref,
             w3_ref, s3_ref, b3_ref,
             wsc_ref, ssc_ref, bsc_ref,
             o_ref) = refs[:14]
            scratch = refs[14:]
        if fused:
            pad_ref, big_ref = scratch
        else:
            (pad_ref,) = scratch

        # --- conv1 (1x1, no bias) + BN1 + ReLU ------------------------------
        x_flat = x_ref[...].reshape(Nb * H * W, Cin)               # bf16
        h1 = jnp.dot(x_flat, w1_ref[...], preferred_element_type=jnp.float32)
        h1 = jnp.maximum(h1 * s1_ref[...] + b1_ref[...], 0.0)      # (NbHW, Cb) f32
        h1 = h1.astype(jnp.bfloat16)                               # cast once

        # --- conv2 (3x3, padding=1, stride applied after) -------------------
        # Zero only the 1-pixel border, once per grid step (interior is fully
        # overwritten for every image; borders are never touched otherwise).
        zr = jnp.zeros((W + 2, Cb), jnp.bfloat16)
        pad_ref[0, :, :] = zr
        pad_ref[H + 1, :, :] = zr
        zc = jnp.zeros((H + 2, 1, Cb), jnp.bfloat16)
        pad_ref[:, 0:1, :] = zc
        pad_ref[:, W + 1:W + 2, :] = zc

        h2_parts = []
        for b in range(Nb):
            pad_ref[1:H + 1, 1:W + 1, :] = (
                h1[b * H * W:(b + 1) * H * W].reshape(H, W, Cb))

            acc = jnp.zeros((H * W, Cb), jnp.float32)
            if fused:
                # big[y, x, kx*Cb + c] = padded[y, x + kx, c]; lane offsets are
                # multiples of 128, so the stores are unmasked in the lane dim.
                for kx in range(3):
                    big_ref[:, :, kx * Cb:(kx + 1) * Cb] = pad_ref[:, kx:kx + W, :]
                flat = big_ref[...].reshape((H + 2) * W, 3 * Cb)   # flatten ONCE
                for ky in range(3):                                # 3 fused taps
                    patch = flat[ky * W: ky * W + H * W]           # (HW, 3*Cb)
                    acc = acc + jnp.dot(patch, w2_ref[ky],
                                        preferred_element_type=jnp.float32)
            else:
                # Small / unaligned Cb: no lane-axis packing, 9 taps with K=Cb.
                for ky in range(3):
                    for kx in range(3):
                        patch = pad_ref[ky:ky + H, kx:kx + W, :].reshape(H * W, Cb)
                        acc = acc + jnp.dot(patch, w2_ref[ky * 3 + kx],
                                            preferred_element_type=jnp.float32)

            # Spatial subsampling (conv stride); no-op for stride == 1.
            acc = _subsample_hw(acc, H, W, Cb, stride)             # (HoWo, Cb)
            h2_b = jnp.maximum(acc * s2_ref[...] + b2_ref[...], 0.0)
            h2_parts.append(h2_b.astype(jnp.bfloat16))

        h2 = h2_parts[0] if Nb == 1 else jnp.concatenate(h2_parts, axis=0)

        # --- conv3 (1x1) + BN3 ----------------------------------------------
        h3 = jnp.dot(h2, w3_ref[...], preferred_element_type=jnp.float32)
        h3 = h3 * s3_ref[...] + b3_ref[...]                        # (NbHoWo, Cout)

        # --- shortcut ---------------------------------------------------------
        if identity:
            sc = x_flat.astype(jnp.float32)
        else:
            xs = _subsample_hw(x_flat, Nb * H, W, Cin, stride)     # in-kernel stride
            sc = jnp.dot(xs, wsc_ref[...], preferred_element_type=jnp.float32)
            sc = sc * ssc_ref[...] + bsc_ref[...]                  # (NbHoWo, Cout)

        # --- residual add + final ReLU ---------------------------------------
        o_ref[...] = jnp.maximum(h3 + sc, 0.0).astype(o_ref.dtype).reshape(
            Nb, Ho, Wo, Cout)

    return kernel


def bottleneck_block(x, params, stride, out_dtype=jnp.float32):
    """x: (N, H, W, Cin) float32 NHWC -> (N, Ho, Wo, Cout) `out_dtype`."""
    N, H, W, Cin = x.shape
    Cb = params['w1'].shape[1]
    Cout = params['w3'].shape[1]
    identity = 'wsc' not in params               # nn.Identity() shortcut
    assert stride in (1, 2), 'stride error'
    assert H % stride == 0 and W % stride == 0
    Ho, Wo = H // stride, W // stride

    # Batch Nb images per grid step so the matmul M-dim >= ~256 at small H*W.
    target = max(1, 256 // max(1, H * W))
    Nb = 1
    for d in range(min(N, target, 8), 0, -1):
        if N % d == 0:
            Nb = d
            break

    fused = (Cb % 128 == 0)                      # lane-aligned fused-K path

    # bf16 activations + weights: native MXU dtype, half the HBM/VMEM traffic
    # (f32 accumulation; residual add differs by <= bf16 rounding of x).
    xb = x.astype(jnp.bfloat16)
    w1 = params['w1'].astype(jnp.bfloat16)
    if fused:
        w2 = params['w2'].reshape(3, 3 * Cb, Cb).astype(jnp.bfloat16)  # k=ky*3+kx
    else:
        w2 = params['w2'].astype(jnp.bfloat16)                         # (9, Cb, Cb)
    w3 = params['w3'].astype(jnp.bfloat16)

    kernel = _make_kernel(Nb, H, W, Cin, Cb, Cout, stride, identity, fused)

    def const_spec(shape):
        nd = len(shape)
        return pl.BlockSpec(shape, lambda n, _nd=nd: (0,) * _nd)

    in_specs = [pl.BlockSpec((Nb, H, W, Cin), lambda n: (n, 0, 0, 0))]
    inputs = [xb]
    in_specs += [
        const_spec(w1.shape), const_spec((1, Cb)), const_spec((1, Cb)),
        const_spec(w2.shape), const_spec((1, Cb)), const_spec((1, Cb)),
        const_spec(w3.shape), const_spec((1, Cout)), const_spec((1, Cout)),
    ]
    inputs += [w1, params['s1'], params['b1'],
               w2, params['s2'], params['b2'],
               w3, params['s3'], params['b3']]
    if not identity:
        in_specs += [const_spec((Cin, Cout)),
                     const_spec((1, Cout)), const_spec((1, Cout))]
        inputs += [params['wsc'].astype(jnp.bfloat16),
                   params['ssc'], params['bsc']]

    scratch_shapes = [pltpu.VMEM((H + 2, W + 2, Cb), jnp.bfloat16)]
    if fused:
        scratch_shapes.append(pltpu.VMEM((H + 2, W, 3 * Cb), jnp.bfloat16))

    # Rough VMEM budget from actual block sizes (double-buffered I/O, weights,
    # scratch, live f32 temporaries), floor 32 MiB, cap 100 MiB.
    out_isz = jnp.dtype(out_dtype).itemsize
    est = 2 * Nb * H * W * Cin * 2
    est += 2 * Nb * Ho * Wo * Cout * out_isz
    est += 2 * (Cin * Cb + 9 * Cb * Cb + Cb * Cout
                + (0 if identity else Cin * Cout)) * 2
    est += (H + 2) * (W + 2) * Cb * 2
    if fused:
        est += (H + 2) * W * 3 * Cb * 2
    est += Nb * H * W * Cb * 4 + 3 * H * W * Cb * 4 + 3 * Nb * Ho * Wo * Cout * 4
    vmem_limit = int(min(100 * 1024 * 1024, max(32 * 1024 * 1024, 2 * est)))

    return pl.pallas_call(
        kernel,
        out_shape=jax.ShapeDtypeStruct((N, Ho, Wo, Cout), out_dtype),
        grid=(N // Nb,),
        in_specs=in_specs,
        out_specs=pl.BlockSpec((Nb, Ho, Wo, Cout), lambda n: (n, 0, 0, 0)),
        scratch_shapes=scratch_shapes,
        compiler_params=pltpu.CompilerParams(
            dimension_semantics=("parallel",),
            vmem_limit_bytes=vmem_limit),
    )(*inputs)


# ---------------------------------------------------------------------------
# deterministic synthetic parameters (BN folded in eval mode)
# ---------------------------------------------------------------------------
def _fold_bn(key, c, eps=1e-5):
    kg, kb, km, kv = jax.random.split(key, 4)
    gamma = 1.0 + 0.1 * jax.random.normal(kg, (c,), jnp.float32)
    beta = 0.1 * jax.random.normal(kb, (c,), jnp.float32)
    mean = 0.1 * jax.random.normal(km, (c,), jnp.float32)
    var = 0.5 + jax.nn.softplus(jax.random.normal(kv, (c,), jnp.float32))
    scale = gamma / jnp.sqrt(var + eps)
    bias = beta - mean * scale
    return scale.reshape(1, c), bias.reshape(1, c)


def make_params(key, cin, cb, cout, stride):
    ks = jax.random.split(key, 8)
    p = {}
    p['w1'] = jax.random.normal(ks[0], (cin, cb), jnp.float32) * (cin ** -0.5)
    p['s1'], p['b1'] = _fold_bn(ks[1], cb)
    p['w2'] = jax.random.normal(ks[2], (9, cb, cb), jnp.float32) * ((9 * cb) ** -0.5)
    p['s2'], p['b2'] = _fold_bn(ks[3], cb)
    p['w3'] = jax.random.normal(ks[4], (cb, cout), jnp.float32) * (cb ** -0.5)
    p['s3'], p['b3'] = _fold_bn(ks[5], cout)
    if not (stride == 1 and cin == cout):        # projection (1x1 conv + BN)
        p['wsc'] = jax.random.normal(ks[6], (cin, cout), jnp.float32) * (cin ** -0.5)
        p['ssc'], p['bsc'] = _fold_bn(ks[7], cout)
    return p


# ---------------------------------------------------------------------------
# plain-JAX reference (for correctness check)
# ---------------------------------------------------------------------------
def reference_block(x, params, stride, identity_shortcut):
    hp = lax.Precision.HIGHEST

    def conv1x1(h, w):
        return jnp.einsum('nhwc,cd->nhwd', h, w, precision=hp)

    h = jnp.maximum(conv1x1(x, params['w1']) * params['s1'][0] + params['b1'][0], 0.0)
    cb = params['w1'].shape[1]
    w2 = params['w2'].reshape(3, 3, cb, cb)
    h = lax.conv_general_dilated(h, w2, (stride, stride), ((1, 1), (1, 1)),
                                 dimension_numbers=('NHWC', 'HWIO', 'NHWC'),
                                 precision=hp)
    h = jnp.maximum(h * params['s2'][0] + params['b2'][0], 0.0)
    h = conv1x1(h, params['w3']) * params['s3'][0] + params['b3'][0]
    if identity_shortcut:
        sc = x
    else:
        xs = x[:, ::stride, ::stride, :]
        sc = conv1x1(xs, params['wsc']) * params['ssc'][0] + params['bsc'][0]
    return jnp.maximum(h + sc, 0.0)


def _check(y, y_ref, shape):
    assert y.shape == shape
    assert jnp.allclose(y, y_ref, atol=5e-2, rtol=5e-2), \
        float(jnp.max(jnp.abs(y - y_ref)))


if __name__ == "__main__":
    key = jax.random.PRNGKey(0)
    k_x1, k_p1, k_x2, k_p2, k_x3, k_p3 = jax.random.split(key, 6)

    # Config A: stride=2, projection shortcut, tiny channels (non-fused conv2).
    N, H, W, cin, cb, cout, stride = 2, 16, 16, 8, 8, 16, 2
    x = jax.random.normal(k_x1, (N, H, W, cin), jnp.float32)
    params = make_params(k_p1, cin, cb, cout, stride)
    y = jax.block_until_ready(bottleneck_block(x, params, stride))
    y_ref = reference_block(x, params, stride, identity_shortcut=False)
    _check(y, y_ref, (N, H // stride, W // stride, cout))

    # Config B: stride=1, identity shortcut (in=out=16, bottleneck=8).
    N, H, W, cin, cb, cout, stride = 2, 16, 16, 16, 8, 16, 1
    x = jax.random.normal(k_x2, (N, H, W, cin), jnp.float32)
    params = make_params(k_p2, cin, cb, cout, stride)
    y = jax.block_until_ready(bottleneck_block(x, params, stride))
    y_ref = reference_block(x, params, stride, identity_shortcut=True)
    _check(y, y_ref, (N, H, W, cout))

    # Config C: stride=2, projection, Cb=128 (fused-K conv2) + Nb image batching.
    N, H, W, cin, cb, cout, stride = 4, 8, 8, 32, 128, 64, 2
    x = jax.random.normal(k_x3, (N, H, W, cin), jnp.float32)
    params = make_params(k_p3, cin, cb, cout, stride)
    y = jax.block_until_ready(bottleneck_block(x, params, stride))
    y_ref = reference_block(x, params, stride, identity_shortcut=False)
    _check(y, y_ref, (N, H // stride, W // stride, cout))

    print("KERNEL_OK")
</pallas_src>

<mosaic_0001>
module attributes {stable_mosaic.version = 11 : i64} {
  func.func @kernel(%arg0: i32, %arg1: memref<1x16x16x8xbf16, #tpu.memory_space<vmem>>, %arg2: memref<8x8xbf16, #tpu.memory_space<vmem>>, %arg3: memref<1x8xf32, #tpu.memory_space<vmem>>, %arg4: memref<1x8xf32, #tpu.memory_space<vmem>>, %arg5: memref<9x8x8xbf16, #tpu.memory_space<vmem>>, %arg6: memref<1x8xf32, #tpu.memory_space<vmem>>, %arg7: memref<1x8xf32, #tpu.memory_space<vmem>>, %arg8: memref<8x16xbf16, #tpu.memory_space<vmem>>, %arg9: memref<1x16xf32, #tpu.memory_space<vmem>>, %arg10: memref<1x16xf32, #tpu.memory_space<vmem>>, %arg11: memref<8x16xbf16, #tpu.memory_space<vmem>>, %arg12: memref<1x16xf32, #tpu.memory_space<vmem>>, %arg13: memref<1x16xf32, #tpu.memory_space<vmem>>, %arg14: memref<1x8x8x16xf32, #tpu.memory_space<vmem>>, %arg15: memref<18x18x8xbf16, #tpu.memory_space<vmem>>) attributes {dimension_semantics = [#tpu.dimension_semantics<parallel>], iteration_bounds = array<i64: 2>, scalar_prefetch = 0 : i64, scratch_operands = 1 : i64, tpu.core_type = #tpu.core_type<tc>, window_params = [{transform_indices = @transform_0, window_bounds = array<i64: 1, 16, 16, 8>}, {pipeline_mode = #tpu.pipeline_mode<synchronous>, transform_indices = @transform_1, window_bounds = array<i64: 8, 8>}, {pipeline_mode = #tpu.pipeline_mode<synchronous>, transform_indices = @transform_2, window_bounds = array<i64: 1, 8>}, {pipeline_mode = #tpu.pipeline_mode<synchronous>, transform_indices = @transform_3, window_bounds = array<i64: 1, 8>}, {pipeline_mode = #tpu.pipeline_mode<synchronous>, transform_indices = @transform_4, window_bounds = array<i64: 9, 8, 8>}, {pipeline_mode = #tpu.pipeline_mode<synchronous>, transform_indices = @transform_5, window_bounds = array<i64: 1, 8>}, {pipeline_mode = #tpu.pipeline_mode<synchronous>, transform_indices = @transform_6, window_bounds = array<i64: 1, 8>}, {pipeline_mode = #tpu.pipeline_mode<synchronous>, transform_indices = @transform_7, window_bounds = array<i64: 8, 16>}, {pipeline_mode = #tpu.pipeline_mode<synchronous>, transform_indices = @transform_8, window_bounds = array<i64: 1, 16>}, {pipeline_mode = #tpu.pipeline_mode<synchronous>, transform_indices = @transform_9, window_bounds = array<i64: 1, 16>}, {pipeline_mode = #tpu.pipeline_mode<synchronous>, transform_indices = @transform_10, window_bounds = array<i64: 8, 16>}, {pipeline_mode = #tpu.pipeline_mode<synchronous>, transform_indices = @transform_11, window_bounds = array<i64: 1, 16>}, {pipeline_mode = #tpu.pipeline_mode<synchronous>, transform_indices = @transform_12, window_bounds = array<i64: 1, 16>}, {transform_indices = @transform_13, window_bounds = array<i64: 1, 8, 8, 16>}]} {
    %c0 = arith.constant 0 : index
    %c0_0 = arith.constant 0 : index
    %c0_1 = arith.constant 0 : index
    %c0_2 = arith.constant 0 : index
    %0 = vector.load %arg1[%c0, %c0_0, %c0_1, %c0_2] : memref<1x16x16x8xbf16, #tpu.memory_space<vmem>>, vector<1x16x16x8xbf16>
    %1 = vector.shape_cast %0 : vector<1x16x16x8xbf16> to vector<256x8xbf16>
    %c0_3 = arith.constant 0 : index
    %c0_4 = arith.constant 0 : index
    %2 = vector.load %arg2[%c0_3, %c0_4] : memref<8x8xbf16, #tpu.memory_space<vmem>>, vector<8x8xbf16>
    %cst = arith.constant dense<0.000000e+00> : vector<256x8xf32>
    %3 = tpu.matmul %1, %2, %cst {dimension_numbers = #tpu.dot_dimension_numbers<[1], [0], [0], [1], [0, 0, 1, 1], [], []>} : vector<256x8xbf16>, vector<8x8xbf16>, vector<256x8xf32> -> vector<256x8xf32>
    %c0_5 = arith.constant 0 : index
    %c0_6 = arith.constant 0 : index
    %4 = vector.load %arg3[%c0_5, %c0_6] : memref<1x8xf32, #tpu.memory_space<vmem>>, vector<1x8xf32>
    %5 = vector.broadcast %4 : vector<1x8xf32> to vector<256x8xf32>
    %6 = arith.mulf %3, %5 : vector<256x8xf32>
    %c0_7 = arith.constant 0 : index
    %c0_8 = arith.constant 0 : index
    %7 = vector.load %arg4[%c0_7, %c0_8] : memref<1x8xf32, #tpu.memory_space<vmem>>, vector<1x8xf32>
    %8 = vector.broadcast %7 : vector<1x8xf32> to vector<256x8xf32>
    %9 = arith.addf %6, %8 : vector<256x8xf32>
    %cst_9 = arith.constant 0.000000e+00 : f32
    %10 = vector.broadcast %cst_9 : f32 to vector<256x8xf32>
    %11 = arith.maximumf %9, %10 : vector<256x8xf32>
    %12 = arith.truncf %11 : vector<256x8xf32> to vector<256x8xbf16>
    %cst_10 = arith.constant 0.000000e+00 : bf16
    %13 = vector.broadcast %cst_10 : bf16 to vector<18x8xbf16>
    %c0_11 = arith.constant 0 : index
    %c0_12 = arith.constant 0 : index
    %c0_13 = arith.constant 0 : index
    %14 = vector.load %arg15[%c0_11, %c0_12, %c0_13] : memref<18x18x8xbf16, #tpu.memory_space<vmem>>, vector<1x18x8xbf16>
    %15 = vector.shape_cast %14 : vector<1x18x8xbf16> to vector<18x8xbf16>
    %16 = vector.shape_cast %13 : vector<18x8xbf16> to vector<1x18x8xbf16>
    tpu.vector_store %arg15[%c0_11, %c0_12, %c0_13], %16 {strides = array<i32>} : memref<18x18x8xbf16, #tpu.memory_space<vmem>>, vector<1x18x8xbf16>,
    %c17 = arith.constant 17 : index
    %c0_14 = arith.constant 0 : index
    %c0_15 = arith.constant 0 : index
    %17 = vector.load %arg15[%c17, %c0_14, %c0_15] : memref<18x18x8xbf16, #tpu.memory_space<vmem>>, vector<1x18x8xbf16>
    %18 = vector.shape_cast %17 : vector<1x18x8xbf16> to vector<18x8xbf16>
    %19 = vector.shape_cast %13 : vector<18x8xbf16> to vector<1x18x8xbf16>
    tpu.vector_store %arg15[%c17, %c0_14, %c0_15], %19 {strides = array<i32>} : memref<18x18x8xbf16, #tpu.memory_space<vmem>>, vector<1x18x8xbf16>,
    %cst_16 = arith.constant 0.000000e+00 : bf16
    %20 = vector.broadcast %cst_16 : bf16 to vector<18x1x8xbf16>
    %c0_17 = arith.constant 0 : index
    %c0_18 = arith.constant 0 : index
    %c0_19 = arith.constant 0 : index
    %21 = vector.load %arg15[%c0_17, %c0_18, %c0_19] : memref<18x18x8xbf16, #tpu.memory_space<vmem>>, vector<18x1x8xbf16>
    tpu.vector_store %arg15[%c0_17, %c0_18, %c0_19], %20 {strides = array<i32>} : memref<18x18x8xbf16, #tpu.memory_space<vmem>>, vector<18x1x8xbf16>,
    %c0_20 = arith.constant 0 : index
    %c17_21 = arith.constant 17 : index
    %c0_22 = arith.constant 0 : index
    %22 = vector.load %arg15[%c0_20, %c17_21, %c0_22] : memref<18x18x8xbf16, #tpu.memory_space<vmem>>, vector<18x1x8xbf16>
    tpu.vector_store %arg15[%c0_20, %c17_21, %c0_22], %20 {strides = array<i32>} : memref<18x18x8xbf16, #tpu.memory_space<vmem>>, vector<18x1x8xbf16>,
    %23 = vector.shape_cast %12 : vector<256x8xbf16> to vector<16x16x8xbf16>
    %c1 = arith.constant 1 : index
    %c1_23 = arith.constant 1 : index
    %c0_24 = arith.constant 0 : index
    %24 = vector.load %arg15[%c1, %c1_23, %c0_24] : memref<18x18x8xbf16, #tpu.memory_space<vmem>>, vector<16x16x8xbf16>
    tpu.vector_store %arg15[%c1, %c1_23, %c0_24], %23 {strides = array<i32>} : memref<18x18x8xbf16, #tpu.memory_space<vmem>>, vector<16x16x8xbf16>,
    %cst_25 = arith.constant 0.000000e+00 : f32
    %25 = vector.broadcast %cst_25 : f32 to vector<256x8xf32>
    %c0_26 = arith.constant 0 : index
    %c0_27 = arith.constant 0 : index
    %c0_28 = arith.constant 0 : index
    %26 = vector.load %arg15[%c0_26, %c0_27, %c0_28] : memref<18x18x8xbf16, #tpu.memory_space<vmem>>, vector<16x16x8xbf16>
    %27 = vector.shape_cast %26 : vector<16x16x8xbf16> to vector<256x8xbf16>
    %c0_29 = arith.constant 0 : index
    %c0_30 = arith.constant 0 : index
    %c0_31 = arith.constant 0 : index
    %28 = vector.load %arg5[%c0_29, %c0_30, %c0_31] : memref<9x8x8xbf16, #tpu.memory_space<vmem>>, vector<1x8x8xbf16>
    %29 = vector.shape_cast %28 : vector<1x8x8xbf16> to vector<8x8xbf16>
    %cst_32 = arith.constant dense<0.000000e+00> : vector<256x8xf32>
    %30 = tpu.matmul %27, %29, %cst_32 {dimension_numbers = #tpu.dot_dimension_numbers<[1], [0], [0], [1], [0, 0, 1, 1], [], []>} : vector<256x8xbf16>, vector<8x8xbf16>, vector<256x8xf32> -> vector<256x8xf32>
    %31 = arith.addf %25, %30 : vector<256x8xf32>
    %c0_33 = arith.constant 0 : index
    %c1_34 = arith.constant 1 : index
    %c0_35 = arith.constant 0 : index
    %32 = vector.load %arg15[%c0_33, %c1_34, %c0_35] : memref<18x18x8xbf16, #tpu.memory_space<vmem>>, vector<16x16x8xbf16>
    %33 = vector.shape_cast %32 : vector<16x16x8xbf16> to vector<256x8xbf16>
    %c1_36 = arith.constant 1 : index
    %c0_37 = arith.constant 0 : index
    %c0_38 = arith.constant 0 : index
    %34 = vector.load %arg5[%c1_36, %c0_37, %c0_38] : memref<9x8x8xbf16, #tpu.memory_space<vmem>>, vector<1x8x8xbf16>
    %35 = vector.shape_cast %34 : vector<1x8x8xbf16> to vector<8x8xbf16>
    %cst_39 = arith.constant dense<0.000000e+00> : vector<256x8xf32>
    %36 = tpu.matmul %33, %35, %cst_39 {dimension_numbers = #tpu.dot_dimension_numbers<[1], [0], [0], [1], [0, 0, 1, 1], [], []>} : vector<256x8xbf16>, vector<8x8xbf16>, vector<256x8xf32> -> vector<256x8xf32>
    %37 = arith.addf %31, %36 : vector<256x8xf32>
    %c0_40 = arith.constant 0 : index
    %c2 = arith.constant 2 : index
    %c0_41 = arith.constant 0 : index
    %38 = vector.load %arg15[%c0_40, %c2, %c0_41] : memref<18x18x8xbf16, #tpu.memory_space<vmem>>, vector<16x16x8xbf16>
    %39 = vector.shape_cast %38 : vector<16x16x8xbf16> to vector<256x8xbf16>
    %c2_42 = arith.constant 2 : index
    %c0_43 = arith.constant 0 : index
    %c0_44 = arith.constant 0 : index
    %40 = vector.load %arg5[%c2_42, %c0_43, %c0_44] : memref<9x8x8xbf16, #tpu.memory_space<vmem>>, vector<1x8x8xbf16>
    %41 = vector.shape_cast %40 : vector<1x8x8xbf16> to vector<8x8xbf16>
    %cst_45 = arith.constant dense<0.000000e+00> : vector<256x8xf32>
    %42 = tpu.matmul %39, %41, %cst_45 {dimension_numbers = #tpu.dot_dimension_numbers<[1], [0], [0], [1], [0, 0, 1, 1], [], []>} : vector<256x8xbf16>, vector<8x8xbf16>, vector<256x8xf32> -> vector<256x8xf32>
    %43 = arith.addf %37, %42 : vector<256x8xf32>
    %c1_46 = arith.constant 1 : index
    %c0_47 = arith.constant 0 : index
    %c0_48 = arith.constant 0 : index
    %44 = vector.load %arg15[%c1_46, %c0_47, %c0_48] : memref<18x18x8xbf16, #tpu.memory_space<vmem>>, vector<16x16x8xbf16>
    %45 = vector.shape_cast %44 : vector<16x16x8xbf16> to vector<256x8xbf16>
    %c3 = arith.constant 3 : index
    %c0_49 = arith.constant 0 : index
    %c0_50 = arith.constant 0 : index
    %46 = vector.load %arg5[%c3, %c0_49, %c0_50] : memref<9x8x8xbf16, #tpu.memory_space<vmem>>, vector<1x8x8xbf16>
    %47 = vector.shape_cast %46 : vector<1x8x8xbf16> to vector<8x8xbf16>
    %cst_51 = arith.constant dense<0.000000e+00> : vector<256x8xf32>
    %48 = tpu.matmul %45, %47, %cst_51 {dimension_numbers = #tpu.dot_dimension_numbers<[1], [0], [0], [1], [0, 0, 1, 1], [], []>} : vector<256x8xbf16>, vector<8x8xbf16>, vector<256x8xf32> -> vector<256x8xf32>
    %49 = arith.addf %43, %48 : vector<256x8xf32>
    %c1_52 = arith.constant 1 : index
    %c1_53 = arith.constant 1 : index
    %c0_54 = arith.constant 0 : index
    %50 = vector.load %arg15[%c1_52, %c1_53, %c0_54] : memref<18x18x8xbf16, #tpu.memory_space<vmem>>, vector<16x16x8xbf16>
    %51 = vector.shape_cast %50 : vector<16x16x8xbf16> to vector<256x8xbf16>
    %c4 = arith.constant 4 : index
    %c0_55 = arith.constant 0 : index
    %c0_56 = arith.constant 0 : index
    %52 = vector.load %arg5[%c4, %c0_55, %c0_56] : memref<9x8x8xbf16, #tpu.memory_space<vmem>>, vector<1x8x8xbf16>
    %53 = vector.shape_cast %52 : vector<1x8x8xbf16> to vector<8x8xbf16>
    %cst_57 = arith.constant dense<0.000000e+00> : vector<256x8xf32>
    %54 = tpu.matmul %51, %53, %cst_57 {dimension_numbers = #tpu.dot_dimension_numbers<[1], [0], [0], [1], [0, 0, 1, 1], [], []>} : vector<256x8xbf16>, vector<8x8xbf16>, vector<256x8xf32> -> vector<256x8xf32>
    %55 = arith.addf %49, %54 : vector<256x8xf32>
    %c1_58 = arith.constant 1 : index
    %c2_59 = arith.constant 2 : index
    %c0_60 = arith.constant 0 : index
    %56 = vector.load %arg15[%c1_58, %c2_59, %c0_60] : memref<18x18x8xbf16, #tpu.memory_space<vmem>>, vector<16x16x8xbf16>
    %57 = vector.shape_cast %56 : vector<16x16x8xbf16> to vector<256x8xbf16>
    %c5 = arith.constant 5 : index
    %c0_61 = arith.constant 0 : index
    %c0_62 = arith.constant 0 : index
    %58 = vector.load %arg5[%c5, %c0_61, %c0_62] : memref<9x8x8xbf16, #tpu.memory_space<vmem>>, vector<1x8x8xbf16>
    %59 = vector.shape_cast %58 : vector<1x8x8xbf16> to vector<8x8xbf16>
    %cst_63 = arith.constant dense<0.000000e+00> : vector<256x8xf32>
    %60 = tpu.matmul %57, %59, %cst_63 {dimension_numbers = #tpu.dot_dimension_numbers<[1], [0], [0], [1], [0, 0, 1, 1], [], []>} : vector<256x8xbf16>, vector<8x8xbf16>, vector<256x8xf32> -> vector<256x8xf32>
    %61 = arith.addf %55, %60 : vector<256x8xf32>
    %c2_64 = arith.constant 2 : index
    %c0_65 = arith.constant 0 : index
    %c0_66 = arith.constant 0 : index
    %62 = vector.load %arg15[%c2_64, %c0_65, %c0_66] : memref<18x18x8xbf16, #tpu.memory_space<vmem>>, vector<16x16x8xbf16>
    %63 = vector.shape_cast %62 : vector<16x16x8xbf16> to vector<256x8xbf16>
    %c6 = arith.constant 6 : index
    %c0_67 = arith.constant 0 : index
    %c0_68 = arith.constant 0 : index
    %64 = vector.load %arg5[%c6, %c0_67, %c0_68] : memref<9x8x8xbf16, #tpu.memory_space<vmem>>, vector<1x8x8xbf16>
    %65 = vector.shape_cast %64 : vector<1x8x8xbf16> to vector<8x8xbf16>
    %cst_69 = arith.constant dense<0.000000e+00> : vector<256x8xf32>
    %66 = tpu.matmul %63, %65, %cst_69 {dimension_numbers = #tpu.dot_dimension_numbers<[1], [0], [0], [1], [0, 0, 1, 1], [], []>} : vector<256x8xbf16>, vector<8x8xbf16>, vector<256x8xf32> -> vector<256x8xf32>
    %67 = arith.addf %61, %66 : vector<256x8xf32>
    %c2_70 = arith.constant 2 : index
    %c1_71 = arith.constant 1 : index
    %c0_72 = arith.constant 0 : index
    %68 = vector.load %arg15[%c2_70, %c1_71, %c0_72] : memref<18x18x8xbf16, #tpu.memory_space<vmem>>, vector<16x16x8xbf16>
    %69 = vector.shape_cast %68 : vector<16x16x8xbf16> to vector<256x8xbf16>
    %c7 = arith.constant 7 : index
    %c0_73 = arith.constant 0 : index
    %c0_74 = arith.constant 0 : index
    %70 = vector.load %arg5[%c7, %c0_73, %c0_74] : memref<9x8x8xbf16, #tpu.memory_space<vmem>>, vector<1x8x8xbf16>
    %71 = vector.shape_cast %70 : vector<1x8x8xbf16> to vector<8x8xbf16>
    %cst_75 = arith.constant dense<0.000000e+00> : vector<256x8xf32>
    %72 = tpu.matmul %69, %71, %cst_75 {dimension_numbers = #tpu.dot_dimension_numbers<[1], [0], [0], [1], [0, 0, 1, 1], [], []>} : vector<256x8xbf16>, vector<8x8xbf16>, vector<256x8xf32> -> vector<256x8xf32>
    %73 = arith.addf %67, %72 : vector<256x8xf32>
    %c2_76 = arith.constant 2 : index
    %c2_77 = arith.constant 2 : index
    %c0_78 = arith.constant 0 : index
    %74 = vector.load %arg15[%c2_76, %c2_77, %c0_78] : memref<18x18x8xbf16, #tpu.memory_space<vmem>>, vector<16x16x8xbf16>
    %75 = vector.shape_cast %74 : vector<16x16x8xbf16> to vector<256x8xbf16>
    %c8 = arith.constant 8 : index
    %c0_79 = arith.constant 0 : index
    %c0_80 = arith.constant 0 : index
    %76 = vector.load %arg5[%c8, %c0_79, %c0_80] : memref<9x8x8xbf16, #tpu.memory_space<vmem>>, vector<1x8x8xbf16>
    %77 = vector.shape_cast %76 : vector<1x8x8xbf16> to vector<8x8xbf16>
    %cst_81 = arith.constant dense<0.000000e+00> : vector<256x8xf32>
    %78 = tpu.matmul %75, %77, %cst_81 {dimension_numbers = #tpu.dot_dimension_numbers<[1], [0], [0], [1], [0, 0, 1, 1], [], []>} : vector<256x8xbf16>, vector<8x8xbf16>, vector<256x8xf32> -> vector<256x8xf32>
    %79 = arith.addf %73, %78 : vector<256x8xf32>
    %80 = vector.shape_cast %79 : vector<256x8xf32> to vector<8x2x16x8xf32>
    %81 = vector.extract_strided_slice %80 {offsets = [0, 0, 0, 0], sizes = [8, 1, 16, 8], strides = [1, 1, 1, 1]} : vector<8x2x16x8xf32> to vector<8x1x16x8xf32>
    %82 = vector.shape_cast %81 : vector<8x1x16x8xf32> to vector<8x16x8xf32>
    %83 = vector.shape_cast %82 : vector<8x16x8xf32> to vector<8x8x2x8xf32>
    %84 = vector.extract_strided_slice %83 {offsets = [0, 0, 0, 0], sizes = [8, 8, 1, 8], strides = [1, 1, 1, 1]} : vector<8x8x2x8xf32> to vector<8x8x1x8xf32>
    %85 = vector.shape_cast %84 : vector<8x8x1x8xf32> to vector<8x8x8xf32>
    %86 = vector.shape_cast %85 : vector<8x8x8xf32> to vector<64x8xf32>
    %c0_82 = arith.constant 0 : index
    %c0_83 = arith.constant 0 : index
    %87 = vector.load %arg6[%c0_82, %c0_83] : memref<1x8xf32, #tpu.memory_space<vmem>>, vector<1x8xf32>
    %88 = vector.broadcast %87 : vector<1x8xf32> to vector<64x8xf32>
    %89 = arith.mulf %86, %88 : vector<64x8xf32>
    %c0_84 = arith.constant 0 : index
    %c0_85 = arith.constant 0 : index
    %90 = vector.load %arg7[%c0_84, %c0_85] : memref<1x8xf32, #tpu.memory_space<vmem>>, vector<1x8xf32>
    %91 = vector.broadcast %90 : vector<1x8xf32> to vector<64x8xf32>
    %92 = arith.addf %89, %91 : vector<64x8xf32>
    %cst_86 = arith.constant 0.000000e+00 : f32
    %93 = vector.broadcast %cst_86 : f32 to vector<64x8xf32>
    %94 = arith.maximumf %92, %93 : vector<64x8xf32>
    %95 = arith.truncf %94 : vector<64x8xf32> to vector<64x8xbf16>
    %c0_87 = arith.constant 0 : index
    %c0_88 = arith.constant 0 : index
    %96 = vector.load %arg8[%c0_87, %c0_88] : memref<8x16xbf16, #tpu.memory_space<vmem>>, vector<8x16xbf16>
    %cst_89 = arith.constant dense<0.000000e+00> : vector<64x16xf32>
    %97 = tpu.matmul %95, %96, %cst_89 {dimension_numbers = #tpu.dot_dimension_numbers<[1], [0], [0], [1], [0, 0, 1, 1], [], []>} : vector<64x8xbf16>, vector<8x16xbf16>, vector<64x16xf32> -> vector<64x16xf32>
    %c0_90 = arith.constant 0 : index
    %c0_91 = arith.constant 0 : index
    %98 = vector.load %arg9[%c0_90, %c0_91] : memref<1x16xf32, #tpu.memory_space<vmem>>, vector<1x16xf32>
    %99 = vector.broadcast %98 : vector<1x16xf32> to vector<64x16xf32>
    %100 = arith.mulf %97, %99 : vector<64x16xf32>
    %c0_92 = arith.constant 0 : index
    %c0_93 = arith.constant 0 : index
    %101 = vector.load %arg10[%c0_92, %c0_93] : memref<1x16xf32, #tpu.memory_space<vmem>>, vector<1x16xf32>
    %102 = vector.broadcast %101 : vector<1x16xf32> to vector<64x16xf32>
    %103 = arith.addf %100, %102 : vector<64x16xf32>
    %104 = vector.shape_cast %1 : vector<256x8xbf16> to vector<8x2x16x8xbf16>
    %105 = vector.extract_strided_slice %104 {offsets = [0, 0, 0, 0], sizes = [8, 1, 16, 8], strides = [1, 1, 1, 1]} : vector<8x2x16x8xbf16> to vector<8x1x16x8xbf16>
    %106 = vector.shape_cast %105 : vector<8x1x16x8xbf16> to vector<8x16x8xbf16>
    %107 = vector.shape_cast %106 : vector<8x16x8xbf16> to vector<8x8x2x8xbf16>
    %108 = vector.extract_strided_slice %107 {offsets = [0, 0, 0, 0], sizes = [8, 8, 1, 8], strides = [1, 1, 1, 1]} : vector<8x8x2x8xbf16> to vector<8x8x1x8xbf16>
    %109 = vector.shape_cast %108 : vector<8x8x1x8xbf16> to vector<8x8x8xbf16>
    %110 = vector.shape_cast %109 : vector<8x8x8xbf16> to vector<64x8xbf16>
    %c0_94 = arith.constant 0 : index
    %c0_95 = arith.constant 0 : index
    %111 = vector.load %arg11[%c0_94, %c0_95] : memref<8x16xbf16, #tpu.memory_space<vmem>>, vector<8x16xbf16>
    %cst_96 = arith.constant dense<0.000000e+00> : vector<64x16xf32>
    %112 = tpu.matmul %110, %111, %cst_96 {dimension_numbers = #tpu.dot_dimension_numbers<[1], [0], [0], [1], [0, 0, 1, 1], [], []>} : vector<64x8xbf16>, vector<8x16xbf16>, vector<64x16xf32> -> vector<64x16xf32>
    %c0_97 = arith.constant 0 : index
    %c0_98 = arith.constant 0 : index
    %113 = vector.load %arg12[%c0_97, %c0_98] : memref<1x16xf32, #tpu.memory_space<vmem>>, vector<1x16xf32>
    %114 = vector.broadcast %113 : vector<1x16xf32> to vector<64x16xf32>
    %115 = arith.mulf %112, %114 : vector<64x16xf32>
    %c0_99 = arith.constant 0 : index
    %c0_100 = arith.constant 0 : index
    %116 = vector.load %arg13[%c0_99, %c0_100] : memref<1x16xf32, #tpu.memory_space<vmem>>, vector<1x16xf32>
    %117 = vector.broadcast %116 : vector<1x16xf32> to vector<64x16xf32>
    %118 = arith.addf %115, %117 : vector<64x16xf32>
    %119 = arith.addf %103, %118 : vector<64x16xf32>
    %cst_101 = arith.constant 0.000000e+00 : f32
    %120 = vector.broadcast %cst_101 : f32 to vector<64x16xf32>
    %121 = arith.maximumf %119, %120 : vector<64x16xf32>
    %122 = vector.shape_cast %121 : vector<64x16xf32> to vector<1x8x8x16xf32>
    %c0_102 = arith.constant 0 : index
    %c0_103 = arith.constant 0 : index
    %c0_104 = arith.constant 0 : index
    %c0_105 = arith.constant 0 : index
    %123 = vector.load %arg14[%c0_102, %c0_103, %c0_104, %c0_105] : memref<1x8x8x16xf32, #tpu.memory_space<vmem>>, vector<1x8x8x16xf32>
    tpu.vector_store %arg14[%c0_102, %c0_103, %c0_104, %c0_105], %122 {strides = array<i32>} : memref<1x8x8x16xf32, #tpu.memory_space<vmem>>, vector<1x8x8x16xf32>,
    return
  }
  func.func @transform_0(%arg0: i32) -> (i32, i32, i32, i32) {
    %c0_i32 = arith.constant 0 : i32
    %c0_i32_0 = arith.constant 0 : i32
    %c0_i32_1 = arith.constant 0 : i32
    %c0_i32_2 = arith.constant 0 : i32
    return %arg0, %c0_i32, %c0_i32_0, %c0_i32_1 : i32, i32, i32, i32
  }
  func.func @transform_1(%arg0: i32) -> (i32, i32) {
    %c0_i32 = arith.constant 0 : i32
    %c0_i32_0 = arith.constant 0 : i32
    %c0_i32_1 = arith.constant 0 : i32
    return %c0_i32, %c0_i32_0 : i32, i32
  }
  func.func @transform_2(%arg0: i32) -> (i32, i32) {
    %c0_i32 = arith.constant 0 : i32
    %c0_i32_0 = arith.constant 0 : i32
    %c0_i32_1 = arith.constant 0 : i32
    return %c0_i32, %c0_i32_0 : i32, i32
  }
  func.func @transform_3(%arg0: i32) -> (i32, i32) {
    %c0_i32 = arith.constant 0 : i32
    %c0_i32_0 = arith.constant 0 : i32
    %c0_i32_1 = arith.constant 0 : i32
    return %c0_i32, %c0_i32_0 : i32, i32
  }
  func.func @transform_4(%arg0: i32) -> (i32, i32, i32) {
    %c0_i32 = arith.constant 0 : i32
    %c0_i32_0 = arith.constant 0 : i32
    %c0_i32_1 = arith.constant 0 : i32
    %c0_i32_2 = arith.constant 0 : i32
    return %c0_i32, %c0_i32_0, %c0_i32_1 : i32, i32, i32
  }
  func.func @transform_5(%arg0: i32) -> (i32, i32) {
    %c0_i32 = arith.constant 0 : i32
    %c0_i32_0 = arith.constant 0 : i32
    %c0_i32_1 = arith.constant 0 : i32
    return %c0_i32, %c0_i32_0 : i32, i32
  }
  func.func @transform_6(%arg0: i32) -> (i32, i32) {
    %c0_i32 = arith.constant 0 : i32
    %c0_i32_0 = arith.constant 0 : i32
    %c0_i32_1 = arith.constant 0 : i32
    return %c0_i32, %c0_i32_0 : i32, i32
  }
  func.func @transform_7(%arg0: i32) -> (i32, i32) {
    %c0_i32 = arith.constant 0 : i32
    %c0_i32_0 = arith.constant 0 : i32
    %c0_i32_1 = arith.constant 0 : i32
    return %c0_i32, %c0_i32_0 : i32, i32
  }
  func.func @transform_8(%arg0: i32) -> (i32, i32) {
    %c0_i32 = arith.constant 0 : i32
    %c0_i32_0 = arith.constant 0 : i32
    %c0_i32_1 = arith.constant 0 : i32
    return %c0_i32, %c0_i32_0 : i32, i32
  }
  func.func @transform_9(%arg0: i32) -> (i32, i32) {
    %c0_i32 = arith.constant 0 : i32
    %c0_i32_0 = arith.constant 0 : i32
    %c0_i32_1 = arith.constant 0 : i32
    return %c0_i32, %c0_i32_0 : i32, i32
  }
  func.func @transform_10(%arg0: i32) -> (i32, i32) {
    %c0_i32 = arith.constant 0 : i32
    %c0_i32_0 = arith.constant 0 : i32
    %c0_i32_1 = arith.constant 0 : i32
    return %c0_i32, %c0_i32_0 : i32, i32
  }
  func.func @transform_11(%arg0: i32) -> (i32, i32) {
    %c0_i32 = arith.constant 0 : i32
    %c0_i32_0 = arith.constant 0 : i32
    %c0_i32_1 = arith.constant 0 : i32
    return %c0_i32, %c0_i32_0 : i32, i32
  }
  func.func @transform_12(%arg0: i32) -> (i32, i32) {
    %c0_i32 = arith.constant 0 : i32
    %c0_i32_0 = arith.constant 0 : i32
    %c0_i32_1 = arith.constant 0 : i32
    return %c0_i32, %c0_i32_0 : i32, i32
  }
  func.func @transform_13(%arg0: i32) -> (i32, i32, i32, i32) {
    %c0_i32 = arith.constant 0 : i32
    %c0_i32_0 = arith.constant 0 : i32
    %c0_i32_1 = arith.constant 0 : i32
    %c0_i32_2 = arith.constant 0 : i32
    return %arg0, %c0_i32, %c0_i32_0, %c0_i32_1 : i32, i32, i32, i32
  }
}

</mosaic_0001>

<llo_original>
// kernel: tpu_custom_call.1
$region0: #{tpu_custom_call.1}
  #allocation0 [shape = 'u32[]', space=smem, size = 0x4, offset = 0x4, fixed_abs, tag = 'smem constant byte address 0x4 - core index']
  #allocation1 [shape = 'u32[144,128]{1,0:T(1,128)}', space=vmem, size = 0x12000, scoped, tag = 'internal scratch']
  #allocation2 [shape = 'bf16[18,18,8]{2,1,0:T(8,128)(2,1)}', space=vmem, size = 0x1b000, scoped, tag = 'scratch operand']
  %s0 = inlined_call_operand.vmem [shape: bf16[2,16,16,8], index: 0, kind: input, shape index: {}]
  %s1 = inlined_call_operand.vmem [shape: bf16[8,8], index: 1, kind: input, shape index: {}]
  %s2 = inlined_call_operand.vmem [shape: f32[1,8], index: 2, kind: input, shape index: {}]
  %s3 = inlined_call_operand.vmem [shape: f32[1,8], index: 3, kind: input, shape index: {}]
  %s4 = inlined_call_operand.vmem [shape: bf16[9,8,8], index: 4, kind: input, shape index: {}]
  %s5 = inlined_call_operand.vmem [shape: f32[1,8], index: 5, kind: input, shape index: {}]
  %s6 = inlined_call_operand.vmem [shape: f32[1,8], index: 6, kind: input, shape index: {}]
  %s7 = inlined_call_operand.vmem [shape: bf16[8,16], index: 7, kind: input, shape index: {}]
  %s8 = inlined_call_operand.vmem [shape: f32[1,16], index: 8, kind: input, shape index: {}]
  %s9 = inlined_call_operand.vmem [shape: f32[1,16], index: 9, kind: input, shape index: {}]
  %s10 = inlined_call_operand.vmem [shape: bf16[8,16], index: 10, kind: input, shape index: {}]
  %s11 = inlined_call_operand.vmem [shape: f32[1,16], index: 11, kind: input, shape index: {}]
  %s12 = inlined_call_operand.vmem [shape: f32[1,16], index: 12, kind: input, shape index: {}]
  %s13 = inlined_call_operand.hbm [shape: f32[2,8,8,16], index: 13, kind: output, shape index: {}]
  %s14 = sld [smem:[#allocation0]]
  $region85: #{tpu_custom_call.1} parent=0
    _
  %s16 = ssub.s32 1, %s14
  %s17 = scalar_select 0, %s16, %s14
  $region1: #{tpu_custom_call.1} parent=0
    #allocation3 [shape = 'u8[65536]{0}', space=vmem, size = 0x10000, scoped, tag = 'output window, operand 0']
    #allocation4 [shape = 's32[2]{0}', space=sflag, size = 0x8, scoped, tag = 'scoped memory for tpu_custom_call.1']
    %18 = vsyncpa [#allocation4], 0
    %s19 = scalar_lea.sflag [#allocation4], 1
    %20 = vsyncpa %s19, 0
    loop: start=0, step=1, limit=4
    $region2: #{tpu_custom_call.1} parent=1 // loop_pre_header
      _
    $region3: #{tpu_custom_call.1} parent=1 // loop_header
      %s22 = sphi 0, %s26
      %p23 = scmp.ge.s32.totalorder %s22, 4
      %s32 = sphi 0, %s34
      %s35 = sphi 0, %s32
      %s36 = sphi 0, %s35
      %s52 = sphi 0, %s36
      %s56 = sphi 0, %s56
      %s58 = sphi 0, %s56
      %s59 = sphi 0, %s58
      %s73 = sphi 0, %s59
      %s77 = sphi 0, %s77
      %s79 = sphi 0, %s77
      %s80 = sphi 0, %s79
      %s94 = sphi 0, %s80
      %s98 = sphi 0, %s98
      %s100 = sphi 0, %s98
      %s101 = sphi 0, %s100
      %s115 = sphi 0, %s101
      %s119 = sphi 0, %s119
      %s121 = sphi 0, %s119
      %s122 = sphi 0, %s121
      %s136 = sphi 0, %s122
      %s140 = sphi 0, %s140
      %s142 = sphi 0, %s140
      %s143 = sphi 0, %s142
      %s157 = sphi 0, %s143
      %s161 = sphi 0, %s161
      %s163 = sphi 0, %s161
      %s164 = sphi 0, %s163
      %s178 = sphi 0, %s164
      %s182 = sphi 0, %s182
      %s184 = sphi 0, %s182
      %s185 = sphi 0, %s184
      %s199 = sphi 0, %s185
      %s203 = sphi 0, %s203
      %s205 = sphi 0, %s203
      %s206 = sphi 0, %s205
      %s220 = sphi 0, %s206
      %s224 = sphi 0, %s224
      %s226 = sphi 0, %s224
      %s227 = sphi 0, %s226
      %s241 = sphi 0, %s227
      %s245 = sphi 0, %s245
      %s247 = sphi 0, %s245
      %s248 = sphi 0, %s247
      %s262 = sphi 0, %s248
      %s266 = sphi 0, %s266
      %s268 = sphi 0, %s266
      %s269 = sphi 0, %s268
      %s283 = sphi 0, %s269
      %s287 = sphi 0, %s287
      %s289 = sphi 0, %s287
      %s290 = sphi 0, %s289
      %s304 = sphi 0, %s290
      %s310 = sphi 0, %s312
      %s313 = sphi 0, %s310
      %s314 = sphi 0, %s313
      %s330 = sphi 0, %s314
    $region4: #{tpu_custom_call.1} parent=1 // loop_header_branch
      %25 = sbr.rel (%p23) target = $region8
    $region5: #{tpu_custom_call.1} parent=1 // loop_body
      %s27 = ssub.s32 %s22, 1
      %s28 = ssub.s32 %s22, 2
      %s29 = sadd.s32 %s22, 1
      %s30 = ssub.s32 %s22, %s29
      %p31 = scmp.eq.s32.totalorder %s30, 0
      %s33 = sadd.s32 %s32, 1
      %s34 = scalar_select %p31, %s32, %s33
      %p37 = pneg %p31
      %p38 = scmp.eq.s32.totalorder %s22, 1
      %p39 = por %p37, %p38
      %p40 = scmp.ne.s32.totalorder %s32, %s35
      %p41 = scmp.eq.s32.totalorder %s22, 0
      %p42 = por %p40, %p41
      %p43 = scmp.ne.s32.totalorder %s32, %s35
      %p44 = scmp.eq.s32.totalorder %s27, 1
      %p45 = por %p43, %p44
      %p46 = scmp.ne.s32.totalorder %s35, %s36
      %p47 = scmp.eq.s32.totalorder %s27, 0
      %p48 = por %p46, %p47
      %p49 = scmp.ne.s32.totalorder %s35, %s36
      %p50 = scmp.eq.s32.totalorder %s28, 1
      %p51 = por %p49, %p50
      %p53 = scmp.ne.s32.totalorder %s36, %s52
      %p54 = scmp.eq.s32.totalorder %s28, 0
      %p55 = por %p53, %p54
      %s57 = sadd.s32 %s56, 1
      %p60 = scmp.eq.s32.totalorder %s22, 1
      %p61 = scmp.ne.s32.totalorder %s56, %s58
      %p62 = scmp.eq.s32.totalorder %s22, 0
      %p63 = por %p61, %p62
      %p64 = scmp.ne.s32.totalorder %s56, %s58
      %p65 = scmp.eq.s32.totalorder %s27, 1
      %p66 = por %p64, %p65
      %p67 = scmp.ne.s32.totalorder %s58, %s59
      %p68 = scmp.eq.s32.totalorder %s27, 0
      %p69 = por %p67, %p68
      %p70 = scmp.ne.s32.totalorder %s58, %s59
      %p71 = scmp.eq.s32.totalorder %s28, 1
      %p72 = por %p70, %p71
      %p74 = scmp.ne.s32.totalorder %s59, %s73
      %p75 = scmp.eq.s32.totalorder %s28, 0
      %p76 = por %p74, %p75
      %s78 = sadd.s32 %s77, 1
      %p81 = scmp.eq.s32.totalorder %s22, 1
      %p82 = scmp.ne.s32.totalorder %s77, %s79
      %p83 = scmp.eq.s32.totalorder %s22, 0
      %p84 = por %p82, %p83
      %p85 = scmp.ne.s32.totalorder %s77, %s79
      %p86 = scmp.eq.s32.totalorder %s27, 1
      %p87 = por %p85, %p86
      %p88 = scmp.ne.s32.totalorder %s79, %s80
      %p89 = scmp.eq.s32.totalorder %s27, 0
      %p90 = por %p88, %p89
      %p91 = scmp.ne.s32.totalorder %s79, %s80
      %p92 = scmp.eq.s32.totalorder %s28, 1
      %p93 = por %p91, %p92
      %p95 = scmp.ne.s32.totalorder %s80, %s94
      %p96 = scmp.eq.s32.totalorder %s28, 0
      %p97 = por %p95, %p96
      %s99 = sadd.s32 %s98, 1
      %p102 = scmp.eq.s32.totalorder %s22, 1
      %p103 = scmp.ne.s32.totalorder %s98, %s100
      %p104 = scmp.eq.s32.totalorder %s22, 0
      %p105 = por %p103, %p104
      %p106 = scmp.ne.s32.totalorder %s98, %s100
      %p107 = scmp.eq.s32.totalorder %s27, 1
      %p108 = por %p106, %p107
      %p109 = scmp.ne.s32.totalorder %s100, %s101
      %p110 = scmp.eq.s32.totalorder %s27, 0
      %p111 = por %p109, %p110
      %p112 = scmp.ne.s32.totalorder %s100, %s101
      %p113 = scmp.eq.s32.totalorder %s28, 1
      %p114 = por %p112, %p113
      %p116 = scmp.ne.s32.totalorder %s101, %s115
      %p117 = scmp.eq.s32.totalorder %s28, 0
      %p118 = por %p116, %p117
      %s120 = sadd.s32 %s119, 1
      %p123 = scmp.eq.s32.totalorder %s22, 1
      %p124 = scmp.ne.s32.totalorder %s119, %s121
      %p125 = scmp.eq.s32.totalorder %s22, 0
      %p126 = por %p124, %p125
      %p127 = scmp.ne.s32.totalorder %s119, %s121
      %p128 = scmp.eq.s32.totalorder %s27, 1
      %p129 = por %p127, %p128
      %p130 = scmp.ne.s32.totalorder %s121, %s122
      %p131 = scmp.eq.s32.totalorder %s27, 0
      %p132 = por %p130, %p131
      %p133 = scmp.ne.s32.totalorder %s121, %s122
      %p134 = scmp.eq.s32.totalorder %s28, 1
      %p135 = por %p133, %p134
      %p137 = scmp.ne.s32.totalorder %s122, %s136
      %p138 = scmp.eq.s32.totalorder %s28, 0
      %p139 = por %p137, %p138
      %s141 = sadd.s32 %s140, 1
      %p144 = scmp.eq.s32.totalorder %s22, 1
      %p145 = scmp.ne.s32.totalorder %s140, %s142
      %p146 = scmp.eq.s32.totalorder %s22, 0
      %p147 = por %p145, %p146
      %p148 = scmp.ne.s32.totalorder %s140, %s142
      %p149 = scmp.eq.s32.totalorder %s27, 1
      %p150 = por %p148, %p149
      %p151 = scmp.ne.s32.totalorder %s142, %s143
      %p152 = scmp.eq.s32.totalorder %s27, 0
      %p153 = por %p151, %p152
      %p154 = scmp.ne.s32.totalorder %s142, %s143
      %p155 = scmp.eq.s32.totalorder %s28, 1
      %p156 = por %p154, %p155
      %p158 = scmp.ne.s32.totalorder %s143, %s157
      %p159 = scmp.eq.s32.totalorder %s28, 0
      %p160 = por %p158, %p159
      %s162 = sadd.s32 %s161, 1
      %p165 = scmp.eq.s32.totalorder %s22, 1
      %p166 = scmp.ne.s32.totalorder %s161, %s163
      %p167 = scmp.eq.s32.totalorder %s22, 0
      %p168 = por %p166, %p167
      %p169 = scmp.ne.s32.totalorder %s161, %s163
      %p170 = scmp.eq.s32.totalorder %s27, 1
      %p171 = por %p169, %p170
      %p172 = scmp.ne.s32.totalorder %s163, %s164
      %p173 = scmp.eq.s32.totalorder %s27, 0
      %p174 = por %p172, %p173
      %p175 = scmp.ne.s32.totalorder %s163, %s164
      %p176 = scmp.eq.s32.totalorder %s28, 1
      %p177 = por %p175, %p176
      %p179 = scmp.ne.s32.totalorder %s164, %s178
      %p180 = scmp.eq.s32.totalorder %s28, 0
      %p181 = por %p179, %p180
      %s183 = sadd.s32 %s182, 1
      %p186 = scmp.eq.s32.totalorder %s22, 1
      %p187 = scmp.ne.s32.totalorder %s182, %s184
      %p188 = scmp.eq.s32.totalorder %s22, 0
      %p189 = por %p187, %p188
      %p190 = scmp.ne.s32.totalorder %s182, %s184
      %p191 = scmp.eq.s32.totalorder %s27, 1
      %p192 = por %p190, %p191
      %p193 = scmp.ne.s32.totalorder %s184, %s185
      %p194 = scmp.eq.s32.totalorder %s27, 0
      %p195 = por %p193, %p194
      %p196 = scmp.ne.s32.totalorder %s184, %s185
      %p197 = scmp.eq.s32.totalorder %s28, 1
      %p198 = por %p196, %p197
      %p200 = scmp.ne.s32.totalorder %s185, %s199
      %p201 = scmp.eq.s32.totalorder %s28, 0
      %p202 = por %p200, %p201
      %s204 = sadd.s32 %s203, 1
      %p207 = scmp.eq.s32.totalorder %s22, 1
      %p208 = scmp.ne.s32.totalorder %s203, %s205
      %p209 = scmp.eq.s32.totalorder %s22, 0
      %p210 = por %p208, %p209
      %p211 = scmp.ne.s32.totalorder %s203, %s205
      %p212 = scmp.eq.s32.totalorder %s27, 1
      %p213 = por %p211, %p212
      %p214 = scmp.ne.s32.totalorder %s205, %s206
      %p215 = scmp.eq.s32.totalorder %s27, 0
      %p216 = por %p214, %p215
      %p217 = scmp.ne.s32.totalorder %s205, %s206
      %p218 = scmp.eq.s32.totalorder %s28, 1
      %p219 = por %p217, %p218
      %p221 = scmp.ne.s32.totalorder %s206, %s220
      %p222 = scmp.eq.s32.totalorder %s28, 0
      %p223 = por %p221, %p222
      %s225 = sadd.s32 %s224, 1
      %p228 = scmp.eq.s32.totalorder %s22, 1
      %p229 = scmp.ne.s32.totalorder %s224, %s226
      %p230 = scmp.eq.s32.totalorder %s22, 0
      %p231 = por %p229, %p230
      %p232 = scmp.ne.s32.totalorder %s224, %s226
      %p233 = scmp.eq.s32.totalorder %s27, 1
      %p234 = por %p232, %p233
      %p235 = scmp.ne.s32.totalorder %s226, %s227
      %p236 = scmp.eq.s32.totalorder %s27, 0
      %p237 = por %p235, %p236
      %p238 = scmp.ne.s32.totalorder %s226, %s227
      %p239 = scmp.eq.s32.totalorder %s28, 1
      %p240 = por %p238, %p239
      %p242 = scmp.ne.s32.totalorder %s227, %s241
      %p243 = scmp.eq.s32.totalorder %s28, 0
      %p244 = por %p242, %p243
      %s246 = sadd.s32 %s245, 1
      %p249 = scmp.eq.s32.totalorder %s22, 1
      %p250 = scmp.ne.s32.totalorder %s245, %s247
      %p251 = scmp.eq.s32.totalorder %s22, 0
      %p252 = por %p250, %p251
      %p253 = scmp.ne.s32.totalorder %s245, %s247
      %p254 = scmp.eq.s32.totalorder %s27, 1
      %p255 = por %p253, %p254
      %p256 = scmp.ne.s32.totalorder %s247, %s248
      %p257 = scmp.eq.s32.totalorder %s27, 0
      %p258 = por %p256, %p257
      %p259 = scmp.ne.s32.totalorder %s247, %s248
      %p260 = scmp.eq.s32.totalorder %s28, 1
      %p261 = por %p259, %p260
      %p263 = scmp.ne.s32.totalorder %s248, %s262
      %p264 = scmp.eq.s32.totalorder %s28, 0
      %p265 = por %p263, %p264
      %s267 = sadd.s32 %s266, 1
      %p270 = scmp.eq.s32.totalorder %s22, 1
      %p271 = scmp.ne.s32.totalorder %s266, %s268
      %p272 = scmp.eq.s32.totalorder %s22, 0
      %p273 = por %p271, %p272
      %p274 = scmp.ne.s32.totalorder %s266, %s268
      %p275 = scmp.eq.s32.totalorder %s27, 1
      %p276 = por %p274, %p275
      %p277 = scmp.ne.s32.totalorder %s268, %s269
      %p278 = scmp.eq.s32.totalorder %s27, 0
      %p279 = por %p277, %p278
      %p280 = scmp.ne.s32.totalorder %s268, %s269
      %p281 = scmp.eq.s32.totalorder %s28, 1
      %p282 = por %p280, %p281
      %p284 = scmp.ne.s32.totalorder %s269, %s283
      %p285 = scmp.eq.s32.totalorder %s28, 0
      %p286 = por %p284, %p285
      %s288 = sadd.s32 %s287, 1
      %p291 = scmp.eq.s32.totalorder %s22, 1
      %p292 = scmp.ne.s32.totalorder %s287, %s289
      %p293 = scmp.eq.s32.totalorder %s22, 0
      %p294 = por %p292, %p293
      %p295 = scmp.ne.s32.totalorder %s287, %s289
      %p296 = scmp.eq.s32.totalorder %s27, 1
      %p297 = por %p295, %p296
      %p298 = scmp.ne.s32.totalorder %s289, %s290
      %p299 = scmp.eq.s32.totalorder %s27, 0
      %p300 = por %p298, %p299
      %p301 = scmp.ne.s32.totalorder %s289, %s290
      %p302 = scmp.eq.s32.totalorder %s28, 1
      %p303 = por %p301, %p302
      %p305 = scmp.ne.s32.totalorder %s290, %s304
      %p306 = scmp.eq.s32.totalorder %s28, 0
      %p307 = por %p305, %p306
      %s308 = ssub.s32 %s22, %s29
      %p309 = scmp.eq.s32.totalorder %s308, 0
      %s311 = sadd.s32 %s310, 1
      %s312 = scalar_select %p309, %s310, %s311
      %p315 = pneg %p309
      %p316 = scmp.eq.s32.totalorder %s22, 1
      %p317 = por %p315, %p316
      %p318 = scmp.ne.s32.totalorder %s310, %s313
      %p319 = scmp.eq.s32.totalorder %s22, 0
      %p320 = por %p318, %p319
      %p321 = scmp.ne.s32.totalorder %s310, %s313
      %p322 = scmp.eq.s32.totalorder %s27, 1
      %p323 = por %p321, %p322
      %p324 = scmp.ne.s32.totalorder %s313, %s314
      %p325 = scmp.eq.s32.totalorder %s27, 0
      %p326 = por %p324, %p325
      %p327 = scmp.ne.s32.totalorder %s313, %s314
      %p328 = scmp.eq.s32.totalorder %s28, 1
      %p329 = por %p327, %p328
      %p331 = scmp.ne.s32.totalorder %s314, %s330
      %p332 = scmp.eq.s32.totalorder %s28, 0
      %p333 = por %p331, %p332
      %p334 = scmp.le.s32.totalorder 1, %s22
      %p335 = scmp.lt.s32.totalorder %s22, 3
      %p336 = pnand %p334, %p335
      %p337 = pneg %p336
      // Predicated region
      $region9: #{tpu_custom_call.1} parent=5 // pred_check
        _
      $region10: #{tpu_custom_call.1} parent=5 // pred_check_branch
        %339 = sbr.rel (%p336) target = $region12
      $region11: #{tpu_custom_call.1} parent=5 // pred_region
        %s340 = ssub.s32 %s22, 1
        // Predicated region
        $region13: #{tpu_custom_call.1} parent=11 // pred_check
          %p341 = pneg %p69
        $region14: #{tpu_custom_call.1} parent=11 // pred_check_branch
          %343 = sbr.rel (%p341) target = $region16
        $region15: #{tpu_custom_call.1} parent=11 // pred_region
          _
        $region16: #{tpu_custom_call.1} parent=11 // pred_fallthru
          _
        // Predicated region
        $region17: #{tpu_custom_call.1} parent=11 // pred_check
          %p344 = pneg %p90
        $region18: #{tpu_custom_call.1} parent=11 // pred_check_branch
          %346 = sbr.rel (%p344) target = $region20
        $region19: #{tpu_custom_call.1} parent=11 // pred_region
          _
        $region20: #{tpu_custom_call.1} parent=11 // pred_fallthru
          _
        // Predicated region
        $region21: #{tpu_custom_call.1} parent=11 // pred_check
          %p347 = pneg %p111
        $region22: #{tpu_custom_call.1} parent=11 // pred_check_branch
          %349 = sbr.rel (%p347) target = $region24
        $region23: #{tpu_custom_call.1} parent=11 // pred_region
          _
        $region24: #{tpu_custom_call.1} parent=11 // pred_fallthru
          _
        // Predicated region
        $region25: #{tpu_custom_call.1} parent=11 // pred_check
          %p350 = pneg %p132
        $region26: #{tpu_custom_call.1} parent=11 // pred_check_branch
          %352 = sbr.rel (%p350) target = $region28
        $region27: #{tpu_custom_call.1} parent=11 // pred_region
          _
        $region28: #{tpu_custom_call.1} parent=11 // pred_fallthru
          _
        // Predicated region
        $region29: #{tpu_custom_call.1} parent=11 // pred_check
          %p353 = pneg %p153
        $region30: #{tpu_custom_call.1} parent=11 // pred_check_branch
          %355 = sbr.rel (%p353) target = $region32
        $region31: #{tpu_custom_call.1} parent=11 // pred_region
          _
        $region32: #{tpu_custom_call.1} parent=11 // pred_fallthru
          _
        // Predicated region
        $region33: #{tpu_custom_call.1} parent=11 // pred_check
          %p356 = pneg %p174
        $region34: #{tpu_custom_call.1} parent=11 // pred_check_branch
          %358 = sbr.rel (%p356) target = $region36
        $region35: #{tpu_custom_call.1} parent=11 // pred_region
          _
        $region36: #{tpu_custom_call.1} parent=11 // pred_fallthru
          _
        // Predicated region
        $region37: #{tpu_custom_call.1} parent=11 // pred_check
          %p359 = pneg %p195
        $region38: #{tpu_custom_call.1} parent=11 // pred_check_branch
          %361 = sbr.rel (%p359) target = $region40
        $region39: #{tpu_custom_call.1} parent=11 // pred_region
          _
        $region40: #{tpu_custom_call.1} parent=11 // pred_fallthru
          _
        // Predicated region
        $region41: #{tpu_custom_call.1} parent=11 // pred_check
          %p362 = pneg %p216
        $region42: #{tpu_custom_call.1} parent=11 // pred_check_branch
          %364 = sbr.rel (%p362) target = $region44
        $region43: #{tpu_custom_call.1} parent=11 // pred_region
          _
        $region44: #{tpu_custom_call.1} parent=11 // pred_fallthru
          _
        // Predicated region
        $region45: #{tpu_custom_call.1} parent=11 // pred_check
          %p365 = pneg %p237
        $region46: #{tpu_custom_call.1} parent=11 // pred_check_branch
          %367 = sbr.rel (%p365) target = $region48
        $region47: #{tpu_custom_call.1} parent=11 // pred_region
          _
        $region48: #{tpu_custom_call.1} parent=11 // pred_fallthru
          _
        // Predicated region
        $region49: #{tpu_custom_call.1} parent=11 // pred_check
          %p368 = pneg %p258
        $region50: #{tpu_custom_call.1} parent=11 // pred_check_branch
          %370 = sbr.rel (%p368) target = $region52
        $region51: #{tpu_custom_call.1} parent=11 // pred_region
          _
        $region52: #{tpu_custom_call.1} parent=11 // pred_fallthru
          _
        // Predicated region
        $region53: #{tpu_custom_call.1} parent=11 // pred_check
          %p371 = pneg %p279
        $region54: #{tpu_custom_call.1} parent=11 // pred_check_branch
          %373 = sbr.rel (%p371) target = $region56
        $region55: #{tpu_custom_call.1} parent=11 // pred_region
          _
        $region56: #{tpu_custom_call.1} parent=11 // pred_fallthru
          _
        // Predicated region
        $region57: #{tpu_custom_call.1} parent=11 // pred_check
          %p374 = pneg %p300
        $region58: #{tpu_custom_call.1} parent=11 // pred_check_branch
          %376 = sbr.rel (%p374) target = $region60
        $region59: #{tpu_custom_call.1} parent=11 // pred_region
          _
        $region60: #{tpu_custom_call.1} parent=11 // pred_fallthru
          _
      $region12: #{tpu_custom_call.1} parent=5 // pred_fallthru
        _
      %p377 = scmp.lt.s32.totalorder %s22, 2
      // Predicated region
      $region61: #{tpu_custom_call.1} parent=5 // pred_check
        %p378 = pneg %p377
      $region62: #{tpu_custom_call.1} parent=5 // pred_check_branch
        %380 = sbr.rel (%p378) target = $region64
      $region63: #{tpu_custom_call.1} parent=5 // pred_region
        // Predicated region
        $region65: #{tpu_custom_call.1} parent=63 // pred_check
          %p381 = pneg %p42
        $region66: #{tpu_custom_call.1} parent=63 // pred_check_branch
          %383 = sbr.rel (%p381) target = $region68
        $region67: #{tpu_custom_call.1} parent=63 // pred_region
          %p384 = scmp.lt.s32.totalorder %s22, 1
          %s385 = scalar_select %p384, %s22, 1
          %s386 = smul.addr %s385, 32
          %s387 = smul.addr %s386, 4
          %s388 = scalar_lea.vmem %s0, %s387
        $region68: #{tpu_custom_call.1} parent=63 // pred_fallthru
          _
      $region64: #{tpu_custom_call.1} parent=5 // pred_fallthru
        _
      %p389 = scmp.le.s32.totalorder 1, %s22
      %p390 = scmp.lt.s32.totalorder %s22, 3
      %p391 = pnand %p389, %p390
      %p392 = pneg %p391
      // Predicated region
      $region69: #{tpu_custom_call.1} parent=5 // pred_check
        _
      $region70: #{tpu_custom_call.1} parent=5 // pred_check_branch
        %394 = sbr.rel (%p391) target = $region72
      $region71: #{tpu_custom_call.1} parent=5 // pred_region
        %s395 = ssub.s32 %s22, 1
        %p396 = scmp.lt.s32.totalorder %s27, 1
        %s397 = scalar_select %p396, %s27, 1
        %s398 = smul.addr %s397, 32
        %s399 = smul.addr %s398, 4
        %s400 = scalar_lea.vmem %s0, %s399
        %p401 = pneg %p48
        %p402 = pneg %p45
        %p403 = pneg %p69
        %p404 = pneg %p66
        %p405 = pneg %p90
        %p406 = pneg %p87
        %p407 = pneg %p111
        %p408 = pneg %p108
        %p409 = pneg %p132
        %p410 = pneg %p129
        %p411 = pneg %p153
        %p412 = pneg %p150
        %p413 = pneg %p174
        %p414 = pneg %p171
        %p415 = pneg %p195
        %p416 = pneg %p192
        %p417 = pneg %p216
        %p418 = pneg %p213
        %p419 = pneg %p237
        %p420 = pneg %p234
        %p421 = pneg %p258
        %p422 = pneg %p255
        %p423 = pneg %p279
        %p424 = pneg %p276
        %p425 = pneg %p300
        %p426 = pneg %p297
        %p427 = pneg %p326
        %p428 = pneg %p323
        %s429 = sand.u32 %s313, 1
        %s430 = scalar_lea.sflag [#allocation4], %s429
        %s431 = sand.u32 %s313, 1
        %s432 = smul.addr %s431, 64
        %s433 = scalar_lea.vmem [#allocation3], %s432
        %p434 = scmp.lt.s32.totalorder %s27, 1
        %s435 = scalar_select %p434, %s27, 1
        %s436 = smul.addr %s435, 32
        %s437 = smul.addr %s436, 4
        %s438 = scalar_lea.vmem %s0, %s437
        %v440 = vld [vmem:[%s438] sm:$0xf]
        %v441 = vld [vmem:[%s438 + $0x4] sm:$0xf]
        %v442 = vld [vmem:[%s438 + $0x8] sm:$0xf]
        %v443 = vld [vmem:[%s438 + $0xc] sm:$0xf]
        %v444 = vld [vmem:[%s438 + $0x10] sm:$0xf]
        %v445 = vld [vmem:[%s438 + $0x14] sm:$0xf]
        %v446 = vld [vmem:[%s438 + $0x18] sm:$0xf]
        %v447 = vld [vmem:[%s438 + $0x1c] sm:$0xf]
        %v448 = vld [vmem:[%s438 + $0x20] sm:$0xf]
        %v449 = vld [vmem:[%s438 + $0x24] sm:$0xf]
        %v450 = vld [vmem:[%s438 + $0x28] sm:$0xf]
        %v451 = vld [vmem:[%s438 + $0x2c] sm:$0xf]
        %v452 = vld [vmem:[%s438 + $0x30] sm:$0xf]
        %v453 = vld [vmem:[%s438 + $0x34] sm:$0xf]
        %v454 = vld [vmem:[%s438 + $0x38] sm:$0xf]
        %v455 = vld [vmem:[%s438 + $0x3c] sm:$0xf]
        %v456 = vld [vmem:[%s438 + $0x40] sm:$0xf]
        %v457 = vld [vmem:[%s438 + $0x44] sm:$0xf]
        %v458 = vld [vmem:[%s438 + $0x48] sm:$0xf]
        %v459 = vld [vmem:[%s438 + $0x4c] sm:$0xf]
        %v460 = vld [vmem:[%s438 + $0x50] sm:$0xf]
        %v461 = vld [vmem:[%s438 + $0x54] sm:$0xf]
        %v462 = vld [vmem:[%s438 + $0x58] sm:$0xf]
        %v463 = vld [vmem:[%s438 + $0x5c] sm:$0xf]
        %v464 = vld [vmem:[%s438 + $0x60] sm:$0xf]
        %v465 = vld [vmem:[%s438 + $0x64] sm:$0xf]
        %v466 = vld [vmem:[%s438 + $0x68] sm:$0xf]
        %v467 = vld [vmem:[%s438 + $0x6c] sm:$0xf]
        %v468 = vld [vmem:[%s438 + $0x70] sm:$0xf]
        %v469 = vld [vmem:[%s438 + $0x74] sm:$0xf]
        %v470 = vld [vmem:[%s438 + $0x78] sm:$0xf]
        %v471 = vld [vmem:[%s438 + $0x7c] sm:$0xf]
        %v472 = vld [vmem:[%s1] sm:$0xf]
        %v505 = vunpack.c.l.b16 %v440
        %v506 = vunpack.c.l.b16 %v441
        %v507 = vunpack.c.l.b16 %v442
        %v508 = vunpack.c.l.b16 %v443
        %v509 = vunpack.c.l.b16 %v444
        %v510 = vunpack.c.l.b16 %v445
        %v511 = vunpack.c.l.b16 %v446
        %v512 = vunpack.c.l.b16 %v447
        %v513 = vunpack.c.l.b16 %v448
        %v514 = vunpack.c.l.b16 %v449
        %v515 = vunpack.c.l.b16 %v450
        %v516 = vunpack.c.l.b16 %v451
        %v517 = vunpack.c.l.b16 %v452
        %v518 = vunpack.c.l.b16 %v453
        %v519 = vunpack.c.l.b16 %v454
        %v520 = vunpack.c.l.b16 %v455
        %v521 = vunpack.c.l.b16 %v456
        %v522 = vunpack.c.l.b16 %v457
        %v523 = vunpack.c.l.b16 %v458
        %v524 = vunpack.c.l.b16 %v459
        %v525 = vunpack.c.l.b16 %v460
        %v526 = vunpack.c.l.b16 %v461
        %v527 = vunpack.c.l.b16 %v462
        %v528 = vunpack.c.l.b16 %v463
        %v529 = vunpack.c.l.b16 %v464
        %v530 = vunpack.c.l.b16 %v465
        %v531 = vunpack.c.l.b16 %v466
        %v532 = vunpack.c.l.b16 %v467
        %v533 = vunpack.c.l.b16 %v468
        %v534 = vunpack.c.l.b16 %v469
        %v535 = vunpack.c.l.b16 %v470
        %v536 = vunpack.c.l.b16 %v471
        %v537 = vpack.c.b16 %v506, %v505
        %v538 = vpack.c.b16 %v508, %v507
        %v539 = vpack.c.b16 %v510, %v509
        %v540 = vpack.c.b16 %v512, %v511
        %v541 = vpack.c.b16 %v514, %v513
        %v542 = vpack.c.b16 %v516, %v515
        %v543 = vpack.c.b16 %v518, %v517
        %v544 = vpack.c.b16 %v520, %v519
        %v545 = vpack.c.b16 %v522, %v521
        %v546 = vpack.c.b16 %v524, %v523
        %v547 = vpack.c.b16 %v526, %v525
        %v548 = vpack.c.b16 %v528, %v527
        %v549 = vpack.c.b16 %v530, %v529
        %v550 = vpack.c.b16 %v532, %v531
        %v551 = vpack.c.b16 %v534, %v533
        %v552 = vpack.c.b16 %v536, %v535
        %vm553 = vcmask 64512
        %v555 = vsel %vm553, %v537, 0
        %v558 = vsel %vm553, %v538, 0
        %v561 = vsel %vm553, %v539, 0
        %v564 = vsel %vm553, %v540, 0
        %v567 = vsel %vm553, %v541, 0
        %v570 = vsel %vm553, %v542, 0
        %v573 = vsel %vm553, %v543, 0
        %v576 = vsel %vm553, %v544, 0
        %v579 = vsel %vm553, %v545, 0
        %v582 = vsel %vm553, %v546, 0
        %v585 = vsel %vm553, %v547, 0
        %v588 = vsel %vm553, %v548, 0
        %v591 = vsel %vm553, %v549, 0
        %v594 = vsel %vm553, %v550, 0
        %v597 = vsel %vm553, %v551, 0
        %v600 = vsel %vm553, %v552, 0
        %vm602 = vcmask 1043456
        %v604 = vsel %vm602, %v472, 0
        %606 = vmatprep.subr.bf16.mxu0 0
        %607 = vmatpush1.bf16.msra.mxu0 %v604
        %608 = vmatprep.subr.bf16.mxu0 0
        %609 = vmatpush1.bf16.msra.mxu0 0
        %610 = vmatprep.subr.bf16.mxu0 0
        %611 = vmatpush1.bf16.msra.mxu0 0
        %612 = vmatprep.subr.bf16.mxu0 0
        %613 = vmatpush1.bf16.msra.mxu0 0
        %614 = vmatprep.subr.bf16.mxu0 0
        %615 = vmatpush1.bf16.msra.mxu0 0
        %616 = vmatprep.subr.bf16.mxu0 0
        %617 = vmatpush1.bf16.msra.mxu0 0
        %618 = vmatprep.subr.bf16.mxu0 0
        %619 = vmatpush1.bf16.msra.mxu0 0
        %620 = vmatprep.subr.bf16.mxu0 0
        %621 = vmatpush1.bf16.msra.mxu0 0
        %622 = vmatprep.subr.bf16.mxu0 0
        %623 = vmatpush1.bf16.msra.mxu0 0
        %624 = vmatprep.subr.bf16.mxu0 0
        %625 = vmatpush1.bf16.msra.mxu0 0
        %626 = vmatprep.subr.bf16.mxu0 0
        %627 = vmatpush1.bf16.msra.mxu0 0
        %628 = vmatprep.subr.bf16.mxu0 0
        %629 = vmatpush1.bf16.msra.mxu0 0
        %630 = vmatprep.subr.bf16.mxu0 0
        %631 = vmatpush1.bf16.msra.mxu0 0
        %632 = vmatprep.subr.bf16.mxu0 0
        %633 = vmatpush1.bf16.msra.mxu0 0
        %634 = vmatprep.subr.bf16.mxu0 0
        %635 = vmatpush1.bf16.msra.mxu0 0
        %636 = vmatprep.subr.bf16.mxu0 0
        %637 = vmatpush1.bf16.msra.mxu0 0
        %638 = vmatprep.mubr.bf16.mxu0 0
        %639 = vmatmul.mubr.bf16.gmra.mrb[0].mxu0 %v555
        %v640 = vpop.f32.mrb[0].mxu0
        %v641 = vadd.f32 0.0, %v640
        %v642 = vpop.f32.mrb[0].mxu0
        %v643 = vpop.f32.mrb[0].mxu0
        %v644 = vadd.f32 0.0, %v643
        %v645 = vpop.f32.mrb[0].mxu0
        %646 = vmatprep.mubr.bf16.mxu0 0
        %647 = vmatmul.mubr.bf16.gmra.mrb[0].mxu0 %v558
        %v648 = vpop.f32.mrb[0].mxu0
        %v649 = vadd.f32 0.0, %v648
        %v650 = vpop.f32.mrb[0].mxu0
        %v651 = vpop.f32.mrb[0].mxu0
        %v652 = vadd.f32 0.0, %v651
        %v653 = vpop.f32.mrb[0].mxu0
        %654 = vmatprep.mubr.bf16.mxu0 0
        %655 = vmatmul.mubr.bf16.gmra.mrb[0].mxu0 %v561
        %v656 = vpop.f32.mrb[0].mxu0
        %v657 = vadd.f32 0.0, %v656
        %v658 = vpop.f32.mrb[0].mxu0
        %v659 = vpop.f32.mrb[0].mxu0
        %v660 = vadd.f32 0.0, %v659
        %v661 = vpop.f32.mrb[0].mxu0
        %662 = vmatprep.mubr.bf16.mxu0 0
        %663 = vmatmul.mubr.bf16.gmra.mrb[0].mxu0 %v564
        %v664 = vpop.f32.mrb[0].mxu0
        %v665 = vadd.f32 0.0, %v664
        %v666 = vpop.f32.mrb[0].mxu0
        %v667 = vpop.f32.mrb[0].mxu0
        %v668 = vadd.f32 0.0, %v667
        %v669 = vpop.f32.mrb[0].mxu0
        %670 = vmatprep.mubr.bf16.mxu0 0
        %671 = vmatmul.mubr.bf16.gmra.mrb[0].mxu0 %v567
        %v672 = vpop.f32.mrb[0].mxu0
        %v673 = vadd.f32 0.0, %v672
        %v674 = vpop.f32.mrb[0].mxu0
        %v675 = vpop.f32.mrb[0].mxu0
        %v676 = vadd.f32 0.0, %v675
        %v677 = vpop.f32.mrb[0].mxu0
        %678 = vmatprep.mubr.bf16.mxu0 0
        %679 = vmatmul.mubr.bf16.gmra.mrb[0].mxu0 %v570
        %v680 = vpop.f32.mrb[0].mxu0
        %v681 = vadd.f32 0.0, %v680
        %v682 = vpop.f32.mrb[0].mxu0
        %v683 = vpop.f32.mrb[0].mxu0
        %v684 = vadd.f32 0.0, %v683
        %v685 = vpop.f32.mrb[0].mxu0
        %686 = vmatprep.mubr.bf16.mxu0 0
        %687 = vmatmul.mubr.bf16.gmra.mrb[0].mxu0 %v573
        %v688 = vpop.f32.mrb[0].mxu0
        %v689 = vadd.f32 0.0, %v688
        %v690 = vpop.f32.mrb[0].mxu0
        %v691 = vpop.f32.mrb[0].mxu0
        %v692 = vadd.f32 0.0, %v691
        %v693 = vpop.f32.mrb[0].mxu0
        %694 = vmatprep.mubr.bf16.mxu0 0
        %695 = vmatmul.mubr.bf16.gmra.mrb[0].mxu0 %v576
        %v696 = vpop.f32.mrb[0].mxu0
        %v697 = vadd.f32 0.0, %v696
        %v698 = vpop.f32.mrb[0].mxu0
        %v699 = vpop.f32.mrb[0].mxu0
        %v700 = vadd.f32 0.0, %v699
        %v701 = vpop.f32.mrb[0].mxu0
        %702 = vmatprep.mubr.bf16.mxu0 0
        %703 = vmatmul.mubr.bf16.gmra.mrb[0].mxu0 %v579
        %v704 = vpop.f32.mrb[0].mxu0
        %v705 = vadd.f32 0.0, %v704
        %v706 = vpop.f32.mrb[0].mxu0
        %v707 = vpop.f32.mrb[0].mxu0
        %v708 = vadd.f32 0.0, %v707
        %v709 = vpop.f32.mrb[0].mxu0
        %710 = vmatprep.mubr.bf16.mxu0 0
        %711 = vmatmul.mubr.bf16.gmra.mrb[0].mxu0 %v582
        %v712 = vpop.f32.mrb[0].mxu0
        %v713 = vadd.f32 0.0, %v712
        %v714 = vpop.f32.mrb[0].mxu0
        %v715 = vpop.f32.mrb[0].mxu0
        %v716 = vadd.f32 0.0, %v715
        %v717 = vpop.f32.mrb[0].mxu0
        %718 = vmatprep.mubr.bf16.mxu0 0
        %719 = vmatmul.mubr.bf16.gmra.mrb[0].mxu0 %v585
        %v720 = vpop.f32.mrb[0].mxu0
        %v721 = vadd.f32 0.0, %v720
        %v722 = vpop.f32.mrb[0].mxu0
        %v723 = vpop.f32.mrb[0].mxu0
        %v724 = vadd.f32 0.0, %v723
        %v725 = vpop.f32.mrb[0].mxu0
        %726 = vmatprep.mubr.bf16.mxu0 0
        %727 = vmatmul.mubr.bf16.gmra.mrb[0].mxu0 %v588
        %v728 = vpop.f32.mrb[0].mxu0
        %v729 = vadd.f32 0.0, %v728
        %v730 = vpop.f32.mrb[0].mxu0
        %v731 = vpop.f32.mrb[0].mxu0
        %v732 = vadd.f32 0.0, %v731
        %v733 = vpop.f32.mrb[0].mxu0
        %734 = vmatprep.mubr.bf16.mxu0 0
        %735 = vmatmul.mubr.bf16.gmra.mrb[0].mxu0 %v591
        %v736 = vpop.f32.mrb[0].mxu0
        %v737 = vadd.f32 0.0, %v736
        %v738 = vpop.f32.mrb[0].mxu0
        %v739 = vpop.f32.mrb[0].mxu0
        %v740 = vadd.f32 0.0, %v739
        %v741 = vpop.f32.mrb[0].mxu0
        %742 = vmatprep.mubr.bf16.mxu0 0
        %743 = vmatmul.mubr.bf16.gmra.mrb[0].mxu0 %v594
        %v744 = vpop.f32.mrb[0].mxu0
        %v745 = vadd.f32 0.0, %v744
        %v746 = vpop.f32.mrb[0].mxu0
        %v747 = vpop.f32.mrb[0].mxu0
        %v748 = vadd.f32 0.0, %v747
        %v749 = vpop.f32.mrb[0].mxu0
        %750 = vmatprep.mubr.bf16.mxu0 0
        %751 = vmatmul.mubr.bf16.gmra.mrb[0].mxu0 %v597
        %v752 = vpop.f32.mrb[0].mxu0
        %v753 = vadd.f32 0.0, %v752
        %v754 = vpop.f32.mrb[0].mxu0
        %v755 = vpop.f32.mrb[0].mxu0
        %v756 = vadd.f32 0.0, %v755
        %v757 = vpop.f32.mrb[0].mxu0
        %758 = vmatprep.mubr.bf16.mxu0 0
        %759 = vmatmul.mubr.bf16.gmra.mrb[0].mxu0 %v600
        %v760 = vpop.f32.mrb[0].mxu0
        %v761 = vadd.f32 0.0, %v760
        %v762 = vpop.f32.mrb[0].mxu0
        %v763 = vpop.f32.mrb[0].mxu0
        %v764 = vadd.f32 0.0, %v763
        %v765 = vpop.f32.mrb[0].mxu0
        %766 = vdwg.mxu0
        %v767 = vld [vmem:[%s2] sm:$0x1]
        %v769 = vlaneseq
        %v770 = vshrl.u32 %v769, 7
        %v771 = vsub.s32 0, %v770
        %v772 = vrot.slane %v767, %v771
        %v774 = vmul.f32 %v641, %v772
        %v775 = vmul.f32 %v644, %v772
        %v776 = vmul.f32 %v649, %v772
        %v777 = vmul.f32 %v652, %v772
        %v778 = vmul.f32 %v657, %v772
        %v779 = vmul.f32 %v660, %v772
        %v780 = vmul.f32 %v665, %v772
        %v781 = vmul.f32 %v668, %v772
        %v782 = vmul.f32 %v673, %v772
        %v783 = vmul.f32 %v676, %v772
        %v784 = vmul.f32 %v681, %v772
        %v785 = vmul.f32 %v684, %v772
        %v786 = vmul.f32 %v689, %v772
        %v787 = vmul.f32 %v692, %v772
        %v788 = vmul.f32 %v697, %v772
        %v789 = vmul.f32 %v700, %v772
        %v790 = vmul.f32 %v705, %v772
        %v791 = vmul.f32 %v708, %v772
        %v792 = vmul.f32 %v713, %v772
        %v793 = vmul.f32 %v716, %v772
        %v794 = vmul.f32 %v721, %v772
        %v795 = vmul.f32 %v724, %v772
        %v796 = vmul.f32 %v729, %v772
        %v797 = vmul.f32 %v732, %v772
        %v798 = vmul.f32 %v737, %v772
        %v799 = vmul.f32 %v740, %v772
        %v800 = vmul.f32 %v745, %v772
        %v801 = vmul.f32 %v748, %v772
        %v802 = vmul.f32 %v753, %v772
        %v803 = vmul.f32 %v756, %v772
        %v804 = vmul.f32 %v761, %v772
        %v805 = vmul.f32 %v764, %v772
        %v806 = vld [vmem:[%s3] sm:$0x1]
        %v808 = vlaneseq
        %v809 = vshrl.u32 %v808, 7
        %v810 = vsub.s32 0, %v809
        %v811 = vrot.slane %v806, %v810
        %v813 = vadd.f32 %v774, %v811
        %v814 = vadd.f32 %v775, %v811
        %v815 = vadd.f32 %v776, %v811
        %v816 = vadd.f32 %v777, %v811
        %v817 = vadd.f32 %v778, %v811
        %v818 = vadd.f32 %v779, %v811
        %v819 = vadd.f32 %v780, %v811
        %v820 = vadd.f32 %v781, %v811
        %v821 = vadd.f32 %v782, %v811
        %v822 = vadd.f32 %v783, %v811
        %v823 = vadd.f32 %v784, %v811
        %v824 = vadd.f32 %v785, %v811
        %v825 = vadd.f32 %v786, %v811
        %v826 = vadd.f32 %v787, %v811
        %v827 = vadd.f32 %v788, %v811
        %v828 = vadd.f32 %v789, %v811
        %v829 = vadd.f32 %v790, %v811
        %v830 = vadd.f32 %v791, %v811
        %v831 = vadd.f32 %v792, %v811
        %v832 = vadd.f32 %v793, %v811
        %v833 = vadd.f32 %v794, %v811
        %v834 = vadd.f32 %v795, %v811
        %v835 = vadd.f32 %v796, %v811
        %v836 = vadd.f32 %v797, %v811
        %v837 = vadd.f32 %v798, %v811
        %v838 = vadd.f32 %v799, %v811
        %v839 = vadd.f32 %v800, %v811
        %v840 = vadd.f32 %v801, %v811
        %v841 = vadd.f32 %v802, %v811
        %v842 = vadd.f32 %v803, %v811
        %v843 = vadd.f32 %v804, %v811
        %v844 = vadd.f32 %v805, %v811
        %v845 = vmax.f32 %v813, 0.0
        %v846 = vmax.f32 %v814, 0.0
        %v847 = vmax.f32 %v815, 0.0
        %v848 = vmax.f32 %v816, 0.0
        %v849 = vmax.f32 %v817, 0.0
        %v850 = vmax.f32 %v818, 0.0
        %v851 = vmax.f32 %v819, 0.0
        %v852 = vmax.f32 %v820, 0.0
        %v853 = vmax.f32 %v821, 0.0
        %v854 = vmax.f32 %v822, 0.0
        %v855 = vmax.f32 %v823, 0.0
        %v856 = vmax.f32 %v824, 0.0
        %v857 = vmax.f32 %v825, 0.0
        %v858 = vmax.f32 %v826, 0.0
        %v859 = vmax.f32 %v827, 0.0
        %v860 = vmax.f32 %v828, 0.0
        %v861 = vmax.f32 %v829, 0.0
        %v862 = vmax.f32 %v830, 0.0
        %v863 = vmax.f32 %v831, 0.0
        %v864 = vmax.f32 %v832, 0.0
        %v865 = vmax.f32 %v833, 0.0
        %v866 = vmax.f32 %v834, 0.0
        %v867 = vmax.f32 %v835, 0.0
        %v868 = vmax.f32 %v836, 0.0
        %v869 = vmax.f32 %v837, 0.0
        %v870 = vmax.f32 %v838, 0.0
        %v871 = vmax.f32 %v839, 0.0
        %v872 = vmax.f32 %v840, 0.0
        %v873 = vmax.f32 %v841, 0.0
        %v874 = vmax.f32 %v842, 0.0
        %v875 = vmax.f32 %v843, 0.0
        %v876 = vmax.f32 %v844, 0.0
        %v877 = vpack.c.bf16 %v846, %v845
        %v878 = vpack.c.bf16 %v848, %v847
        %v879 = vpack.c.bf16 %v850, %v849
        %v880 = vpack.c.bf16 %v852, %v851
        %v881 = vpack.c.bf16 %v854, %v853
        %v882 = vpack.c.bf16 %v856, %v855
        %v883 = vpack.c.bf16 %v858, %v857
        %v884 = vpack.c.bf16 %v860, %v859
        %v885 = vpack.c.bf16 %v862, %v861
        %v886 = vpack.c.bf16 %v864, %v863
        %v887 = vpack.c.bf16 %v866, %v865
        %v888 = vpack.c.bf16 %v868, %v867
        %v889 = vpack.c.bf16 %v870, %v869
        %v890 = vpack.c.bf16 %v872, %v871
        %v891 = vpack.c.bf16 %v874, %v873
        %v892 = vpack.c.bf16 %v876, %v875
        %vm893 = vcmask 60416
        %894 = vst.msk [vmem:[#allocation2] sm:$0xf] %vm893, 0
        %895 = vst.msk [vmem:[#allocation2 + $0x4] sm:$0xf] %vm893, 0
        %vm896 = vcmask 57344
        %897 = vst.msk [vmem:[#allocation2 + $0x8] sm:$0x1] %vm896, 0
        %s898 = scalar_lea.vmem [#allocation2], 204
        %899 = vst.msk [vmem:[%s898] sm:$0xf] %vm893, 0
        %900 = vst.msk [vmem:[%s898 + $0x4] sm:$0xf] %vm893, 0
        %901 = vst.msk [vmem:[%s898 + $0x8] sm:$0x1] %vm896, 0
        %vm902 = vcmask 57344
        %vm903 = vsmask.f32 256
        %vm904 = vmand %vm902, %vm903
        %v905 = vld [vmem:[#allocation2] sm:$0x1]
        %v906 = vsel %vm904, 0, %v905
        %907 = vst [vmem:[#allocation2] sm:$0x1] %v906
        %v908 = vld [vmem:[#allocation2 + $0xc] sm:$0x1]
        %v909 = vsel %vm904, 0, %v908
        %910 = vst [vmem:[#allocation2 + $0xc] sm:$0x1] %v909
        %v911 = vld [vmem:[#allocation2 + $0x18] sm:$0x1]
        %v912 = vsel %vm904, 0, %v911
        %913 = vst [vmem:[#allocation2 + $0x18] sm:$0x1] %v912
        %v914 = vld [vmem:[#allocation2 + $0x24] sm:$0x1]
        %v915 = vsel %vm904, 0, %v914
        %916 = vst [vmem:[#allocation2 + $0x24] sm:$0x1] %v915
        %v917 = vld [vmem:[#allocation2 + $0x30] sm:$0x1]
        %v918 = vsel %vm904, 0, %v917
        %919 = vst [vmem:[#allocation2 + $0x30] sm:$0x1] %v918
        %v920 = vld [vmem:[#allocation2 + $0x3c] sm:$0x1]
        %v921 = vsel %vm904, 0, %v920
        %922 = vst [vmem:[#allocation2 + $0x3c] sm:$0x1] %v921
        %v923 = vld [vmem:[#allocation2 + $0x48] sm:$0x1]
        %v924 = vsel %vm904, 0, %v923
        %925 = vst [vmem:[#allocation2 + $0x48] sm:$0x1] %v924
        %v926 = vld [vmem:[#allocation2 + $0x54] sm:$0x1]
        %v927 = vsel %vm904, 0, %v926
        %928 = vst [vmem:[#allocation2 + $0x54] sm:$0x1] %v927
        %v929 = vld [vmem:[#allocation2 + $0x60] sm:$0x1]
        %v930 = vsel %vm904, 0, %v929
        %931 = vst [vmem:[#allocation2 + $0x60] sm:$0x1] %v930
        %v932 = vld [vmem:[#allocation2 + $0x6c] sm:$0x1]
        %v933 = vsel %vm904, 0, %v932
        %934 = vst [vmem:[#allocation2 + $0x6c] sm:$0x1] %v933
        %v935 = vld [vmem:[#allocation2 + $0x78] sm:$0x1]
        %v936 = vsel %vm904, 0, %v935
        %937 = vst [vmem:[#allocation2 + $0x78] sm:$0x1] %v936
        %v938 = vld [vmem:[#allocation2 + $0x84] sm:$0x1]
        %v939 = vsel %vm904, 0, %v938
        %940 = vst [vmem:[#allocation2 + $0x84] sm:$0x1] %v939
        %v941 = vld [vmem:[#allocation2 + $0x90] sm:$0x1]
        %v942 = vsel %vm904, 0, %v941
        %943 = vst [vmem:[#allocation2 + $0x90] sm:$0x1] %v942
        %v944 = vld [vmem:[#allocation2 + $0x9c] sm:$0x1]
        %v945 = vsel %vm904, 0, %v944
        %946 = vst [vmem:[#allocation2 + $0x9c] sm:$0x1] %v945
        %v947 = vld [vmem:[#allocation2 + $0xa8] sm:$0x1]
        %v948 = vsel %vm904, 0, %v947
        %949 = vst [vmem:[#allocation2 + $0xa8] sm:$0x1] %v948
        %v950 = vld [vmem:[#allocation2 + $0xb4] sm:$0x1]
        %v951 = vsel %vm904, 0, %v950
        %952 = vst [vmem:[#allocation2 + $0xb4] sm:$0x1] %v951
        %v953 = vld [vmem:[#allocation2 + $0xc0] sm:$0x1]
        %v954 = vsel %vm904, 0, %v953
        %955 = vst [vmem:[#allocation2 + $0xc0] sm:$0x1] %v954
        %v956 = vld [vmem:[#allocation2 + $0xcc] sm:$0x1]
        %v957 = vsel %vm904, 0, %v956
        %958 = vst [vmem:[#allocation2 + $0xcc] sm:$0x1] %v957
        %vm959 = vsmask.f32 7938
        %vm960 = vmand %vm902, %vm959
        %v961 = vld [vmem:[#allocation2 + $0x8] sm:$0x1]
        %v962 = vsel %vm960, 0, %v961
        %963 = vst [vmem:[#allocation2 + $0x8] sm:$0x1] %v962
        %v964 = vld [vmem:[#allocation2 + $0x14] sm:$0x1]
        %v965 = vsel %vm960, 0, %v964
        %966 = vst [vmem:[#allocation2 + $0x14] sm:$0x1] %v965
        %v967 = vld [vmem:[#allocation2 + $0x20] sm:$0x1]
        %v968 = vsel %vm960, 0, %v967
        %969 = vst [vmem:[#allocation2 + $0x20] sm:$0x1] %v968
        %v970 = vld [vmem:[#allocation2 + $0x2c] sm:$0x1]
        %v971 = vsel %vm960, 0, %v970
        %972 = vst [vmem:[#allocation2 + $0x2c] sm:$0x1] %v971
        %v973 = vld [vmem:[#allocation2 + $0x38] sm:$0x1]
        %v974 = vsel %vm960, 0, %v973
        %975 = vst [vmem:[#allocation2 + $0x38] sm:$0x1] %v974
        %v976 = vld [vmem:[#allocation2 + $0x44] sm:$0x1]
        %v977 = vsel %vm960, 0, %v976
        %978 = vst [vmem:[#allocation2 + $0x44] sm:$0x1] %v977
        %v979 = vld [vmem:[#allocation2 + $0x50] sm:$0x1]
        %v980 = vsel %vm960, 0, %v979
        %981 = vst [vmem:[#allocation2 + $0x50] sm:$0x1] %v980
        %v982 = vld [vmem:[#allocation2 + $0x5c] sm:$0x1]
        %v983 = vsel %vm960, 0, %v982
        %984 = vst [vmem:[#allocation2 + $0x5c] sm:$0x1] %v983
        %v985 = vld [vmem:[#allocation2 + $0x68] sm:$0x1]
        %v986 = vsel %vm960, 0, %v985
        %987 = vst [vmem:[#allocation2 + $0x68] sm:$0x1] %v986
        %v988 = vld [vmem:[#allocation2 + $0x74] sm:$0x1]
        %v989 = vsel %vm960, 0, %v988
        %990 = vst [vmem:[#allocation2 + $0x74] sm:$0x1] %v989
        %v991 = vld [vmem:[#allocation2 + $0x80] sm:$0x1]
        %v992 = vsel %vm960, 0, %v991
        %993 = vst [vmem:[#allocation2 + $0x80] sm:$0x1] %v992
        %v994 = vld [vmem:[#allocation2 + $0x8c] sm:$0x1]
        %v995 = vsel %vm960, 0, %v994
        %996 = vst [vmem:[#allocation2 + $0x8c] sm:$0x1] %v995
        %v997 = vld [vmem:[#allocation2 + $0x98] sm:$0x1]
        %v998 = vsel %vm960, 0, %v997
        %999 = vst [vmem:[#allocation2 + $0x98] sm:$0x1] %v998
        %v1000 = vld [vmem:[#allocation2 + $0xa4] sm:$0x1]
        %v1001 = vsel %vm960, 0, %v1000
        %1002 = vst [vmem:[#allocation2 + $0xa4] sm:$0x1] %v1001
        %v1003 = vld [vmem:[#allocation2 + $0xb0] sm:$0x1]
        %v1004 = vsel %vm960, 0, %v1003
        %1005 = vst [vmem:[#allocation2 + $0xb0] sm:$0x1] %v1004
        %v1006 = vld [vmem:[#allocation2 + $0xbc] sm:$0x1]
        %v1007 = vsel %vm960, 0, %v1006
        %1008 = vst [vmem:[#allocation2 + $0xbc] sm:$0x1] %v1007
        %v1009 = vld [vmem:[#allocation2 + $0xc8] sm:$0x1]
        %v1010 = vsel %vm960, 0, %v1009
        %1011 = vst [vmem:[#allocation2 + $0xc8] sm:$0x1] %v1010
        %v1012 = vld [vmem:[#allocation2 + $0xd4] sm:$0x1]
        %v1013 = vsel %vm960, 0, %v1012
        %1014 = vst [vmem:[#allocation2 + $0xd4] sm:$0x1] %v1013
        %v1031 = vunpack.c.l.b16 %v877
        %v1032 = vunpack.c.h.b16 %v877
        %v1033 = vunpack.c.l.b16 %v878
        %v1034 = vunpack.c.h.b16 %v878
        %v1035 = vunpack.c.l.b16 %v879
        %v1036 = vunpack.c.h.b16 %v879
        %v1037 = vunpack.c.l.b16 %v880
        %v1038 = vunpack.c.h.b16 %v880
        %v1039 = vunpack.c.l.b16 %v881
        %v1040 = vunpack.c.h.b16 %v881
        %v1041 = vunpack.c.l.b16 %v882
        %v1042 = vunpack.c.h.b16 %v882
        %v1043 = vunpack.c.l.b16 %v883
        %v1044 = vunpack.c.h.b16 %v883
        %v1045 = vunpack.c.l.b16 %v884
        %v1046 = vunpack.c.h.b16 %v884
        %v1047 = vunpack.c.l.b16 %v885
        %v1048 = vunpack.c.h.b16 %v885
        %v1049 = vunpack.c.l.b16 %v886
        %v1050 = vunpack.c.h.b16 %v886
        %v1051 = vunpack.c.l.b16 %v887
        %v1052 = vunpack.c.h.b16 %v887
        %v1053 = vunpack.c.l.b16 %v888
        %v1054 = vunpack.c.h.b16 %v888
        %v1055 = vunpack.c.l.b16 %v889
        %v1056 = vunpack.c.h.b16 %v889
        %v1057 = vunpack.c.l.b16 %v890
        %v1058 = vunpack.c.h.b16 %v890
        %v1059 = vunpack.c.l.b16 %v891
        %v1060 = vunpack.c.h.b16 %v891
        %v1061 = vunpack.c.l.b16 %v892
        %v1062 = vunpack.c.h.b16 %v892
        %v1063 = vpack.c.b16 %v1031, %v1031
        %v1064 = vpack.c.b16 %v1032, %v1032
        %v1065 = vpack.c.b16 %v1033, %v1033
        %v1066 = vpack.c.b16 %v1034, %v1034
        %v1067 = vpack.c.b16 %v1035, %v1035
        %v1068 = vpack.c.b16 %v1036, %v1036
        %v1069 = vpack.c.b16 %v1037, %v1037
        %v1070 = vpack.c.b16 %v1038, %v1038
        %v1071 = vpack.c.b16 %v1039, %v1039
        %v1072 = vpack.c.b16 %v1040, %v1040
        %v1073 = vpack.c.b16 %v1041, %v1041
        %v1074 = vpack.c.b16 %v1042, %v1042
        %v1075 = vpack.c.b16 %v1043, %v1043
        %v1076 = vpack.c.b16 %v1044, %v1044
        %v1077 = vpack.c.b16 %v1045, %v1045
        %v1078 = vpack.c.b16 %v1046, %v1046
        %v1079 = vpack.c.b16 %v1047, %v1047
        %v1080 = vpack.c.b16 %v1048, %v1048
        %v1081 = vpack.c.b16 %v1049, %v1049
        %v1082 = vpack.c.b16 %v1050, %v1050
        %v1083 = vpack.c.b16 %v1051, %v1051
        %v1084 = vpack.c.b16 %v1052, %v1052
        %v1085 = vpack.c.b16 %v1053, %v1053
        %v1086 = vpack.c.b16 %v1054, %v1054
        %v1087 = vpack.c.b16 %v1055, %v1055
        %v1088 = vpack.c.b16 %v1056, %v1056
        %v1089 = vpack.c.b16 %v1057, %v1057
        %v1090 = vpack.c.b16 %v1058, %v1058
        %v1091 = vpack.c.b16 %v1059, %v1059
        %v1092 = vpack.c.b16 %v1060, %v1060
        %v1093 = vpack.c.b16 %v1061, %v1061
        %v1094 = vpack.c.b16 %v1062, %v1062
        %vm1095 = vsmask.f32 4368
        %vm1096 = vmor %vm903, %vm1095
        %v1098 = vshrl.u32 %v1063, 16
        %v1100 = vrot.slane %v1098, 7
        %v1101 = vshll.u32 %v1063, 16
        %v1103 = vor.u32 %v1100, %v1101
        %v1104 = vrot.slane %v1100, 4
        %v1106 = vshrl.u32 %v1064, 16
        %v1108 = vrot.slane %v1106, 7
        %v1109 = vshll.u32 %v1064, 16
        %v1111 = vor.u32 %v1108, %v1109
        %v1112 = vsel %vm1096, %v1104, %v1111
        %v1113 = vrot.slane %v1108, 4
        %v1115 = vshrl.u32 %v1065, 16
        %v1117 = vrot.slane %v1115, 7
        %v1118 = vshll.u32 %v1065, 16
        %v1120 = vor.u32 %v1117, %v1118
        %v1121 = vrot.slane %v1117, 4
        %v1123 = vshrl.u32 %v1066, 16
        %v1125 = vrot.slane %v1123, 7
        %v1126 = vshll.u32 %v1066, 16
        %v1128 = vor.u32 %v1125, %v1126
        %v1129 = vsel %vm1096, %v1121, %v1128
        %v1130 = vrot.slane %v1125, 4
        %v1132 = vshrl.u32 %v1067, 16
        %v1134 = vrot.slane %v1132, 7
        %v1135 = vshll.u32 %v1067, 16
        %v1137 = vor.u32 %v1134, %v1135
        %v1138 = vrot.slane %v1134, 4
        %v1140 = vshrl.u32 %v1068, 16
        %v1142 = vrot.slane %v1140, 7
        %v1143 = vshll.u32 %v1068, 16
        %v1145 = vor.u32 %v1142, %v1143
        %v1146 = vsel %vm1096, %v1138, %v1145
        %v1147 = vrot.slane %v1142, 4
        %v1149 = vshrl.u32 %v1069, 16
        %v1151 = vrot.slane %v1149, 7
        %v1152 = vshll.u32 %v1069, 16
        %v1154 = vor.u32 %v1151, %v1152
        %v1155 = vrot.slane %v1151, 4
        %v1157 = vshrl.u32 %v1070, 16
        %v1159 = vrot.slane %v1157, 7
        %v1160 = vshll.u32 %v1070, 16
        %v1162 = vor.u32 %v1159, %v1160
        %v1163 = vsel %vm1096, %v1155, %v1162
        %v1164 = vrot.slane %v1159, 4
        %v1166 = vshrl.u32 %v1071, 16
        %v1168 = vrot.slane %v1166, 7
        %v1169 = vshll.u32 %v1071, 16
        %v1171 = vor.u32 %v1168, %v1169
        %v1172 = vrot.slane %v1168, 4
        %v1174 = vshrl.u32 %v1072, 16
        %v1176 = vrot.slane %v1174, 7
        %v1177 = vshll.u32 %v1072, 16
        %v1179 = vor.u32 %v1176, %v1177
        %v1180 = vsel %vm1096, %v1172, %v1179
        %v1181 = vrot.slane %v1176, 4
        %v1183 = vshrl.u32 %v1073, 16
        %v1185 = vrot.slane %v1183, 7
        %v1186 = vshll.u32 %v1073, 16
        %v1188 = vor.u32 %v1185, %v1186
        %v1189 = vrot.slane %v1185, 4
        %v1191 = vshrl.u32 %v1074, 16
        %v1193 = vrot.slane %v1191, 7
        %v1194 = vshll.u32 %v1074, 16
        %v1196 = vor.u32 %v1193, %v1194
        %v1197 = vsel %vm1096, %v1189, %v1196
        %v1198 = vrot.slane %v1193, 4
        %v1200 = vshrl.u32 %v1075, 16
        %v1202 = vrot.slane %v1200, 7
        %v1203 = vshll.u32 %v1075, 16
        %v1205 = vor.u32 %v1202, %v1203
        %v1206 = vrot.slane %v1202, 4
        %v1208 = vshrl.u32 %v1076, 16
        %v1210 = vrot.slane %v1208, 7
        %v1211 = vshll.u32 %v1076, 16
        %v1213 = vor.u32 %v1210, %v1211
        %v1214 = vsel %vm1096, %v1206, %v1213
        %v1215 = vrot.slane %v1210, 4
        %v1217 = vshrl.u32 %v1077, 16
        %v1219 = vrot.slane %v1217, 7
        %v1220 = vshll.u32 %v1077, 16
        %v1222 = vor.u32 %v1219, %v1220
        %v1223 = vrot.slane %v1219, 4
        %v1225 = vshrl.u32 %v1078, 16
        %v1227 = vrot.slane %v1225, 7
        %v1228 = vshll.u32 %v1078, 16
        %v1230 = vor.u32 %v1227, %v1228
        %v1231 = vsel %vm1096, %v1223, %v1230
        %v1232 = vrot.slane %v1227, 4
        %v1234 = vshrl.u32 %v1079, 16
        %v1236 = vrot.slane %v1234, 7
        %v1237 = vshll.u32 %v1079, 16
        %v1239 = vor.u32 %v1236, %v1237
        %v1240 = vrot.slane %v1236, 4
        %v1242 = vshrl.u32 %v1080, 16
        %v1244 = vrot.slane %v1242, 7
        %v1245 = vshll.u32 %v1080, 16
        %v1247 = vor.u32 %v1244, %v1245
        %v1248 = vsel %vm1096, %v1240, %v1247
        %v1249 = vrot.slane %v1244, 4
        %v1251 = vshrl.u32 %v1081, 16
        %v1253 = vrot.slane %v1251, 7
        %v1254 = vshll.u32 %v1081, 16
        %v1256 = vor.u32 %v1253, %v1254
        %v1257 = vrot.slane %v1253, 4
        %v1259 = vshrl.u32 %v1082, 16
        %v1261 = vrot.slane %v1259, 7
        %v1262 = vshll.u32 %v1082, 16
        %v1264 = vor.u32 %v1261, %v1262
        %v1265 = vsel %vm1096, %v1257, %v1264
        %v1266 = vrot.slane %v1261, 4
        %v1268 = vshrl.u32 %v1083, 16
        %v1270 = vrot.slane %v1268, 7
        %v1271 = vshll.u32 %v1083, 16
        %v1273 = vor.u32 %v1270, %v1271
        %v1274 = vrot.slane %v1270, 4
        %v1276 = vshrl.u32 %v1084, 16
        %v1278 = vrot.slane %v1276, 7
        %v1279 = vshll.u32 %v1084, 16
        %v1281 = vor.u32 %v1278, %v1279
        %v1282 = vsel %vm1096, %v1274, %v1281
        %v1283 = vrot.slane %v1278, 4
        %v1285 = vshrl.u32 %v1085, 16
        %v1287 = vrot.slane %v1285, 7
        %v1288 = vshll.u32 %v1085, 16
        %v1290 = vor.u32 %v1287, %v1288
        %v1291 = vrot.slane %v1287, 4
        %v1293 = vshrl.u32 %v1086, 16
        %v1295 = vrot.slane %v1293, 7
        %v1296 = vshll.u32 %v1086, 16
        %v1298 = vor.u32 %v1295, %v1296
        %v1299 = vsel %vm1096, %v1291, %v1298
        %v1300 = vrot.slane %v1295, 4
        %v1302 = vshrl.u32 %v1087, 16
        %v1304 = vrot.slane %v1302, 7
        %v1305 = vshll.u32 %v1087, 16
        %v1307 = vor.u32 %v1304, %v1305
        %v1308 = vrot.slane %v1304, 4
        %v1310 = vshrl.u32 %v1088, 16
        %v1312 = vrot.slane %v1310, 7
        %v1313 = vshll.u32 %v1088, 16
        %v1315 = vor.u32 %v1312, %v1313
        %v1316 = vsel %vm1096, %v1308, %v1315
        %v1317 = vrot.slane %v1312, 4
        %v1319 = vshrl.u32 %v1089, 16
        %v1321 = vrot.slane %v1319, 7
        %v1322 = vshll.u32 %v1089, 16
        %v1324 = vor.u32 %v1321, %v1322
        %v1325 = vrot.slane %v1321, 4
        %v1327 = vshrl.u32 %v1090, 16
        %v1329 = vrot.slane %v1327, 7
        %v1330 = vshll.u32 %v1090, 16
        %v1332 = vor.u32 %v1329, %v1330
        %v1333 = vsel %vm1096, %v1325, %v1332
        %v1334 = vrot.slane %v1329, 4
        %v1336 = vshrl.u32 %v1091, 16
        %v1338 = vrot.slane %v1336, 7
        %v1339 = vshll.u32 %v1091, 16
        %v1341 = vor.u32 %v1338, %v1339
        %v1342 = vrot.slane %v1338, 4
        %v1344 = vshrl.u32 %v1092, 16
        %v1346 = vrot.slane %v1344, 7
        %v1347 = vshll.u32 %v1092, 16
        %v1349 = vor.u32 %v1346, %v1347
        %v1350 = vsel %vm1096, %v1342, %v1349
        %v1351 = vrot.slane %v1346, 4
        %v1353 = vshrl.u32 %v1093, 16
        %v1355 = vrot.slane %v1353, 7
        %v1356 = vshll.u32 %v1093, 16
        %v1358 = vor.u32 %v1355, %v1356
        %v1359 = vrot.slane %v1355, 4
        %v1361 = vshrl.u32 %v1094, 16
        %v1363 = vrot.slane %v1361, 7
        %v1364 = vshll.u32 %v1094, 16
        %v1366 = vor.u32 %v1363, %v1364
        %v1367 = vsel %vm1096, %v1359, %v1366
        %v1368 = vrot.slane %v1363, 4
        %s1417 = scalar_lea.vmem [#allocation2], 12
        %vm1418 = vcmask 60416
        %vm1419 = vmand %vm1418, %vm959
        %v1420 = vld [vmem:[%s1417] sm:$0xf]
        %v1421 = vsel %vm1419, %v1103, %v1420
        %1422 = vst [vmem:[%s1417] sm:$0xf] %v1421
        %1423 = vst.msk [vmem:[%s1417 + $0x4] sm:$0xf] %vm893, %v1112
        %v1424 = vld [vmem:[%s1417 + $0x8] sm:$0x1]
        %v1425 = vsel %vm904, %v1113, %v1424
        %1426 = vst [vmem:[%s1417 + $0x8] sm:$0x1] %v1425
        %v1427 = vld [vmem:[%s1417 + $0xc] sm:$0xf]
        %v1428 = vsel %vm1419, %v1120, %v1427
        %1429 = vst [vmem:[%s1417 + $0xc] sm:$0xf] %v1428
        %1430 = vst.msk [vmem:[%s1417 + $0x10] sm:$0xf] %vm893, %v1129
        %v1431 = vld [vmem:[%s1417 + $0x14] sm:$0x1]
        %v1432 = vsel %vm904, %v1130, %v1431
        %1433 = vst [vmem:[%s1417 + $0x14] sm:$0x1] %v1432
        %v1434 = vld [vmem:[%s1417 + $0x18] sm:$0xf]
        %v1435 = vsel %vm1419, %v1137, %v1434
        %1436 = vst [vmem:[%s1417 + $0x18] sm:$0xf] %v1435
        %1437 = vst.msk [vmem:[%s1417 + $0x1c] sm:$0xf] %vm893, %v1146
        %v1438 = vld [vmem:[%s1417 + $0x20] sm:$0x1]
        %v1439 = vsel %vm904, %v1147, %v1438
        %1440 = vst [vmem:[%s1417 + $0x20] sm:$0x1] %v1439
        %v1441 = vld [vmem:[%s1417 + $0x24] sm:$0xf]
        %v1442 = vsel %vm1419, %v1154, %v1441
        %1443 = vst [vmem:[%s1417 + $0x24] sm:$0xf] %v1442
        %1444 = vst.msk [vmem:[%s1417 + $0x28] sm:$0xf] %vm893, %v1163
        %v1445 = vld [vmem:[%s1417 + $0x2c] sm:$0x1]
        %v1446 = vsel %vm904, %v1164, %v1445
        %1447 = vst [vmem:[%s1417 + $0x2c] sm:$0x1] %v1446
        %v1448 = vld [vmem:[%s1417 + $0x30] sm:$0xf]
        %v1449 = vsel %vm1419, %v1171, %v1448
        %1450 = vst [vmem:[%s1417 + $0x30] sm:$0xf] %v1449
        %1451 = vst.msk [vmem:[%s1417 + $0x34] sm:$0xf] %vm893, %v1180
        %v1452 = vld [vmem:[%s1417 + $0x38] sm:$0x1]
        %v1453 = vsel %vm904, %v1181, %v1452
        %1454 = vst [vmem:[%s1417 + $0x38] sm:$0x1] %v1453
        %v1455 = vld [vmem:[%s1417 + $0x3c] sm:$0xf]
        %v1456 = vsel %vm1419, %v1188, %v1455
        %1457 = vst [vmem:[%s1417 + $0x3c] sm:$0xf] %v1456
        %1458 = vst.msk [vmem:[%s1417 + $0x40] sm:$0xf] %vm893, %v1197
        %v1459 = vld [vmem:[%s1417 + $0x44] sm:$0x1]
        %v1460 = vsel %vm904, %v1198, %v1459
        %1461 = vst [vmem:[%s1417 + $0x44] sm:$0x1] %v1460
        %v1462 = vld [vmem:[%s1417 + $0x48] sm:$0xf]
        %v1463 = vsel %vm1419, %v1205, %v1462
        %1464 = vst [vmem:[%s1417 + $0x48] sm:$0xf] %v1463
        %1465 = vst.msk [vmem:[%s1417 + $0x4c] sm:$0xf] %vm893, %v1214
        %v1466 = vld [vmem:[%s1417 + $0x50] sm:$0x1]
        %v1467 = vsel %vm904, %v1215, %v1466
        %1468 = vst [vmem:[%s1417 + $0x50] sm:$0x1] %v1467
        %v1469 = vld [vmem:[%s1417 + $0x54] sm:$0xf]
        %v1470 = vsel %vm1419, %v1222, %v1469
        %1471 = vst [vmem:[%s1417 + $0x54] sm:$0xf] %v1470
        %1472 = vst.msk [vmem:[%s1417 + $0x58] sm:$0xf] %vm893, %v1231
        %v1473 = vld [vmem:[%s1417 + $0x5c] sm:$0x1]
        %v1474 = vsel %vm904, %v1232, %v1473
        %1475 = vst [vmem:[%s1417 + $0x5c] sm:$0x1] %v1474
        %v1476 = vld [vmem:[%s1417 + $0x60] sm:$0xf]
        %v1477 = vsel %vm1419, %v1239, %v1476
        %1478 = vst [vmem:[%s1417 + $0x60] sm:$0xf] %v1477
        %1479 = vst.msk [vmem:[%s1417 + $0x64] sm:$0xf] %vm893, %v1248
        %v1480 = vld [vmem:[%s1417 + $0x68] sm:$0x1]
        %v1481 = vsel %vm904, %v1249, %v1480
        %1482 = vst [vmem:[%s1417 + $0x68] sm:$0x1] %v1481
        %v1483 = vld [vmem:[%s1417 + $0x6c] sm:$0xf]
        %v1484 = vsel %vm1419, %v1256, %v1483
        %1485 = vst [vmem:[%s1417 + $0x6c] sm:$0xf] %v1484
        %1486 = vst.msk [vmem:[%s1417 + $0x70] sm:$0xf] %vm893, %v1265
        %v1487 = vld [vmem:[%s1417 + $0x74] sm:$0x1]
        %v1488 = vsel %vm904, %v1266, %v1487
        %1489 = vst [vmem:[%s1417 + $0x74] sm:$0x1] %v1488
        %v1490 = vld [vmem:[%s1417 + $0x78] sm:$0xf]
        %v1491 = vsel %vm1419, %v1273, %v1490
        %1492 = vst [vmem:[%s1417 + $0x78] sm:$0xf] %v1491
        %1493 = vst.msk [vmem:[%s1417 + $0x7c] sm:$0xf] %vm893, %v1282
        %v1494 = vld [vmem:[%s1417 + $0x80] sm:$0x1]
        %v1495 = vsel %vm904, %v1283, %v1494
        %1496 = vst [vmem:[%s1417 + $0x80] sm:$0x1] %v1495
        %v1497 = vld [vmem:[%s1417 + $0x84] sm:$0xf]
        %v1498 = vsel %vm1419, %v1290, %v1497
        %1499 = vst [vmem:[%s1417 + $0x84] sm:$0xf] %v1498
        %1500 = vst.msk [vmem:[%s1417 + $0x88] sm:$0xf] %vm893, %v1299
        %v1501 = vld [vmem:[%s1417 + $0x8c] sm:$0x1]
        %v1502 = vsel %vm904, %v1300, %v1501
        %1503 = vst [vmem:[%s1417 + $0x8c] sm:$0x1] %v1502
        %v1504 = vld [vmem:[%s1417 + $0x90] sm:$0xf]
        %v1505 = vsel %vm1419, %v1307, %v1504
        %1506 = vst [vmem:[%s1417 + $0x90] sm:$0xf] %v1505
        %1507 = vst.msk [vmem:[%s1417 + $0x94] sm:$0xf] %vm893, %v1316
        %v1508 = vld [vmem:[%s1417 + $0x98] sm:$0x1]
        %v1509 = vsel %vm904, %v1317, %v1508
        %1510 = vst [vmem:[%s1417 + $0x98] sm:$0x1] %v1509
        %v1511 = vld [vmem:[%s1417 + $0x9c] sm:$0xf]
        %v1512 = vsel %vm1419, %v1324, %v1511
        %1513 = vst [vmem:[%s1417 + $0x9c] sm:$0xf] %v1512
        %1514 = vst.msk [vmem:[%s1417 + $0xa0] sm:$0xf] %vm893, %v1333
        %v1515 = vld [vmem:[%s1417 + $0xa4] sm:$0x1]
        %v1516 = vsel %vm904, %v1334, %v1515
        %1517 = vst [vmem:[%s1417 + $0xa4] sm:$0x1] %v1516
        %v1518 = vld [vmem:[%s1417 + $0xa8] sm:$0xf]
        %v1519 = vsel %vm1419, %v1341, %v1518
        %1520 = vst [vmem:[%s1417 + $0xa8] sm:$0xf] %v1519
        %1521 = vst.msk [vmem:[%s1417 + $0xac] sm:$0xf] %vm893, %v1350
        %v1522 = vld [vmem:[%s1417 + $0xb0] sm:$0x1]
        %v1523 = vsel %vm904, %v1351, %v1522
        %1524 = vst [vmem:[%s1417 + $0xb0] sm:$0x1] %v1523
        %v1525 = vld [vmem:[%s1417 + $0xb4] sm:$0xf]
        %v1526 = vsel %vm1419, %v1358, %v1525
        %1527 = vst [vmem:[%s1417 + $0xb4] sm:$0xf] %v1526
        %1528 = vst.msk [vmem:[%s1417 + $0xb8] sm:$0xf] %vm893, %v1367
        %v1529 = vld [vmem:[%s1417 + $0xbc] sm:$0x1]
        %v1530 = vsel %vm904, %v1368, %v1529
        %1531 = vst [vmem:[%s1417 + $0xbc] sm:$0x1] %v1530
        %v1532 = vld [vmem:[#allocation2] sm:$0xf]
        %v1533 = vld [vmem:[#allocation2 + $0x4] sm:$0xf]
        %v1534 = vld [vmem:[#allocation2 + $0xc] sm:$0xf]
        %v1535 = vld [vmem:[#allocation2 + $0x10] sm:$0xf]
        %v1536 = vld [vmem:[#allocation2 + $0x18] sm:$0xf]
        %v1537 = vld [vmem:[#allocation2 + $0x1c] sm:$0xf]
        %v1538 = vld [vmem:[#allocation2 + $0x24] sm:$0xf]
        %v1539 = vld [vmem:[#allocation2 + $0x28] sm:$0xf]
        %v1540 = vld [vmem:[#allocation2 + $0x30] sm:$0xf]
        %v1541 = vld [vmem:[#allocation2 + $0x34] sm:$0xf]
        %v1542 = vld [vmem:[#allocation2 + $0x3c] sm:$0xf]
        %v1543 = vld [vmem:[#allocation2 + $0x40] sm:$0xf]
        %v1544 = vld [vmem:[#allocation2 + $0x48] sm:$0xf]
        %v1545 = vld [vmem:[#allocation2 + $0x4c] sm:$0xf]
        %v1546 = vld [vmem:[#allocation2 + $0x54] sm:$0xf]
        %v1547 = vld [vmem:[#allocation2 + $0x58] sm:$0xf]
        %v1548 = vld [vmem:[#allocation2 + $0x60] sm:$0xf]
        %v1549 = vld [vmem:[#allocation2 + $0x64] sm:$0xf]
        %v1550 = vld [vmem:[#allocation2 + $0x6c] sm:$0xf]
        %v1551 = vld [vmem:[#allocation2 + $0x70] sm:$0xf]
        %v1552 = vld [vmem:[#allocation2 + $0x78] sm:$0xf]
        %v1553 = vld [vmem:[#allocation2 + $0x7c] sm:$0xf]
        %v1554 = vld [vmem:[#allocation2 + $0x84] sm:$0xf]
        %v1555 = vld [vmem:[#allocation2 + $0x88] sm:$0xf]
        %v1556 = vld [vmem:[#allocation2 + $0x90] sm:$0xf]
        %v1557 = vld [vmem:[#allocation2 + $0x94] sm:$0xf]
        %v1558 = vld [vmem:[#allocation2 + $0x9c] sm:$0xf]
        %v1559 = vld [vmem:[#allocation2 + $0xa0] sm:$0xf]
        %v1560 = vld [vmem:[#allocation2 + $0xa8] sm:$0xf]
        %v1561 = vld [vmem:[#allocation2 + $0xac] sm:$0xf]
        %v1562 = vld [vmem:[#allocation2 + $0xb4] sm:$0xf]
        %v1563 = vld [vmem:[#allocation2 + $0xb8] sm:$0xf]
        %v1564 = vld [vmem:[%s4] sm:$0xf]
        %v1565 = vld [vmem:[#allocation2 + $0x8] sm:$0x1]
        %v1566 = vld [vmem:[#allocation2 + $0x14] sm:$0x1]
        %v1567 = vld [vmem:[#allocation2 + $0x20] sm:$0x1]
        %v1568 = vld [vmem:[#allocation2 + $0x2c] sm:$0x1]
        %v1569 = vld [vmem:[#allocation2 + $0x38] sm:$0x1]
        %v1570 = vld [vmem:[#allocation2 + $0x44] sm:$0x1]
        %v1571 = vld [vmem:[#allocation2 + $0x50] sm:$0x1]
        %v1572 = vld [vmem:[#allocation2 + $0x5c] sm:$0x1]
        %v1573 = vld [vmem:[#allocation2 + $0x68] sm:$0x1]
        %v1574 = vld [vmem:[#allocation2 + $0x74] sm:$0x1]
        %v1575 = vld [vmem:[#allocation2 + $0x80] sm:$0x1]
        %v1576 = vld [vmem:[#allocation2 + $0x8c] sm:$0x1]
        %v1577 = vld [vmem:[#allocation2 + $0x98] sm:$0x1]
        %v1578 = vld [vmem:[#allocation2 + $0xa4] sm:$0x1]
        %v1579 = vld [vmem:[#allocation2 + $0xb0] sm:$0x1]
        %v1580 = vld [vmem:[#allocation2 + $0xbc] sm:$0x1]
        %vm1581 = vsmask.f32 3328
        %vm1582 = vsmask.f32 7440
        %vm1583 = vmor %vm1581, %vm1582
        %v1585 = vshrl.u32 %v1532, 16
        %v1587 = vrot.slane %v1585, 4
        %v1588 = vshll.u32 %v1532, 16
        %v1590 = vrot.slane %v1588, 5
        %v1591 = vor.u32 %v1587, %v1590
        %v1592 = vrot.slane %v1591, 4
        %v1594 = vshll.u32 %v1533, 16
        %v1596 = vrot.slane %v1594, 5
        %v1597 = vsel %vm1583, %v1592, %v1596
        %v1598 = vshrl.u32 %v1533, 16
        %v1600 = vrot.slane %v1598, 4
        %v1601 = vor.u32 %v1600, %v1596
        %v1602 = vrot.slane %v1601, 4
        %v1604 = vshll.u32 %v1565, 16
        %v1606 = vrot.slane %v1604, 5
        %v1607 = vsel %vm1583, %v1602, %v1606
        %v1609 = vshrl.u32 %v1534, 16
        %v1611 = vrot.slane %v1609, 4
        %v1612 = vshll.u32 %v1534, 16
        %v1614 = vrot.slane %v1612, 5
        %v1615 = vor.u32 %v1611, %v1614
        %v1616 = vrot.slane %v1615, 4
        %v1618 = vshll.u32 %v1535, 16
        %v1620 = vrot.slane %v1618, 5
        %v1621 = vsel %vm1583, %v1616, %v1620
        %v1622 = vshrl.u32 %v1535, 16
        %v1624 = vrot.slane %v1622, 4
        %v1625 = vor.u32 %v1624, %v1620
        %v1626 = vrot.slane %v1625, 4
        %v1628 = vshll.u32 %v1566, 16
        %v1630 = vrot.slane %v1628, 5
        %v1631 = vsel %vm1583, %v1626, %v1630
        %v1633 = vshrl.u32 %v1536, 16
        %v1635 = vrot.slane %v1633, 4
        %v1636 = vshll.u32 %v1536, 16
        %v1638 = vrot.slane %v1636, 5
        %v1639 = vor.u32 %v1635, %v1638
        %v1640 = vrot.slane %v1639, 4
        %v1642 = vshll.u32 %v1537, 16
        %v1644 = vrot.slane %v1642, 5
        %v1645 = vsel %vm1583, %v1640, %v1644
        %v1646 = vshrl.u32 %v1537, 16
        %v1648 = vrot.slane %v1646, 4
        %v1649 = vor.u32 %v1648, %v1644
        %v1650 = vrot.slane %v1649, 4
        %v1652 = vshll.u32 %v1567, 16
        %v1654 = vrot.slane %v1652, 5
        %v1655 = vsel %vm1583, %v1650, %v1654
        %v1657 = vshrl.u32 %v1538, 16
        %v1659 = vrot.slane %v1657, 4
        %v1660 = vshll.u32 %v1538, 16
        %v1662 = vrot.slane %v1660, 5
        %v1663 = vor.u32 %v1659, %v1662
        %v1664 = vrot.slane %v1663, 4
        %v1666 = vshll.u32 %v1539, 16
        %v1668 = vrot.slane %v1666, 5
        %v1669 = vsel %vm1583, %v1664, %v1668
        %v1670 = vshrl.u32 %v1539, 16
        %v1672 = vrot.slane %v1670, 4
        %v1673 = vor.u32 %v1672, %v1668
        %v1674 = vrot.slane %v1673, 4
        %v1676 = vshll.u32 %v1568, 16
        %v1678 = vrot.slane %v1676, 5
        %v1679 = vsel %vm1583, %v1674, %v1678
        %v1681 = vshrl.u32 %v1540, 16
        %v1683 = vrot.slane %v1681, 4
        %v1684 = vshll.u32 %v1540, 16
        %v1686 = vrot.slane %v1684, 5
        %v1687 = vor.u32 %v1683, %v1686
        %v1688 = vrot.slane %v1687, 4
        %v1690 = vshll.u32 %v1541, 16
        %v1692 = vrot.slane %v1690, 5
        %v1693 = vsel %vm1583, %v1688, %v1692
        %v1694 = vshrl.u32 %v1541, 16
        %v1696 = vrot.slane %v1694, 4
        %v1697 = vor.u32 %v1696, %v1692
        %v1698 = vrot.slane %v1697, 4
        %v1700 = vshll.u32 %v1569, 16
        %v1702 = vrot.slane %v1700, 5
        %v1703 = vsel %vm1583, %v1698, %v1702
        %v1705 = vshrl.u32 %v1542, 16
        %v1707 = vrot.slane %v1705, 4
        %v1708 = vshll.u32 %v1542, 16
        %v1710 = vrot.slane %v1708, 5
        %v1711 = vor.u32 %v1707, %v1710
        %v1712 = vrot.slane %v1711, 4
        %v1714 = vshll.u32 %v1543, 16
        %v1716 = vrot.slane %v1714, 5
        %v1717 = vsel %vm1583, %v1712, %v1716
        %v1718 = vshrl.u32 %v1543, 16
        %v1720 = vrot.slane %v1718, 4
        %v1721 = vor.u32 %v1720, %v1716
        %v1722 = vrot.slane %v1721, 4
        %v1724 = vshll.u32 %v1570, 16
        %v1726 = vrot.slane %v1724, 5
        %v1727 = vsel %vm1583, %v1722, %v1726
        %v1729 = vshrl.u32 %v1544, 16
        %v1731 = vrot.slane %v1729, 4
        %v1732 = vshll.u32 %v1544, 16
        %v1734 = vrot.slane %v1732, 5
        %v1735 = vor.u32 %v1731, %v1734
        %v1736 = vrot.slane %v1735, 4
        %v1738 = vshll.u32 %v1545, 16
        %v1740 = vrot.slane %v1738, 5
        %v1741 = vsel %vm1583, %v1736, %v1740
        %v1742 = vshrl.u32 %v1545, 16
        %v1744 = vrot.slane %v1742, 4
        %v1745 = vor.u32 %v1744, %v1740
        %v1746 = vrot.slane %v1745, 4
        %v1748 = vshll.u32 %v1571, 16
        %v1750 = vrot.slane %v1748, 5
        %v1751 = vsel %vm1583, %v1746, %v1750
        %v1753 = vshrl.u32 %v1546, 16
        %v1755 = vrot.slane %v1753, 4
        %v1756 = vshll.u32 %v1546, 16
        %v1758 = vrot.slane %v1756, 5
        %v1759 = vor.u32 %v1755, %v1758
        %v1760 = vrot.slane %v1759, 4
        %v1762 = vshll.u32 %v1547, 16
        %v1764 = vrot.slane %v1762, 5
        %v1765 = vsel %vm1583, %v1760, %v1764
        %v1766 = vshrl.u32 %v1547, 16
        %v1768 = vrot.slane %v1766, 4
        %v1769 = vor.u32 %v1768, %v1764
        %v1770 = vrot.slane %v1769, 4
        %v1772 = vshll.u32 %v1572, 16
        %v1774 = vrot.slane %v1772, 5
        %v1775 = vsel %vm1583, %v1770, %v1774
        %v1777 = vshrl.u32 %v1548, 16
        %v1779 = vrot.slane %v1777, 4
        %v1780 = vshll.u32 %v1548, 16
        %v1782 = vrot.slane %v1780, 5
        %v1783 = vor.u32 %v1779, %v1782
        %v1784 = vrot.slane %v1783, 4
        %v1786 = vshll.u32 %v1549, 16
        %v1788 = vrot.slane %v1786, 5
        %v1789 = vsel %vm1583, %v1784, %v1788
        %v1790 = vshrl.u32 %v1549, 16
        %v1792 = vrot.slane %v1790, 4
        %v1793 = vor.u32 %v1792, %v1788
        %v1794 = vrot.slane %v1793, 4
        %v1796 = vshll.u32 %v1573, 16
        %v1798 = vrot.slane %v1796, 5
        %v1799 = vsel %vm1583, %v1794, %v1798
        %v1801 = vshrl.u32 %v1550, 16
        %v1803 = vrot.slane %v1801, 4
        %v1804 = vshll.u32 %v1550, 16
        %v1806 = vrot.slane %v1804, 5
        %v1807 = vor.u32 %v1803, %v1806
        %v1808 = vrot.slane %v1807, 4
        %v1810 = vshll.u32 %v1551, 16
        %v1812 = vrot.slane %v1810, 5
        %v1813 = vsel %vm1583, %v1808, %v1812
        %v1814 = vshrl.u32 %v1551, 16
        %v1816 = vrot.slane %v1814, 4
        %v1817 = vor.u32 %v1816, %v1812
        %v1818 = vrot.slane %v1817, 4
        %v1820 = vshll.u32 %v1574, 16
        %v1822 = vrot.slane %v1820, 5
        %v1823 = vsel %vm1583, %v1818, %v1822
        %v1825 = vshrl.u32 %v1552, 16
        %v1827 = vrot.slane %v1825, 4
        %v1828 = vshll.u32 %v1552, 16
        %v1830 = vrot.slane %v1828, 5
        %v1831 = vor.u32 %v1827, %v1830
        %v1832 = vrot.slane %v1831, 4
        %v1834 = vshll.u32 %v1553, 16
        %v1836 = vrot.slane %v1834, 5
        %v1837 = vsel %vm1583, %v1832, %v1836
        %v1838 = vshrl.u32 %v1553, 16
        %v1840 = vrot.slane %v1838, 4
        %v1841 = vor.u32 %v1840, %v1836
        %v1842 = vrot.slane %v1841, 4
        %v1844 = vshll.u32 %v1575, 16
        %v1846 = vrot.slane %v1844, 5
        %v1847 = vsel %vm1583, %v1842, %v1846
        %v1849 = vshrl.u32 %v1554, 16
        %v1851 = vrot.slane %v1849, 4
        %v1852 = vshll.u32 %v1554, 16
        %v1854 = vrot.slane %v1852, 5
        %v1855 = vor.u32 %v1851, %v1854
        %v1856 = vrot.slane %v1855, 4
        %v1858 = vshll.u32 %v1555, 16
        %v1860 = vrot.slane %v1858, 5
        %v1861 = vsel %vm1583, %v1856, %v1860
        %v1862 = vshrl.u32 %v1555, 16
        %v1864 = vrot.slane %v1862, 4
        %v1865 = vor.u32 %v1864, %v1860
        %v1866 = vrot.slane %v1865, 4
        %v1868 = vshll.u32 %v1576, 16
        %v1870 = vrot.slane %v1868, 5
        %v1871 = vsel %vm1583, %v1866, %v1870
        %v1873 = vshrl.u32 %v1556, 16
        %v1875 = vrot.slane %v1873, 4
        %v1876 = vshll.u32 %v1556, 16
        %v1878 = vrot.slane %v1876, 5
        %v1879 = vor.u32 %v1875, %v1878
        %v1880 = vrot.slane %v1879, 4
        %v1882 = vshll.u32 %v1557, 16
        %v1884 = vrot.slane %v1882, 5
        %v1885 = vsel %vm1583, %v1880, %v1884
        %v1886 = vshrl.u32 %v1557, 16
        %v1888 = vrot.slane %v1886, 4
        %v1889 = vor.u32 %v1888, %v1884
        %v1890 = vrot.slane %v1889, 4
        %v1892 = vshll.u32 %v1577, 16
        %v1894 = vrot.slane %v1892, 5
        %v1895 = vsel %vm1583, %v1890, %v1894
        %v1897 = vshrl.u32 %v1558, 16
        %v1899 = vrot.slane %v1897, 4
        %v1900 = vshll.u32 %v1558, 16
        %v1902 = vrot.slane %v1900, 5
        %v1903 = vor.u32 %v1899, %v1902
        %v1904 = vrot.slane %v1903, 4
        %v1906 = vshll.u32 %v1559, 16
        %v1908 = vrot.slane %v1906, 5
        %v1909 = vsel %vm1583, %v1904, %v1908
        %v1910 = vshrl.u32 %v1559, 16
        %v1912 = vrot.slane %v1910, 4
        %v1913 = vor.u32 %v1912, %v1908
        %v1914 = vrot.slane %v1913, 4
        %v1916 = vshll.u32 %v1578, 16
        %v1918 = vrot.slane %v1916, 5
        %v1919 = vsel %vm1583, %v1914, %v1918
        %v1921 = vshrl.u32 %v1560, 16
        %v1923 = vrot.slane %v1921, 4
        %v1924 = vshll.u32 %v1560, 16
        %v1926 = vrot.slane %v1924, 5
        %v1927 = vor.u32 %v1923, %v1926
        %v1928 = vrot.slane %v1927, 4
        %v1930 = vshll.u32 %v1561, 16
        %v1932 = vrot.slane %v1930, 5
        %v1933 = vsel %vm1583, %v1928, %v1932
        %v1934 = vshrl.u32 %v1561, 16
        %v1936 = vrot.slane %v1934, 4
        %v1937 = vor.u32 %v1936, %v1932
        %v1938 = vrot.slane %v1937, 4
        %v1940 = vshll.u32 %v1579, 16
        %v1942 = vrot.slane %v1940, 5
        %v1943 = vsel %vm1583, %v1938, %v1942
        %v1945 = vshrl.u32 %v1562, 16
        %v1947 = vrot.slane %v1945, 4
        %v1948 = vshll.u32 %v1562, 16
        %v1950 = vrot.slane %v1948, 5
        %v1951 = vor.u32 %v1947, %v1950
        %v1952 = vrot.slane %v1951, 4
        %v1954 = vshll.u32 %v1563, 16
        %v1956 = vrot.slane %v1954, 5
        %v1957 = vsel %vm1583, %v1952, %v1956
        %v1958 = vshrl.u32 %v1563, 16
        %v1960 = vrot.slane %v1958, 4
        %v1961 = vor.u32 %v1960, %v1956
        %v1962 = vrot.slane %v1961, 4
        %v1964 = vshll.u32 %v1580, 16
        %v1966 = vrot.slane %v1964, 5
        %v1967 = vsel %vm1583, %v1962, %v1966
        %s1968 = scalar_lea.vmem %s4, 4
        %v1969 = vld [vmem:[%s1968] sm:$0xf]
        %v1970 = vunpack.c.l.b16 %v1597
        %v1971 = vunpack.c.l.b16 %v1607
        %v1972 = vunpack.c.l.b16 %v1621
        %v1973 = vunpack.c.l.b16 %v1631
        %v1974 = vunpack.c.l.b16 %v1645
        %v1975 = vunpack.c.l.b16 %v1655
        %v1976 = vunpack.c.l.b16 %v1669
        %v1977 = vunpack.c.l.b16 %v1679
        %v1978 = vunpack.c.l.b16 %v1693
        %v1979 = vunpack.c.l.b16 %v1703
        %v1980 = vunpack.c.l.b16 %v1717
        %v1981 = vunpack.c.l.b16 %v1727
        %v1982 = vunpack.c.l.b16 %v1741
        %v1983 = vunpack.c.l.b16 %v1751
        %v1984 = vunpack.c.l.b16 %v1765
        %v1985 = vunpack.c.l.b16 %v1775
        %v1986 = vunpack.c.l.b16 %v1789
        %v1987 = vunpack.c.l.b16 %v1799
        %v1988 = vunpack.c.l.b16 %v1813
        %v1989 = vunpack.c.l.b16 %v1823
        %v1990 = vunpack.c.l.b16 %v1837
        %v1991 = vunpack.c.l.b16 %v1847
        %v1992 = vunpack.c.l.b16 %v1861
        %v1993 = vunpack.c.l.b16 %v1871
        %v1994 = vunpack.c.l.b16 %v1885
        %v1995 = vunpack.c.l.b16 %v1895
        %v1996 = vunpack.c.l.b16 %v1909
        %v1997 = vunpack.c.l.b16 %v1919
        %v1998 = vunpack.c.l.b16 %v1933
        %v1999 = vunpack.c.l.b16 %v1943
        %v2000 = vunpack.c.l.b16 %v1957
        %v2001 = vunpack.c.l.b16 %v1967
        %v2002 = vpack.c.b16 %v1971, %v1970
        %v2003 = vpack.c.b16 %v1973, %v1972
        %v2004 = vpack.c.b16 %v1975, %v1974
        %v2005 = vpack.c.b16 %v1977, %v1976
        %v2006 = vpack.c.b16 %v1979, %v1978
        %v2007 = vpack.c.b16 %v1981, %v1980
        %v2008 = vpack.c.b16 %v1983, %v1982
        %v2009 = vpack.c.b16 %v1985, %v1984
        %v2010 = vpack.c.b16 %v1987, %v1986
        %v2011 = vpack.c.b16 %v1989, %v1988
        %v2012 = vpack.c.b16 %v1991, %v1990
        %v2013 = vpack.c.b16 %v1993, %v1992
        %v2014 = vpack.c.b16 %v1995, %v1994
        %v2015 = vpack.c.b16 %v1997, %v1996
        %v2016 = vpack.c.b16 %v1999, %v1998
        %v2017 = vpack.c.b16 %v2001, %v2000
        %v2019 = vsel %vm553, %v2002, 0
        %v2022 = vsel %vm553, %v2003, 0
        %v2025 = vsel %vm553, %v2004, 0
        %v2028 = vsel %vm553, %v2005, 0
        %v2031 = vsel %vm553, %v2006, 0
        %v2034 = vsel %vm553, %v2007, 0
        %v2037 = vsel %vm553, %v2008, 0
        %v2040 = vsel %vm553, %v2009, 0
        %v2043 = vsel %vm553, %v2010, 0
        %v2046 = vsel %vm553, %v2011, 0
        %v2049 = vsel %vm553, %v2012, 0
        %v2052 = vsel %vm553, %v2013, 0
        %v2055 = vsel %vm553, %v2014, 0
        %v2058 = vsel %vm553, %v2015, 0
        %v2061 = vsel %vm553, %v2016, 0
        %v2064 = vsel %vm553, %v2017, 0
        %v2067 = vsel %vm602, %v1969, 0
        %2069 = vmatprep.subr.bf16.mxu0 0
        %2070 = vmatpush1.bf16.msra.mxu0 %v2067
        %2071 = vmatprep.subr.bf16.mxu0 0
        %2072 = vmatpush1.bf16.msra.mxu0 0
        %2073 = vmatprep.subr.bf16.mxu0 0
        %2074 = vmatpush1.bf16.msra.mxu0 0
        %2075 = vmatprep.subr.bf16.mxu0 0
        %2076 = vmatpush1.bf16.msra.mxu0 0
        %2077 = vmatprep.subr.bf16.mxu0 0
        %2078 = vmatpush1.bf16.msra.mxu0 0
        %2079 = vmatprep.subr.bf16.mxu0 0
        %2080 = vmatpush1.bf16.msra.mxu0 0
        %2081 = vmatprep.subr.bf16.mxu0 0
        %2082 = vmatpush1.bf16.msra.mxu0 0
        %2083 = vmatprep.subr.bf16.mxu0 0
        %2084 = vmatpush1.bf16.msra.mxu0 0
        %2085 = vmatprep.subr.bf16.mxu0 0
        %2086 = vmatpush1.bf16.msra.mxu0 0
        %2087 = vmatprep.subr.bf16.mxu0 0
        %2088 = vmatpush1.bf16.msra.mxu0 0
        %2089 = vmatprep.subr.bf16.mxu0 0
        %2090 = vmatpush1.bf16.msra.mxu0 0
        %2091 = vmatprep.subr.bf16.mxu0 0
        %2092 = vmatpush1.bf16.msra.mxu0 0
        %2093 = vmatprep.subr.bf16.mxu0 0
        %2094 = vmatpush1.bf16.msra.mxu0 0
        %2095 = vmatprep.subr.bf16.mxu0 0
        %2096 = vmatpush1.bf16.msra.mxu0 0
        %2097 = vmatprep.subr.bf16.mxu0 0
        %2098 = vmatpush1.bf16.msra.mxu0 0
        %2099 = vmatprep.subr.bf16.mxu0 0
        %2100 = vmatpush1.bf16.msra.mxu0 0
        %2101 = vmatprep.mubr.bf16.mxu0 0
        %2102 = vmatmul.mubr.bf16.gmra.mrb[0].mxu0 %v2019
        %v2103 = vpop.f32.mrb[0].mxu0
        %v2104 = vadd.f32 0.0, %v2103
        %v2105 = vpop.f32.mrb[0].mxu0
        %v2106 = vpop.f32.mrb[0].mxu0
        %v2107 = vadd.f32 0.0, %v2106
        %v2108 = vpop.f32.mrb[0].mxu0
        %2109 = vmatprep.mubr.bf16.mxu0 0
        %2110 = vmatmul.mubr.bf16.gmra.mrb[0].mxu0 %v2022
        %v2111 = vpop.f32.mrb[0].mxu0
        %v2112 = vpop.f32.mrb[0].mxu0
        %v2113 = vpop.f32.mrb[0].mxu0
        %v2114 = vpop.f32.mrb[0].mxu0
        %2115 = vmatprep.mubr.bf16.mxu0 0
        %2116 = vmatmul.mubr.bf16.gmra.mrb[0].mxu0 %v2025
        %v2117 = vpop.f32.mrb[0].mxu0
        %v2118 = vadd.f32 0.0, %v2117
        %v2119 = vpop.f32.mrb[0].mxu0
        %v2120 = vpop.f32.mrb[0].mxu0
        %v2121 = vadd.f32 0.0, %v2120
        %v2122 = vpop.f32.mrb[0].mxu0
        %2123 = vmatprep.mubr.bf16.mxu0 0
        %2124 = vmatmul.mubr.bf16.gmra.mrb[0].mxu0 %v2028
        %v2125 = vpop.f32.mrb[0].mxu0
        %v2126 = vpop.f32.mrb[0].mxu0
        %v2127 = vpop.f32.mrb[0].mxu0
        %v2128 = vpop.f32.mrb[0].mxu0
        %2129 = vmatprep.mubr.bf16.mxu0 0
        %2130 = vmatmul.mubr.bf16.gmra.mrb[0].mxu0 %v2031
        %v2131 = vpop.f32.mrb[0].mxu0
        %v2132 = vadd.f32 0.0, %v2131
        %v2133 = vpop.f32.mrb[0].mxu0
        %v2134 = vpop.f32.mrb[0].mxu0
        %v2135 = vadd.f32 0.0, %v2134
        %v2136 = vpop.f32.mrb[0].mxu0
        %2137 = vmatprep.mubr.bf16.mxu0 0
        %2138 = vmatmul.mubr.bf16.gmra.mrb[0].mxu0 %v2034
        %v2139 = vpop.f32.mrb[0].mxu0
        %v2140 = vpop.f32.mrb[0].mxu0
        %v2141 = vpop.f32.mrb[0].mxu0
        %v2142 = vpop.f32.mrb[0].mxu0
        %2143 = vmatprep.mubr.bf16.mxu0 0
        %2144 = vmatmul.mubr.bf16.gmra.mrb[0].mxu0 %v2037
        %v2145 = vpop.f32.mrb[0].mxu0
        %v2146 = vadd.f32 0.0, %v2145
        %v2147 = vpop.f32.mrb[0].mxu0
        %v2148 = vpop.f32.mrb[0].mxu0
        %v2149 = vadd.f32 0.0, %v2148
        %v2150 = vpop.f32.mrb[0].mxu0
        %2151 = vmatprep.mubr.bf16.mxu0 0
        %2152 = vmatmul.mubr.bf16.gmra.mrb[0].mxu0 %v2040
        %v2153 = vpop.f32.mrb[0].mxu0
        %v2154 = vpop.f32.mrb[0].mxu0
        %v2155 = vpop.f32.mrb[0].mxu0
        %v2156 = vpop.f32.mrb[0].mxu0
        %2157 = vmatprep.mubr.bf16.mxu0 0
        %2158 = vmatmul.mubr.bf16.gmra.mrb[0].mxu0 %v2043
        %v2159 = vpop.f32.mrb[0].mxu0
        %v2160 = vadd.f32 0.0, %v2159
        %v2161 = vpop.f32.mrb[0].mxu0
        %v2162 = vpop.f32.mrb[0].mxu0
        %v2163 = vadd.f32 0.0, %v2162
        %v2164 = vpop.f32.mrb[0].mxu0
        %2165 = vmatprep.mubr.bf16.mxu0 0
        %2166 = vmatmul.mubr.bf16.gmra.mrb[0].mxu0 %v2046
        %v2167 = vpop.f32.mrb[0].mxu0
        %v2168 = vpop.f32.mrb[0].mxu0
        %v2169 = vpop.f32.mrb[0].mxu0
        %v2170 = vpop.f32.mrb[0].mxu0
        %2171 = vmatprep.mubr.bf16.mxu0 0
        %2172 = vmatmul.mubr.bf16.gmra.mrb[0].mxu0 %v2049
        %v2173 = vpop.f32.mrb[0].mxu0
        %v2174 = vadd.f32 0.0, %v2173
        %v2175 = vpop.f32.mrb[0].mxu0
        %v2176 = vpop.f32.mrb[0].mxu0
        %v2177 = vadd.f32 0.0, %v2176
        %v2178 = vpop.f32.mrb[0].mxu0
        %2179 = vmatprep.mubr.bf16.mxu0 0
        %2180 = vmatmul.mubr.bf16.gmra.mrb[0].mxu0 %v2052
        %v2181 = vpop.f32.mrb[0].mxu0
        %v2182 = vpop.f32.mrb[0].mxu0
        %v2183 = vpop.f32.mrb[0].mxu0
        %v2184 = vpop.f32.mrb[0].mxu0
        %2185 = vmatprep.mubr.bf16.mxu0 0
        %2186 = vmatmul.mubr.bf16.gmra.mrb[0].mxu0 %v2055
        %v2187 = vpop.f32.mrb[0].mxu0
        %v2188 = vadd.f32 0.0, %v2187
        %v2189 = vpop.f32.mrb[0].mxu0
        %v2190 = vpop.f32.mrb[0].mxu0
        %v2191 = vadd.f32 0.0, %v2190
        %v2192 = vpop.f32.mrb[0].mxu0
        %2193 = vmatprep.mubr.bf16.mxu0 0
        %2194 = vmatmul.mubr.bf16.gmra.mrb[0].mxu0 %v2058
        %v2195 = vpop.f32.mrb[0].mxu0
        %v2196 = vpop.f32.mrb[0].mxu0
        %v2197 = vpop.f32.mrb[0].mxu0
        %v2198 = vpop.f32.mrb[0].mxu0
        %2199 = vmatprep.mubr.bf16.mxu0 0
        %2200 = vmatmul.mubr.bf16.gmra.mrb[0].mxu0 %v2061
        %v2201 = vpop.f32.mrb[0].mxu0
        %v2202 = vadd.f32 0.0, %v2201
        %v2203 = vpop.f32.mrb[0].mxu0
        %v2204 = vpop.f32.mrb[0].mxu0
        %v2205 = vadd.f32 0.0, %v2204
        %v2206 = vpop.f32.mrb[0].mxu0
        %2207 = vmatprep.mubr.bf16.mxu0 0
        %2208 = vmatmul.mubr.bf16.gmra.mrb[0].mxu0 %v2064
        %v2209 = vpop.f32.mrb[0].mxu0
        %v2210 = vpop.f32.mrb[0].mxu0
        %v2211 = vpop.f32.mrb[0].mxu0
        %v2212 = vpop.f32.mrb[0].mxu0
        %2213 = vdwg.mxu0
        %v2246 = vunpack.c.l.b16 %v1532
        %v2247 = vunpack.c.l.b16 %v1533
        %v2248 = vunpack.c.l.b16 %v1534
        %v2249 = vunpack.c.l.b16 %v1535
        %v2250 = vunpack.c.l.b16 %v1536
        %v2251 = vunpack.c.l.b16 %v1537
        %v2252 = vunpack.c.l.b16 %v1538
        %v2253 = vunpack.c.l.b16 %v1539
        %v2254 = vunpack.c.l.b16 %v1540
        %v2255 = vunpack.c.l.b16 %v1541
        %v2256 = vunpack.c.l.b16 %v1542
        %v2257 = vunpack.c.l.b16 %v1543
        %v2258 = vunpack.c.l.b16 %v1544
        %v2259 = vunpack.c.l.b16 %v1545
        %v2260 = vunpack.c.l.b16 %v1546
        %v2261 = vunpack.c.l.b16 %v1547
        %v2262 = vunpack.c.l.b16 %v1548
        %v2263 = vunpack.c.l.b16 %v1549
        %v2264 = vunpack.c.l.b16 %v1550
        %v2265 = vunpack.c.l.b16 %v1551
        %v2266 = vunpack.c.l.b16 %v1552
        %v2267 = vunpack.c.l.b16 %v1553
        %v2268 = vunpack.c.l.b16 %v1554
        %v2269 = vunpack.c.l.b16 %v1555
        %v2270 = vunpack.c.l.b16 %v1556
        %v2271 = vunpack.c.l.b16 %v1557
        %v2272 = vunpack.c.l.b16 %v1558
        %v2273 = vunpack.c.l.b16 %v1559
        %v2274 = vunpack.c.l.b16 %v1560
        %v2275 = vunpack.c.l.b16 %v1561
        %v2276 = vunpack.c.l.b16 %v1562
        %v2277 = vunpack.c.l.b16 %v1563
        %v2278 = vpack.c.b16 %v2247, %v2246
        %v2279 = vpack.c.b16 %v2249, %v2248
        %v2280 = vpack.c.b16 %v2251, %v2250
        %v2281 = vpack.c.b16 %v2253, %v2252
        %v2282 = vpack.c.b16 %v2255, %v2254
        %v2283 = vpack.c.b16 %v2257, %v2256
        %v2284 = vpack.c.b16 %v2259, %v2258
        %v2285 = vpack.c.b16 %v2261, %v2260
        %v2286 = vpack.c.b16 %v2263, %v2262
        %v2287 = vpack.c.b16 %v2265, %v2264
        %v2288 = vpack.c.b16 %v2267, %v2266
        %v2289 = vpack.c.b16 %v2269, %v2268
        %v2290 = vpack.c.b16 %v2271, %v2270
        %v2291 = vpack.c.b16 %v2273, %v2272
        %v2292 = vpack.c.b16 %v2275, %v2274
        %v2293 = vpack.c.b16 %v2277, %v2276
        %v2295 = vsel %vm553, %v2278, 0
        %v2298 = vsel %vm553, %v2279, 0
        %v2301 = vsel %vm553, %v2280, 0
        %v2304 = vsel %vm553, %v2281, 0
        %v2307 = vsel %vm553, %v2282, 0
        %v2310 = vsel %vm553, %v2283, 0
        %v2313 = vsel %vm553, %v2284, 0
        %v2316 = vsel %vm553, %v2285, 0
        %v2319 = vsel %vm553, %v2286, 0
        %v2322 = vsel %vm553, %v2287, 0
        %v2325 = vsel %vm553, %v2288, 0
        %v2328 = vsel %vm553, %v2289, 0
        %v2331 = vsel %vm553, %v2290, 0
        %v2334 = vsel %vm553, %v2291, 0
        %v2337 = vsel %vm553, %v2292, 0
        %v2340 = vsel %vm553, %v2293, 0
        %v2343 = vsel %vm602, %v1564, 0
        %2345 = vmatprep.subr.bf16.mxu0 0
        %2346 = vmatpush1.bf16.msra.mxu0 %v2343
        %2347 = vmatprep.subr.bf16.mxu0 0
        %2348 = vmatpush1.bf16.msra.mxu0 0
        %2349 = vmatprep.subr.bf16.mxu0 0
        %2350 = vmatpush1.bf16.msra.mxu0 0
        %2351 = vmatprep.subr.bf16.mxu0 0
        %2352 = vmatpush1.bf16.msra.mxu0 0
        %2353 = vmatprep.subr.bf16.mxu0 0
        %2354 = vmatpush1.bf16.msra.mxu0 0
        %2355 = vmatprep.subr.bf16.mxu0 0
        %2356 = vmatpush1.bf16.msra.mxu0 0
        %2357 = vmatprep.subr.bf16.mxu0 0
        %2358 = vmatpush1.bf16.msra.mxu0 0
        %2359 = vmatprep.subr.bf16.mxu0 0
        %2360 = vmatpush1.bf16.msra.mxu0 0
        %2361 = vmatprep.subr.bf16.mxu0 0
        %2362 = vmatpush1.bf16.msra.mxu0 0
        %2363 = vmatprep.subr.bf16.mxu0 0
        %2364 = vmatpush1.bf16.msra.mxu0 0
        %2365 = vmatprep.subr.bf16.mxu0 0
        %2366 = vmatpush1.bf16.msra.mxu0 0
        %2367 = vmatprep.subr.bf16.mxu0 0
        %2368 = vmatpush1.bf16.msra.mxu0 0
        %2369 = vmatprep.subr.bf16.mxu0 0
        %2370 = vmatpush1.bf16.msra.mxu0 0
        %2371 = vmatprep.subr.bf16.mxu0 0
        %2372 = vmatpush1.bf16.msra.mxu0 0
        %2373 = vmatprep.subr.bf16.mxu0 0
        %2374 = vmatpush1.bf16.msra.mxu0 0
        %2375 = vmatprep.subr.bf16.mxu0 0
        %2376 = vmatpush1.bf16.msra.mxu0 0
        %2377 = vmatprep.mubr.bf16.mxu0 0
        %2378 = vmatmul.mubr.bf16.gmra.mrb[0].mxu0 %v2295
        %v2379 = vpop.f32.mrb[0].mxu0
        %v2380 = vadd.f32 %v2104, %v2379
        %v2381 = vpop.f32.mrb[0].mxu0
        %v2382 = vpop.f32.mrb[0].mxu0
        %v2383 = vadd.f32 %v2107, %v2382
        %v2384 = vpop.f32.mrb[0].mxu0
        %2385 = vmatprep.mubr.bf16.mxu0 0
        %2386 = vmatmul.mubr.bf16.gmra.mrb[0].mxu0 %v2298
        %v2387 = vpop.f32.mrb[0].mxu0
        %v2388 = vpop.f32.mrb[0].mxu0
        %v2389 = vpop.f32.mrb[0].mxu0
        %v2390 = vpop.f32.mrb[0].mxu0
        %2391 = vmatprep.mubr.bf16.mxu0 0
        %2392 = vmatmul.mubr.bf16.gmra.mrb[0].mxu0 %v2301
        %v2393 = vpop.f32.mrb[0].mxu0
        %v2394 = vadd.f32 %v2118, %v2393
        %v2395 = vpop.f32.mrb[0].mxu0
        %v2396 = vpop.f32.mrb[0].mxu0
        %v2397 = vadd.f32 %v2121, %v2396
        %v2398 = vpop.f32.mrb[0].mxu0
        %2399 = vmatprep.mubr.bf16.mxu0 0
        %2400 = vmatmul.mubr.bf16.gmra.mrb[0].mxu0 %v2304
        %v2401 = vpop.f32.mrb[0].mxu0
        %v2402 = vpop.f32.mrb[0].mxu0
        %v2403 = vpop.f32.mrb[0].mxu0
        %v2404 = vpop.f32.mrb[0].mxu0
        %2405 = vmatprep.mubr.bf16.mxu0 0
        %2406 = vmatmul.mubr.bf16.gmra.mrb[0].mxu0 %v2307
        %v2407 = vpop.f32.mrb[0].mxu0
        %v2408 = vadd.f32 %v2132, %v2407
        %v2409 = vpop.f32.mrb[0].mxu0
        %v2410 = vpop.f32.mrb[0].mxu0
        %v2411 = vadd.f32 %v2135, %v2410
        %v2412 = vpop.f32.mrb[0].mxu0
        %2413 = vmatprep.mubr.bf16.mxu0 0
        %2414 = vmatmul.mubr.bf16.gmra.mrb[0].mxu0 %v2310
        %v2415 = vpop.f32.mrb[0].mxu0
        %v2416 = vpop.f32.mrb[0].mxu0
        %v2417 = vpop.f32.mrb[0].mxu0
        %v2418 = vpop.f32.mrb[0].mxu0
        %2419 = vmatprep.mubr.bf16.mxu0 0
        %2420 = vmatmul.mubr.bf16.gmra.mrb[0].mxu0 %v2313
        %v2421 = vpop.f32.mrb[0].mxu0
        %v2422 = vadd.f32 %v2146, %v2421
        %v2423 = vpop.f32.mrb[0].mxu0
        %v2424 = vpop.f32.mrb[0].mxu0
        %v2425 = vadd.f32 %v2149, %v2424
        %v2426 = vpop.f32.mrb[0].mxu0
        %2427 = vmatprep.mubr.bf16.mxu0 0
        %2428 = vmatmul.mubr.bf16.gmra.mrb[0].mxu0 %v2316
        %v2429 = vpop.f32.mrb[0].mxu0
        %v2430 = vpop.f32.mrb[0].mxu0
        %v2431 = vpop.f32.mrb[0].mxu0
        %v2432 = vpop.f32.mrb[0].mxu0
        %2433 = vmatprep.mubr.bf16.mxu0 0
        %2434 = vmatmul.mubr.bf16.gmra.mrb[0].mxu0 %v2319
        %v2435 = vpop.f32.mrb[0].mxu0
        %v2436 = vadd.f32 %v2160, %v2435
        %v2437 = vpop.f32.mrb[0].mxu0
        %v2438 = vpop.f32.mrb[0].mxu0
        %v2439 = vadd.f32 %v2163, %v2438
        %v2440 = vpop.f32.mrb[0].mxu0
        %2441 = vmatprep.mubr.bf16.mxu0 0
        %2442 = vmatmul.mubr.bf16.gmra.mrb[0].mxu0 %v2322
        %v2443 = vpop.f32.mrb[0].mxu0
        %v2444 = vpop.f32.mrb[0].mxu0
        %v2445 = vpop.f32.mrb[0].mxu0
        %v2446 = vpop.f32.mrb[0].mxu0
        %2447 = vmatprep.mubr.bf16.mxu0 0
        %2448 = vmatmul.mubr.bf16.gmra.mrb[0].mxu0 %v2325
        %v2449 = vpop.f32.mrb[0].mxu0
        %v2450 = vadd.f32 %v2174, %v2449
        %v2451 = vpop.f32.mrb[0].mxu0
        %v2452 = vpop.f32.mrb[0].mxu0
        %v2453 = vadd.f32 %v2177, %v2452
        %v2454 = vpop.f32.mrb[0].mxu0
        %2455 = vmatprep.mubr.bf16.mxu0 0
        %2456 = vmatmul.mubr.bf16.gmra.mrb[0].mxu0 %v2328
        %v2457 = vpop.f32.mrb[0].mxu0
        %v2458 = vpop.f32.mrb[0].mxu0
        %v2459 = vpop.f32.mrb[0].mxu0
        %v2460 = vpop.f32.mrb[0].mxu0
        %2461 = vmatprep.mubr.bf16.mxu0 0
        %2462 = vmatmul.mubr.bf16.gmra.mrb[0].mxu0 %v2331
        %v2463 = vpop.f32.mrb[0].mxu0
        %v2464 = vadd.f32 %v2188, %v2463
        %v2465 = vpop.f32.mrb[0].mxu0
        %v2466 = vpop.f32.mrb[0].mxu0
        %v2467 = vadd.f32 %v2191, %v2466
        %v2468 = vpop.f32.mrb[0].mxu0
        %2469 = vmatprep.mubr.bf16.mxu0 0
        %2470 = vmatmul.mubr.bf16.gmra.mrb[0].mxu0 %v2334
        %v2471 = vpop.f32.mrb[0].mxu0
        %v2472 = vpop.f32.mrb[0].mxu0
        %v2473 = vpop.f32.mrb[0].mxu0
        %v2474 = vpop.f32.mrb[0].mxu0
        %2475 = vmatprep.mubr.bf16.mxu0 0
        %2476 = vmatmul.mubr.bf16.gmra.mrb[0].mxu0 %v2337
        %v2477 = vpop.f32.mrb[0].mxu0
        %v2478 = vadd.f32 %v2202, %v2477
        %v2479 = vpop.f32.mrb[0].mxu0
        %v2480 = vpop.f32.mrb[0].mxu0
        %v2481 = vadd.f32 %v2205, %v2480
        %v2482 = vpop.f32.mrb[0].mxu0
        %2483 = vmatprep.mubr.bf16.mxu0 0
        %2484 = vmatmul.mubr.bf16.gmra.mrb[0].mxu0 %v2340
        %v2485 = vpop.f32.mrb[0].mxu0
        %v2486 = vpop.f32.mrb[0].mxu0
        %v2487 = vpop.f32.mrb[0].mxu0
        %v2488 = vpop.f32.mrb[0].mxu0
        %2489 = vdwg.mxu0
        %v2490 = vld [vmem:[#allocation2] sm:$0xe]
        %v2491 = vld [vmem:[#allocation2 + $0xc] sm:$0xe]
        %v2492 = vld [vmem:[#allocation2 + $0x18] sm:$0xe]
        %v2493 = vld [vmem:[#allocation2 + $0x24] sm:$0xe]
        %v2494 = vld [vmem:[#allocation2 + $0x30] sm:$0xe]
        %v2495 = vld [vmem:[#allocation2 + $0x3c] sm:$0xe]
        %v2496 = vld [vmem:[#allocation2 + $0x48] sm:$0xe]
        %v2497 = vld [vmem:[#allocation2 + $0x54] sm:$0xe]
        %v2498 = vld [vmem:[#allocation2 + $0x60] sm:$0xe]
        %v2499 = vld [vmem:[#allocation2 + $0x6c] sm:$0xe]
        %v2500 = vld [vmem:[#allocation2 + $0x78] sm:$0xe]
        %v2501 = vld [vmem:[#allocation2 + $0x84] sm:$0xe]
        %v2502 = vld [vmem:[#allocation2 + $0x90] sm:$0xe]
        %v2503 = vld [vmem:[#allocation2 + $0x9c] sm:$0xe]
        %v2504 = vld [vmem:[#allocation2 + $0xa8] sm:$0xe]
        %v2505 = vld [vmem:[#allocation2 + $0xb4] sm:$0xe]
        %vm2538 = vcmask 1042432
        %vm2539 = vcmask 1046532
        %vm2540 = vmor %vm2538, %vm2539
        %v2541 = vrot.slane %v2490, 5
        %v2542 = vrot.slane %v2541, 4
        %v2543 = vrot.slane %v1533, 5
        %v2544 = vsel %vm2540, %v2542, %v2543
        %v2545 = vrot.slane %v2543, 4
        %v2546 = vrot.slane %v1565, 5
        %v2547 = vsel %vm2540, %v2545, %v2546
        %v2548 = vrot.slane %v2491, 5
        %v2549 = vrot.slane %v2548, 4
        %v2550 = vrot.slane %v1535, 5
        %v2551 = vsel %vm2540, %v2549, %v2550
        %v2552 = vrot.slane %v2550, 4
        %v2553 = vrot.slane %v1566, 5
        %v2554 = vsel %vm2540, %v2552, %v2553
        %v2555 = vrot.slane %v2492, 5
        %v2556 = vrot.slane %v2555, 4
        %v2557 = vrot.slane %v1537, 5
        %v2558 = vsel %vm2540, %v2556, %v2557
        %v2559 = vrot.slane %v2557, 4
        %v2560 = vrot.slane %v1567, 5
        %v2561 = vsel %vm2540, %v2559, %v2560
        %v2562 = vrot.slane %v2493, 5
        %v2563 = vrot.slane %v2562, 4
        %v2564 = vrot.slane %v1539, 5
        %v2565 = vsel %vm2540, %v2563, %v2564
        %v2566 = vrot.slane %v2564, 4
        %v2567 = vrot.slane %v1568, 5
        %v2568 = vsel %vm2540, %v2566, %v2567
        %v2569 = vrot.slane %v2494, 5
        %v2570 = vrot.slane %v2569, 4
        %v2571 = vrot.slane %v1541, 5
        %v2572 = vsel %vm2540, %v2570, %v2571
        %v2573 = vrot.slane %v2571, 4
        %v2574 = vrot.slane %v1569, 5
        %v2575 = vsel %vm2540, %v2573, %v2574
        %v2576 = vrot.slane %v2495, 5
        %v2577 = vrot.slane %v2576, 4
        %v2578 = vrot.slane %v1543, 5
        %v2579 = vsel %vm2540, %v2577, %v2578
        %v2580 = vrot.slane %v2578, 4
        %v2581 = vrot.slane %v1570, 5
        %v2582 = vsel %vm2540, %v2580, %v2581
        %v2583 = vrot.slane %v2496, 5
        %v2584 = vrot.slane %v2583, 4
        %v2585 = vrot.slane %v1545, 5
        %v2586 = vsel %vm2540, %v2584, %v2585
        %v2587 = vrot.slane %v2585, 4
        %v2588 = vrot.slane %v1571, 5
        %v2589 = vsel %vm2540, %v2587, %v2588
        %v2590 = vrot.slane %v2497, 5
        %v2591 = vrot.slane %v2590, 4
        %v2592 = vrot.slane %v1547, 5
        %v2593 = vsel %vm2540, %v2591, %v2592
        %v2594 = vrot.slane %v2592, 4
        %v2595 = vrot.slane %v1572, 5
        %v2596 = vsel %vm2540, %v2594, %v2595
        %v2597 = vrot.slane %v2498, 5
        %v2598 = vrot.slane %v2597, 4
        %v2599 = vrot.slane %v1549, 5
        %v2600 = vsel %vm2540, %v2598, %v2599
        %v2601 = vrot.slane %v2599, 4
        %v2602 = vrot.slane %v1573, 5
        %v2603 = vsel %vm2540, %v2601, %v2602
        %v2604 = vrot.slane %v2499, 5
        %v2605 = vrot.slane %v2604, 4
        %v2606 = vrot.slane %v1551, 5
        %v2607 = vsel %vm2540, %v2605, %v2606
        %v2608 = vrot.slane %v2606, 4
        %v2609 = vrot.slane %v1574, 5
        %v2610 = vsel %vm2540, %v2608, %v2609
        %v2611 = vrot.slane %v2500, 5
        %v2612 = vrot.slane %v2611, 4
        %v2613 = vrot.slane %v1553, 5
        %v2614 = vsel %vm2540, %v2612, %v2613
        %v2615 = vrot.slane %v2613, 4
        %v2616 = vrot.slane %v1575, 5
        %v2617 = vsel %vm2540, %v2615, %v2616
        %v2618 = vrot.slane %v2501, 5
        %v2619 = vrot.slane %v2618, 4
        %v2620 = vrot.slane %v1555, 5
        %v2621 = vsel %vm2540, %v2619, %v2620
        %v2622 = vrot.slane %v2620, 4
        %v2623 = vrot.slane %v1576, 5
        %v2624 = vsel %vm2540, %v2622, %v2623
        %v2625 = vrot.slane %v2502, 5
        %v2626 = vrot.slane %v2625, 4
        %v2627 = vrot.slane %v1557, 5
        %v2628 = vsel %vm2540, %v2626, %v2627
        %v2629 = vrot.slane %v2627, 4
        %v2630 = vrot.slane %v1577, 5
        %v2631 = vsel %vm2540, %v2629, %v2630
        %v2632 = vrot.slane %v2503, 5
        %v2633 = vrot.slane %v2632, 4
        %v2634 = vrot.slane %v1559, 5
        %v2635 = vsel %vm2540, %v2633, %v2634
        %v2636 = vrot.slane %v2634, 4
        %v2637 = vrot.slane %v1578, 5
        %v2638 = vsel %vm2540, %v2636, %v2637
        %v2639 = vrot.slane %v2504, 5
        %v2640 = vrot.slane %v2639, 4
        %v2641 = vrot.slane %v1561, 5
        %v2642 = vsel %vm2540, %v2640, %v2641
        %v2643 = vrot.slane %v2641, 4
        %v2644 = vrot.slane %v1579, 5
        %v2645 = vsel %vm2540, %v2643, %v2644
        %v2646 = vrot.slane %v2505, 5
        %v2647 = vrot.slane %v2646, 4
        %v2648 = vrot.slane %v1563, 5
        %v2649 = vsel %vm2540, %v2647, %v2648
        %v2650 = vrot.slane %v2648, 4
        %v2651 = vrot.slane %v1580, 5
        %v2652 = vsel %vm2540, %v2650, %v2651
        %s2653 = scalar_lea.vmem %s4, 8
        %v2654 = vld [vmem:[%s2653] sm:$0xf]
        %v2655 = vunpack.c.l.b16 %v2544
        %v2656 = vunpack.c.l.b16 %v2547
        %v2657 = vunpack.c.l.b16 %v2551
        %v2658 = vunpack.c.l.b16 %v2554
        %v2659 = vunpack.c.l.b16 %v2558
        %v2660 = vunpack.c.l.b16 %v2561
        %v2661 = vunpack.c.l.b16 %v2565
        %v2662 = vunpack.c.l.b16 %v2568
        %v2663 = vunpack.c.l.b16 %v2572
        %v2664 = vunpack.c.l.b16 %v2575
        %v2665 = vunpack.c.l.b16 %v2579
        %v2666 = vunpack.c.l.b16 %v2582
        %v2667 = vunpack.c.l.b16 %v2586
        %v2668 = vunpack.c.l.b16 %v2589
        %v2669 = vunpack.c.l.b16 %v2593
        %v2670 = vunpack.c.l.b16 %v2596
        %v2671 = vunpack.c.l.b16 %v2600
        %v2672 = vunpack.c.l.b16 %v2603
        %v2673 = vunpack.c.l.b16 %v2607
        %v2674 = vunpack.c.l.b16 %v2610
        %v2675 = vunpack.c.l.b16 %v2614
        %v2676 = vunpack.c.l.b16 %v2617
        %v2677 = vunpack.c.l.b16 %v2621
        %v2678 = vunpack.c.l.b16 %v2624
        %v2679 = vunpack.c.l.b16 %v2628
        %v2680 = vunpack.c.l.b16 %v2631
        %v2681 = vunpack.c.l.b16 %v2635
        %v2682 = vunpack.c.l.b16 %v2638
        %v2683 = vunpack.c.l.b16 %v2642
        %v2684 = vunpack.c.l.b16 %v2645
        %v2685 = vunpack.c.l.b16 %v2649
        %v2686 = vunpack.c.l.b16 %v2652
        %v2687 = vpack.c.b16 %v2656, %v2655
        %v2688 = vpack.c.b16 %v2658, %v2657
        %v2689 = vpack.c.b16 %v2660, %v2659
        %v2690 = vpack.c.b16 %v2662, %v2661
        %v2691 = vpack.c.b16 %v2664, %v2663
        %v2692 = vpack.c.b16 %v2666, %v2665
        %v2693 = vpack.c.b16 %v2668, %v2667
        %v2694 = vpack.c.b16 %v2670, %v2669
        %v2695 = vpack.c.b16 %v2672, %v2671
        %v2696 = vpack.c.b16 %v2674, %v2673
        %v2697 = vpack.c.b16 %v2676, %v2675
        %v2698 = vpack.c.b16 %v2678, %v2677
        %v2699 = vpack.c.b16 %v2680, %v2679
        %v2700 = vpack.c.b16 %v2682, %v2681
        %v2701 = vpack.c.b16 %v2684, %v2683
        %v2702 = vpack.c.b16 %v2686, %v2685
        %v2704 = vsel %vm553, %v2687, 0
        %v2707 = vsel %vm553, %v2688, 0
        %v2710 = vsel %vm553, %v2689, 0
        %v2713 = vsel %vm553, %v2690, 0
        %v2716 = vsel %vm553, %v2691, 0
        %v2719 = vsel %vm553, %v2692, 0
        %v2722 = vsel %vm553, %v2693, 0
        %v2725 = vsel %vm553, %v2694, 0
        %v2728 = vsel %vm553, %v2695, 0
        %v2731 = vsel %vm553, %v2696, 0
        %v2734 = vsel %vm553, %v2697, 0
        %v2737 = vsel %vm553, %v2698, 0
        %v2740 = vsel %vm553, %v2699, 0
        %v2743 = vsel %vm553, %v2700, 0
        %v2746 = vsel %vm553, %v2701, 0
        %v2749 = vsel %vm553, %v2702, 0
        %v2752 = vsel %vm602, %v2654, 0
        %2754 = vmatprep.subr.bf16.mxu0 0
        %2755 = vmatpush1.bf16.msra.mxu0 %v2752
        %2756 = vmatprep.subr.bf16.mxu0 0
        %2757 = vmatpush1.bf16.msra.mxu0 0
        %2758 = vmatprep.subr.bf16.mxu0 0
        %2759 = vmatpush1.bf16.msra.mxu0 0
        %2760 = vmatprep.subr.bf16.mxu0 0
        %2761 = vmatpush1.bf16.msra.mxu0 0
        %2762 = vmatprep.subr.bf16.mxu0 0
        %2763 = vmatpush1.bf16.msra.mxu0 0
        %2764 = vmatprep.subr.bf16.mxu0 0
        %2765 = vmatpush1.bf16.msra.mxu0 0
        %2766 = vmatprep.subr.bf16.mxu0 0
        %2767 = vmatpush1.bf16.msra.mxu0 0
        %2768 = vmatprep.subr.bf16.mxu0 0
        %2769 = vmatpush1.bf16.msra.mxu0 0
        %2770 = vmatprep.subr.bf16.mxu0 0
        %2771 = vmatpush1.bf16.msra.mxu0 0
        %2772 = vmatprep.subr.bf16.mxu0 0
        %2773 = vmatpush1.bf16.msra.mxu0 0
        %2774 = vmatprep.subr.bf16.mxu0 0
        %2775 = vmatpush1.bf16.msra.mxu0 0
        %2776 = vmatprep.subr.bf16.mxu0 0
        %2777 = vmatpush1.bf16.msra.mxu0 0
        %2778 = vmatprep.subr.bf16.mxu0 0
        %2779 = vmatpush1.bf16.msra.mxu0 0
        %2780 = vmatprep.subr.bf16.mxu0 0
        %2781 = vmatpush1.bf16.msra.mxu0 0
        %2782 = vmatprep.subr.bf16.mxu0 0
        %2783 = vmatpush1.bf16.msra.mxu0 0
        %2784 = vmatprep.subr.bf16.mxu0 0
        %2785 = vmatpush1.bf16.msra.mxu0 0
        %2786 = vmatprep.mubr.bf16.mxu0 0
        %2787 = vmatmul.mubr.bf16.gmra.mrb[0].mxu0 %v2704
        %v2788 = vpop.f32.mrb[0].mxu0
        %v2789 = vadd.f32 0.0, %v2788
        %v2790 = vpop.f32.mrb[0].mxu0
        %v2791 = vpop.f32.mrb[0].mxu0
        %v2792 = vadd.f32 0.0, %v2791
        %v2793 = vpop.f32.mrb[0].mxu0
        %2794 = vmatprep.mubr.bf16.mxu0 0
        %2795 = vmatmul.mubr.bf16.gmra.mrb[0].mxu0 %v2707
        %v2796 = vpop.f32.mrb[0].mxu0
        %v2797 = vpop.f32.mrb[0].mxu0
        %v2798 = vpop.f32.mrb[0].mxu0
        %v2799 = vpop.f32.mrb[0].mxu0
        %2800 = vmatprep.mubr.bf16.mxu0 0
        %2801 = vmatmul.mubr.bf16.gmra.mrb[0].mxu0 %v2710
        %v2802 = vpop.f32.mrb[0].mxu0
        %v2803 = vadd.f32 0.0, %v2802
        %v2804 = vpop.f32.mrb[0].mxu0
        %v2805 = vpop.f32.mrb[0].mxu0
        %v2806 = vadd.f32 0.0, %v2805
        %v2807 = vpop.f32.mrb[0].mxu0
        %2808 = vmatprep.mubr.bf16.mxu0 0
        %2809 = vmatmul.mubr.bf16.gmra.mrb[0].mxu0 %v2713
        %v2810 = vpop.f32.mrb[0].mxu0
        %v2811 = vpop.f32.mrb[0].mxu0
        %v2812 = vpop.f32.mrb[0].mxu0
        %v2813 = vpop.f32.mrb[0].mxu0
        %2814 = vmatprep.mubr.bf16.mxu0 0
        %2815 = vmatmul.mubr.bf16.gmra.mrb[0].mxu0 %v2716
        %v2816 = vpop.f32.mrb[0].mxu0
        %v2817 = vadd.f32 0.0, %v2816
        %v2818 = vpop.f32.mrb[0].mxu0
        %v2819 = vpop.f32.mrb[0].mxu0
        %v2820 = vadd.f32 0.0, %v2819
        %v2821 = vpop.f32.mrb[0].mxu0
        %2822 = vmatprep.mubr.bf16.mxu0 0
        %2823 = vmatmul.mubr.bf16.gmra.mrb[0].mxu0 %v2719
        %v2824 = vpop.f32.mrb[0].mxu0
        %v2825 = vpop.f32.mrb[0].mxu0
        %v2826 = vpop.f32.mrb[0].mxu0
        %v2827 = vpop.f32.mrb[0].mxu0
        %2828 = vmatprep.mubr.bf16.mxu0 0
        %2829 = vmatmul.mubr.bf16.gmra.mrb[0].mxu0 %v2722
        %v2830 = vpop.f32.mrb[0].mxu0
        %v2831 = vadd.f32 0.0, %v2830
        %v2832 = vpop.f32.mrb[0].mxu0
        %v2833 = vpop.f32.mrb[0].mxu0
        %v2834 = vadd.f32 0.0, %v2833
        %v2835 = vpop.f32.mrb[0].mxu0
        %2836 = vmatprep.mubr.bf16.mxu0 0
        %2837 = vmatmul.mubr.bf16.gmra.mrb[0].mxu0 %v2725
        %v2838 = vpop.f32.mrb[0].mxu0
        %v2839 = vpop.f32.mrb[0].mxu0
        %v2840 = vpop.f32.mrb[0].mxu0
        %v2841 = vpop.f32.mrb[0].mxu0
        %2842 = vmatprep.mubr.bf16.mxu0 0
        %2843 = vmatmul.mubr.bf16.gmra.mrb[0].mxu0 %v2728
        %v2844 = vpop.f32.mrb[0].mxu0
        %v2845 = vadd.f32 0.0, %v2844
        %v2846 = vpop.f32.mrb[0].mxu0
        %v2847 = vpop.f32.mrb[0].mxu0
        %v2848 = vadd.f32 0.0, %v2847
        %v2849 = vpop.f32.mrb[0].mxu0
        %2850 = vmatprep.mubr.bf16.mxu0 0
        %2851 = vmatmul.mubr.bf16.gmra.mrb[0].mxu0 %v2731
        %v2852 = vpop.f32.mrb[0].mxu0
        %v2853 = vpop.f32.mrb[0].mxu0
        %v2854 = vpop.f32.mrb[0].mxu0
        %v2855 = vpop.f32.mrb[0].mxu0
        %2856 = vmatprep.mubr.bf16.mxu0 0
        %2857 = vmatmul.mubr.bf16.gmra.mrb[0].mxu0 %v2734
        %v2858 = vpop.f32.mrb[0].mxu0
        %v2859 = vadd.f32 0.0, %v2858
        %v2860 = vpop.f32.mrb[0].mxu0
        %v2861 = vpop.f32.mrb[0].mxu0
        %v2862 = vadd.f32 0.0, %v2861
        %v2863 = vpop.f32.mrb[0].mxu0
        %2864 = vmatprep.mubr.bf16.mxu0 0
        %2865 = vmatmul.mubr.bf16.gmra.mrb[0].mxu0 %v2737
        %v2866 = vpop.f32.mrb[0].mxu0
        %v2867 = vpop.f32.mrb[0].mxu0
        %v2868 = vpop.f32.mrb[0].mxu0
        %v2869 = vpop.f32.mrb[0].mxu0
        %2870 = vmatprep.mubr.bf16.mxu0 0
        %2871 = vmatmul.mubr.bf16.gmra.mrb[0].mxu0 %v2740
        %v2872 = vpop.f32.mrb[0].mxu0
        %v2873 = vadd.f32 0.0, %v2872
        %v2874 = vpop.f32.mrb[0].mxu0
        %v2875 = vpop.f32.mrb[0].mxu0
        %v2876 = vadd.f32 0.0, %v2875
        %v2877 = vpop.f32.mrb[0].mxu0
        %2878 = vmatprep.mubr.bf16.mxu0 0
        %2879 = vmatmul.mubr.bf16.gmra.mrb[0].mxu0 %v2743
        %v2880 = vpop.f32.mrb[0].mxu0
        %v2881 = vpop.f32.mrb[0].mxu0
        %v2882 = vpop.f32.mrb[0].mxu0
        %v2883 = vpop.f32.mrb[0].mxu0
        %2884 = vmatprep.mubr.bf16.mxu0 0
        %2885 = vmatmul.mubr.bf16.gmra.mrb[0].mxu0 %v2746
        %v2886 = vpop.f32.mrb[0].mxu0
        %v2887 = vadd.f32 0.0, %v2886
        %v2888 = vpop.f32.mrb[0].mxu0
        %v2889 = vpop.f32.mrb[0].mxu0
        %v2890 = vadd.f32 0.0, %v2889
        %v2891 = vpop.f32.mrb[0].mxu0
        %2892 = vmatprep.mubr.bf16.mxu0 0
        %2893 = vmatmul.mubr.bf16.gmra.mrb[0].mxu0 %v2749
        %v2894 = vpop.f32.mrb[0].mxu0
        %v2895 = vpop.f32.mrb[0].mxu0
        %v2896 = vpop.f32.mrb[0].mxu0
        %v2897 = vpop.f32.mrb[0].mxu0
        %2898 = vdwg.mxu0
        %v2899 = vadd.f32 %v2380, %v2789
        %v2900 = vadd.f32 %v2383, %v2792
        %v2901 = vadd.f32 %v2394, %v2803
        %v2902 = vadd.f32 %v2397, %v2806
        %v2903 = vadd.f32 %v2408, %v2817
        %v2904 = vadd.f32 %v2411, %v2820
        %v2905 = vadd.f32 %v2422, %v2831
        %v2906 = vadd.f32 %v2425, %v2834
        %v2907 = vadd.f32 %v2436, %v2845
        %v2908 = vadd.f32 %v2439, %v2848
        %v2909 = vadd.f32 %v2450, %v2859
        %v2910 = vadd.f32 %v2453, %v2862
        %v2911 = vadd.f32 %v2464, %v2873
        %v2912 = vadd.f32 %v2467, %v2876
        %v2913 = vadd.f32 %v2478, %v2887
        %v2914 = vadd.f32 %v2481, %v2890
        %v2915 = vld [vmem:[%s1417] sm:$0xf]
        %v2916 = vld [vmem:[%s1417 + $0x4] sm:$0xf]
        %v2917 = vld [vmem:[%s1417 + $0xc] sm:$0xf]
        %v2918 = vld [vmem:[%s1417 + $0x10] sm:$0xf]
        %v2919 = vld [vmem:[%s1417 + $0x18] sm:$0xf]
        %v2920 = vld [vmem:[%s1417 + $0x1c] sm:$0xf]
        %v2921 = vld [vmem:[%s1417 + $0x24] sm:$0xf]
        %v2922 = vld [vmem:[%s1417 + $0x28] sm:$0xf]
        %v2923 = vld [vmem:[%s1417 + $0x30] sm:$0xf]
        %v2924 = vld [vmem:[%s1417 + $0x34] sm:$0xf]
        %v2925 = vld [vmem:[%s1417 + $0x3c] sm:$0xf]
        %v2926 = vld [vmem:[%s1417 + $0x40] sm:$0xf]
        %v2927 = vld [vmem:[%s1417 + $0x48] sm:$0xf]
        %v2928 = vld [vmem:[%s1417 + $0x4c] sm:$0xf]
        %v2929 = vld [vmem:[%s1417 + $0x54] sm:$0xf]
        %v2930 = vld [vmem:[%s1417 + $0x58] sm:$0xf]
        %v2931 = vld [vmem:[%s1417 + $0x60] sm:$0xf]
        %v2932 = vld [vmem:[%s1417 + $0x64] sm:$0xf]
        %v2933 = vld [vmem:[%s1417 + $0x6c] sm:$0xf]
        %v2934 = vld [vmem:[%s1417 + $0x70] sm:$0xf]
        %v2935 = vld [vmem:[%s1417 + $0x78] sm:$0xf]
        %v2936 = vld [vmem:[%s1417 + $0x7c] sm:$0xf]
        %v2937 = vld [vmem:[%s1417 + $0x84] sm:$0xf]
        %v2938 = vld [vmem:[%s1417 + $0x88] sm:$0xf]
        %v2939 = vld [vmem:[%s1417 + $0x90] sm:$0xf]
        %v2940 = vld [vmem:[%s1417 + $0x94] sm:$0xf]
        %v2941 = vld [vmem:[%s1417 + $0x9c] sm:$0xf]
        %v2942 = vld [vmem:[%s1417 + $0xa0] sm:$0xf]
        %v2943 = vld [vmem:[%s1417 + $0xa8] sm:$0xf]
        %v2944 = vld [vmem:[%s1417 + $0xac] sm:$0xf]
        %v2945 = vld [vmem:[%s1417 + $0xb4] sm:$0xf]
        %v2946 = vld [vmem:[%s1417 + $0xb8] sm:$0xf]
        %s2947 = scalar_lea.vmem %s4, 12
        %v2948 = vld [vmem:[%s2947] sm:$0xf]
        %v2981 = vunpack.c.l.b16 %v2915
        %v2982 = vunpack.c.l.b16 %v2916
        %v2983 = vunpack.c.l.b16 %v2917
        %v2984 = vunpack.c.l.b16 %v2918
        %v2985 = vunpack.c.l.b16 %v2919
        %v2986 = vunpack.c.l.b16 %v2920
        %v2987 = vunpack.c.l.b16 %v2921
        %v2988 = vunpack.c.l.b16 %v2922
        %v2989 = vunpack.c.l.b16 %v2923
        %v2990 = vunpack.c.l.b16 %v2924
        %v2991 = vunpack.c.l.b16 %v2925
        %v2992 = vunpack.c.l.b16 %v2926
        %v2993 = vunpack.c.l.b16 %v2927
        %v2994 = vunpack.c.l.b16 %v2928
        %v2995 = vunpack.c.l.b16 %v2929
        %v2996 = vunpack.c.l.b16 %v2930
        %v2997 = vunpack.c.l.b16 %v2931
        %v2998 = vunpack.c.l.b16 %v2932
        %v2999 = vunpack.c.l.b16 %v2933
        %v3000 = vunpack.c.l.b16 %v2934
        %v3001 = vunpack.c.l.b16 %v2935
        %v3002 = vunpack.c.l.b16 %v2936
        %v3003 = vunpack.c.l.b16 %v2937
        %v3004 = vunpack.c.l.b16 %v2938
        %v3005 = vunpack.c.l.b16 %v2939
        %v3006 = vunpack.c.l.b16 %v2940
        %v3007 = vunpack.c.l.b16 %v2941
        %v3008 = vunpack.c.l.b16 %v2942
        %v3009 = vunpack.c.l.b16 %v2943
        %v3010 = vunpack.c.l.b16 %v2944
        %v3011 = vunpack.c.l.b16 %v2945
        %v3012 = vunpack.c.l.b16 %v2946
        %v3013 = vpack.c.b16 %v2982, %v2981
        %v3014 = vpack.c.b16 %v2984, %v2983
        %v3015 = vpack.c.b16 %v2986, %v2985
        %v3016 = vpack.c.b16 %v2988, %v2987
        %v3017 = vpack.c.b16 %v2990, %v2989
        %v3018 = vpack.c.b16 %v2992, %v2991
        %v3019 = vpack.c.b16 %v2994, %v2993
        %v3020 = vpack.c.b16 %v2996, %v2995
        %v3021 = vpack.c.b16 %v2998, %v2997
        %v3022 = vpack.c.b16 %v3000, %v2999
        %v3023 = vpack.c.b16 %v3002, %v3001
        %v3024 = vpack.c.b16 %v3004, %v3003
        %v3025 = vpack.c.b16 %v3006, %v3005
        %v3026 = vpack.c.b16 %v3008, %v3007
        %v3027 = vpack.c.b16 %v3010, %v3009
        %v3028 = vpack.c.b16 %v3012, %v3011
        %v3030 = vsel %vm553, %v3013, 0
        %v3033 = vsel %vm553, %v3014, 0
        %v3036 = vsel %vm553, %v3015, 0
        %v3039 = vsel %vm553, %v3016, 0
        %v3042 = vsel %vm553, %v3017, 0
        %v3045 = vsel %vm553, %v3018, 0
        %v3048 = vsel %vm553, %v3019, 0
        %v3051 = vsel %vm553, %v3020, 0
        %v3054 = vsel %vm553, %v3021, 0
        %v3057 = vsel %vm553, %v3022, 0
        %v3060 = vsel %vm553, %v3023, 0
        %v3063 = vsel %vm553, %v3024, 0
        %v3066 = vsel %vm553, %v3025, 0
        %v3069 = vsel %vm553, %v3026, 0
        %v3072 = vsel %vm553, %v3027, 0
        %v3075 = vsel %vm553, %v3028, 0
        %v3078 = vsel %vm602, %v2948, 0
        %3080 = vmatprep.subr.bf16.mxu0 0
        %3081 = vmatpush1.bf16.msra.mxu0 %v3078
        %3082 = vmatprep.subr.bf16.mxu0 0
        %3083 = vmatpush1.bf16.msra.mxu0 0
        %3084 = vmatprep.subr.bf16.mxu0 0
        %3085 = vmatpush1.bf16.msra.mxu0 0
        %3086 = vmatprep.subr.bf16.mxu0 0
        %3087 = vmatpush1.bf16.msra.mxu0 0
        %3088 = vmatprep.subr.bf16.mxu0 0
        %3089 = vmatpush1.bf16.msra.mxu0 0
        %3090 = vmatprep.subr.bf16.mxu0 0
        %3091 = vmatpush1.bf16.msra.mxu0 0
        %3092 = vmatprep.subr.bf16.mxu0 0
        %3093 = vmatpush1.bf16.msra.mxu0 0
        %3094 = vmatprep.subr.bf16.mxu0 0
        %3095 = vmatpush1.bf16.msra.mxu0 0
        %3096 = vmatprep.subr.bf16.mxu0 0
        %3097 = vmatpush1.bf16.msra.mxu0 0
        %3098 = vmatprep.subr.bf16.mxu0 0
        %3099 = vmatpush1.bf16.msra.mxu0 0
        %3100 = vmatprep.subr.bf16.mxu0 0
        %3101 = vmatpush1.bf16.msra.mxu0 0
        %3102 = vmatprep.subr.bf16.mxu0 0
        %3103 = vmatpush1.bf16.msra.mxu0 0
        %3104 = vmatprep.subr.bf16.mxu0 0
        %3105 = vmatpush1.bf16.msra.mxu0 0
        %3106 = vmatprep.subr.bf16.mxu0 0
        %3107 = vmatpush1.bf16.msra.mxu0 0
        %3108 = vmatprep.subr.bf16.mxu0 0
        %3109 = vmatpush1.bf16.msra.mxu0 0
        %3110 = vmatprep.subr.bf16.mxu0 0
        %3111 = vmatpush1.bf16.msra.mxu0 0
        %3112 = vmatprep.mubr.bf16.mxu0 0
        %3113 = vmatmul.mubr.bf16.gmra.mrb[0].mxu0 %v3030
        %v3114 = vpop.f32.mrb[0].mxu0
        %v3115 = vadd.f32 0.0, %v3114
        %v3116 = vpop.f32.mrb[0].mxu0
        %v3117 = vpop.f32.mrb[0].mxu0
        %v3118 = vadd.f32 0.0, %v3117
        %v3119 = vpop.f32.mrb[0].mxu0
        %3120 = vmatprep.mubr.bf16.mxu0 0
        %3121 = vmatmul.mubr.bf16.gmra.mrb[0].mxu0 %v3033
        %v3122 = vpop.f32.mrb[0].mxu0
        %v3123 = vpop.f32.mrb[0].mxu0
        %v3124 = vpop.f32.mrb[0].mxu0
        %v3125 = vpop.f32.mrb[0].mxu0
        %3126 = vmatprep.mubr.bf16.mxu0 0
        %3127 = vmatmul.mubr.bf16.gmra.mrb[0].mxu0 %v3036
        %v3128 = vpop.f32.mrb[0].mxu0
        %v3129 = vadd.f32 0.0, %v3128
        %v3130 = vpop.f32.mrb[0].mxu0
        %v3131 = vpop.f32.mrb[0].mxu0
        %v3132 = vadd.f32 0.0, %v3131
        %v3133 = vpop.f32.mrb[0].mxu0
        %3134 = vmatprep.mubr.bf16.mxu0 0
        %3135 = vmatmul.mubr.bf16.gmra.mrb[0].mxu0 %v3039
        %v3136 = vpop.f32.mrb[0].mxu0
        %v3137 = vpop.f32.mrb[0].mxu0
        %v3138 = vpop.f32.mrb[0].mxu0
        %v3139 = vpop.f32.mrb[0].mxu0
        %3140 = vmatprep.mubr.bf16.mxu0 0
        %3141 = vmatmul.mubr.bf16.gmra.mrb[0].mxu0 %v3042
        %v3142 = vpop.f32.mrb[0].mxu0
        %v3143 = vadd.f32 0.0, %v3142
        %v3144 = vpop.f32.mrb[0].mxu0
        %v3145 = vpop.f32.mrb[0].mxu0
        %v3146 = vadd.f32 0.0, %v3145
        %v3147 = vpop.f32.mrb[0].mxu0
        %3148 = vmatprep.mubr.bf16.mxu0 0
        %3149 = vmatmul.mubr.bf16.gmra.mrb[0].mxu0 %v3045
        %v3150 = vpop.f32.mrb[0].mxu0
        %v3151 = vpop.f32.mrb[0].mxu0
        %v3152 = vpop.f32.mrb[0].mxu0
        %v3153 = vpop.f32.mrb[0].mxu0
        %3154 = vmatprep.mubr.bf16.mxu0 0
        %3155 = vmatmul.mubr.bf16.gmra.mrb[0].mxu0 %v3048
        %v3156 = vpop.f32.mrb[0].mxu0
        %v3157 = vadd.f32 0.0, %v3156
        %v3158 = vpop.f32.mrb[0].mxu0
        %v3159 = vpop.f32.mrb[0].mxu0
        %v3160 = vadd.f32 0.0, %v3159
        %v3161 = vpop.f32.mrb[0].mxu0
        %3162 = vmatprep.mubr.bf16.mxu0 0
        %3163 = vmatmul.mubr.bf16.gmra.mrb[0].mxu0 %v3051
        %v3164 = vpop.f32.mrb[0].mxu0
        %v3165 = vpop.f32.mrb[0].mxu0
        %v3166 = vpop.f32.mrb[0].mxu0
        %v3167 = vpop.f32.mrb[0].mxu0
        %3168 = vmatprep.mubr.bf16.mxu0 0
        %3169 = vmatmul.mubr.bf16.gmra.mrb[0].mxu0 %v3054
        %v3170 = vpop.f32.mrb[0].mxu0
        %v3171 = vadd.f32 0.0, %v3170
        %v3172 = vpop.f32.mrb[0].mxu0
        %v3173 = vpop.f32.mrb[0].mxu0
        %v3174 = vadd.f32 0.0, %v3173
        %v3175 = vpop.f32.mrb[0].mxu0
        %3176 = vmatprep.mubr.bf16.mxu0 0
        %3177 = vmatmul.mubr.bf16.gmra.mrb[0].mxu0 %v3057
        %v3178 = vpop.f32.mrb[0].mxu0
        %v3179 = vpop.f32.mrb[0].mxu0
        %v3180 = vpop.f32.mrb[0].mxu0
        %v3181 = vpop.f32.mrb[0].mxu0
        %3182 = vmatprep.mubr.bf16.mxu0 0
        %3183 = vmatmul.mubr.bf16.gmra.mrb[0].mxu0 %v3060
        %v3184 = vpop.f32.mrb[0].mxu0
        %v3185 = vadd.f32 0.0, %v3184
        %v3186 = vpop.f32.mrb[0].mxu0
        %v3187 = vpop.f32.mrb[0].mxu0
        %v3188 = vadd.f32 0.0, %v3187
        %v3189 = vpop.f32.mrb[0].mxu0
        %3190 = vmatprep.mubr.bf16.mxu0 0
        %3191 = vmatmul.mubr.bf16.gmra.mrb[0].mxu0 %v3063
        %v3192 = vpop.f32.mrb[0].mxu0
        %v3193 = vpop.f32.mrb[0].mxu0
        %v3194 = vpop.f32.mrb[0].mxu0
        %v3195 = vpop.f32.mrb[0].mxu0
        %3196 = vmatprep.mubr.bf16.mxu0 0
        %3197 = vmatmul.mubr.bf16.gmra.mrb[0].mxu0 %v3066
        %v3198 = vpop.f32.mrb[0].mxu0
        %v3199 = vadd.f32 0.0, %v3198
        %v3200 = vpop.f32.mrb[0].mxu0
        %v3201 = vpop.f32.mrb[0].mxu0
        %v3202 = vadd.f32 0.0, %v3201
        %v3203 = vpop.f32.mrb[0].mxu0
        %3204 = vmatprep.mubr.bf16.mxu0 0
        %3205 = vmatmul.mubr.bf16.gmra.mrb[0].mxu0 %v3069
        %v3206 = vpop.f32.mrb[0].mxu0
        %v3207 = vpop.f32.mrb[0].mxu0
        %v3208 = vpop.f32.mrb[0].mxu0
        %v3209 = vpop.f32.mrb[0].mxu0
        %3210 = vmatprep.mubr.bf16.mxu0 0
        %3211 = vmatmul.mubr.bf16.gmra.mrb[0].mxu0 %v3072
        %v3212 = vpop.f32.mrb[0].mxu0
        %v3213 = vadd.f32 0.0, %v3212
        %v3214 = vpop.f32.mrb[0].mxu0
        %v3215 = vpop.f32.mrb[0].mxu0
        %v3216 = vadd.f32 0.0, %v3215
        %v3217 = vpop.f32.mrb[0].mxu0
        %3218 = vmatprep.mubr.bf16.mxu0 0
        %3219 = vmatmul.mubr.bf16.gmra.mrb[0].mxu0 %v3075
        %v3220 = vpop.f32.mrb[0].mxu0
        %v3221 = vpop.f32.mrb[0].mxu0
        %v3222 = vpop.f32.mrb[0].mxu0
        %v3223 = vpop.f32.mrb[0].mxu0
        %3224 = vdwg.mxu0
        %v3225 = vadd.f32 %v2899, %v3115
        %v3226 = vadd.f32 %v2900, %v3118
        %v3227 = vadd.f32 %v2901, %v3129
        %v3228 = vadd.f32 %v2902, %v3132
        %v3229 = vadd.f32 %v2903, %v3143
        %v3230 = vadd.f32 %v2904, %v3146
        %v3231 = vadd.f32 %v2905, %v3157
        %v3232 = vadd.f32 %v2906, %v3160
        %v3233 = vadd.f32 %v2907, %v3171
        %v3234 = vadd.f32 %v2908, %v3174
        %v3235 = vadd.f32 %v2909, %v3185
        %v3236 = vadd.f32 %v2910, %v3188
        %v3237 = vadd.f32 %v2911, %v3199
        %v3238 = vadd.f32 %v2912, %v3202
        %v3239 = vadd.f32 %v2913, %v3213
        %v3240 = vadd.f32 %v2914, %v3216
        %v3241 = vld [vmem:[%s1417] sm:$0xf]
        %v3242 = vld [vmem:[%s1417 + $0x4] sm:$0xf]
        %v3243 = vld [vmem:[%s1417 + $0x8] sm:$0x1]
        %v3244 = vld [vmem:[%s1417 + $0xc] sm:$0xf]
        %v3245 = vld [vmem:[%s1417 + $0x10] sm:$0xf]
        %v3246 = vld [vmem:[%s1417 + $0x14] sm:$0x1]
        %v3247 = vld [vmem:[%s1417 + $0x18] sm:$0xf]
        %v3248 = vld [vmem:[%s1417 + $0x1c] sm:$0xf]
        %v3249 = vld [vmem:[%s1417 + $0x20] sm:$0x1]
        %v3250 = vld [vmem:[%s1417 + $0x24] sm:$0xf]
        %v3251 = vld [vmem:[%s1417 + $0x28] sm:$0xf]
        %v3252 = vld [vmem:[%s1417 + $0x2c] sm:$0x1]
        %v3253 = vld [vmem:[%s1417 + $0x30] sm:$0xf]
        %v3254 = vld [vmem:[%s1417 + $0x34] sm:$0xf]
        %v3255 = vld [vmem:[%s1417 + $0x38] sm:$0x1]
        %v3256 = vld [vmem:[%s1417 + $0x3c] sm:$0xf]
        %v3257 = vld [vmem:[%s1417 + $0x40] sm:$0xf]
        %v3258 = vld [vmem:[%s1417 + $0x44] sm:$0x1]
        %v3259 = vld [vmem:[%s1417 + $0x48] sm:$0xf]
        %v3260 = vld [vmem:[%s1417 + $0x4c] sm:$0xf]
        %v3261 = vld [vmem:[%s1417 + $0x50] sm:$0x1]
        %v3262 = vld [vmem:[%s1417 + $0x54] sm:$0xf]
        %v3263 = vld [vmem:[%s1417 + $0x58] sm:$0xf]
        %v3264 = vld [vmem:[%s1417 + $0x5c] sm:$0x1]
        %v3265 = vld [vmem:[%s1417 + $0x60] sm:$0xf]
        %v3266 = vld [vmem:[%s1417 + $0x64] sm:$0xf]
        %v3267 = vld [vmem:[%s1417 + $0x68] sm:$0x1]
        %v3268 = vld [vmem:[%s1417 + $0x6c] sm:$0xf]
        %v3269 = vld [vmem:[%s1417 + $0x70] sm:$0xf]
        %v3270 = vld [vmem:[%s1417 + $0x74] sm:$0x1]
        %v3271 = vld [vmem:[%s1417 + $0x78] sm:$0xf]
        %v3272 = vld [vmem:[%s1417 + $0x7c] sm:$0xf]
        %v3273 = vld [vmem:[%s1417 + $0x80] sm:$0x1]
        %v3274 = vld [vmem:[%s1417 + $0x84] sm:$0xf]
        %v3275 = vld [vmem:[%s1417 + $0x88] sm:$0xf]
        %v3276 = vld [vmem:[%s1417 + $0x8c] sm:$0x1]
        %v3277 = vld [vmem:[%s1417 + $0x90] sm:$0xf]
        %v3278 = vld [vmem:[%s1417 + $0x94] sm:$0xf]
        %v3279 = vld [vmem:[%s1417 + $0x98] sm:$0x1]
        %v3280 = vld [vmem:[%s1417 + $0x9c] sm:$0xf]
        %v3281 = vld [vmem:[%s1417 + $0xa0] sm:$0xf]
        %v3282 = vld [vmem:[%s1417 + $0xa4] sm:$0x1]
        %v3283 = vld [vmem:[%s1417 + $0xa8] sm:$0xf]
        %v3284 = vld [vmem:[%s1417 + $0xac] sm:$0xf]
        %v3285 = vld [vmem:[%s1417 + $0xb0] sm:$0x1]
        %v3286 = vld [vmem:[%s1417 + $0xb4] sm:$0xf]
        %v3287 = vld [vmem:[%s1417 + $0xb8] sm:$0xf]
        %v3288 = vld [vmem:[%s1417 + $0xbc] sm:$0x1]
        %v3290 = vshrl.u32 %v3241, 16
        %v3292 = vrot.slane %v3290, 4
        %v3293 = vshll.u32 %v3241, 16
        %v3295 = vrot.slane %v3293, 5
        %v3296 = vor.u32 %v3292, %v3295
        %v3297 = vrot.slane %v3296, 4
        %v3299 = vshll.u32 %v3242, 16
        %v3301 = vrot.slane %v3299, 5
        %v3302 = vsel %vm1583, %v3297, %v3301
        %v3303 = vshrl.u32 %v3242, 16
        %v3305 = vrot.slane %v3303, 4
        %v3306 = vor.u32 %v3305, %v3301
        %v3307 = vrot.slane %v3306, 4
        %v3309 = vshll.u32 %v3243, 16
        %v3311 = vrot.slane %v3309, 5
        %v3312 = vsel %vm1583, %v3307, %v3311
        %v3314 = vshrl.u32 %v3244, 16
        %v3316 = vrot.slane %v3314, 4
        %v3317 = vshll.u32 %v3244, 16
        %v3319 = vrot.slane %v3317, 5
        %v3320 = vor.u32 %v3316, %v3319
        %v3321 = vrot.slane %v3320, 4
        %v3323 = vshll.u32 %v3245, 16
        %v3325 = vrot.slane %v3323, 5
        %v3326 = vsel %vm1583, %v3321, %v3325
        %v3327 = vshrl.u32 %v3245, 16
        %v3329 = vrot.slane %v3327, 4
        %v3330 = vor.u32 %v3329, %v3325
        %v3331 = vrot.slane %v3330, 4
        %v3333 = vshll.u32 %v3246, 16
        %v3335 = vrot.slane %v3333, 5
        %v3336 = vsel %vm1583, %v3331, %v3335
        %v3338 = vshrl.u32 %v3247, 16
        %v3340 = vrot.slane %v3338, 4
        %v3341 = vshll.u32 %v3247, 16
        %v3343 = vrot.slane %v3341, 5
        %v3344 = vor.u32 %v3340, %v3343
        %v3345 = vrot.slane %v3344, 4
        %v3347 = vshll.u32 %v3248, 16
        %v3349 = vrot.slane %v3347, 5
        %v3350 = vsel %vm1583, %v3345, %v3349
        %v3351 = vshrl.u32 %v3248, 16
        %v3353 = vrot.slane %v3351, 4
        %v3354 = vor.u32 %v3353, %v3349
        %v3355 = vrot.slane %v3354, 4
        %v3357 = vshll.u32 %v3249, 16
        %v3359 = vrot.slane %v3357, 5
        %v3360 = vsel %vm1583, %v3355, %v3359
        %v3362 = vshrl.u32 %v3250, 16
        %v3364 = vrot.slane %v3362, 4
        %v3365 = vshll.u32 %v3250, 16
        %v3367 = vrot.slane %v3365, 5
        %v3368 = vor.u32 %v3364, %v3367
        %v3369 = vrot.slane %v3368, 4
        %v3371 = vshll.u32 %v3251, 16
        %v3373 = vrot.slane %v3371, 5
        %v3374 = vsel %vm1583, %v3369, %v3373
        %v3375 = vshrl.u32 %v3251, 16
        %v3377 = vrot.slane %v3375, 4
        %v3378 = vor.u32 %v3377, %v3373
        %v3379 = vrot.slane %v3378, 4
        %v3381 = vshll.u32 %v3252, 16
        %v3383 = vrot.slane %v3381, 5
        %v3384 = vsel %vm1583, %v3379, %v3383
        %v3386 = vshrl.u32 %v3253, 16
        %v3388 = vrot.slane %v3386, 4
        %v3389 = vshll.u32 %v3253, 16
        %v3391 = vrot.slane %v3389, 5
        %v3392 = vor.u32 %v3388, %v3391
        %v3393 = vrot.slane %v3392, 4
        %v3395 = vshll.u32 %v3254, 16
        %v3397 = vrot.slane %v3395, 5
        %v3398 = vsel %vm1583, %v3393, %v3397
        %v3399 = vshrl.u32 %v3254, 16
        %v3401 = vrot.slane %v3399, 4
        %v3402 = vor.u32 %v3401, %v3397
        %v3403 = vrot.slane %v3402, 4
        %v3405 = vshll.u32 %v3255, 16
        %v3407 = vrot.slane %v3405, 5
        %v3408 = vsel %vm1583, %v3403, %v3407
        %v3410 = vshrl.u32 %v3256, 16
        %v3412 = vrot.slane %v3410, 4
        %v3413 = vshll.u32 %v3256, 16
        %v3415 = vrot.slane %v3413, 5
        %v3416 = vor.u32 %v3412, %v3415
        %v3417 = vrot.slane %v3416, 4
        %v3419 = vshll.u32 %v3257, 16
        %v3421 = vrot.slane %v3419, 5
        %v3422 = vsel %vm1583, %v3417, %v3421
        %v3423 = vshrl.u32 %v3257, 16
        %v3425 = vrot.slane %v3423, 4
        %v3426 = vor.u32 %v3425, %v3421
        %v3427 = vrot.slane %v3426, 4
        %v3429 = vshll.u32 %v3258, 16
        %v3431 = vrot.slane %v3429, 5
        %v3432 = vsel %vm1583, %v3427, %v3431
        %v3434 = vshrl.u32 %v3259, 16
        %v3436 = vrot.slane %v3434, 4
        %v3437 = vshll.u32 %v3259, 16
        %v3439 = vrot.slane %v3437, 5
        %v3440 = vor.u32 %v3436, %v3439
        %v3441 = vrot.slane %v3440, 4
        %v3443 = vshll.u32 %v3260, 16
        %v3445 = vrot.slane %v3443, 5
        %v3446 = vsel %vm1583, %v3441, %v3445
        %v3447 = vshrl.u32 %v3260, 16
        %v3449 = vrot.slane %v3447, 4
        %v3450 = vor.u32 %v3449, %v3445
        %v3451 = vrot.slane %v3450, 4
        %v3453 = vshll.u32 %v3261, 16
        %v3455 = vrot.slane %v3453, 5
        %v3456 = vsel %vm1583, %v3451, %v3455
        %v3458 = vshrl.u32 %v3262, 16
        %v3460 = vrot.slane %v3458, 4
        %v3461 = vshll.u32 %v3262, 16
        %v3463 = vrot.slane %v3461, 5
        %v3464 = vor.u32 %v3460, %v3463
        %v3465 = vrot.slane %v3464, 4
        %v3467 = vshll.u32 %v3263, 16
        %v3469 = vrot.slane %v3467, 5
        %v3470 = vsel %vm1583, %v3465, %v3469
        %v3471 = vshrl.u32 %v3263, 16
        %v3473 = vrot.slane %v3471, 4
        %v3474 = vor.u32 %v3473, %v3469
        %v3475 = vrot.slane %v3474, 4
        %v3477 = vshll.u32 %v3264, 16
        %v3479 = vrot.slane %v3477, 5
        %v3480 = vsel %vm1583, %v3475, %v3479
        %v3482 = vshrl.u32 %v3265, 16
        %v3484 = vrot.slane %v3482, 4
        %v3485 = vshll.u32 %v3265, 16
        %v3487 = vrot.slane %v3485, 5
        %v3488 = vor.u32 %v3484, %v3487
        %v3489 = vrot.slane %v3488, 4
        %v3491 = vshll.u32 %v3266, 16
        %v3493 = vrot.slane %v3491, 5
        %v3494 = vsel %vm1583, %v3489, %v3493
        %v3495 = vshrl.u32 %v3266, 16
        %v3497 = vrot.slane %v3495, 4
        %v3498 = vor.u32 %v3497, %v3493
        %v3499 = vrot.slane %v3498, 4
        %v3501 = vshll.u32 %v3267, 16
        %v3503 = vrot.slane %v3501, 5
        %v3504 = vsel %vm1583, %v3499, %v3503
        %v3506 = vshrl.u32 %v3268, 16
        %v3508 = vrot.slane %v3506, 4
        %v3509 = vshll.u32 %v3268, 16
        %v3511 = vrot.slane %v3509, 5
        %v3512 = vor.u32 %v3508, %v3511
        %v3513 = vrot.slane %v3512, 4
        %v3515 = vshll.u32 %v3269, 16
        %v3517 = vrot.slane %v3515, 5
        %v3518 = vsel %vm1583, %v3513, %v3517
        %v3519 = vshrl.u32 %v3269, 16
        %v3521 = vrot.slane %v3519, 4
        %v3522 = vor.u32 %v3521, %v3517
        %v3523 = vrot.slane %v3522, 4
        %v3525 = vshll.u32 %v3270, 16
        %v3527 = vrot.slane %v3525, 5
        %v3528 = vsel %vm1583, %v3523, %v3527
        %v3530 = vshrl.u32 %v3271, 16
        %v3532 = vrot.slane %v3530, 4
        %v3533 = vshll.u32 %v3271, 16
        %v3535 = vrot.slane %v3533, 5
        %v3536 = vor.u32 %v3532, %v3535
        %v3537 = vrot.slane %v3536, 4
        %v3539 = vshll.u32 %v3272, 16
        %v3541 = vrot.slane %v3539, 5
        %v3542 = vsel %vm1583, %v3537, %v3541
        %v3543 = vshrl.u32 %v3272, 16
        %v3545 = vrot.slane %v3543, 4
        %v3546 = vor.u32 %v3545, %v3541
        %v3547 = vrot.slane %v3546, 4
        %v3549 = vshll.u32 %v3273, 16
        %v3551 = vrot.slane %v3549, 5
        %v3552 = vsel %vm1583, %v3547, %v3551
        %v3554 = vshrl.u32 %v3274, 16
        %v3556 = vrot.slane %v3554, 4
        %v3557 = vshll.u32 %v3274, 16
        %v3559 = vrot.slane %v3557, 5
        %v3560 = vor.u32 %v3556, %v3559
        %v3561 = vrot.slane %v3560, 4
        %v3563 = vshll.u32 %v3275, 16
        %v3565 = vrot.slane %v3563, 5
        %v3566 = vsel %vm1583, %v3561, %v3565
        %v3567 = vshrl.u32 %v3275, 16
        %v3569 = vrot.slane %v3567, 4
        %v3570 = vor.u32 %v3569, %v3565
        %v3571 = vrot.slane %v3570, 4
        %v3573 = vshll.u32 %v3276, 16
        %v3575 = vrot.slane %v3573, 5
        %v3576 = vsel %vm1583, %v3571, %v3575
        %v3578 = vshrl.u32 %v3277, 16
        %v3580 = vrot.slane %v3578, 4
        %v3581 = vshll.u32 %v3277, 16
        %v3583 = vrot.slane %v3581, 5
        %v3584 = vor.u32 %v3580, %v3583
        %v3585 = vrot.slane %v3584, 4
        %v3587 = vshll.u32 %v3278, 16
        %v3589 = vrot.slane %v3587, 5
        %v3590 = vsel %vm1583, %v3585, %v3589
        %v3591 = vshrl.u32 %v3278, 16
        %v3593 = vrot.slane %v3591, 4
        %v3594 = vor.u32 %v3593, %v3589
        %v3595 = vrot.slane %v3594, 4
        %v3597 = vshll.u32 %v3279, 16
        %v3599 = vrot.slane %v3597, 5
        %v3600 = vsel %vm1583, %v3595, %v3599
        %v3602 = vshrl.u32 %v3280, 16
        %v3604 = vrot.slane %v3602, 4
        %v3605 = vshll.u32 %v3280, 16
        %v3607 = vrot.slane %v3605, 5
        %v3608 = vor.u32 %v3604, %v3607
        %v3609 = vrot.slane %v3608, 4
        %v3611 = vshll.u32 %v3281, 16
        %v3613 = vrot.slane %v3611, 5
        %v3614 = vsel %vm1583, %v3609, %v3613
        %v3615 = vshrl.u32 %v3281, 16
        %v3617 = vrot.slane %v3615, 4
        %v3618 = vor.u32 %v3617, %v3613
        %v3619 = vrot.slane %v3618, 4
        %v3621 = vshll.u32 %v3282, 16
        %v3623 = vrot.slane %v3621, 5
        %v3624 = vsel %vm1583, %v3619, %v3623
        %v3626 = vshrl.u32 %v3283, 16
        %v3628 = vrot.slane %v3626, 4
        %v3629 = vshll.u32 %v3283, 16
        %v3631 = vrot.slane %v3629, 5
        %v3632 = vor.u32 %v3628, %v3631
        %v3633 = vrot.slane %v3632, 4
        %v3635 = vshll.u32 %v3284, 16
        %v3637 = vrot.slane %v3635, 5
        %v3638 = vsel %vm1583, %v3633, %v3637
        %v3639 = vshrl.u32 %v3284, 16
        %v3641 = vrot.slane %v3639, 4
        %v3642 = vor.u32 %v3641, %v3637
        %v3643 = vrot.slane %v3642, 4
        %v3645 = vshll.u32 %v3285, 16
        %v3647 = vrot.slane %v3645, 5
        %v3648 = vsel %vm1583, %v3643, %v3647
        %v3650 = vshrl.u32 %v3286, 16
        %v3652 = vrot.slane %v3650, 4
        %v3653 = vshll.u32 %v3286, 16
        %v3655 = vrot.slane %v3653, 5
        %v3656 = vor.u32 %v3652, %v3655
        %v3657 = vrot.slane %v3656, 4
        %v3659 = vshll.u32 %v3287, 16
        %v3661 = vrot.slane %v3659, 5
        %v3662 = vsel %vm1583, %v3657, %v3661
        %v3663 = vshrl.u32 %v3287, 16
        %v3665 = vrot.slane %v3663, 4
        %v3666 = vor.u32 %v3665, %v3661
        %v3667 = vrot.slane %v3666, 4
        %v3669 = vshll.u32 %v3288, 16
        %v3671 = vrot.slane %v3669, 5
        %v3672 = vsel %vm1583, %v3667, %v3671
        %s3673 = scalar_lea.vmem %s4, 16
        %v3674 = vld [vmem:[%s3673] sm:$0xf]
        %v3675 = vunpack.c.l.b16 %v3302
        %v3676 = vunpack.c.l.b16 %v3312
        %v3677 = vunpack.c.l.b16 %v3326
        %v3678 = vunpack.c.l.b16 %v3336
        %v3679 = vunpack.c.l.b16 %v3350
        %v3680 = vunpack.c.l.b16 %v3360
        %v3681 = vunpack.c.l.b16 %v3374
        %v3682 = vunpack.c.l.b16 %v3384
        %v3683 = vunpack.c.l.b16 %v3398
        %v3684 = vunpack.c.l.b16 %v3408
        %v3685 = vunpack.c.l.b16 %v3422
        %v3686 = vunpack.c.l.b16 %v3432
        %v3687 = vunpack.c.l.b16 %v3446
        %v3688 = vunpack.c.l.b16 %v3456
        %v3689 = vunpack.c.l.b16 %v3470
        %v3690 = vunpack.c.l.b16 %v3480
        %v3691 = vunpack.c.l.b16 %v3494
        %v3692 = vunpack.c.l.b16 %v3504
        %v3693 = vunpack.c.l.b16 %v3518
        %v3694 = vunpack.c.l.b16 %v3528
        %v3695 = vunpack.c.l.b16 %v3542
        %v3696 = vunpack.c.l.b16 %v3552
        %v3697 = vunpack.c.l.b16 %v3566
        %v3698 = vunpack.c.l.b16 %v3576
        %v3699 = vunpack.c.l.b16 %v3590
        %v3700 = vunpack.c.l.b16 %v3600
        %v3701 = vunpack.c.l.b16 %v3614
        %v3702 = vunpack.c.l.b16 %v3624
        %v3703 = vunpack.c.l.b16 %v3638
        %v3704 = vunpack.c.l.b16 %v3648
        %v3705 = vunpack.c.l.b16 %v3662
        %v3706 = vunpack.c.l.b16 %v3672
        %v3707 = vpack.c.b16 %v3676, %v3675
        %v3708 = vpack.c.b16 %v3678, %v3677
        %v3709 = vpack.c.b16 %v3680, %v3679
        %v3710 = vpack.c.b16 %v3682, %v3681
        %v3711 = vpack.c.b16 %v3684, %v3683
        %v3712 = vpack.c.b16 %v3686, %v3685
        %v3713 = vpack.c.b16 %v3688, %v3687
        %v3714 = vpack.c.b16 %v3690, %v3689
        %v3715 = vpack.c.b16 %v3692, %v3691
        %v3716 = vpack.c.b16 %v3694, %v3693
        %v3717 = vpack.c.b16 %v3696, %v3695
        %v3718 = vpack.c.b16 %v3698, %v3697
        %v3719 = vpack.c.b16 %v3700, %v3699
        %v3720 = vpack.c.b16 %v3702, %v3701
        %v3721 = vpack.c.b16 %v3704, %v3703
        %v3722 = vpack.c.b16 %v3706, %v3705
        %v3724 = vsel %vm553, %v3707, 0
        %v3727 = vsel %vm553, %v3708, 0
        %v3730 = vsel %vm553, %v3709, 0
        %v3733 = vsel %vm553, %v3710, 0
        %v3736 = vsel %vm553, %v3711, 0
        %v3739 = vsel %vm553, %v3712, 0
        %v3742 = vsel %vm553, %v3713, 0
        %v3745 = vsel %vm553, %v3714, 0
        %v3748 = vsel %vm553, %v3715, 0
        %v3751 = vsel %vm553, %v3716, 0
        %v3754 = vsel %vm553, %v3717, 0
        %v3757 = vsel %vm553, %v3718, 0
        %v3760 = vsel %vm553, %v3719, 0
        %v3763 = vsel %vm553, %v3720, 0
        %v3766 = vsel %vm553, %v3721, 0
        %v3769 = vsel %vm553, %v3722, 0
        %v3772 = vsel %vm602, %v3674, 0
        %3774 = vmatprep.subr.bf16.mxu0 0
        %3775 = vmatpush1.bf16.msra.mxu0 %v3772
        %3776 = vmatprep.subr.bf16.mxu0 0
        %3777 = vmatpush1.bf16.msra.mxu0 0
        %3778 = vmatprep.subr.bf16.mxu0 0
        %3779 = vmatpush1.bf16.msra.mxu0 0
        %3780 = vmatprep.subr.bf16.mxu0 0
        %3781 = vmatpush1.bf16.msra.mxu0 0
        %3782 = vmatprep.subr.bf16.mxu0 0
        %3783 = vmatpush1.bf16.msra.mxu0 0
        %3784 = vmatprep.subr.bf16.mxu0 0
        %3785 = vmatpush1.bf16.msra.mxu0 0
        %3786 = vmatprep.subr.bf16.mxu0 0
        %3787 = vmatpush1.bf16.msra.mxu0 0
        %3788 = vmatprep.subr.bf16.mxu0 0
        %3789 = vmatpush1.bf16.msra.mxu0 0
        %3790 = vmatprep.subr.bf16.mxu0 0
        %3791 = vmatpush1.bf16.msra.mxu0 0
        %3792 = vmatprep.subr.bf16.mxu0 0
        %3793 = vmatpush1.bf16.msra.mxu0 0
        %3794 = vmatprep.subr.bf16.mxu0 0
        %3795 = vmatpush1.bf16.msra.mxu0 0
        %3796 = vmatprep.subr.bf16.mxu0 0
        %3797 = vmatpush1.bf16.msra.mxu0 0
        %3798 = vmatprep.subr.bf16.mxu0 0
        %3799 = vmatpush1.bf16.msra.mxu0 0
        %3800 = vmatprep.subr.bf16.mxu0 0
        %3801 = vmatpush1.bf16.msra.mxu0 0
        %3802 = vmatprep.subr.bf16.mxu0 0
        %3803 = vmatpush1.bf16.msra.mxu0 0
        %3804 = vmatprep.subr.bf16.mxu0 0
        %3805 = vmatpush1.bf16.msra.mxu0 0
        %3806 = vmatprep.mubr.bf16.mxu0 0
        %3807 = vmatmul.mubr.bf16.gmra.mrb[0].mxu0 %v3724
        %v3808 = vpop.f32.mrb[0].mxu0
        %v3809 = vadd.f32 0.0, %v3808
        %v3810 = vpop.f32.mrb[0].mxu0
        %v3811 = vpop.f32.mrb[0].mxu0
        %v3812 = vadd.f32 0.0, %v3811
        %v3813 = vpop.f32.mrb[0].mxu0
        %3814 = vmatprep.mubr.bf16.mxu0 0
        %3815 = vmatmul.mubr.bf16.gmra.mrb[0].mxu0 %v3727
        %v3816 = vpop.f32.mrb[0].mxu0
        %v3817 = vpop.f32.mrb[0].mxu0
        %v3818 = vpop.f32.mrb[0].mxu0
        %v3819 = vpop.f32.mrb[0].mxu0
        %3820 = vmatprep.mubr.bf16.mxu0 0
        %3821 = vmatmul.mubr.bf16.gmra.mrb[0].mxu0 %v3730
        %v3822 = vpop.f32.mrb[0].mxu0
        %v3823 = vadd.f32 0.0, %v3822
        %v3824 = vpop.f32.mrb[0].mxu0
        %v3825 = vpop.f32.mrb[0].mxu0
        %v3826 = vadd.f32 0.0, %v3825
        %v3827 = vpop.f32.mrb[0].mxu0
        %3828 = vmatprep.mubr.bf16.mxu0 0
        %3829 = vmatmul.mubr.bf16.gmra.mrb[0].mxu0 %v3733
        %v3830 = vpop.f32.mrb[0].mxu0
        %v3831 = vpop.f32.mrb[0].mxu0
        %v3832 = vpop.f32.mrb[0].mxu0
        %v3833 = vpop.f32.mrb[0].mxu0
        %3834 = vmatprep.mubr.bf16.mxu0 0
        %3835 = vmatmul.mubr.bf16.gmra.mrb[0].mxu0 %v3736
        %v3836 = vpop.f32.mrb[0].mxu0
        %v3837 = vadd.f32 0.0, %v3836
        %v3838 = vpop.f32.mrb[0].mxu0
        %v3839 = vpop.f32.mrb[0].mxu0
        %v3840 = vadd.f32 0.0, %v3839
        %v3841 = vpop.f32.mrb[0].mxu0
        %3842 = vmatprep.mubr.bf16.mxu0 0
        %3843 = vmatmul.mubr.bf16.gmra.mrb[0].mxu0 %v3739
        %v3844 = vpop.f32.mrb[0].mxu0
        %v3845 = vpop.f32.mrb[0].mxu0
        %v3846 = vpop.f32.mrb[0].mxu0
        %v3847 = vpop.f32.mrb[0].mxu0
        %3848 = vmatprep.mubr.bf16.mxu0 0
        %3849 = vmatmul.mubr.bf16.gmra.mrb[0].mxu0 %v3742
        %v3850 = vpop.f32.mrb[0].mxu0
        %v3851 = vadd.f32 0.0, %v3850
        %v3852 = vpop.f32.mrb[0].mxu0
        %v3853 = vpop.f32.mrb[0].mxu0
        %v3854 = vadd.f32 0.0, %v3853
        %v3855 = vpop.f32.mrb[0].mxu0
        %3856 = vmatprep.mubr.bf16.mxu0 0
        %3857 = vmatmul.mubr.bf16.gmra.mrb[0].mxu0 %v3745
        %v3858 = vpop.f32.mrb[0].mxu0
        %v3859 = vpop.f32.mrb[0].mxu0
        %v3860 = vpop.f32.mrb[0].mxu0
        %v3861 = vpop.f32.mrb[0].mxu0
        %3862 = vmatprep.mubr.bf16.mxu0 0
        %3863 = vmatmul.mubr.bf16.gmra.mrb[0].mxu0 %v3748
        %v3864 = vpop.f32.mrb[0].mxu0
        %v3865 = vadd.f32 0.0, %v3864
        %v3866 = vpop.f32.mrb[0].mxu0
        %v3867 = vpop.f32.mrb[0].mxu0
        %v3868 = vadd.f32 0.0, %v3867
        %v3869 = vpop.f32.mrb[0].mxu0
        %3870 = vmatprep.mubr.bf16.mxu0 0
        %3871 = vmatmul.mubr.bf16.gmra.mrb[0].mxu0 %v3751
        %v3872 = vpop.f32.mrb[0].mxu0
        %v3873 = vpop.f32.mrb[0].mxu0
        %v3874 = vpop.f32.mrb[0].mxu0
        %v3875 = vpop.f32.mrb[0].mxu0
        %3876 = vmatprep.mubr.bf16.mxu0 0
        %3877 = vmatmul.mubr.bf16.gmra.mrb[0].mxu0 %v3754
        %v3878 = vpop.f32.mrb[0].mxu0
        %v3879 = vadd.f32 0.0, %v3878
        %v3880 = vpop.f32.mrb[0].mxu0
        %v3881 = vpop.f32.mrb[0].mxu0
        %v3882 = vadd.f32 0.0, %v3881
        %v3883 = vpop.f32.mrb[0].mxu0
        %3884 = vmatprep.mubr.bf16.mxu0 0
        %3885 = vmatmul.mubr.bf16.gmra.mrb[0].mxu0 %v3757
        %v3886 = vpop.f32.mrb[0].mxu0
        %v3887 = vpop.f32.mrb[0].mxu0
        %v3888 = vpop.f32.mrb[0].mxu0
        %v3889 = vpop.f32.mrb[0].mxu0
        %3890 = vmatprep.mubr.bf16.mxu0 0
        %3891 = vmatmul.mubr.bf16.gmra.mrb[0].mxu0 %v3760
        %v3892 = vpop.f32.mrb[0].mxu0
        %v3893 = vadd.f32 0.0, %v3892
        %v3894 = vpop.f32.mrb[0].mxu0
        %v3895 = vpop.f32.mrb[0].mxu0
        %v3896 = vadd.f32 0.0, %v3895
        %v3897 = vpop.f32.mrb[0].mxu0
        %3898 = vmatprep.mubr.bf16.mxu0 0
        %3899 = vmatmul.mubr.bf16.gmra.mrb[0].mxu0 %v3763
        %v3900 = vpop.f32.mrb[0].mxu0
        %v3901 = vpop.f32.mrb[0].mxu0
        %v3902 = vpop.f32.mrb[0].mxu0
        %v3903 = vpop.f32.mrb[0].mxu0
        %3904 = vmatprep.mubr.bf16.mxu0 0
        %3905 = vmatmul.mubr.bf16.gmra.mrb[0].mxu0 %v3766
        %v3906 = vpop.f32.mrb[0].mxu0
        %v3907 = vadd.f32 0.0, %v3906
        %v3908 = vpop.f32.mrb[0].mxu0
        %v3909 = vpop.f32.mrb[0].mxu0
        %v3910 = vadd.f32 0.0, %v3909
        %v3911 = vpop.f32.mrb[0].mxu0
        %3912 = vmatprep.mubr.bf16.mxu0 0
        %3913 = vmatmul.mubr.bf16.gmra.mrb[0].mxu0 %v3769
        %v3914 = vpop.f32.mrb[0].mxu0
        %v3915 = vpop.f32.mrb[0].mxu0
        %v3916 = vpop.f32.mrb[0].mxu0
        %v3917 = vpop.f32.mrb[0].mxu0
        %3918 = vdwg.mxu0
        %v3919 = vadd.f32 %v3225, %v3809
        %v3920 = vadd.f32 %v3226, %v3812
        %v3921 = vadd.f32 %v3227, %v3823
        %v3922 = vadd.f32 %v3228, %v3826
        %v3923 = vadd.f32 %v3229, %v3837
        %v3924 = vadd.f32 %v3230, %v3840
        %v3925 = vadd.f32 %v3231, %v3851
        %v3926 = vadd.f32 %v3232, %v3854
        %v3927 = vadd.f32 %v3233, %v3865
        %v3928 = vadd.f32 %v3234, %v3868
        %v3929 = vadd.f32 %v3235, %v3879
        %v3930 = vadd.f32 %v3236, %v3882
        %v3931 = vadd.f32 %v3237, %v3893
        %v3932 = vadd.f32 %v3238, %v3896
        %v3933 = vadd.f32 %v3239, %v3907
        %v3934 = vadd.f32 %v3240, %v3910
        %v3935 = vld [vmem:[%s1417] sm:$0xe]
        %v3936 = vld [vmem:[%s1417 + $0xc] sm:$0xe]
        %v3937 = vld [vmem:[%s1417 + $0x18] sm:$0xe]
        %v3938 = vld [vmem:[%s1417 + $0x24] sm:$0xe]
        %v3939 = vld [vmem:[%s1417 + $0x30] sm:$0xe]
        %v3940 = vld [vmem:[%s1417 + $0x3c] sm:$0xe]
        %v3941 = vld [vmem:[%s1417 + $0x48] sm:$0xe]
        %v3942 = vld [vmem:[%s1417 + $0x54] sm:$0xe]
        %v3943 = vld [vmem:[%s1417 + $0x60] sm:$0xe]
        %v3944 = vld [vmem:[%s1417 + $0x6c] sm:$0xe]
        %v3945 = vld [vmem:[%s1417 + $0x78] sm:$0xe]
        %v3946 = vld [vmem:[%s1417 + $0x84] sm:$0xe]
        %v3947 = vld [vmem:[%s1417 + $0x90] sm:$0xe]
        %v3948 = vld [vmem:[%s1417 + $0x9c] sm:$0xe]
        %v3949 = vld [vmem:[%s1417 + $0xa8] sm:$0xe]
        %v3950 = vld [vmem:[%s1417 + $0xb4] sm:$0xe]
        %v3999 = vrot.slane %v3935, 5
        %v4000 = vrot.slane %v3999, 4
        %v4001 = vrot.slane %v3242, 5
        %v4002 = vsel %vm2540, %v4000, %v4001
        %v4003 = vrot.slane %v4001, 4
        %v4004 = vrot.slane %v3243, 5
        %v4005 = vsel %vm2540, %v4003, %v4004
        %v4006 = vrot.slane %v3936, 5
        %v4007 = vrot.slane %v4006, 4
        %v4008 = vrot.slane %v3245, 5
        %v4009 = vsel %vm2540, %v4007, %v4008
        %v4010 = vrot.slane %v4008, 4
        %v4011 = vrot.slane %v3246, 5
        %v4012 = vsel %vm2540, %v4010, %v4011
        %v4013 = vrot.slane %v3937, 5
        %v4014 = vrot.slane %v4013, 4
        %v4015 = vrot.slane %v3248, 5
        %v4016 = vsel %vm2540, %v4014, %v4015
        %v4017 = vrot.slane %v4015, 4
        %v4018 = vrot.slane %v3249, 5
        %v4019 = vsel %vm2540, %v4017, %v4018
        %v4020 = vrot.slane %v3938, 5
        %v4021 = vrot.slane %v4020, 4
        %v4022 = vrot.slane %v3251, 5
        %v4023 = vsel %vm2540, %v4021, %v4022
        %v4024 = vrot.slane %v4022, 4
        %v4025 = vrot.slane %v3252, 5
        %v4026 = vsel %vm2540, %v4024, %v4025
        %v4027 = vrot.slane %v3939, 5
        %v4028 = vrot.slane %v4027, 4
        %v4029 = vrot.slane %v3254, 5
        %v4030 = vsel %vm2540, %v4028, %v4029
        %v4031 = vrot.slane %v4029, 4
        %v4032 = vrot.slane %v3255, 5
        %v4033 = vsel %vm2540, %v4031, %v4032
        %v4034 = vrot.slane %v3940, 5
        %v4035 = vrot.slane %v4034, 4
        %v4036 = vrot.slane %v3257, 5
        %v4037 = vsel %vm2540, %v4035, %v4036
        %v4038 = vrot.slane %v4036, 4
        %v4039 = vrot.slane %v3258, 5
        %v4040 = vsel %vm2540, %v4038, %v4039
        %v4041 = vrot.slane %v3941, 5
        %v4042 = vrot.slane %v4041, 4
        %v4043 = vrot.slane %v3260, 5
        %v4044 = vsel %vm2540, %v4042, %v4043
        %v4045 = vrot.slane %v4043, 4
        %v4046 = vrot.slane %v3261, 5
        %v4047 = vsel %vm2540, %v4045, %v4046
        %v4048 = vrot.slane %v3942, 5
        %v4049 = vrot.slane %v4048, 4
        %v4050 = vrot.slane %v3263, 5
        %v4051 = vsel %vm2540, %v4049, %v4050
        %v4052 = vrot.slane %v4050, 4
        %v4053 = vrot.slane %v3264, 5
        %v4054 = vsel %vm2540, %v4052, %v4053
        %v4055 = vrot.slane %v3943, 5
        %v4056 = vrot.slane %v4055, 4
        %v4057 = vrot.slane %v3266, 5
        %v4058 = vsel %vm2540, %v4056, %v4057
        %v4059 = vrot.slane %v4057, 4
        %v4060 = vrot.slane %v3267, 5
        %v4061 = vsel %vm2540, %v4059, %v4060
        %v4062 = vrot.slane %v3944, 5
        %v4063 = vrot.slane %v4062, 4
        %v4064 = vrot.slane %v3269, 5
        %v4065 = vsel %vm2540, %v4063, %v4064
        %v4066 = vrot.slane %v4064, 4
        %v4067 = vrot.slane %v3270, 5
        %v4068 = vsel %vm2540, %v4066, %v4067
        %v4069 = vrot.slane %v3945, 5
        %v4070 = vrot.slane %v4069, 4
        %v4071 = vrot.slane %v3272, 5
        %v4072 = vsel %vm2540, %v4070, %v4071
        %v4073 = vrot.slane %v4071, 4
        %v4074 = vrot.slane %v3273, 5
        %v4075 = vsel %vm2540, %v4073, %v4074
        %v4076 = vrot.slane %v3946, 5
        %v4077 = vrot.slane %v4076, 4
        %v4078 = vrot.slane %v3275, 5
        %v4079 = vsel %vm2540, %v4077, %v4078
        %v4080 = vrot.slane %v4078, 4
        %v4081 = vrot.slane %v3276, 5
        %v4082 = vsel %vm2540, %v4080, %v4081
        %v4083 = vrot.slane %v3947, 5
        %v4084 = vrot.slane %v4083, 4
        %v4085 = vrot.slane %v3278, 5
        %v4086 = vsel %vm2540, %v4084, %v4085
        %v4087 = vrot.slane %v4085, 4
        %v4088 = vrot.slane %v3279, 5
        %v4089 = vsel %vm2540, %v4087, %v4088
        %v4090 = vrot.slane %v3948, 5
        %v4091 = vrot.slane %v4090, 4
        %v4092 = vrot.slane %v3281, 5
        %v4093 = vsel %vm2540, %v4091, %v4092
        %v4094 = vrot.slane %v4092, 4
        %v4095 = vrot.slane %v3282, 5
        %v4096 = vsel %vm2540, %v4094, %v4095
        %v4097 = vrot.slane %v3949, 5
        %v4098 = vrot.slane %v4097, 4
        %v4099 = vrot.slane %v3284, 5
        %v4100 = vsel %vm2540, %v4098, %v4099
        %v4101 = vrot.slane %v4099, 4
        %v4102 = vrot.slane %v3285, 5
        %v4103 = vsel %vm2540, %v4101, %v4102
        %v4104 = vrot.slane %v3950, 5
        %v4105 = vrot.slane %v4104, 4
        %v4106 = vrot.slane %v3287, 5
        %v4107 = vsel %vm2540, %v4105, %v4106
        %v4108 = vrot.slane %v4106, 4
        %v4109 = vrot.slane %v3288, 5
        %v4110 = vsel %vm2540, %v4108, %v4109
        %s4111 = scalar_lea.vmem %s4, 20
        %v4112 = vld [vmem:[%s4111] sm:$0xf]
        %v4113 = vunpack.c.l.b16 %v4002
        %v4114 = vunpack.c.l.b16 %v4005
        %v4115 = vunpack.c.l.b16 %v4009
        %v4116 = vunpack.c.l.b16 %v4012
        %v4117 = vunpack.c.l.b16 %v4016
        %v4118 = vunpack.c.l.b16 %v4019
        %v4119 = vunpack.c.l.b16 %v4023
        %v4120 = vunpack.c.l.b16 %v4026
        %v4121 = vunpack.c.l.b16 %v4030
        %v4122 = vunpack.c.l.b16 %v4033
        %v4123 = vunpack.c.l.b16 %v4037
        %v4124 = vunpack.c.l.b16 %v4040
        %v4125 = vunpack.c.l.b16 %v4044
        %v4126 = vunpack.c.l.b16 %v4047
        %v4127 = vunpack.c.l.b16 %v4051
        %v4128 = vunpack.c.l.b16 %v4054
        %v4129 = vunpack.c.l.b16 %v4058
        %v4130 = vunpack.c.l.b16 %v4061
        %v4131 = vunpack.c.l.b16 %v4065
        %v4132 = vunpack.c.l.b16 %v4068
        %v4133 = vunpack.c.l.b16 %v4072
        %v4134 = vunpack.c.l.b16 %v4075
        %v4135 = vunpack.c.l.b16 %v4079
        %v4136 = vunpack.c.l.b16 %v4082
        %v4137 = vunpack.c.l.b16 %v4086
        %v4138 = vunpack.c.l.b16 %v4089
        %v4139 = vunpack.c.l.b16 %v4093
        %v4140 = vunpack.c.l.b16 %v4096
        %v4141 = vunpack.c.l.b16 %v4100
        %v4142 = vunpack.c.l.b16 %v4103
        %v4143 = vunpack.c.l.b16 %v4107
        %v4144 = vunpack.c.l.b16 %v4110
        %v4145 = vpack.c.b16 %v4114, %v4113
        %v4146 = vpack.c.b16 %v4116, %v4115
        %v4147 = vpack.c.b16 %v4118, %v4117
        %v4148 = vpack.c.b16 %v4120, %v4119
        %v4149 = vpack.c.b16 %v4122, %v4121
        %v4150 = vpack.c.b16 %v4124, %v4123
        %v4151 = vpack.c.b16 %v4126, %v4125
        %v4152 = vpack.c.b16 %v4128, %v4127
        %v4153 = vpack.c.b16 %v4130, %v4129
        %v4154 = vpack.c.b16 %v4132, %v4131
        %v4155 = vpack.c.b16 %v4134, %v4133
        %v4156 = vpack.c.b16 %v4136, %v4135
        %v4157 = vpack.c.b16 %v4138, %v4137
        %v4158 = vpack.c.b16 %v4140, %v4139
        %v4159 = vpack.c.b16 %v4142, %v4141
        %v4160 = vpack.c.b16 %v4144, %v4143
        %v4162 = vsel %vm553, %v4145, 0
        %v4165 = vsel %vm553, %v4146, 0
        %v4168 = vsel %vm553, %v4147, 0
        %v4171 = vsel %vm553, %v4148, 0
        %v4174 = vsel %vm553, %v4149, 0
        %v4177 = vsel %vm553, %v4150, 0
        %v4180 = vsel %vm553, %v4151, 0
        %v4183 = vsel %vm553, %v4152, 0
        %v4186 = vsel %vm553, %v4153, 0
        %v4189 = vsel %vm553, %v4154, 0
        %v4192 = vsel %vm553, %v4155, 0
        %v4195 = vsel %vm553, %v4156, 0
        %v4198 = vsel %vm553, %v4157, 0
        %v4201 = vsel %vm553, %v4158, 0
        %v4204 = vsel %vm553, %v4159, 0
        %v4207 = vsel %vm553, %v4160, 0
        %v4210 = vsel %vm602, %v4112, 0
        %4212 = vmatprep.subr.bf16.mxu0 0
        %4213 = vmatpush1.bf16.msra.mxu0 %v4210
        %4214 = vmatprep.subr.bf16.mxu0 0
        %4215 = vmatpush1.bf16.msra.mxu0 0
        %4216 = vmatprep.subr.bf16.mxu0 0
        %4217 = vmatpush1.bf16.msra.mxu0 0
        %4218 = vmatprep.subr.bf16.mxu0 0
        %4219 = vmatpush1.bf16.msra.mxu0 0
        %4220 = vmatprep.subr.bf16.mxu0 0
        %4221 = vmatpush1.bf16.msra.mxu0 0
        %4222 = vmatprep.subr.bf16.mxu0 0
        %4223 = vmatpush1.bf16.msra.mxu0 0
        %4224 = vmatprep.subr.bf16.mxu0 0
        %4225 = vmatpush1.bf16.msra.mxu0 0
        %4226 = vmatprep.subr.bf16.mxu0 0
        %4227 = vmatpush1.bf16.msra.mxu0 0
        %4228 = vmatprep.subr.bf16.mxu0 0
        %4229 = vmatpush1.bf16.msra.mxu0 0
        %4230 = vmatprep.subr.bf16.mxu0 0
        %4231 = vmatpush1.bf16.msra.mxu0 0
        %4232 = vmatprep.subr.bf16.mxu0 0
        %4233 = vmatpush1.bf16.msra.mxu0 0
        %4234 = vmatprep.subr.bf16.mxu0 0
        %4235 = vmatpush1.bf16.msra.mxu0 0
        %4236 = vmatprep.subr.bf16.mxu0 0
        %4237 = vmatpush1.bf16.msra.mxu0 0
        %4238 = vmatprep.subr.bf16.mxu0 0
        %4239 = vmatpush1.bf16.msra.mxu0 0
        %4240 = vmatprep.subr.bf16.mxu0 0
        %4241 = vmatpush1.bf16.msra.mxu0 0
        %4242 = vmatprep.subr.bf16.mxu0 0
        %4243 = vmatpush1.bf16.msra.mxu0 0
        %4244 = vmatprep.mubr.bf16.mxu0 0
        %4245 = vmatmul.mubr.bf16.gmra.mrb[0].mxu0 %v4162
        %v4246 = vpop.f32.mrb[0].mxu0
        %v4247 = vadd.f32 0.0, %v4246
        %v4248 = vpop.f32.mrb[0].mxu0
        %v4249 = vpop.f32.mrb[0].mxu0
        %v4250 = vadd.f32 0.0, %v4249
        %v4251 = vpop.f32.mrb[0].mxu0
        %4252 = vmatprep.mubr.bf16.mxu0 0
        %4253 = vmatmul.mubr.bf16.gmra.mrb[0].mxu0 %v4165
        %v4254 = vpop.f32.mrb[0].mxu0
        %v4255 = vpop.f32.mrb[0].mxu0
        %v4256 = vpop.f32.mrb[0].mxu0
        %v4257 = vpop.f32.mrb[0].mxu0
        %4258 = vmatprep.mubr.bf16.mxu0 0
        %4259 = vmatmul.mubr.bf16.gmra.mrb[0].mxu0 %v4168
        %v4260 = vpop.f32.mrb[0].mxu0
        %v4261 = vadd.f32 0.0, %v4260
        %v4262 = vpop.f32.mrb[0].mxu0
        %v4263 = vpop.f32.mrb[0].mxu0
        %v4264 = vadd.f32 0.0, %v4263
        %v4265 = vpop.f32.mrb[0].mxu0
        %4266 = vmatprep.mubr.bf16.mxu0 0
        %4267 = vmatmul.mubr.bf16.gmra.mrb[0].mxu0 %v4171
        %v4268 = vpop.f32.mrb[0].mxu0
        %v4269 = vpop.f32.mrb[0].mxu0
        %v4270 = vpop.f32.mrb[0].mxu0
        %v4271 = vpop.f32.mrb[0].mxu0
        %4272 = vmatprep.mubr.bf16.mxu0 0
        %4273 = vmatmul.mubr.bf16.gmra.mrb[0].mxu0 %v4174
        %v4274 = vpop.f32.mrb[0].mxu0
        %v4275 = vadd.f32 0.0, %v4274
        %v4276 = vpop.f32.mrb[0].mxu0
        %v4277 = vpop.f32.mrb[0].mxu0
        %v4278 = vadd.f32 0.0, %v4277
        %v4279 = vpop.f32.mrb[0].mxu0
        %4280 = vmatprep.mubr.bf16.mxu0 0
        %4281 = vmatmul.mubr.bf16.gmra.mrb[0].mxu0 %v4177
        %v4282 = vpop.f32.mrb[0].mxu0
        %v4283 = vpop.f32.mrb[0].mxu0
        %v4284 = vpop.f32.mrb[0].mxu0
        %v4285 = vpop.f32.mrb[0].mxu0
        %4286 = vmatprep.mubr.bf16.mxu0 0
        %4287 = vmatmul.mubr.bf16.gmra.mrb[0].mxu0 %v4180
        %v4288 = vpop.f32.mrb[0].mxu0
        %v4289 = vadd.f32 0.0, %v4288
        %v4290 = vpop.f32.mrb[0].mxu0
        %v4291 = vpop.f32.mrb[0].mxu0
        %v4292 = vadd.f32 0.0, %v4291
        %v4293 = vpop.f32.mrb[0].mxu0
        %4294 = vmatprep.mubr.bf16.mxu0 0
        %4295 = vmatmul.mubr.bf16.gmra.mrb[0].mxu0 %v4183
        %v4296 = vpop.f32.mrb[0].mxu0
        %v4297 = vpop.f32.mrb[0].mxu0
        %v4298 = vpop.f32.mrb[0].mxu0
        %v4299 = vpop.f32.mrb[0].mxu0
        %4300 = vmatprep.mubr.bf16.mxu0 0
        %4301 = vmatmul.mubr.bf16.gmra.mrb[0].mxu0 %v4186
        %v4302 = vpop.f32.mrb[0].mxu0
        %v4303 = vadd.f32 0.0, %v4302
        %v4304 = vpop.f32.mrb[0].mxu0
        %v4305 = vpop.f32.mrb[0].mxu0
        %v4306 = vadd.f32 0.0, %v4305
        %v4307 = vpop.f32.mrb[0].mxu0
        %4308 = vmatprep.mubr.bf16.mxu0 0
        %4309 = vmatmul.mubr.bf16.gmra.mrb[0].mxu0 %v4189
        %v4310 = vpop.f32.mrb[0].mxu0
        %v4311 = vpop.f32.mrb[0].mxu0
        %v4312 = vpop.f32.mrb[0].mxu0
        %v4313 = vpop.f32.mrb[0].mxu0
        %4314 = vmatprep.mubr.bf16.mxu0 0
        %4315 = vmatmul.mubr.bf16.gmra.mrb[0].mxu0 %v4192
        %v4316 = vpop.f32.mrb[0].mxu0
        %v4317 = vadd.f32 0.0, %v4316
        %v4318 = vpop.f32.mrb[0].mxu0
        %v4319 = vpop.f32.mrb[0].mxu0
        %v4320 = vadd.f32 0.0, %v4319
        %v4321 = vpop.f32.mrb[0].mxu0
        %4322 = vmatprep.mubr.bf16.mxu0 0
        %4323 = vmatmul.mubr.bf16.gmra.mrb[0].mxu0 %v4195
        %v4324 = vpop.f32.mrb[0].mxu0
        %v4325 = vpop.f32.mrb[0].mxu0
        %v4326 = vpop.f32.mrb[0].mxu0
        %v4327 = vpop.f32.mrb[0].mxu0
        %4328 = vmatprep.mubr.bf16.mxu0 0
        %4329 = vmatmul.mubr.bf16.gmra.mrb[0].mxu0 %v4198
        %v4330 = vpop.f32.mrb[0].mxu0
        %v4331 = vadd.f32 0.0, %v4330
        %v4332 = vpop.f32.mrb[0].mxu0
        %v4333 = vpop.f32.mrb[0].mxu0
        %v4334 = vadd.f32 0.0, %v4333
        %v4335 = vpop.f32.mrb[0].mxu0
        %4336 = vmatprep.mubr.bf16.mxu0 0
        %4337 = vmatmul.mubr.bf16.gmra.mrb[0].mxu0 %v4201
        %v4338 = vpop.f32.mrb[0].mxu0
        %v4339 = vpop.f32.mrb[0].mxu0
        %v4340 = vpop.f32.mrb[0].mxu0
        %v4341 = vpop.f32.mrb[0].mxu0
        %4342 = vmatprep.mubr.bf16.mxu0 0
        %4343 = vmatmul.mubr.bf16.gmra.mrb[0].mxu0 %v4204
        %v4344 = vpop.f32.mrb[0].mxu0
        %v4345 = vadd.f32 0.0, %v4344
        %v4346 = vpop.f32.mrb[0].mxu0
        %v4347 = vpop.f32.mrb[0].mxu0
        %v4348 = vadd.f32 0.0, %v4347
        %v4349 = vpop.f32.mrb[0].mxu0
        %4350 = vmatprep.mubr.bf16.mxu0 0
        %4351 = vmatmul.mubr.bf16.gmra.mrb[0].mxu0 %v4207
        %v4352 = vpop.f32.mrb[0].mxu0
        %v4353 = vpop.f32.mrb[0].mxu0
        %v4354 = vpop.f32.mrb[0].mxu0
        %v4355 = vpop.f32.mrb[0].mxu0
        %4356 = vdwg.mxu0
        %v4357 = vadd.f32 %v3919, %v4247
        %v4358 = vadd.f32 %v3920, %v4250
        %v4359 = vadd.f32 %v3921, %v4261
        %v4360 = vadd.f32 %v3922, %v4264
        %v4361 = vadd.f32 %v3923, %v4275
        %v4362 = vadd.f32 %v3924, %v4278
        %v4363 = vadd.f32 %v3925, %v4289
        %v4364 = vadd.f32 %v3926, %v4292
        %v4365 = vadd.f32 %v3927, %v4303
        %v4366 = vadd.f32 %v3928, %v4306
        %v4367 = vadd.f32 %v3929, %v4317
        %v4368 = vadd.f32 %v3930, %v4320
        %v4369 = vadd.f32 %v3931, %v4331
        %v4370 = vadd.f32 %v3932, %v4334
        %v4371 = vadd.f32 %v3933, %v4345
        %v4372 = vadd.f32 %v3934, %v4348
        %s4373 = scalar_lea.vmem [#allocation2], 24
        %v4374 = vld [vmem:[%s4373] sm:$0xf]
        %v4375 = vld [vmem:[%s4373 + $0x4] sm:$0xf]
        %v4376 = vld [vmem:[%s4373 + $0xc] sm:$0xf]
        %v4377 = vld [vmem:[%s4373 + $0x10] sm:$0xf]
        %v4378 = vld [vmem:[%s4373 + $0x18] sm:$0xf]
        %v4379 = vld [vmem:[%s4373 + $0x1c] sm:$0xf]
        %v4380 = vld [vmem:[%s4373 + $0x24] sm:$0xf]
        %v4381 = vld [vmem:[%s4373 + $0x28] sm:$0xf]
        %v4382 = vld [vmem:[%s4373 + $0x30] sm:$0xf]
        %v4383 = vld [vmem:[%s4373 + $0x34] sm:$0xf]
        %v4384 = vld [vmem:[%s4373 + $0x3c] sm:$0xf]
        %v4385 = vld [vmem:[%s4373 + $0x40] sm:$0xf]
        %v4386 = vld [vmem:[%s4373 + $0x48] sm:$0xf]
        %v4387 = vld [vmem:[%s4373 + $0x4c] sm:$0xf]
        %v4388 = vld [vmem:[%s4373 + $0x54] sm:$0xf]
        %v4389 = vld [vmem:[%s4373 + $0x58] sm:$0xf]
        %v4390 = vld [vmem:[%s4373 + $0x60] sm:$0xf]
        %v4391 = vld [vmem:[%s4373 + $0x64] sm:$0xf]
        %v4392 = vld [vmem:[%s4373 + $0x6c] sm:$0xf]
        %v4393 = vld [vmem:[%s4373 + $0x70] sm:$0xf]
        %v4394 = vld [vmem:[%s4373 + $0x78] sm:$0xf]
        %v4395 = vld [vmem:[%s4373 + $0x7c] sm:$0xf]
        %v4396 = vld [vmem:[%s4373 + $0x84] sm:$0xf]
        %v4397 = vld [vmem:[%s4373 + $0x88] sm:$0xf]
        %v4398 = vld [vmem:[%s4373 + $0x90] sm:$0xf]
        %v4399 = vld [vmem:[%s4373 + $0x94] sm:$0xf]
        %v4400 = vld [vmem:[%s4373 + $0x9c] sm:$0xf]
        %v4401 = vld [vmem:[%s4373 + $0xa0] sm:$0xf]
        %v4402 = vld [vmem:[%s4373 + $0xa8] sm:$0xf]
        %v4403 = vld [vmem:[%s4373 + $0xac] sm:$0xf]
        %v4404 = vld [vmem:[%s4373 + $0xb4] sm:$0xf]
        %v4405 = vld [vmem:[%s4373 + $0xb8] sm:$0xf]
        %s4406 = scalar_lea.vmem %s4, 24
        %v4407 = vld [vmem:[%s4406] sm:$0xf]
        %v4440 = vunpack.c.l.b16 %v4374
        %v4441 = vunpack.c.l.b16 %v4375
        %v4442 = vunpack.c.l.b16 %v4376
        %v4443 = vunpack.c.l.b16 %v4377
        %v4444 = vunpack.c.l.b16 %v4378
        %v4445 = vunpack.c.l.b16 %v4379
        %v4446 = vunpack.c.l.b16 %v4380
        %v4447 = vunpack.c.l.b16 %v4381
        %v4448 = vunpack.c.l.b16 %v4382
        %v4449 = vunpack.c.l.b16 %v4383
        %v4450 = vunpack.c.l.b16 %v4384
        %v4451 = vunpack.c.l.b16 %v4385
        %v4452 = vunpack.c.l.b16 %v4386
        %v4453 = vunpack.c.l.b16 %v4387
        %v4454 = vunpack.c.l.b16 %v4388
        %v4455 = vunpack.c.l.b16 %v4389
        %v4456 = vunpack.c.l.b16 %v4390
        %v4457 = vunpack.c.l.b16 %v4391
        %v4458 = vunpack.c.l.b16 %v4392
        %v4459 = vunpack.c.l.b16 %v4393
        %v4460 = vunpack.c.l.b16 %v4394
        %v4461 = vunpack.c.l.b16 %v4395
        %v4462 = vunpack.c.l.b16 %v4396
        %v4463 = vunpack.c.l.b16 %v4397
        %v4464 = vunpack.c.l.b16 %v4398
        %v4465 = vunpack.c.l.b16 %v4399
        %v4466 = vunpack.c.l.b16 %v4400
        %v4467 = vunpack.c.l.b16 %v4401
        %v4468 = vunpack.c.l.b16 %v4402
        %v4469 = vunpack.c.l.b16 %v4403
        %v4470 = vunpack.c.l.b16 %v4404
        %v4471 = vunpack.c.l.b16 %v4405
        %v4472 = vpack.c.b16 %v4441, %v4440
        %v4473 = vpack.c.b16 %v4443, %v4442
        %v4474 = vpack.c.b16 %v4445, %v4444
        %v4475 = vpack.c.b16 %v4447, %v4446
        %v4476 = vpack.c.b16 %v4449, %v4448
        %v4477 = vpack.c.b16 %v4451, %v4450
        %v4478 = vpack.c.b16 %v4453, %v4452
        %v4479 = vpack.c.b16 %v4455, %v4454
        %v4480 = vpack.c.b16 %v4457, %v4456
        %v4481 = vpack.c.b16 %v4459, %v4458
        %v4482 = vpack.c.b16 %v4461, %v4460
        %v4483 = vpack.c.b16 %v4463, %v4462
        %v4484 = vpack.c.b16 %v4465, %v4464
        %v4485 = vpack.c.b16 %v4467, %v4466
        %v4486 = vpack.c.b16 %v4469, %v4468
        %v4487 = vpack.c.b16 %v4471, %v4470
        %v4489 = vsel %vm553, %v4472, 0
        %v4492 = vsel %vm553, %v4473, 0
        %v4495 = vsel %vm553, %v4474, 0
        %v4498 = vsel %vm553, %v4475, 0
        %v4501 = vsel %vm553, %v4476, 0
        %v4504 = vsel %vm553, %v4477, 0
        %v4507 = vsel %vm553, %v4478, 0
        %v4510 = vsel %vm553, %v4479, 0
        %v4513 = vsel %vm553, %v4480, 0
        %v4516 = vsel %vm553, %v4481, 0
        %v4519 = vsel %vm553, %v4482, 0
        %v4522 = vsel %vm553, %v4483, 0
        %v4525 = vsel %vm553, %v4484, 0
        %v4528 = vsel %vm553, %v4485, 0
        %v4531 = vsel %vm553, %v4486, 0
        %v4534 = vsel %vm553, %v4487, 0
        %v4537 = vsel %vm602, %v4407, 0
        %4539 = vmatprep.subr.bf16.mxu0 0
        %4540 = vmatpush1.bf16.msra.mxu0 %v4537
        %4541 = vmatprep.subr.bf16.mxu0 0
        %4542 = vmatpush1.bf16.msra.mxu0 0
        %4543 = vmatprep.subr.bf16.mxu0 0
        %4544 = vmatpush1.bf16.msra.mxu0 0
        %4545 = vmatprep.subr.bf16.mxu0 0
        %4546 = vmatpush1.bf16.msra.mxu0 0
        %4547 = vmatprep.subr.bf16.mxu0 0
        %4548 = vmatpush1.bf16.msra.mxu0 0
        %4549 = vmatprep.subr.bf16.mxu0 0
        %4550 = vmatpush1.bf16.msra.mxu0 0
        %4551 = vmatprep.subr.bf16.mxu0 0
        %4552 = vmatpush1.bf16.msra.mxu0 0
        %4553 = vmatprep.subr.bf16.mxu0 0
        %4554 = vmatpush1.bf16.msra.mxu0 0
        %4555 = vmatprep.subr.bf16.mxu0 0
        %4556 = vmatpush1.bf16.msra.mxu0 0
        %4557 = vmatprep.subr.bf16.mxu0 0
        %4558 = vmatpush1.bf16.msra.mxu0 0
        %4559 = vmatprep.subr.bf16.mxu0 0
        %4560 = vmatpush1.bf16.msra.mxu0 0
        %4561 = vmatprep.subr.bf16.mxu0 0
        %4562 = vmatpush1.bf16.msra.mxu0 0
        %4563 = vmatprep.subr.bf16.mxu0 0
        %4564 = vmatpush1.bf16.msra.mxu0 0
        %4565 = vmatprep.subr.bf16.mxu0 0
        %4566 = vmatpush1.bf16.msra.mxu0 0
        %4567 = vmatprep.subr.bf16.mxu0 0
        %4568 = vmatpush1.bf16.msra.mxu0 0
        %4569 = vmatprep.subr.bf16.mxu0 0
        %4570 = vmatpush1.bf16.msra.mxu0 0
        %4571 = vmatprep.mubr.bf16.mxu0 0
        %4572 = vmatmul.mubr.bf16.gmra.mrb[0].mxu0 %v4489
        %v4573 = vpop.f32.mrb[0].mxu0
        %v4574 = vadd.f32 0.0, %v4573
        %v4575 = vpop.f32.mrb[0].mxu0
        %v4576 = vpop.f32.mrb[0].mxu0
        %v4577 = vadd.f32 0.0, %v4576
        %v4578 = vpop.f32.mrb[0].mxu0
        %4579 = vmatprep.mubr.bf16.mxu0 0
        %4580 = vmatmul.mubr.bf16.gmra.mrb[0].mxu0 %v4492
        %v4581 = vpop.f32.mrb[0].mxu0
        %v4582 = vpop.f32.mrb[0].mxu0
        %v4583 = vpop.f32.mrb[0].mxu0
        %v4584 = vpop.f32.mrb[0].mxu0
        %4585 = vmatprep.mubr.bf16.mxu0 0
        %4586 = vmatmul.mubr.bf16.gmra.mrb[0].mxu0 %v4495
        %v4587 = vpop.f32.mrb[0].mxu0
        %v4588 = vadd.f32 0.0, %v4587
        %v4589 = vpop.f32.mrb[0].mxu0
        %v4590 = vpop.f32.mrb[0].mxu0
        %v4591 = vadd.f32 0.0, %v4590
        %v4592 = vpop.f32.mrb[0].mxu0
        %4593 = vmatprep.mubr.bf16.mxu0 0
        %4594 = vmatmul.mubr.bf16.gmra.mrb[0].mxu0 %v4498
        %v4595 = vpop.f32.mrb[0].mxu0
        %v4596 = vpop.f32.mrb[0].mxu0
        %v4597 = vpop.f32.mrb[0].mxu0
        %v4598 = vpop.f32.mrb[0].mxu0
        %4599 = vmatprep.mubr.bf16.mxu0 0
        %4600 = vmatmul.mubr.bf16.gmra.mrb[0].mxu0 %v4501
        %v4601 = vpop.f32.mrb[0].mxu0
        %v4602 = vadd.f32 0.0, %v4601
        %v4603 = vpop.f32.mrb[0].mxu0
        %v4604 = vpop.f32.mrb[0].mxu0
        %v4605 = vadd.f32 0.0, %v4604
        %v4606 = vpop.f32.mrb[0].mxu0
        %4607 = vmatprep.mubr.bf16.mxu0 0
        %4608 = vmatmul.mubr.bf16.gmra.mrb[0].mxu0 %v4504
        %v4609 = vpop.f32.mrb[0].mxu0
        %v4610 = vpop.f32.mrb[0].mxu0
        %v4611 = vpop.f32.mrb[0].mxu0
        %v4612 = vpop.f32.mrb[0].mxu0
        %4613 = vmatprep.mubr.bf16.mxu0 0
        %4614 = vmatmul.mubr.bf16.gmra.mrb[0].mxu0 %v4507
        %v4615 = vpop.f32.mrb[0].mxu0
        %v4616 = vadd.f32 0.0, %v4615
        %v4617 = vpop.f32.mrb[0].mxu0
        %v4618 = vpop.f32.mrb[0].mxu0
        %v4619 = vadd.f32 0.0, %v4618
        %v4620 = vpop.f32.mrb[0].mxu0
        %4621 = vmatprep.mubr.bf16.mxu0 0
        %4622 = vmatmul.mubr.bf16.gmra.mrb[0].mxu0 %v4510
        %v4623 = vpop.f32.mrb[0].mxu0
        %v4624 = vpop.f32.mrb[0].mxu0
        %v4625 = vpop.f32.mrb[0].mxu0
        %v4626 = vpop.f32.mrb[0].mxu0
        %4627 = vmatprep.mubr.bf16.mxu0 0
        %4628 = vmatmul.mubr.bf16.gmra.mrb[0].mxu0 %v4513
        %v4629 = vpop.f32.mrb[0].mxu0
        %v4630 = vadd.f32 0.0, %v4629
        %v4631 = vpop.f32.mrb[0].mxu0
        %v4632 = vpop.f32.mrb[0].mxu0
        %v4633 = vadd.f32 0.0, %v4632
        %v4634 = vpop.f32.mrb[0].mxu0
        %4635 = vmatprep.mubr.bf16.mxu0 0
        %4636 = vmatmul.mubr.bf16.gmra.mrb[0].mxu0 %v4516
        %v4637 = vpop.f32.mrb[0].mxu0
        %v4638 = vpop.f32.mrb[0].mxu0
        %v4639 = vpop.f32.mrb[0].mxu0
        %v4640 = vpop.f32.mrb[0].mxu0
        %4641 = vmatprep.mubr.bf16.mxu0 0
        %4642 = vmatmul.mubr.bf16.gmra.mrb[0].mxu0 %v4519
        %v4643 = vpop.f32.mrb[0].mxu0
        %v4644 = vadd.f32 0.0, %v4643
        %v4645 = vpop.f32.mrb[0].mxu0
        %v4646 = vpop.f32.mrb[0].mxu0
        %v4647 = vadd.f32 0.0, %v4646
        %v4648 = vpop.f32.mrb[0].mxu0
        %4649 = vmatprep.mubr.bf16.mxu0 0
        %4650 = vmatmul.mubr.bf16.gmra.mrb[0].mxu0 %v4522
        %v4651 = vpop.f32.mrb[0].mxu0
        %v4652 = vpop.f32.mrb[0].mxu0
        %v4653 = vpop.f32.mrb[0].mxu0
        %v4654 = vpop.f32.mrb[0].mxu0
        %4655 = vmatprep.mubr.bf16.mxu0 0
        %4656 = vmatmul.mubr.bf16.gmra.mrb[0].mxu0 %v4525
        %v4657 = vpop.f32.mrb[0].mxu0
        %v4658 = vadd.f32 0.0, %v4657
        %v4659 = vpop.f32.mrb[0].mxu0
        %v4660 = vpop.f32.mrb[0].mxu0
        %v4661 = vadd.f32 0.0, %v4660
        %v4662 = vpop.f32.mrb[0].mxu0
        %4663 = vmatprep.mubr.bf16.mxu0 0
        %4664 = vmatmul.mubr.bf16.gmra.mrb[0].mxu0 %v4528
        %v4665 = vpop.f32.mrb[0].mxu0
        %v4666 = vpop.f32.mrb[0].mxu0
        %v4667 = vpop.f32.mrb[0].mxu0
        %v4668 = vpop.f32.mrb[0].mxu0
        %4669 = vmatprep.mubr.bf16.mxu0 0
        %4670 = vmatmul.mubr.bf16.gmra.mrb[0].mxu0 %v4531
        %v4671 = vpop.f32.mrb[0].mxu0
        %v4672 = vadd.f32 0.0, %v4671
        %v4673 = vpop.f32.mrb[0].mxu0
        %v4674 = vpop.f32.mrb[0].mxu0
        %v4675 = vadd.f32 0.0, %v4674
        %v4676 = vpop.f32.mrb[0].mxu0
        %4677 = vmatprep.mubr.bf16.mxu0 0
        %4678 = vmatmul.mubr.bf16.gmra.mrb[0].mxu0 %v4534
        %v4679 = vpop.f32.mrb[0].mxu0
        %v4680 = vpop.f32.mrb[0].mxu0
        %v4681 = vpop.f32.mrb[0].mxu0
        %v4682 = vpop.f32.mrb[0].mxu0
        %4683 = vdwg.mxu0
        %v4684 = vadd.f32 %v4357, %v4574
        %v4685 = vadd.f32 %v4358, %v4577
        %v4686 = vadd.f32 %v4359, %v4588
        %v4687 = vadd.f32 %v4360, %v4591
        %v4688 = vadd.f32 %v4361, %v4602
        %v4689 = vadd.f32 %v4362, %v4605
        %v4690 = vadd.f32 %v4363, %v4616
        %v4691 = vadd.f32 %v4364, %v4619
        %v4692 = vadd.f32 %v4365, %v4630
        %v4693 = vadd.f32 %v4366, %v4633
        %v4694 = vadd.f32 %v4367, %v4644
        %v4695 = vadd.f32 %v4368, %v4647
        %v4696 = vadd.f32 %v4369, %v4658
        %v4697 = vadd.f32 %v4370, %v4661
        %v4698 = vadd.f32 %v4371, %v4672
        %v4699 = vadd.f32 %v4372, %v4675
        %v4700 = vld [vmem:[%s4373] sm:$0xf]
        %v4701 = vld [vmem:[%s4373 + $0x4] sm:$0xf]
        %v4702 = vld [vmem:[%s4373 + $0x8] sm:$0x1]
        %v4703 = vld [vmem:[%s4373 + $0xc] sm:$0xf]
        %v4704 = vld [vmem:[%s4373 + $0x10] sm:$0xf]
        %v4705 = vld [vmem:[%s4373 + $0x14] sm:$0x1]
        %v4706 = vld [vmem:[%s4373 + $0x18] sm:$0xf]
        %v4707 = vld [vmem:[%s4373 + $0x1c] sm:$0xf]
        %v4708 = vld [vmem:[%s4373 + $0x20] sm:$0x1]
        %v4709 = vld [vmem:[%s4373 + $0x24] sm:$0xf]
        %v4710 = vld [vmem:[%s4373 + $0x28] sm:$0xf]
        %v4711 = vld [vmem:[%s4373 + $0x2c] sm:$0x1]
        %v4712 = vld [vmem:[%s4373 + $0x30] sm:$0xf]
        %v4713 = vld [vmem:[%s4373 + $0x34] sm:$0xf]
        %v4714 = vld [vmem:[%s4373 + $0x38] sm:$0x1]
        %v4715 = vld [vmem:[%s4373 + $0x3c] sm:$0xf]
        %v4716 = vld [vmem:[%s4373 + $0x40] sm:$0xf]
        %v4717 = vld [vmem:[%s4373 + $0x44] sm:$0x1]
        %v4718 = vld [vmem:[%s4373 + $0x48] sm:$0xf]
        %v4719 = vld [vmem:[%s4373 + $0x4c] sm:$0xf]
        %v4720 = vld [vmem:[%s4373 + $0x50] sm:$0x1]
        %v4721 = vld [vmem:[%s4373 + $0x54] sm:$0xf]
        %v4722 = vld [vmem:[%s4373 + $0x58] sm:$0xf]
        %v4723 = vld [vmem:[%s4373 + $0x5c] sm:$0x1]
        %v4724 = vld [vmem:[%s4373 + $0x60] sm:$0xf]
        %v4725 = vld [vmem:[%s4373 + $0x64] sm:$0xf]
        %v4726 = vld [vmem:[%s4373 + $0x68] sm:$0x1]
        %v4727 = vld [vmem:[%s4373 + $0x6c] sm:$0xf]
        %v4728 = vld [vmem:[%s4373 + $0x70] sm:$0xf]
        %v4729 = vld [vmem:[%s4373 + $0x74] sm:$0x1]
        %v4730 = vld [vmem:[%s4373 + $0x78] sm:$0xf]
        %v4731 = vld [vmem:[%s4373 + $0x7c] sm:$0xf]
        %v4732 = vld [vmem:[%s4373 + $0x80] sm:$0x1]
        %v4733 = vld [vmem:[%s4373 + $0x84] sm:$0xf]
        %v4734 = vld [vmem:[%s4373 + $0x88] sm:$0xf]
        %v4735 = vld [vmem:[%s4373 + $0x8c] sm:$0x1]
        %v4736 = vld [vmem:[%s4373 + $0x90] sm:$0xf]
        %v4737 = vld [vmem:[%s4373 + $0x94] sm:$0xf]
        %v4738 = vld [vmem:[%s4373 + $0x98] sm:$0x1]
        %v4739 = vld [vmem:[%s4373 + $0x9c] sm:$0xf]
        %v4740 = vld [vmem:[%s4373 + $0xa0] sm:$0xf]
        %v4741 = vld [vmem:[%s4373 + $0xa4] sm:$0x1]
        %v4742 = vld [vmem:[%s4373 + $0xa8] sm:$0xf]
        %v4743 = vld [vmem:[%s4373 + $0xac] sm:$0xf]
        %v4744 = vld [vmem:[%s4373 + $0xb0] sm:$0x1]
        %v4745 = vld [vmem:[%s4373 + $0xb4] sm:$0xf]
        %v4746 = vld [vmem:[%s4373 + $0xb8] sm:$0xf]
        %v4747 = vld [vmem:[%s4373 + $0xbc] sm:$0x1]
        %v4749 = vshrl.u32 %v4700, 16
        %v4751 = vrot.slane %v4749, 4
        %v4752 = vshll.u32 %v4700, 16
        %v4754 = vrot.slane %v4752, 5
        %v4755 = vor.u32 %v4751, %v4754
        %v4756 = vrot.slane %v4755, 4
        %v4758 = vshll.u32 %v4701, 16
        %v4760 = vrot.slane %v4758, 5
        %v4761 = vsel %vm1583, %v4756, %v4760
        %v4762 = vshrl.u32 %v4701, 16
        %v4764 = vrot.slane %v4762, 4
        %v4765 = vor.u32 %v4764, %v4760
        %v4766 = vrot.slane %v4765, 4
        %v4768 = vshll.u32 %v4702, 16
        %v4770 = vrot.slane %v4768, 5
        %v4771 = vsel %vm1583, %v4766, %v4770
        %v4773 = vshrl.u32 %v4703, 16
        %v4775 = vrot.slane %v4773, 4
        %v4776 = vshll.u32 %v4703, 16
        %v4778 = vrot.slane %v4776, 5
        %v4779 = vor.u32 %v4775, %v4778
        %v4780 = vrot.slane %v4779, 4
        %v4782 = vshll.u32 %v4704, 16
        %v4784 = vrot.slane %v4782, 5
        %v4785 = vsel %vm1583, %v4780, %v4784
        %v4786 = vshrl.u32 %v4704, 16
        %v4788 = vrot.slane %v4786, 4
        %v4789 = vor.u32 %v4788, %v4784
        %v4790 = vrot.slane %v4789, 4
        %v4792 = vshll.u32 %v4705, 16
        %v4794 = vrot.slane %v4792, 5
        %v4795 = vsel %vm1583, %v4790, %v4794
        %v4797 = vshrl.u32 %v4706, 16
        %v4799 = vrot.slane %v4797, 4
        %v4800 = vshll.u32 %v4706, 16
        %v4802 = vrot.slane %v4800, 5
        %v4803 = vor.u32 %v4799, %v4802
        %v4804 = vrot.slane %v4803, 4
        %v4806 = vshll.u32 %v4707, 16
        %v4808 = vrot.slane %v4806, 5
        %v4809 = vsel %vm1583, %v4804, %v4808
        %v4810 = vshrl.u32 %v4707, 16
        %v4812 = vrot.slane %v4810, 4
        %v4813 = vor.u32 %v4812, %v4808
        %v4814 = vrot.slane %v4813, 4
        %v4816 = vshll.u32 %v4708, 16
        %v4818 = vrot.slane %v4816, 5
        %v4819 = vsel %vm1583, %v4814, %v4818
        %v4821 = vshrl.u32 %v4709, 16
        %v4823 = vrot.slane %v4821, 4
        %v4824 = vshll.u32 %v4709, 16
        %v4826 = vrot.slane %v4824, 5
        %v4827 = vor.u32 %v4823, %v4826
        %v4828 = vrot.slane %v4827, 4
        %v4830 = vshll.u32 %v4710, 16
        %v4832 = vrot.slane %v4830, 5
        %v4833 = vsel %vm1583, %v4828, %v4832
        %v4834 = vshrl.u32 %v4710, 16
        %v4836 = vrot.slane %v4834, 4
        %v4837 = vor.u32 %v4836, %v4832
        %v4838 = vrot.slane %v4837, 4
        %v4840 = vshll.u32 %v4711, 16
        %v4842 = vrot.slane %v4840, 5
        %v4843 = vsel %vm1583, %v4838, %v4842
        %v4845 = vshrl.u32 %v4712, 16
        %v4847 = vrot.slane %v4845, 4
        %v4848 = vshll.u32 %v4712, 16
        %v4850 = vrot.slane %v4848, 5
        %v4851 = vor.u32 %v4847, %v4850
        %v4852 = vrot.slane %v4851, 4
        %v4854 = vshll.u32 %v4713, 16
        %v4856 = vrot.slane %v4854, 5
        %v4857 = vsel %vm1583, %v4852, %v4856
        %v4858 = vshrl.u32 %v4713, 16
        %v4860 = vrot.slane %v4858, 4
        %v4861 = vor.u32 %v4860, %v4856
        %v4862 = vrot.slane %v4861, 4
        %v4864 = vshll.u32 %v4714, 16
        %v4866 = vrot.slane %v4864, 5
        %v4867 = vsel %vm1583, %v4862, %v4866
        %v4869 = vshrl.u32 %v4715, 16
        %v4871 = vrot.slane %v4869, 4
        %v4872 = vshll.u32 %v4715, 16
        %v4874 = vrot.slane %v4872, 5
        %v4875 = vor.u32 %v4871, %v4874
        %v4876 = vrot.slane %v4875, 4
        %v4878 = vshll.u32 %v4716, 16
        %v4880 = vrot.slane %v4878, 5
        %v4881 = vsel %vm1583, %v4876, %v4880
        %v4882 = vshrl.u32 %v4716, 16
        %v4884 = vrot.slane %v4882, 4
        %v4885 = vor.u32 %v4884, %v4880
        %v4886 = vrot.slane %v4885, 4
        %v4888 = vshll.u32 %v4717, 16
        %v4890 = vrot.slane %v4888, 5
        %v4891 = vsel %vm1583, %v4886, %v4890
        %v4893 = vshrl.u32 %v4718, 16
        %v4895 = vrot.slane %v4893, 4
        %v4896 = vshll.u32 %v4718, 16
        %v4898 = vrot.slane %v4896, 5
        %v4899 = vor.u32 %v4895, %v4898
        %v4900 = vrot.slane %v4899, 4
        %v4902 = vshll.u32 %v4719, 16
        %v4904 = vrot.slane %v4902, 5
        %v4905 = vsel %vm1583, %v4900, %v4904
        %v4906 = vshrl.u32 %v4719, 16
        %v4908 = vrot.slane %v4906, 4
        %v4909 = vor.u32 %v4908, %v4904
        %v4910 = vrot.slane %v4909, 4
        %v4912 = vshll.u32 %v4720, 16
        %v4914 = vrot.slane %v4912, 5
        %v4915 = vsel %vm1583, %v4910, %v4914
        %v4917 = vshrl.u32 %v4721, 16
        %v4919 = vrot.slane %v4917, 4
        %v4920 = vshll.u32 %v4721, 16
        %v4922 = vrot.slane %v4920, 5
        %v4923 = vor.u32 %v4919, %v4922
        %v4924 = vrot.slane %v4923, 4
        %v4926 = vshll.u32 %v4722, 16
        %v4928 = vrot.slane %v4926, 5
        %v4929 = vsel %vm1583, %v4924, %v4928
        %v4930 = vshrl.u32 %v4722, 16
        %v4932 = vrot.slane %v4930, 4
        %v4933 = vor.u32 %v4932, %v4928
        %v4934 = vrot.slane %v4933, 4
        %v4936 = vshll.u32 %v4723, 16
        %v4938 = vrot.slane %v4936, 5
        %v4939 = vsel %vm1583, %v4934, %v4938
        %v4941 = vshrl.u32 %v4724, 16
        %v4943 = vrot.slane %v4941, 4
        %v4944 = vshll.u32 %v4724, 16
        %v4946 = vrot.slane %v4944, 5
        %v4947 = vor.u32 %v4943, %v4946
        %v4948 = vrot.slane %v4947, 4
        %v4950 = vshll.u32 %v4725, 16
        %v4952 = vrot.slane %v4950, 5
        %v4953 = vsel %vm1583, %v4948, %v4952
        %v4954 = vshrl.u32 %v4725, 16
        %v4956 = vrot.slane %v4954, 4
        %v4957 = vor.u32 %v4956, %v4952
        %v4958 = vrot.slane %v4957, 4
        %v4960 = vshll.u32 %v4726, 16
        %v4962 = vrot.slane %v4960, 5
        %v4963 = vsel %vm1583, %v4958, %v4962
        %v4965 = vshrl.u32 %v4727, 16
        %v4967 = vrot.slane %v4965, 4
        %v4968 = vshll.u32 %v4727, 16
        %v4970 = vrot.slane %v4968, 5
        %v4971 = vor.u32 %v4967, %v4970
        %v4972 = vrot.slane %v4971, 4
        %v4974 = vshll.u32 %v4728, 16
        %v4976 = vrot.slane %v4974, 5
        %v4977 = vsel %vm1583, %v4972, %v4976
        %v4978 = vshrl.u32 %v4728, 16
        %v4980 = vrot.slane %v4978, 4
        %v4981 = vor.u32 %v4980, %v4976
        %v4982 = vrot.slane %v4981, 4
        %v4984 = vshll.u32 %v4729, 16
        %v4986 = vrot.slane %v4984, 5
        %v4987 = vsel %vm1583, %v4982, %v4986
        %v4989 = vshrl.u32 %v4730, 16
        %v4991 = vrot.slane %v4989, 4
        %v4992 = vshll.u32 %v4730, 16
        %v4994 = vrot.slane %v4992, 5
        %v4995 = vor.u32 %v4991, %v4994
        %v4996 = vrot.slane %v4995, 4
        %v4998 = vshll.u32 %v4731, 16
        %v5000 = vrot.slane %v4998, 5
        %v5001 = vsel %vm1583, %v4996, %v5000
        %v5002 = vshrl.u32 %v4731, 16
        %v5004 = vrot.slane %v5002, 4
        %v5005 = vor.u32 %v5004, %v5000
        %v5006 = vrot.slane %v5005, 4
        %v5008 = vshll.u32 %v4732, 16
        %v5010 = vrot.slane %v5008, 5
        %v5011 = vsel %vm1583, %v5006, %v5010
        %v5013 = vshrl.u32 %v4733, 16
        %v5015 = vrot.slane %v5013, 4
        %v5016 = vshll.u32 %v4733, 16
        %v5018 = vrot.slane %v5016, 5
        %v5019 = vor.u32 %v5015, %v5018
        %v5020 = vrot.slane %v5019, 4
        %v5022 = vshll.u32 %v4734, 16
        %v5024 = vrot.slane %v5022, 5
        %v5025 = vsel %vm1583, %v5020, %v5024
        %v5026 = vshrl.u32 %v4734, 16
        %v5028 = vrot.slane %v5026, 4
        %v5029 = vor.u32 %v5028, %v5024
        %v5030 = vrot.slane %v5029, 4
        %v5032 = vshll.u32 %v4735, 16
        %v5034 = vrot.slane %v5032, 5
        %v5035 = vsel %vm1583, %v5030, %v5034
        %v5037 = vshrl.u32 %v4736, 16
        %v5039 = vrot.slane %v5037, 4
        %v5040 = vshll.u32 %v4736, 16
        %v5042 = vrot.slane %v5040, 5
        %v5043 = vor.u32 %v5039, %v5042
        %v5044 = vrot.slane %v5043, 4
        %v5046 = vshll.u32 %v4737, 16
        %v5048 = vrot.slane %v5046, 5
        %v5049 = vsel %vm1583, %v5044, %v5048
        %v5050 = vshrl.u32 %v4737, 16
        %v5052 = vrot.slane %v5050, 4
        %v5053 = vor.u32 %v5052, %v5048
        %v5054 = vrot.slane %v5053, 4
        %v5056 = vshll.u32 %v4738, 16
        %v5058 = vrot.slane %v5056, 5
        %v5059 = vsel %vm1583, %v5054, %v5058
        %v5061 = vshrl.u32 %v4739, 16
        %v5063 = vrot.slane %v5061, 4
        %v5064 = vshll.u32 %v4739, 16
        %v5066 = vrot.slane %v5064, 5
        %v5067 = vor.u32 %v5063, %v5066
        %v5068 = vrot.slane %v5067, 4
        %v5070 = vshll.u32 %v4740, 16
        %v5072 = vrot.slane %v5070, 5
        %v5073 = vsel %vm1583, %v5068, %v5072
        %v5074 = vshrl.u32 %v4740, 16
        %v5076 = vrot.slane %v5074, 4
        %v5077 = vor.u32 %v5076, %v5072
        %v5078 = vrot.slane %v5077, 4
        %v5080 = vshll.u32 %v4741, 16
        %v5082 = vrot.slane %v5080, 5
        %v5083 = vsel %vm1583, %v5078, %v5082
        %v5085 = vshrl.u32 %v4742, 16
        %v5087 = vrot.slane %v5085, 4
        %v5088 = vshll.u32 %v4742, 16
        %v5090 = vrot.slane %v5088, 5
        %v5091 = vor.u32 %v5087, %v5090
        %v5092 = vrot.slane %v5091, 4
        %v5094 = vshll.u32 %v4743, 16
        %v5096 = vrot.slane %v5094, 5
        %v5097 = vsel %vm1583, %v5092, %v5096
        %v5098 = vshrl.u32 %v4743, 16
        %v5100 = vrot.slane %v5098, 4
        %v5101 = vor.u32 %v5100, %v5096
        %v5102 = vrot.slane %v5101, 4
        %v5104 = vshll.u32 %v4744, 16
        %v5106 = vrot.slane %v5104, 5
        %v5107 = vsel %vm1583, %v5102, %v5106
        %v5109 = vshrl.u32 %v4745, 16
        %v5111 = vrot.slane %v5109, 4
        %v5112 = vshll.u32 %v4745, 16
        %v5114 = vrot.slane %v5112, 5
        %v5115 = vor.u32 %v5111, %v5114
        %v5116 = vrot.slane %v5115, 4
        %v5118 = vshll.u32 %v4746, 16
        %v5120 = vrot.slane %v5118, 5
        %v5121 = vsel %vm1583, %v5116, %v5120
        %v5122 = vshrl.u32 %v4746, 16
        %v5124 = vrot.slane %v5122, 4
        %v5125 = vor.u32 %v5124, %v5120
        %v5126 = vrot.slane %v5125, 4
        %v5128 = vshll.u32 %v4747, 16
        %v5130 = vrot.slane %v5128, 5
        %v5131 = vsel %vm1583, %v5126, %v5130
        %s5132 = scalar_lea.vmem %s4, 28
        %v5133 = vld [vmem:[%s5132] sm:$0xf]
        %v5134 = vunpack.c.l.b16 %v4761
        %v5135 = vunpack.c.l.b16 %v4771
        %v5136 = vunpack.c.l.b16 %v4785
        %v5137 = vunpack.c.l.b16 %v4795
        %v5138 = vunpack.c.l.b16 %v4809
        %v5139 = vunpack.c.l.b16 %v4819
        %v5140 = vunpack.c.l.b16 %v4833
        %v5141 = vunpack.c.l.b16 %v4843
        %v5142 = vunpack.c.l.b16 %v4857
        %v5143 = vunpack.c.l.b16 %v4867
        %v5144 = vunpack.c.l.b16 %v4881
        %v5145 = vunpack.c.l.b16 %v4891
        %v5146 = vunpack.c.l.b16 %v4905
        %v5147 = vunpack.c.l.b16 %v4915
        %v5148 = vunpack.c.l.b16 %v4929
        %v5149 = vunpack.c.l.b16 %v4939
        %v5150 = vunpack.c.l.b16 %v4953
        %v5151 = vunpack.c.l.b16 %v4963
        %v5152 = vunpack.c.l.b16 %v4977
        %v5153 = vunpack.c.l.b16 %v4987
        %v5154 = vunpack.c.l.b16 %v5001
        %v5155 = vunpack.c.l.b16 %v5011
        %v5156 = vunpack.c.l.b16 %v5025
        %v5157 = vunpack.c.l.b16 %v5035
        %v5158 = vunpack.c.l.b16 %v5049
        %v5159 = vunpack.c.l.b16 %v5059
        %v5160 = vunpack.c.l.b16 %v5073
        %v5161 = vunpack.c.l.b16 %v5083
        %v5162 = vunpack.c.l.b16 %v5097
        %v5163 = vunpack.c.l.b16 %v5107
        %v5164 = vunpack.c.l.b16 %v5121
        %v5165 = vunpack.c.l.b16 %v5131
        %v5166 = vpack.c.b16 %v5135, %v5134
        %v5167 = vpack.c.b16 %v5137, %v5136
        %v5168 = vpack.c.b16 %v5139, %v5138
        %v5169 = vpack.c.b16 %v5141, %v5140
        %v5170 = vpack.c.b16 %v5143, %v5142
        %v5171 = vpack.c.b16 %v5145, %v5144
        %v5172 = vpack.c.b16 %v5147, %v5146
        %v5173 = vpack.c.b16 %v5149, %v5148
        %v5174 = vpack.c.b16 %v5151, %v5150
        %v5175 = vpack.c.b16 %v5153, %v5152
        %v5176 = vpack.c.b16 %v5155, %v5154
        %v5177 = vpack.c.b16 %v5157, %v5156
        %v5178 = vpack.c.b16 %v5159, %v5158
        %v5179 = vpack.c.b16 %v5161, %v5160
        %v5180 = vpack.c.b16 %v5163, %v5162
        %v5181 = vpack.c.b16 %v5165, %v5164
        %v5183 = vsel %vm553, %v5166, 0
        %v5186 = vsel %vm553, %v5167, 0
        %v5189 = vsel %vm553, %v5168, 0
        %v5192 = vsel %vm553, %v5169, 0
        %v5195 = vsel %vm553, %v5170, 0
        %v5198 = vsel %vm553, %v5171, 0
        %v5201 = vsel %vm553, %v5172, 0
        %v5204 = vsel %vm553, %v5173, 0
        %v5207 = vsel %vm553, %v5174, 0
        %v5210 = vsel %vm553, %v5175, 0
        %v5213 = vsel %vm553, %v5176, 0
        %v5216 = vsel %vm553, %v5177, 0
        %v5219 = vsel %vm553, %v5178, 0
        %v5222 = vsel %vm553, %v5179, 0
        %v5225 = vsel %vm553, %v5180, 0
        %v5228 = vsel %vm553, %v5181, 0
        %v5231 = vsel %vm602, %v5133, 0
        %5233 = vmatprep.subr.bf16.mxu0 0
        %5234 = vmatpush1.bf16.msra.mxu0 %v5231
        %5235 = vmatprep.subr.bf16.mxu0 0
        %5236 = vmatpush1.bf16.msra.mxu0 0
        %5237 = vmatprep.subr.bf16.mxu0 0
        %5238 = vmatpush1.bf16.msra.mxu0 0
        %5239 = vmatprep.subr.bf16.mxu0 0
        %5240 = vmatpush1.bf16.msra.mxu0 0
        %5241 = vmatprep.subr.bf16.mxu0 0
        %5242 = vmatpush1.bf16.msra.mxu0 0
        %5243 = vmatprep.subr.bf16.mxu0 0
        %5244 = vmatpush1.bf16.msra.mxu0 0
        %5245 = vmatprep.subr.bf16.mxu0 0
        %5246 = vmatpush1.bf16.msra.mxu0 0
        %5247 = vmatprep.subr.bf16.mxu0 0
        %5248 = vmatpush1.bf16.msra.mxu0 0
        %5249 = vmatprep.subr.bf16.mxu0 0
        %5250 = vmatpush1.bf16.msra.mxu0 0
        %5251 = vmatprep.subr.bf16.mxu0 0
        %5252 = vmatpush1.bf16.msra.mxu0 0
        %5253 = vmatprep.subr.bf16.mxu0 0
        %5254 = vmatpush1.bf16.msra.mxu0 0
        %5255 = vmatprep.subr.bf16.mxu0 0
        %5256 = vmatpush1.bf16.msra.mxu0 0
        %5257 = vmatprep.subr.bf16.mxu0 0
        %5258 = vmatpush1.bf16.msra.mxu0 0
        %5259 = vmatprep.subr.bf16.mxu0 0
        %5260 = vmatpush1.bf16.msra.mxu0 0
        %5261 = vmatprep.subr.bf16.mxu0 0
        %5262 = vmatpush1.bf16.msra.mxu0 0
        %5263 = vmatprep.subr.bf16.mxu0 0
        %5264 = vmatpush1.bf16.msra.mxu0 0
        %5265 = vmatprep.mubr.bf16.mxu0 0
        %5266 = vmatmul.mubr.bf16.gmra.mrb[0].mxu0 %v5183
        %v5267 = vpop.f32.mrb[0].mxu0
        %v5268 = vadd.f32 0.0, %v5267
        %v5269 = vpop.f32.mrb[0].mxu0
        %v5270 = vpop.f32.mrb[0].mxu0
        %v5271 = vadd.f32 0.0, %v5270
        %v5272 = vpop.f32.mrb[0].mxu0
        %5273 = vmatprep.mubr.bf16.mxu0 0
        %5274 = vmatmul.mubr.bf16.gmra.mrb[0].mxu0 %v5186
        %v5275 = vpop.f32.mrb[0].mxu0
        %v5276 = vpop.f32.mrb[0].mxu0
        %v5277 = vpop.f32.mrb[0].mxu0
        %v5278 = vpop.f32.mrb[0].mxu0
        %5279 = vmatprep.mubr.bf16.mxu0 0
        %5280 = vmatmul.mubr.bf16.gmra.mrb[0].mxu0 %v5189
        %v5281 = vpop.f32.mrb[0].mxu0
        %v5282 = vadd.f32 0.0, %v5281
        %v5283 = vpop.f32.mrb[0].mxu0
        %v5284 = vpop.f32.mrb[0].mxu0
        %v5285 = vadd.f32 0.0, %v5284
        %v5286 = vpop.f32.mrb[0].mxu0
        %5287 = vmatprep.mubr.bf16.mxu0 0
        %5288 = vmatmul.mubr.bf16.gmra.mrb[0].mxu0 %v5192
        %v5289 = vpop.f32.mrb[0].mxu0
        %v5290 = vpop.f32.mrb[0].mxu0
        %v5291 = vpop.f32.mrb[0].mxu0
        %v5292 = vpop.f32.mrb[0].mxu0
        %5293 = vmatprep.mubr.bf16.mxu0 0
        %5294 = vmatmul.mubr.bf16.gmra.mrb[0].mxu0 %v5195
        %v5295 = vpop.f32.mrb[0].mxu0
        %v5296 = vadd.f32 0.0, %v5295
        %v5297 = vpop.f32.mrb[0].mxu0
        %v5298 = vpop.f32.mrb[0].mxu0
        %v5299 = vadd.f32 0.0, %v5298
        %v5300 = vpop.f32.mrb[0].mxu0
        %5301 = vmatprep.mubr.bf16.mxu0 0
        %5302 = vmatmul.mubr.bf16.gmra.mrb[0].mxu0 %v5198
        %v5303 = vpop.f32.mrb[0].mxu0
        %v5304 = vpop.f32.mrb[0].mxu0
        %v5305 = vpop.f32.mrb[0].mxu0
        %v5306 = vpop.f32.mrb[0].mxu0
        %5307 = vmatprep.mubr.bf16.mxu0 0
        %5308 = vmatmul.mubr.bf16.gmra.mrb[0].mxu0 %v5201
        %v5309 = vpop.f32.mrb[0].mxu0
        %v5310 = vadd.f32 0.0, %v5309
        %v5311 = vpop.f32.mrb[0].mxu0
        %v5312 = vpop.f32.mrb[0].mxu0
        %v5313 = vadd.f32 0.0, %v5312
        %v5314 = vpop.f32.mrb[0].mxu0
        %5315 = vmatprep.mubr.bf16.mxu0 0
        %5316 = vmatmul.mubr.bf16.gmra.mrb[0].mxu0 %v5204
        %v5317 = vpop.f32.mrb[0].mxu0
        %v5318 = vpop.f32.mrb[0].mxu0
        %v5319 = vpop.f32.mrb[0].mxu0
        %v5320 = vpop.f32.mrb[0].mxu0
        %5321 = vmatprep.mubr.bf16.mxu0 0
        %5322 = vmatmul.mubr.bf16.gmra.mrb[0].mxu0 %v5207
        %v5323 = vpop.f32.mrb[0].mxu0
        %v5324 = vadd.f32 0.0, %v5323
        %v5325 = vpop.f32.mrb[0].mxu0
        %v5326 = vpop.f32.mrb[0].mxu0
        %v5327 = vadd.f32 0.0, %v5326
        %v5328 = vpop.f32.mrb[0].mxu0
        %5329 = vmatprep.mubr.bf16.mxu0 0
        %5330 = vmatmul.mubr.bf16.gmra.mrb[0].mxu0 %v5210
        %v5331 = vpop.f32.mrb[0].mxu0
        %v5332 = vpop.f32.mrb[0].mxu0
        %v5333 = vpop.f32.mrb[0].mxu0
        %v5334 = vpop.f32.mrb[0].mxu0
        %5335 = vmatprep.mubr.bf16.mxu0 0
        %5336 = vmatmul.mubr.bf16.gmra.mrb[0].mxu0 %v5213
        %v5337 = vpop.f32.mrb[0].mxu0
        %v5338 = vadd.f32 0.0, %v5337
        %v5339 = vpop.f32.mrb[0].mxu0
        %v5340 = vpop.f32.mrb[0].mxu0
        %v5341 = vadd.f32 0.0, %v5340
        %v5342 = vpop.f32.mrb[0].mxu0
        %5343 = vmatprep.mubr.bf16.mxu0 0
        %5344 = vmatmul.mubr.bf16.gmra.mrb[0].mxu0 %v5216
        %v5345 = vpop.f32.mrb[0].mxu0
        %v5346 = vpop.f32.mrb[0].mxu0
        %v5347 = vpop.f32.mrb[0].mxu0
        %v5348 = vpop.f32.mrb[0].mxu0
        %5349 = vmatprep.mubr.bf16.mxu0 0
        %5350 = vmatmul.mubr.bf16.gmra.mrb[0].mxu0 %v5219
        %v5351 = vpop.f32.mrb[0].mxu0
        %v5352 = vadd.f32 0.0, %v5351
        %v5353 = vpop.f32.mrb[0].mxu0
        %v5354 = vpop.f32.mrb[0].mxu0
        %v5355 = vadd.f32 0.0, %v5354
        %v5356 = vpop.f32.mrb[0].mxu0
        %5357 = vmatprep.mubr.bf16.mxu0 0
        %5358 = vmatmul.mubr.bf16.gmra.mrb[0].mxu0 %v5222
        %v5359 = vpop.f32.mrb[0].mxu0
        %v5360 = vpop.f32.mrb[0].mxu0
        %v5361 = vpop.f32.mrb[0].mxu0
        %v5362 = vpop.f32.mrb[0].mxu0
        %5363 = vmatprep.mubr.bf16.mxu0 0
        %5364 = vmatmul.mubr.bf16.gmra.mrb[0].mxu0 %v5225
        %v5365 = vpop.f32.mrb[0].mxu0
        %v5366 = vadd.f32 0.0, %v5365
        %v5367 = vpop.f32.mrb[0].mxu0
        %v5368 = vpop.f32.mrb[0].mxu0
        %v5369 = vadd.f32 0.0, %v5368
        %v5370 = vpop.f32.mrb[0].mxu0
        %5371 = vmatprep.mubr.bf16.mxu0 0
        %5372 = vmatmul.mubr.bf16.gmra.mrb[0].mxu0 %v5228
        %v5373 = vpop.f32.mrb[0].mxu0
        %v5374 = vpop.f32.mrb[0].mxu0
        %v5375 = vpop.f32.mrb[0].mxu0
        %v5376 = vpop.f32.mrb[0].mxu0
        %5377 = vdwg.mxu0
        %v5378 = vadd.f32 %v4684, %v5268
        %v5379 = vadd.f32 %v4685, %v5271
        %v5380 = vadd.f32 %v4686, %v5282
        %v5381 = vadd.f32 %v4687, %v5285
        %v5382 = vadd.f32 %v4688, %v5296
        %v5383 = vadd.f32 %v4689, %v5299
        %v5384 = vadd.f32 %v4690, %v5310
        %v5385 = vadd.f32 %v4691, %v5313
        %v5386 = vadd.f32 %v4692, %v5324
        %v5387 = vadd.f32 %v4693, %v5327
        %v5388 = vadd.f32 %v4694, %v5338
        %v5389 = vadd.f32 %v4695, %v5341
        %v5390 = vadd.f32 %v4696, %v5352
        %v5391 = vadd.f32 %v4697, %v5355
        %v5392 = vadd.f32 %v4698, %v5366
        %v5393 = vadd.f32 %v4699, %v5369
        %v5394 = vld [vmem:[%s4373] sm:$0xe]
        %v5395 = vld [vmem:[%s4373 + $0xc] sm:$0xe]
        %v5396 = vld [vmem:[%s4373 + $0x18] sm:$0xe]
        %v5397 = vld [vmem:[%s4373 + $0x24] sm:$0xe]
        %v5398 = vld [vmem:[%s4373 + $0x30] sm:$0xe]
        %v5399 = vld [vmem:[%s4373 + $0x3c] sm:$0xe]
        %v5400 = vld [vmem:[%s4373 + $0x48] sm:$0xe]
        %v5401 = vld [vmem:[%s4373 + $0x54] sm:$0xe]
        %v5402 = vld [vmem:[%s4373 + $0x60] sm:$0xe]
        %v5403 = vld [vmem:[%s4373 + $0x6c] sm:$0xe]
        %v5404 = vld [vmem:[%s4373 + $0x78] sm:$0xe]
        %v5405 = vld [vmem:[%s4373 + $0x84] sm:$0xe]
        %v5406 = vld [vmem:[%s4373 + $0x90] sm:$0xe]
        %v5407 = vld [vmem:[%s4373 + $0x9c] sm:$0xe]
        %v5408 = vld [vmem:[%s4373 + $0xa8] sm:$0xe]
        %v5409 = vld [vmem:[%s4373 + $0xb4] sm:$0xe]
        %v5458 = vrot.slane %v5394, 5
        %v5459 = vrot.slane %v5458, 4
        %v5460 = vrot.slane %v4701, 5
        %v5461 = vsel %vm2540, %v5459, %v5460
        %v5462 = vrot.slane %v5460, 4
        %v5463 = vrot.slane %v4702, 5
        %v5464 = vsel %vm2540, %v5462, %v5463
        %v5465 = vrot.slane %v5395, 5
        %v5466 = vrot.slane %v5465, 4
        %v5467 = vrot.slane %v4704, 5
        %v5468 = vsel %vm2540, %v5466, %v5467
        %v5469 = vrot.slane %v5467, 4
        %v5470 = vrot.slane %v4705, 5
        %v5471 = vsel %vm2540, %v5469, %v5470
        %v5472 = vrot.slane %v5396, 5
        %v5473 = vrot.slane %v5472, 4
        %v5474 = vrot.slane %v4707, 5
        %v5475 = vsel %vm2540, %v5473, %v5474
        %v5476 = vrot.slane %v5474, 4
        %v5477 = vrot.slane %v4708, 5
        %v5478 = vsel %vm2540, %v5476, %v5477
        %v5479 = vrot.slane %v5397, 5
        %v5480 = vrot.slane %v5479, 4
        %v5481 = vrot.slane %v4710, 5
        %v5482 = vsel %vm2540, %v5480, %v5481
        %v5483 = vrot.slane %v5481, 4
        %v5484 = vrot.slane %v4711, 5
        %v5485 = vsel %vm2540, %v5483, %v5484
        %v5486 = vrot.slane %v5398, 5
        %v5487 = vrot.slane %v5486, 4
        %v5488 = vrot.slane %v4713, 5
        %v5489 = vsel %vm2540, %v5487, %v5488
        %v5490 = vrot.slane %v5488, 4
        %v5491 = vrot.slane %v4714, 5
        %v5492 = vsel %vm2540, %v5490, %v5491
        %v5493 = vrot.slane %v5399, 5
        %v5494 = vrot.slane %v5493, 4
        %v5495 = vrot.slane %v4716, 5
        %v5496 = vsel %vm2540, %v5494, %v5495
        %v5497 = vrot.slane %v5495, 4
        %v5498 = vrot.slane %v4717, 5
        %v5499 = vsel %vm2540, %v5497, %v5498
        %v5500 = vrot.slane %v5400, 5
        %v5501 = vrot.slane %v5500, 4
        %v5502 = vrot.slane %v4719, 5
        %v5503 = vsel %vm2540, %v5501, %v5502
        %v5504 = vrot.slane %v5502, 4
        %v5505 = vrot.slane %v4720, 5
        %v5506 = vsel %vm2540, %v5504, %v5505
        %v5507 = vrot.slane %v5401, 5
        %v5508 = vrot.slane %v5507, 4
        %v5509 = vrot.slane %v4722, 5
        %v5510 = vsel %vm2540, %v5508, %v5509
        %v5511 = vrot.slane %v5509, 4
        %v5512 = vrot.slane %v4723, 5
        %v5513 = vsel %vm2540, %v5511, %v5512
        %v5514 = vrot.slane %v5402, 5
        %v5515 = vrot.slane %v5514, 4
        %v5516 = vrot.slane %v4725, 5
        %v5517 = vsel %vm2540, %v5515, %v5516
        %v5518 = vrot.slane %v5516, 4
        %v5519 = vrot.slane %v4726, 5
        %v5520 = vsel %vm2540, %v5518, %v5519
        %v5521 = vrot.slane %v5403, 5
        %v5522 = vrot.slane %v5521, 4
        %v5523 = vrot.slane %v4728, 5
        %v5524 = vsel %vm2540, %v5522, %v5523
        %v5525 = vrot.slane %v5523, 4
        %v5526 = vrot.slane %v4729, 5
        %v5527 = vsel %vm2540, %v5525, %v5526
        %v5528 = vrot.slane %v5404, 5
        %v5529 = vrot.slane %v5528, 4
        %v5530 = vrot.slane %v4731, 5
        %v5531 = vsel %vm2540, %v5529, %v5530
        %v5532 = vrot.slane %v5530, 4
        %v5533 = vrot.slane %v4732, 5
        %v5534 = vsel %vm2540, %v5532, %v5533
        %v5535 = vrot.slane %v5405, 5
        %v5536 = vrot.slane %v5535, 4
        %v5537 = vrot.slane %v4734, 5
        %v5538 = vsel %vm2540, %v5536, %v5537
        %v5539 = vrot.slane %v5537, 4
        %v5540 = vrot.slane %v4735, 5
        %v5541 = vsel %vm2540, %v5539, %v5540
        %v5542 = vrot.slane %v5406, 5
        %v5543 = vrot.slane %v5542, 4
        %v5544 = vrot.slane %v4737, 5
        %v5545 = vsel %vm2540, %v5543, %v5544
        %v5546 = vrot.slane %v5544, 4
        %v5547 = vrot.slane %v4738, 5
        %v5548 = vsel %vm2540, %v5546, %v5547
        %v5549 = vrot.slane %v5407, 5
        %v5550 = vrot.slane %v5549, 4
        %v5551 = vrot.slane %v4740, 5
        %v5552 = vsel %vm2540, %v5550, %v5551
        %v5553 = vrot.slane %v5551, 4
        %v5554 = vrot.slane %v4741, 5
        %v5555 = vsel %vm2540, %v5553, %v5554
        %v5556 = vrot.slane %v5408, 5
        %v5557 = vrot.slane %v5556, 4
        %v5558 = vrot.slane %v4743, 5
        %v5559 = vsel %vm2540, %v5557, %v5558
        %v5560 = vrot.slane %v5558, 4
        %v5561 = vrot.slane %v4744, 5
        %v5562 = vsel %vm2540, %v5560, %v5561
        %v5563 = vrot.slane %v5409, 5
        %v5564 = vrot.slane %v5563, 4
        %v5565 = vrot.slane %v4746, 5
        %v5566 = vsel %vm2540, %v5564, %v5565
        %v5567 = vrot.slane %v5565, 4
        %v5568 = vrot.slane %v4747, 5
        %v5569 = vsel %vm2540, %v5567, %v5568
        %s5570 = scalar_lea.vmem %s4, 32
        %v5571 = vld [vmem:[%s5570] sm:$0xf]
        %v5572 = vunpack.c.l.b16 %v5461
        %v5573 = vunpack.c.l.b16 %v5464
        %v5574 = vunpack.c.l.b16 %v5468
        %v5575 = vunpack.c.l.b16 %v5471
        %v5576 = vunpack.c.l.b16 %v5475
        %v5577 = vunpack.c.l.b16 %v5478
        %v5578 = vunpack.c.l.b16 %v5482
        %v5579 = vunpack.c.l.b16 %v5485
        %v5580 = vunpack.c.l.b16 %v5489
        %v5581 = vunpack.c.l.b16 %v5492
        %v5582 = vunpack.c.l.b16 %v5496
        %v5583 = vunpack.c.l.b16 %v5499
        %v5584 = vunpack.c.l.b16 %v5503
        %v5585 = vunpack.c.l.b16 %v5506
        %v5586 = vunpack.c.l.b16 %v5510
        %v5587 = vunpack.c.l.b16 %v5513
        %v5588 = vunpack.c.l.b16 %v5517
        %v5589 = vunpack.c.l.b16 %v5520
        %v5590 = vunpack.c.l.b16 %v5524
        %v5591 = vunpack.c.l.b16 %v5527
        %v5592 = vunpack.c.l.b16 %v5531
        %v5593 = vunpack.c.l.b16 %v5534
        %v5594 = vunpack.c.l.b16 %v5538
        %v5595 = vunpack.c.l.b16 %v5541
        %v5596 = vunpack.c.l.b16 %v5545
        %v5597 = vunpack.c.l.b16 %v5548
        %v5598 = vunpack.c.l.b16 %v5552
        %v5599 = vunpack.c.l.b16 %v5555
        %v5600 = vunpack.c.l.b16 %v5559
        %v5601 = vunpack.c.l.b16 %v5562
        %v5602 = vunpack.c.l.b16 %v5566
        %v5603 = vunpack.c.l.b16 %v5569
        %v5604 = vpack.c.b16 %v5573, %v5572
        %v5605 = vpack.c.b16 %v5575, %v5574
        %v5606 = vpack.c.b16 %v5577, %v5576
        %v5607 = vpack.c.b16 %v5579, %v5578
        %v5608 = vpack.c.b16 %v5581, %v5580
        %v5609 = vpack.c.b16 %v5583, %v5582
        %v5610 = vpack.c.b16 %v5585, %v5584
        %v5611 = vpack.c.b16 %v5587, %v5586
        %v5612 = vpack.c.b16 %v5589, %v5588
        %v5613 = vpack.c.b16 %v5591, %v5590
        %v5614 = vpack.c.b16 %v5593, %v5592
        %v5615 = vpack.c.b16 %v5595, %v5594
        %v5616 = vpack.c.b16 %v5597, %v5596
        %v5617 = vpack.c.b16 %v5599, %v5598
        %v5618 = vpack.c.b16 %v5601, %v5600
        %v5619 = vpack.c.b16 %v5603, %v5602
        %v5621 = vsel %vm553, %v5604, 0
        %v5624 = vsel %vm553, %v5605, 0
        %v5627 = vsel %vm553, %v5606, 0
        %v5630 = vsel %vm553, %v5607, 0
        %v5633 = vsel %vm553, %v5608, 0
        %v5636 = vsel %vm553, %v5609, 0
        %v5639 = vsel %vm553, %v5610, 0
        %v5642 = vsel %vm553, %v5611, 0
        %v5645 = vsel %vm553, %v5612, 0
        %v5648 = vsel %vm553, %v5613, 0
        %v5651 = vsel %vm553, %v5614, 0
        %v5654 = vsel %vm553, %v5615, 0
        %v5657 = vsel %vm553, %v5616, 0
        %v5660 = vsel %vm553, %v5617, 0
        %v5663 = vsel %vm553, %v5618, 0
        %v5666 = vsel %vm553, %v5619, 0
        %v5669 = vsel %vm602, %v5571, 0
        %5671 = vmatprep.subr.bf16.mxu0 0
        %5672 = vmatpush1.bf16.msra.mxu0 %v5669
        %5673 = vmatprep.subr.bf16.mxu0 0
        %5674 = vmatpush1.bf16.msra.mxu0 0
        %5675 = vmatprep.subr.bf16.mxu0 0
        %5676 = vmatpush1.bf16.msra.mxu0 0
        %5677 = vmatprep.subr.bf16.mxu0 0
        %5678 = vmatpush1.bf16.msra.mxu0 0
        %5679 = vmatprep.subr.bf16.mxu0 0
        %5680 = vmatpush1.bf16.msra.mxu0 0
        %5681 = vmatprep.subr.bf16.mxu0 0
        %5682 = vmatpush1.bf16.msra.mxu0 0
        %5683 = vmatprep.subr.bf16.mxu0 0
        %5684 = vmatpush1.bf16.msra.mxu0 0
        %5685 = vmatprep.subr.bf16.mxu0 0
        %5686 = vmatpush1.bf16.msra.mxu0 0
        %5687 = vmatprep.subr.bf16.mxu0 0
        %5688 = vmatpush1.bf16.msra.mxu0 0
        %5689 = vmatprep.subr.bf16.mxu0 0
        %5690 = vmatpush1.bf16.msra.mxu0 0
        %5691 = vmatprep.subr.bf16.mxu0 0
        %5692 = vmatpush1.bf16.msra.mxu0 0
        %5693 = vmatprep.subr.bf16.mxu0 0
        %5694 = vmatpush1.bf16.msra.mxu0 0
        %5695 = vmatprep.subr.bf16.mxu0 0
        %5696 = vmatpush1.bf16.msra.mxu0 0
        %5697 = vmatprep.subr.bf16.mxu0 0
        %5698 = vmatpush1.bf16.msra.mxu0 0
        %5699 = vmatprep.subr.bf16.mxu0 0
        %5700 = vmatpush1.bf16.msra.mxu0 0
        %5701 = vmatprep.subr.bf16.mxu0 0
        %5702 = vmatpush1.bf16.msra.mxu0 0
        %5703 = vmatprep.mubr.bf16.mxu0 0
        %5704 = vmatmul.mubr.bf16.gmra.mrb[0].mxu0 %v5621
        %v5705 = vpop.f32.mrb[0].mxu0
        %v5706 = vadd.f32 0.0, %v5705
        %v5707 = vpop.f32.mrb[0].mxu0
        %v5708 = vpop.f32.mrb[0].mxu0
        %v5709 = vadd.f32 0.0, %v5708
        %v5710 = vpop.f32.mrb[0].mxu0
        %5711 = vmatprep.mubr.bf16.mxu0 0
        %5712 = vmatmul.mubr.bf16.gmra.mrb[0].mxu0 %v5624
        %v5713 = vpop.f32.mrb[0].mxu0
        %v5714 = vpop.f32.mrb[0].mxu0
        %v5715 = vpop.f32.mrb[0].mxu0
        %v5716 = vpop.f32.mrb[0].mxu0
        %5717 = vmatprep.mubr.bf16.mxu0 0
        %5718 = vmatmul.mubr.bf16.gmra.mrb[0].mxu0 %v5627
        %v5719 = vpop.f32.mrb[0].mxu0
        %v5720 = vadd.f32 0.0, %v5719
        %v5721 = vpop.f32.mrb[0].mxu0
        %v5722 = vpop.f32.mrb[0].mxu0
        %v5723 = vadd.f32 0.0, %v5722
        %v5724 = vpop.f32.mrb[0].mxu0
        %5725 = vmatprep.mubr.bf16.mxu0 0
        %5726 = vmatmul.mubr.bf16.gmra.mrb[0].mxu0 %v5630
        %v5727 = vpop.f32.mrb[0].mxu0
        %v5728 = vpop.f32.mrb[0].mxu0
        %v5729 = vpop.f32.mrb[0].mxu0
        %v5730 = vpop.f32.mrb[0].mxu0
        %5731 = vmatprep.mubr.bf16.mxu0 0
        %5732 = vmatmul.mubr.bf16.gmra.mrb[0].mxu0 %v5633
        %v5733 = vpop.f32.mrb[0].mxu0
        %v5734 = vadd.f32 0.0, %v5733
        %v5735 = vpop.f32.mrb[0].mxu0
        %v5736 = vpop.f32.mrb[0].mxu0
        %v5737 = vadd.f32 0.0, %v5736
        %v5738 = vpop.f32.mrb[0].mxu0
        %5739 = vmatprep.mubr.bf16.mxu0 0
        %5740 = vmatmul.mubr.bf16.gmra.mrb[0].mxu0 %v5636
        %v5741 = vpop.f32.mrb[0].mxu0
        %v5742 = vpop.f32.mrb[0].mxu0
        %v5743 = vpop.f32.mrb[0].mxu0
        %v5744 = vpop.f32.mrb[0].mxu0
        %5745 = vmatprep.mubr.bf16.mxu0 0
        %5746 = vmatmul.mubr.bf16.gmra.mrb[0].mxu0 %v5639
        %v5747 = vpop.f32.mrb[0].mxu0
        %v5748 = vadd.f32 0.0, %v5747
        %v5749 = vpop.f32.mrb[0].mxu0
        %v5750 = vpop.f32.mrb[0].mxu0
        %v5751 = vadd.f32 0.0, %v5750
        %v5752 = vpop.f32.mrb[0].mxu0
        %5753 = vmatprep.mubr.bf16.mxu0 0
        %5754 = vmatmul.mubr.bf16.gmra.mrb[0].mxu0 %v5642
        %v5755 = vpop.f32.mrb[0].mxu0
        %v5756 = vpop.f32.mrb[0].mxu0
        %v5757 = vpop.f32.mrb[0].mxu0
        %v5758 = vpop.f32.mrb[0].mxu0
        %5759 = vmatprep.mubr.bf16.mxu0 0
        %5760 = vmatmul.mubr.bf16.gmra.mrb[0].mxu0 %v5645
        %v5761 = vpop.f32.mrb[0].mxu0
        %v5762 = vadd.f32 0.0, %v5761
        %v5763 = vpop.f32.mrb[0].mxu0
        %v5764 = vpop.f32.mrb[0].mxu0
        %v5765 = vadd.f32 0.0, %v5764
        %v5766 = vpop.f32.mrb[0].mxu0
        %5767 = vmatprep.mubr.bf16.mxu0 0
        %5768 = vmatmul.mubr.bf16.gmra.mrb[0].mxu0 %v5648
        %v5769 = vpop.f32.mrb[0].mxu0
        %v5770 = vpop.f32.mrb[0].mxu0
        %v5771 = vpop.f32.mrb[0].mxu0
        %v5772 = vpop.f32.mrb[0].mxu0
        %5773 = vmatprep.mubr.bf16.mxu0 0
        %5774 = vmatmul.mubr.bf16.gmra.mrb[0].mxu0 %v5651
        %v5775 = vpop.f32.mrb[0].mxu0
        %v5776 = vadd.f32 0.0, %v5775
        %v5777 = vpop.f32.mrb[0].mxu0
        %v5778 = vpop.f32.mrb[0].mxu0
        %v5779 = vadd.f32 0.0, %v5778
        %v5780 = vpop.f32.mrb[0].mxu0
        %5781 = vmatprep.mubr.bf16.mxu0 0
        %5782 = vmatmul.mubr.bf16.gmra.mrb[0].mxu0 %v5654
        %v5783 = vpop.f32.mrb[0].mxu0
        %v5784 = vpop.f32.mrb[0].mxu0
        %v5785 = vpop.f32.mrb[0].mxu0
        %v5786 = vpop.f32.mrb[0].mxu0
        %5787 = vmatprep.mubr.bf16.mxu0 0
        %5788 = vmatmul.mubr.bf16.gmra.mrb[0].mxu0 %v5657
        %v5789 = vpop.f32.mrb[0].mxu0
        %v5790 = vadd.f32 0.0, %v5789
        %v5791 = vpop.f32.mrb[0].mxu0
        %v5792 = vpop.f32.mrb[0].mxu0
        %v5793 = vadd.f32 0.0, %v5792
        %v5794 = vpop.f32.mrb[0].mxu0
        %5795 = vmatprep.mubr.bf16.mxu0 0
        %5796 = vmatmul.mubr.bf16.gmra.mrb[0].mxu0 %v5660
        %v5797 = vpop.f32.mrb[0].mxu0
        %v5798 = vpop.f32.mrb[0].mxu0
        %v5799 = vpop.f32.mrb[0].mxu0
        %v5800 = vpop.f32.mrb[0].mxu0
        %5801 = vmatprep.mubr.bf16.mxu0 0
        %5802 = vmatmul.mubr.bf16.gmra.mrb[0].mxu0 %v5663
        %v5803 = vpop.f32.mrb[0].mxu0
        %v5804 = vadd.f32 0.0, %v5803
        %v5805 = vpop.f32.mrb[0].mxu0
        %v5806 = vpop.f32.mrb[0].mxu0
        %v5807 = vadd.f32 0.0, %v5806
        %v5808 = vpop.f32.mrb[0].mxu0
        %5809 = vmatprep.mubr.bf16.mxu0 0
        %5810 = vmatmul.mubr.bf16.gmra.mrb[0].mxu0 %v5666
        %v5811 = vpop.f32.mrb[0].mxu0
        %v5812 = vpop.f32.mrb[0].mxu0
        %v5813 = vpop.f32.mrb[0].mxu0
        %v5814 = vpop.f32.mrb[0].mxu0
        %5815 = vdwg.mxu0
        %v5816 = vadd.f32 %v5378, %v5706
        %v5817 = vadd.f32 %v5379, %v5709
        %v5818 = vadd.f32 %v5380, %v5720
        %v5819 = vadd.f32 %v5381, %v5723
        %v5820 = vadd.f32 %v5382, %v5734
        %v5821 = vadd.f32 %v5383, %v5737
        %v5822 = vadd.f32 %v5384, %v5748
        %v5823 = vadd.f32 %v5385, %v5751
        %v5824 = vadd.f32 %v5386, %v5762
        %v5825 = vadd.f32 %v5387, %v5765
        %v5826 = vadd.f32 %v5388, %v5776
        %v5827 = vadd.f32 %v5389, %v5779
        %v5828 = vadd.f32 %v5390, %v5790
        %v5829 = vadd.f32 %v5391, %v5793
        %v5830 = vadd.f32 %v5392, %v5804
        %v5831 = vadd.f32 %v5393, %v5807
        %v5848 = vcombine.high %v5816, %v5816
        %v5850 = vunpack.c.l.s4 1983009808
        %v5851 = vunpack.c.0.s8 %v5850
        %v5852 = vlaneseq
        %v5853 = vshrl.u32 %v5852, 7
        %v5854 = vsub.s32 %v5851, %v5853
        %v5855 = vrot.slane %v5816, %v5854
        %v5857 = vunpack.c.l.s4 1983009808
        %v5858 = vunpack.c.0.s8 %v5857
        %v5859 = vlaneseq
        %v5860 = vshrl.u32 %v5859, 7
        %v5861 = vsub.s32 %v5858, %v5860
        %v5862 = vrot.slane %v5848, %v5861
        %v5863 = vcombine.high %v5855, %v5855
        %v5864 = vcombine.high %v5862, %v5862
        %v5865 = vcombine.high %v5817, %v5817
        %v5867 = vunpack.c.l.s4 1983009808
        %v5868 = vunpack.c.0.s8 %v5867
        %v5869 = vlaneseq
        %v5870 = vshrl.u32 %v5869, 7
        %v5871 = vsub.s32 %v5868, %v5870
        %v5872 = vrot.slane %v5817, %v5871
        %v5874 = vunpack.c.l.s4 1983009808
        %v5875 = vunpack.c.0.s8 %v5874
        %v5876 = vlaneseq
        %v5877 = vshrl.u32 %v5876, 7
        %v5878 = vsub.s32 %v5875, %v5877
        %v5879 = vrot.slane %v5865, %v5878
        %v5880 = vcombine.high %v5872, %v5872
        %v5881 = vcombine.high %v5879, %v5879
        %v5882 = vcombine.high %v5818, %v5818
        %v5884 = vunpack.c.l.s4 1983009808
        %v5885 = vunpack.c.0.s8 %v5884
        %v5886 = vlaneseq
        %v5887 = vshrl.u32 %v5886, 7
        %v5888 = vsub.s32 %v5885, %v5887
        %v5889 = vrot.slane %v5818, %v5888
        %v5891 = vunpack.c.l.s4 1983009808
        %v5892 = vunpack.c.0.s8 %v5891
        %v5893 = vlaneseq
        %v5894 = vshrl.u32 %v5893, 7
        %v5895 = vsub.s32 %v5892, %v5894
        %v5896 = vrot.slane %v5882, %v5895
        %v5897 = vcombine.high %v5889, %v5889
        %v5898 = vcombine.high %v5896, %v5896
        %v5899 = vcombine.high %v5819, %v5819
        %v5901 = vunpack.c.l.s4 1983009808
        %v5902 = vunpack.c.0.s8 %v5901
        %v5903 = vlaneseq
        %v5904 = vshrl.u32 %v5903, 7
        %v5905 = vsub.s32 %v5902, %v5904
        %v5906 = vrot.slane %v5819, %v5905
        %v5908 = vunpack.c.l.s4 1983009808
        %v5909 = vunpack.c.0.s8 %v5908
        %v5910 = vlaneseq
        %v5911 = vshrl.u32 %v5910, 7
        %v5912 = vsub.s32 %v5909, %v5911
        %v5913 = vrot.slane %v5899, %v5912
        %v5914 = vcombine.high %v5906, %v5906
        %v5915 = vcombine.high %v5913, %v5913
        %v5916 = vcombine.high %v5820, %v5820
        %v5918 = vunpack.c.l.s4 1983009808
        %v5919 = vunpack.c.0.s8 %v5918
        %v5920 = vlaneseq
        %v5921 = vshrl.u32 %v5920, 7
        %v5922 = vsub.s32 %v5919, %v5921
        %v5923 = vrot.slane %v5820, %v5922
        %v5925 = vunpack.c.l.s4 1983009808
        %v5926 = vunpack.c.0.s8 %v5925
        %v5927 = vlaneseq
        %v5928 = vshrl.u32 %v5927, 7
        %v5929 = vsub.s32 %v5926, %v5928
        %v5930 = vrot.slane %v5916, %v5929
        %v5931 = vcombine.high %v5923, %v5923
        %v5932 = vcombine.high %v5930, %v5930
        %v5933 = vcombine.high %v5821, %v5821
        %v5935 = vunpack.c.l.s4 1983009808
        %v5936 = vunpack.c.0.s8 %v5935
        %v5937 = vlaneseq
        %v5938 = vshrl.u32 %v5937, 7
        %v5939 = vsub.s32 %v5936, %v5938
        %v5940 = vrot.slane %v5821, %v5939
        %v5942 = vunpack.c.l.s4 1983009808
        %v5943 = vunpack.c.0.s8 %v5942
        %v5944 = vlaneseq
        %v5945 = vshrl.u32 %v5944, 7
        %v5946 = vsub.s32 %v5943, %v5945
        %v5947 = vrot.slane %v5933, %v5946
        %v5948 = vcombine.high %v5940, %v5940
        %v5949 = vcombine.high %v5947, %v5947
        %v5950 = vcombine.high %v5822, %v5822
        %v5952 = vunpack.c.l.s4 1983009808
        %v5953 = vunpack.c.0.s8 %v5952
        %v5954 = vlaneseq
        %v5955 = vshrl.u32 %v5954, 7
        %v5956 = vsub.s32 %v5953, %v5955
        %v5957 = vrot.slane %v5822, %v5956
        %v5959 = vunpack.c.l.s4 1983009808
        %v5960 = vunpack.c.0.s8 %v5959
        %v5961 = vlaneseq
        %v5962 = vshrl.u32 %v5961, 7
        %v5963 = vsub.s32 %v5960, %v5962
        %v5964 = vrot.slane %v5950, %v5963
        %v5965 = vcombine.high %v5957, %v5957
        %v5966 = vcombine.high %v5964, %v5964
        %v5967 = vcombine.high %v5823, %v5823
        %v5969 = vunpack.c.l.s4 1983009808
        %v5970 = vunpack.c.0.s8 %v5969
        %v5971 = vlaneseq
        %v5972 = vshrl.u32 %v5971, 7
        %v5973 = vsub.s32 %v5970, %v5972
        %v5974 = vrot.slane %v5823, %v5973
        %v5976 = vunpack.c.l.s4 1983009808
        %v5977 = vunpack.c.0.s8 %v5976
        %v5978 = vlaneseq
        %v5979 = vshrl.u32 %v5978, 7
        %v5980 = vsub.s32 %v5977, %v5979
        %v5981 = vrot.slane %v5967, %v5980
        %v5982 = vcombine.high %v5974, %v5974
        %v5983 = vcombine.high %v5981, %v5981
        %v5984 = vcombine.high %v5824, %v5824
        %v5986 = vunpack.c.l.s4 1983009808
        %v5987 = vunpack.c.0.s8 %v5986
        %v5988 = vlaneseq
        %v5989 = vshrl.u32 %v5988, 7
        %v5990 = vsub.s32 %v5987, %v5989
        %v5991 = vrot.slane %v5824, %v5990
        %v5993 = vunpack.c.l.s4 1983009808
        %v5994 = vunpack.c.0.s8 %v5993
        %v5995 = vlaneseq
        %v5996 = vshrl.u32 %v5995, 7
        %v5997 = vsub.s32 %v5994, %v5996
        %v5998 = vrot.slane %v5984, %v5997
        %v5999 = vcombine.high %v5991, %v5991
        %v6000 = vcombine.high %v5998, %v5998
        %v6001 = vcombine.high %v5825, %v5825
        %v6003 = vunpack.c.l.s4 1983009808
        %v6004 = vunpack.c.0.s8 %v6003
        %v6005 = vlaneseq
        %v6006 = vshrl.u32 %v6005, 7
        %v6007 = vsub.s32 %v6004, %v6006
        %v6008 = vrot.slane %v5825, %v6007
        %v6010 = vunpack.c.l.s4 1983009808
        %v6011 = vunpack.c.0.s8 %v6010
        %v6012 = vlaneseq
        %v6013 = vshrl.u32 %v6012, 7
        %v6014 = vsub.s32 %v6011, %v6013
        %v6015 = vrot.slane %v6001, %v6014
        %v6016 = vcombine.high %v6008, %v6008
        %v6017 = vcombine.high %v6015, %v6015
        %v6018 = vcombine.high %v5826, %v5826
        %v6020 = vunpack.c.l.s4 1983009808
        %v6021 = vunpack.c.0.s8 %v6020
        %v6022 = vlaneseq
        %v6023 = vshrl.u32 %v6022, 7
        %v6024 = vsub.s32 %v6021, %v6023
        %v6025 = vrot.slane %v5826, %v6024
        %v6027 = vunpack.c.l.s4 1983009808
        %v6028 = vunpack.c.0.s8 %v6027
        %v6029 = vlaneseq
        %v6030 = vshrl.u32 %v6029, 7
        %v6031 = vsub.s32 %v6028, %v6030
        %v6032 = vrot.slane %v6018, %v6031
        %v6033 = vcombine.high %v6025, %v6025
        %v6034 = vcombine.high %v6032, %v6032
        %v6035 = vcombine.high %v5827, %v5827
        %v6037 = vunpack.c.l.s4 1983009808
        %v6038 = vunpack.c.0.s8 %v6037
        %v6039 = vlaneseq
        %v6040 = vshrl.u32 %v6039, 7
        %v6041 = vsub.s32 %v6038, %v6040
        %v6042 = vrot.slane %v5827, %v6041
        %v6044 = vunpack.c.l.s4 1983009808
        %v6045 = vunpack.c.0.s8 %v6044
        %v6046 = vlaneseq
        %v6047 = vshrl.u32 %v6046, 7
        %v6048 = vsub.s32 %v6045, %v6047
        %v6049 = vrot.slane %v6035, %v6048
        %v6050 = vcombine.high %v6042, %v6042
        %v6051 = vcombine.high %v6049, %v6049
        %v6052 = vcombine.high %v5828, %v5828
        %v6054 = vunpack.c.l.s4 1983009808
        %v6055 = vunpack.c.0.s8 %v6054
        %v6056 = vlaneseq
        %v6057 = vshrl.u32 %v6056, 7
        %v6058 = vsub.s32 %v6055, %v6057
        %v6059 = vrot.slane %v5828, %v6058
        %v6061 = vunpack.c.l.s4 1983009808
        %v6062 = vunpack.c.0.s8 %v6061
        %v6063 = vlaneseq
        %v6064 = vshrl.u32 %v6063, 7
        %v6065 = vsub.s32 %v6062, %v6064
        %v6066 = vrot.slane %v6052, %v6065
        %v6067 = vcombine.high %v6059, %v6059
        %v6068 = vcombine.high %v6066, %v6066
        %v6069 = vcombine.high %v5829, %v5829
        %v6071 = vunpack.c.l.s4 1983009808
        %v6072 = vunpack.c.0.s8 %v6071
        %v6073 = vlaneseq
        %v6074 = vshrl.u32 %v6073, 7
        %v6075 = vsub.s32 %v6072, %v6074
        %v6076 = vrot.slane %v5829, %v6075
        %v6078 = vunpack.c.l.s4 1983009808
        %v6079 = vunpack.c.0.s8 %v6078
        %v6080 = vlaneseq
        %v6081 = vshrl.u32 %v6080, 7
        %v6082 = vsub.s32 %v6079, %v6081
        %v6083 = vrot.slane %v6069, %v6082
        %v6084 = vcombine.high %v6076, %v6076
        %v6085 = vcombine.high %v6083, %v6083
        %v6086 = vcombine.high %v5830, %v5830
        %v6088 = vunpack.c.l.s4 1983009808
        %v6089 = vunpack.c.0.s8 %v6088
        %v6090 = vlaneseq
        %v6091 = vshrl.u32 %v6090, 7
        %v6092 = vsub.s32 %v6089, %v6091
        %v6093 = vrot.slane %v5830, %v6092
        %v6095 = vunpack.c.l.s4 1983009808
        %v6096 = vunpack.c.0.s8 %v6095
        %v6097 = vlaneseq
        %v6098 = vshrl.u32 %v6097, 7
        %v6099 = vsub.s32 %v6096, %v6098
        %v6100 = vrot.slane %v6086, %v6099
        %v6101 = vcombine.high %v6093, %v6093
        %v6102 = vcombine.high %v6100, %v6100
        %v6103 = vcombine.high %v5831, %v5831
        %v6105 = vunpack.c.l.s4 1983009808
        %v6106 = vunpack.c.0.s8 %v6105
        %v6107 = vlaneseq
        %v6108 = vshrl.u32 %v6107, 7
        %v6109 = vsub.s32 %v6106, %v6108
        %v6110 = vrot.slane %v5831, %v6109
        %v6112 = vunpack.c.l.s4 1983009808
        %v6113 = vunpack.c.0.s8 %v6112
        %v6114 = vlaneseq
        %v6115 = vshrl.u32 %v6114, 7
        %v6116 = vsub.s32 %v6113, %v6115
        %v6117 = vrot.slane %v6103, %v6116
        %v6118 = vcombine.high %v6110, %v6110
        %v6119 = vcombine.high %v6117, %v6117
        %v6184 = vld [vmem:[%s5] sm:$0x1]
        %v6186 = vlaneseq
        %v6187 = vshrl.u32 %v6186, 7
        %v6188 = vsub.s32 0, %v6187
        %v6189 = vrot.slane %v6184, %v6188
        %v6190 = vcombine.high %v6189, %v6189
        %v6192 = vunpack.c.l.s4 1983009808
        %v6193 = vunpack.c.0.s8 %v6192
        %v6194 = vlaneseq
        %v6195 = vshrl.u32 %v6194, 7
        %v6196 = vsub.s32 %v6193, %v6195
        %v6197 = vrot.slane %v6189, %v6196
        %v6199 = vunpack.c.l.s4 1983009808
        %v6200 = vunpack.c.0.s8 %v6199
        %v6201 = vlaneseq
        %v6202 = vshrl.u32 %v6201, 7
        %v6203 = vsub.s32 %v6200, %v6202
        %v6204 = vrot.slane %v6190, %v6203
        %v6205 = vcombine.high %v6197, %v6197
        %v6206 = vcombine.high %v6204, %v6204
        %v6207 = vrot.slane %v6197, 1
        %v6208 = vrot.slane %v6205, 1
        %v6209 = vrot.slane %v6204, 1
        %v6210 = vrot.slane %v6206, 1
        %v6219 = vmul.f32 %v5855, %v6197
        %v6220 = vmul.f32 %v5863, %v6207
        %v6221 = vmul.f32 %v5862, %v6205
        %v6222 = vmul.f32 %v5864, %v6208
        %v6223 = vmul.f32 %v5872, %v6204
        %v6224 = vmul.f32 %v5880, %v6209
        %v6225 = vmul.f32 %v5879, %v6206
        %v6226 = vmul.f32 %v5881, %v6210
        %v6227 = vmul.f32 %v5889, %v6197
        %v6228 = vmul.f32 %v5897, %v6207
        %v6229 = vmul.f32 %v5896, %v6205
        %v6230 = vmul.f32 %v5898, %v6208
        %v6231 = vmul.f32 %v5906, %v6204
        %v6232 = vmul.f32 %v5914, %v6209
        %v6233 = vmul.f32 %v5913, %v6206
        %v6234 = vmul.f32 %v5915, %v6210
        %v6235 = vmul.f32 %v5923, %v6197
        %v6236 = vmul.f32 %v5931, %v6207
        %v6237 = vmul.f32 %v5930, %v6205
        %v6238 = vmul.f32 %v5932, %v6208
        %v6239 = vmul.f32 %v5940, %v6204
        %v6240 = vmul.f32 %v5948, %v6209
        %v6241 = vmul.f32 %v5947, %v6206
        %v6242 = vmul.f32 %v5949, %v6210
        %v6243 = vmul.f32 %v5957, %v6197
        %v6244 = vmul.f32 %v5965, %v6207
        %v6245 = vmul.f32 %v5964, %v6205
        %v6246 = vmul.f32 %v5966, %v6208
        %v6247 = vmul.f32 %v5974, %v6204
        %v6248 = vmul.f32 %v5982, %v6209
        %v6249 = vmul.f32 %v5981, %v6206
        %v6250 = vmul.f32 %v5983, %v6210
        %v6251 = vmul.f32 %v5991, %v6197
        %v6252 = vmul.f32 %v5999, %v6207
        %v6253 = vmul.f32 %v5998, %v6205
        %v6254 = vmul.f32 %v6000, %v6208
        %v6255 = vmul.f32 %v6008, %v6204
        %v6256 = vmul.f32 %v6016, %v6209
        %v6257 = vmul.f32 %v6015, %v6206
        %v6258 = vmul.f32 %v6017, %v6210
        %v6259 = vmul.f32 %v6025, %v6197
        %v6260 = vmul.f32 %v6033, %v6207
        %v6261 = vmul.f32 %v6032, %v6205
        %v6262 = vmul.f32 %v6034, %v6208
        %v6263 = vmul.f32 %v6042, %v6204
        %v6264 = vmul.f32 %v6050, %v6209
        %v6265 = vmul.f32 %v6049, %v6206
        %v6266 = vmul.f32 %v6051, %v6210
        %v6267 = vmul.f32 %v6059, %v6197
        %v6268 = vmul.f32 %v6067, %v6207
        %v6269 = vmul.f32 %v6066, %v6205
        %v6270 = vmul.f32 %v6068, %v6208
        %v6271 = vmul.f32 %v6076, %v6204
        %v6272 = vmul.f32 %v6084, %v6209
        %v6273 = vmul.f32 %v6083, %v6206
        %v6274 = vmul.f32 %v6085, %v6210
        %v6275 = vmul.f32 %v6093, %v6197
        %v6276 = vmul.f32 %v6101, %v6207
        %v6277 = vmul.f32 %v6100, %v6205
        %v6278 = vmul.f32 %v6102, %v6208
        %v6279 = vmul.f32 %v6110, %v6204
        %v6280 = vmul.f32 %v6118, %v6209
        %v6281 = vmul.f32 %v6117, %v6206
        %v6282 = vmul.f32 %v6119, %v6210
        %v6283 = vld [vmem:[%s6] sm:$0x1]
        %v6285 = vlaneseq
        %v6286 = vshrl.u32 %v6285, 7
        %v6287 = vsub.s32 0, %v6286
        %v6288 = vrot.slane %v6283, %v6287
        %v6289 = vcombine.high %v6288, %v6288
        %v6291 = vunpack.c.l.s4 1983009808
        %v6292 = vunpack.c.0.s8 %v6291
        %v6293 = vlaneseq
        %v6294 = vshrl.u32 %v6293, 7
        %v6295 = vsub.s32 %v6292, %v6294
        %v6296 = vrot.slane %v6288, %v6295
        %v6298 = vunpack.c.l.s4 1983009808
        %v6299 = vunpack.c.0.s8 %v6298
        %v6300 = vlaneseq
        %v6301 = vshrl.u32 %v6300, 7
        %v6302 = vsub.s32 %v6299, %v6301
        %v6303 = vrot.slane %v6289, %v6302
        %v6304 = vcombine.high %v6296, %v6296
        %v6305 = vcombine.high %v6303, %v6303
        %v6306 = vrot.slane %v6296, 1
        %v6307 = vrot.slane %v6304, 1
        %v6308 = vrot.slane %v6303, 1
        %v6309 = vrot.slane %v6305, 1
        %v6318 = vadd.f32 %v6219, %v6296
        %v6319 = vadd.f32 %v6220, %v6306
        %v6320 = vadd.f32 %v6221, %v6304
        %v6321 = vadd.f32 %v6222, %v6307
        %v6322 = vadd.f32 %v6223, %v6303
        %v6323 = vadd.f32 %v6224, %v6308
        %v6324 = vadd.f32 %v6225, %v6305
        %v6325 = vadd.f32 %v6226, %v6309
        %v6326 = vadd.f32 %v6227, %v6296
        %v6327 = vadd.f32 %v6228, %v6306
        %v6328 = vadd.f32 %v6229, %v6304
        %v6329 = vadd.f32 %v6230, %v6307
        %v6330 = vadd.f32 %v6231, %v6303
        %v6331 = vadd.f32 %v6232, %v6308
        %v6332 = vadd.f32 %v6233, %v6305
        %v6333 = vadd.f32 %v6234, %v6309
        %v6334 = vadd.f32 %v6235, %v6296
        %v6335 = vadd.f32 %v6236, %v6306
        %v6336 = vadd.f32 %v6237, %v6304
        %v6337 = vadd.f32 %v6238, %v6307
        %v6338 = vadd.f32 %v6239, %v6303
        %v6339 = vadd.f32 %v6240, %v6308
        %v6340 = vadd.f32 %v6241, %v6305
        %v6341 = vadd.f32 %v6242, %v6309
        %v6342 = vadd.f32 %v6243, %v6296
        %v6343 = vadd.f32 %v6244, %v6306
        %v6344 = vadd.f32 %v6245, %v6304
        %v6345 = vadd.f32 %v6246, %v6307
        %v6346 = vadd.f32 %v6247, %v6303
        %v6347 = vadd.f32 %v6248, %v6308
        %v6348 = vadd.f32 %v6249, %v6305
        %v6349 = vadd.f32 %v6250, %v6309
        %v6350 = vadd.f32 %v6251, %v6296
        %v6351 = vadd.f32 %v6252, %v6306
        %v6352 = vadd.f32 %v6253, %v6304
        %v6353 = vadd.f32 %v6254, %v6307
        %v6354 = vadd.f32 %v6255, %v6303
        %v6355 = vadd.f32 %v6256, %v6308
        %v6356 = vadd.f32 %v6257, %v6305
        %v6357 = vadd.f32 %v6258, %v6309
        %v6358 = vadd.f32 %v6259, %v6296
        %v6359 = vadd.f32 %v6260, %v6306
        %v6360 = vadd.f32 %v6261, %v6304
        %v6361 = vadd.f32 %v6262, %v6307
        %v6362 = vadd.f32 %v6263, %v6303
        %v6363 = vadd.f32 %v6264, %v6308
        %v6364 = vadd.f32 %v6265, %v6305
        %v6365 = vadd.f32 %v6266, %v6309
        %v6366 = vadd.f32 %v6267, %v6296
        %v6367 = vadd.f32 %v6268, %v6306
        %v6368 = vadd.f32 %v6269, %v6304
        %v6369 = vadd.f32 %v6270, %v6307
        %v6370 = vadd.f32 %v6271, %v6303
        %v6371 = vadd.f32 %v6272, %v6308
        %v6372 = vadd.f32 %v6273, %v6305
        %v6373 = vadd.f32 %v6274, %v6309
        %v6374 = vadd.f32 %v6275, %v6296
        %v6375 = vadd.f32 %v6276, %v6306
        %v6376 = vadd.f32 %v6277, %v6304
        %v6377 = vadd.f32 %v6278, %v6307
        %v6378 = vadd.f32 %v6279, %v6303
        %v6379 = vadd.f32 %v6280, %v6308
        %v6380 = vadd.f32 %v6281, %v6305
        %v6381 = vadd.f32 %v6282, %v6309
        %v6382 = vmax.f32 %v6318, 0.0
        %v6383 = vmax.f32 %v6319, 0.0
        %v6384 = vmax.f32 %v6320, 0.0
        %v6385 = vmax.f32 %v6321, 0.0
        %v6386 = vmax.f32 %v6322, 0.0
        %v6387 = vmax.f32 %v6323, 0.0
        %v6388 = vmax.f32 %v6324, 0.0
        %v6389 = vmax.f32 %v6325, 0.0
        %v6390 = vmax.f32 %v6326, 0.0
        %v6391 = vmax.f32 %v6327, 0.0
        %v6392 = vmax.f32 %v6328, 0.0
        %v6393 = vmax.f32 %v6329, 0.0
        %v6394 = vmax.f32 %v6330, 0.0
        %v6395 = vmax.f32 %v6331, 0.0
        %v6396 = vmax.f32 %v6332, 0.0
        %v6397 = vmax.f32 %v6333, 0.0
        %v6398 = vmax.f32 %v6334, 0.0
        %v6399 = vmax.f32 %v6335, 0.0
        %v6400 = vmax.f32 %v6336, 0.0
        %v6401 = vmax.f32 %v6337, 0.0
        %v6402 = vmax.f32 %v6338, 0.0
        %v6403 = vmax.f32 %v6339, 0.0
        %v6404 = vmax.f32 %v6340, 0.0
        %v6405 = vmax.f32 %v6341, 0.0
        %v6406 = vmax.f32 %v6342, 0.0
        %v6407 = vmax.f32 %v6343, 0.0
        %v6408 = vmax.f32 %v6344, 0.0
        %v6409 = vmax.f32 %v6345, 0.0
        %v6410 = vmax.f32 %v6346, 0.0
        %v6411 = vmax.f32 %v6347, 0.0
        %v6412 = vmax.f32 %v6348, 0.0
        %v6413 = vmax.f32 %v6349, 0.0
        %v6414 = vmax.f32 %v6350, 0.0
        %v6415 = vmax.f32 %v6351, 0.0
        %v6416 = vmax.f32 %v6352, 0.0
        %v6417 = vmax.f32 %v6353, 0.0
        %v6418 = vmax.f32 %v6354, 0.0
        %v6419 = vmax.f32 %v6355, 0.0
        %v6420 = vmax.f32 %v6356, 0.0
        %v6421 = vmax.f32 %v6357, 0.0
        %v6422 = vmax.f32 %v6358, 0.0
        %v6423 = vmax.f32 %v6359, 0.0
        %v6424 = vmax.f32 %v6360, 0.0
        %v6425 = vmax.f32 %v6361, 0.0
        %v6426 = vmax.f32 %v6362, 0.0
        %v6427 = vmax.f32 %v6363, 0.0
        %v6428 = vmax.f32 %v6364, 0.0
        %v6429 = vmax.f32 %v6365, 0.0
        %v6430 = vmax.f32 %v6366, 0.0
        %v6431 = vmax.f32 %v6367, 0.0
        %v6432 = vmax.f32 %v6368, 0.0
        %v6433 = vmax.f32 %v6369, 0.0
        %v6434 = vmax.f32 %v6370, 0.0
        %v6435 = vmax.f32 %v6371, 0.0
        %v6436 = vmax.f32 %v6372, 0.0
        %v6437 = vmax.f32 %v6373, 0.0
        %v6438 = vmax.f32 %v6374, 0.0
        %v6439 = vmax.f32 %v6375, 0.0
        %v6440 = vmax.f32 %v6376, 0.0
        %v6441 = vmax.f32 %v6377, 0.0
        %v6442 = vmax.f32 %v6378, 0.0
        %v6443 = vmax.f32 %v6379, 0.0
        %v6444 = vmax.f32 %v6380, 0.0
        %v6445 = vmax.f32 %v6381, 0.0
        %v6446 = vpack.c.bf16 %v6382, %v6382
        %v6447 = vpack.c.bf16 %v6383, %v6383
        %v6448 = vpack.c.bf16 %v6384, %v6384
        %v6449 = vpack.c.bf16 %v6385, %v6385
        %v6450 = vpack.c.bf16 %v6386, %v6386
        %v6451 = vpack.c.bf16 %v6387, %v6387
        %v6452 = vpack.c.bf16 %v6388, %v6388
        %v6453 = vpack.c.bf16 %v6389, %v6389
        %v6454 = vpack.c.bf16 %v6390, %v6390
        %v6455 = vpack.c.bf16 %v6391, %v6391
        %v6456 = vpack.c.bf16 %v6392, %v6392
        %v6457 = vpack.c.bf16 %v6393, %v6393
        %v6458 = vpack.c.bf16 %v6394, %v6394
        %v6459 = vpack.c.bf16 %v6395, %v6395
        %v6460 = vpack.c.bf16 %v6396, %v6396
        %v6461 = vpack.c.bf16 %v6397, %v6397
        %v6462 = vpack.c.bf16 %v6398, %v6398
        %v6463 = vpack.c.bf16 %v6399, %v6399
        %v6464 = vpack.c.bf16 %v6400, %v6400
        %v6465 = vpack.c.bf16 %v6401, %v6401
        %v6466 = vpack.c.bf16 %v6402, %v6402
        %v6467 = vpack.c.bf16 %v6403, %v6403
        %v6468 = vpack.c.bf16 %v6404, %v6404
        %v6469 = vpack.c.bf16 %v6405, %v6405
        %v6470 = vpack.c.bf16 %v6406, %v6406
        %v6471 = vpack.c.bf16 %v6407, %v6407
        %v6472 = vpack.c.bf16 %v6408, %v6408
        %v6473 = vpack.c.bf16 %v6409, %v6409
        %v6474 = vpack.c.bf16 %v6410, %v6410
        %v6475 = vpack.c.bf16 %v6411, %v6411
        %v6476 = vpack.c.bf16 %v6412, %v6412
        %v6477 = vpack.c.bf16 %v6413, %v6413
        %v6478 = vpack.c.bf16 %v6414, %v6414
        %v6479 = vpack.c.bf16 %v6415, %v6415
        %v6480 = vpack.c.bf16 %v6416, %v6416
        %v6481 = vpack.c.bf16 %v6417, %v6417
        %v6482 = vpack.c.bf16 %v6418, %v6418
        %v6483 = vpack.c.bf16 %v6419, %v6419
        %v6484 = vpack.c.bf16 %v6420, %v6420
        %v6485 = vpack.c.bf16 %v6421, %v6421
        %v6486 = vpack.c.bf16 %v6422, %v6422
        %v6487 = vpack.c.bf16 %v6423, %v6423
        %v6488 = vpack.c.bf16 %v6424, %v6424
        %v6489 = vpack.c.bf16 %v6425, %v6425
        %v6490 = vpack.c.bf16 %v6426, %v6426
        %v6491 = vpack.c.bf16 %v6427, %v6427
        %v6492 = vpack.c.bf16 %v6428, %v6428
        %v6493 = vpack.c.bf16 %v6429, %v6429
        %v6494 = vpack.c.bf16 %v6430, %v6430
        %v6495 = vpack.c.bf16 %v6431, %v6431
        %v6496 = vpack.c.bf16 %v6432, %v6432
        %v6497 = vpack.c.bf16 %v6433, %v6433
        %v6498 = vpack.c.bf16 %v6434, %v6434
        %v6499 = vpack.c.bf16 %v6435, %v6435
        %v6500 = vpack.c.bf16 %v6436, %v6436
        %v6501 = vpack.c.bf16 %v6437, %v6437
        %v6502 = vpack.c.bf16 %v6438, %v6438
        %v6503 = vpack.c.bf16 %v6439, %v6439
        %v6504 = vpack.c.bf16 %v6440, %v6440
        %v6505 = vpack.c.bf16 %v6441, %v6441
        %v6506 = vpack.c.bf16 %v6442, %v6442
        %v6507 = vpack.c.bf16 %v6443, %v6443
        %v6508 = vpack.c.bf16 %v6444, %v6444
        %v6509 = vpack.c.bf16 %v6445, %v6445
        %v6510 = vld [vmem:[%s7] sm:$0xf]
        %v6575 = vunpack.c.l.b16 %v6446
        %v6576 = vunpack.c.l.b16 %v6447
        %v6577 = vunpack.c.l.b16 %v6448
        %v6578 = vunpack.c.l.b16 %v6449
        %v6579 = vunpack.c.l.b16 %v6450
        %v6580 = vunpack.c.l.b16 %v6451
        %v6581 = vunpack.c.l.b16 %v6452
        %v6582 = vunpack.c.l.b16 %v6453
        %v6583 = vunpack.c.l.b16 %v6454
        %v6584 = vunpack.c.l.b16 %v6455
        %v6585 = vunpack.c.l.b16 %v6456
        %v6586 = vunpack.c.l.b16 %v6457
        %v6587 = vunpack.c.l.b16 %v6458
        %v6588 = vunpack.c.l.b16 %v6459
        %v6589 = vunpack.c.l.b16 %v6460
        %v6590 = vunpack.c.l.b16 %v6461
        %v6591 = vunpack.c.l.b16 %v6462
        %v6592 = vunpack.c.l.b16 %v6463
        %v6593 = vunpack.c.l.b16 %v6464
        %v6594 = vunpack.c.l.b16 %v6465
        %v6595 = vunpack.c.l.b16 %v6466
        %v6596 = vunpack.c.l.b16 %v6467
        %v6597 = vunpack.c.l.b16 %v6468
        %v6598 = vunpack.c.l.b16 %v6469
        %v6599 = vunpack.c.l.b16 %v6470
        %v6600 = vunpack.c.l.b16 %v6471
        %v6601 = vunpack.c.l.b16 %v6472
        %v6602 = vunpack.c.l.b16 %v6473
        %v6603 = vunpack.c.l.b16 %v6474
        %v6604 = vunpack.c.l.b16 %v6475
        %v6605 = vunpack.c.l.b16 %v6476
        %v6606 = vunpack.c.l.b16 %v6477
        %v6607 = vunpack.c.l.b16 %v6478
        %v6608 = vunpack.c.l.b16 %v6479
        %v6609 = vunpack.c.l.b16 %v6480
        %v6610 = vunpack.c.l.b16 %v6481
        %v6611 = vunpack.c.l.b16 %v6482
        %v6612 = vunpack.c.l.b16 %v6483
        %v6613 = vunpack.c.l.b16 %v6484
        %v6614 = vunpack.c.l.b16 %v6485
        %v6615 = vunpack.c.l.b16 %v6486
        %v6616 = vunpack.c.l.b16 %v6487
        %v6617 = vunpack.c.l.b16 %v6488
        %v6618 = vunpack.c.l.b16 %v6489
        %v6619 = vunpack.c.l.b16 %v6490
        %v6620 = vunpack.c.l.b16 %v6491
        %v6621 = vunpack.c.l.b16 %v6492
        %v6622 = vunpack.c.l.b16 %v6493
        %v6623 = vunpack.c.l.b16 %v6494
        %v6624 = vunpack.c.l.b16 %v6495
        %v6625 = vunpack.c.l.b16 %v6496
        %v6626 = vunpack.c.l.b16 %v6497
        %v6627 = vunpack.c.l.b16 %v6498
        %v6628 = vunpack.c.l.b16 %v6499
        %v6629 = vunpack.c.l.b16 %v6500
        %v6630 = vunpack.c.l.b16 %v6501
        %v6631 = vunpack.c.l.b16 %v6502
        %v6632 = vunpack.c.l.b16 %v6503
        %v6633 = vunpack.c.l.b16 %v6504
        %v6634 = vunpack.c.l.b16 %v6505
        %v6635 = vunpack.c.l.b16 %v6506
        %v6636 = vunpack.c.l.b16 %v6507
        %v6637 = vunpack.c.l.b16 %v6508
        %v6638 = vunpack.c.l.b16 %v6509
        %v6639 = vrot.slane %v6576, 7
        %vm6640 = vcmask 1041409
        %v6641 = vsel %vm6640, %v6639, %v6575
        %v6642 = vrot.slane %v6577, 6
        %vm6643 = vcmask 1042434
        %v6644 = vsel %vm6643, %v6642, %v6641
        %v6645 = vrot.slane %v6578, 5
        %vm6646 = vcmask 1043459
        %v6647 = vsel %vm6646, %v6645, %v6644
        %v6648 = vrot.slane %v6579, 4
        %vm6649 = vcmask 1044484
        %v6650 = vsel %vm6649, %v6648, %v6647
        %v6651 = vrot.slane %v6580, 3
        %vm6652 = vcmask 1045509
        %v6653 = vsel %vm6652, %v6651, %v6650
        %v6654 = vrot.slane %v6581, 2
        %vm6655 = vcmask 1046534
        %v6656 = vsel %vm6655, %v6654, %v6653
        %v6657 = vrot.slane %v6582, 1
        %vm6658 = vcmask 1047559
        %v6659 = vsel %vm6658, %v6657, %v6656
        %v6660 = vrot.slane %v6584, 7
        %v6661 = vsel %vm6640, %v6660, %v6583
        %v6662 = vrot.slane %v6585, 6
        %v6663 = vsel %vm6643, %v6662, %v6661
        %v6664 = vrot.slane %v6586, 5
        %v6665 = vsel %vm6646, %v6664, %v6663
        %v6666 = vrot.slane %v6587, 4
        %v6667 = vsel %vm6649, %v6666, %v6665
        %v6668 = vrot.slane %v6588, 3
        %v6669 = vsel %vm6652, %v6668, %v6667
        %v6670 = vrot.slane %v6589, 2
        %v6671 = vsel %vm6655, %v6670, %v6669
        %v6672 = vrot.slane %v6590, 1
        %v6673 = vsel %vm6658, %v6672, %v6671
        %v6674 = vrot.slane %v6592, 7
        %v6675 = vsel %vm6640, %v6674, %v6591
        %v6676 = vrot.slane %v6593, 6
        %v6677 = vsel %vm6643, %v6676, %v6675
        %v6678 = vrot.slane %v6594, 5
        %v6679 = vsel %vm6646, %v6678, %v6677
        %v6680 = vrot.slane %v6595, 4
        %v6681 = vsel %vm6649, %v6680, %v6679
        %v6682 = vrot.slane %v6596, 3
        %v6683 = vsel %vm6652, %v6682, %v6681
        %v6684 = vrot.slane %v6597, 2
        %v6685 = vsel %vm6655, %v6684, %v6683
        %v6686 = vrot.slane %v6598, 1
        %v6687 = vsel %vm6658, %v6686, %v6685
        %v6688 = vrot.slane %v6600, 7
        %v6689 = vsel %vm6640, %v6688, %v6599
        %v6690 = vrot.slane %v6601, 6
        %v6691 = vsel %vm6643, %v6690, %v6689
        %v6692 = vrot.slane %v6602, 5
        %v6693 = vsel %vm6646, %v6692, %v6691
        %v6694 = vrot.slane %v6603, 4
        %v6695 = vsel %vm6649, %v6694, %v6693
        %v6696 = vrot.slane %v6604, 3
        %v6697 = vsel %vm6652, %v6696, %v6695
        %v6698 = vrot.slane %v6605, 2
        %v6699 = vsel %vm6655, %v6698, %v6697
        %v6700 = vrot.slane %v6606, 1
        %v6701 = vsel %vm6658, %v6700, %v6699
        %v6702 = vrot.slane %v6608, 7
        %v6703 = vsel %vm6640, %v6702, %v6607
        %v6704 = vrot.slane %v6609, 6
        %v6705 = vsel %vm6643, %v6704, %v6703
        %v6706 = vrot.slane %v6610, 5
        %v6707 = vsel %vm6646, %v6706, %v6705
        %v6708 = vrot.slane %v6611, 4
        %v6709 = vsel %vm6649, %v6708, %v6707
        %v6710 = vrot.slane %v6612, 3
        %v6711 = vsel %vm6652, %v6710, %v6709
        %v6712 = vrot.slane %v6613, 2
        %v6713 = vsel %vm6655, %v6712, %v6711
        %v6714 = vrot.slane %v6614, 1
        %v6715 = vsel %vm6658, %v6714, %v6713
        %v6716 = vrot.slane %v6616, 7
        %v6717 = vsel %vm6640, %v6716, %v6615
        %v6718 = vrot.slane %v6617, 6
        %v6719 = vsel %vm6643, %v6718, %v6717
        %v6720 = vrot.slane %v6618, 5
        %v6721 = vsel %vm6646, %v6720, %v6719
        %v6722 = vrot.slane %v6619, 4
        %v6723 = vsel %vm6649, %v6722, %v6721
        %v6724 = vrot.slane %v6620, 3
        %v6725 = vsel %vm6652, %v6724, %v6723
        %v6726 = vrot.slane %v6621, 2
        %v6727 = vsel %vm6655, %v6726, %v6725
        %v6728 = vrot.slane %v6622, 1
        %v6729 = vsel %vm6658, %v6728, %v6727
        %v6730 = vrot.slane %v6624, 7
        %v6731 = vsel %vm6640, %v6730, %v6623
        %v6732 = vrot.slane %v6625, 6
        %v6733 = vsel %vm6643, %v6732, %v6731
        %v6734 = vrot.slane %v6626, 5
        %v6735 = vsel %vm6646, %v6734, %v6733
        %v6736 = vrot.slane %v6627, 4
        %v6737 = vsel %vm6649, %v6736, %v6735
        %v6738 = vrot.slane %v6628, 3
        %v6739 = vsel %vm6652, %v6738, %v6737
        %v6740 = vrot.slane %v6629, 2
        %v6741 = vsel %vm6655, %v6740, %v6739
        %v6742 = vrot.slane %v6630, 1
        %v6743 = vsel %vm6658, %v6742, %v6741
        %v6744 = vrot.slane %v6632, 7
        %v6745 = vsel %vm6640, %v6744, %v6631
        %v6746 = vrot.slane %v6633, 6
        %v6747 = vsel %vm6643, %v6746, %v6745
        %v6748 = vrot.slane %v6634, 5
        %v6749 = vsel %vm6646, %v6748, %v6747
        %v6750 = vrot.slane %v6635, 4
        %v6751 = vsel %vm6649, %v6750, %v6749
        %v6752 = vrot.slane %v6636, 3
        %v6753 = vsel %vm6652, %v6752, %v6751
        %v6754 = vrot.slane %v6637, 2
        %v6755 = vsel %vm6655, %v6754, %v6753
        %v6756 = vrot.slane %v6638, 1
        %v6757 = vsel %vm6658, %v6756, %v6755
        %v6758 = vpack.c.b16 %v6673, %v6659
        %v6759 = vpack.c.b16 %v6701, %v6687
        %v6760 = vpack.c.b16 %v6729, %v6715
        %v6761 = vpack.c.b16 %v6757, %v6743
        %v6763 = vsel %vm553, %v6758, 0
        %v6766 = vsel %vm553, %v6759, 0
        %v6769 = vsel %vm553, %v6760, 0
        %v6772 = vsel %vm553, %v6761, 0
        %v6775 = vsel %vm602, %v6510, 0
        %6777 = vmatprep.subr.bf16.mxu0 0
        %6778 = vmatpush1.bf16.msra.mxu0 %v6775
        %6779 = vmatprep.subr.bf16.mxu0 0
        %6780 = vmatpush1.bf16.msra.mxu0 0
        %6781 = vmatprep.subr.bf16.mxu0 0
        %6782 = vmatpush1.bf16.msra.mxu0 0
        %6783 = vmatprep.subr.bf16.mxu0 0
        %6784 = vmatpush1.bf16.msra.mxu0 0
        %6785 = vmatprep.subr.bf16.mxu0 0
        %6786 = vmatpush1.bf16.msra.mxu0 0
        %6787 = vmatprep.subr.bf16.mxu0 0
        %6788 = vmatpush1.bf16.msra.mxu0 0
        %6789 = vmatprep.subr.bf16.mxu0 0
        %6790 = vmatpush1.bf16.msra.mxu0 0
        %6791 = vmatprep.subr.bf16.mxu0 0
        %6792 = vmatpush1.bf16.msra.mxu0 0
        %6793 = vmatprep.subr.bf16.mxu0 0
        %6794 = vmatpush1.bf16.msra.mxu0 0
        %6795 = vmatprep.subr.bf16.mxu0 0
        %6796 = vmatpush1.bf16.msra.mxu0 0
        %6797 = vmatprep.subr.bf16.mxu0 0
        %6798 = vmatpush1.bf16.msra.mxu0 0
        %6799 = vmatprep.subr.bf16.mxu0 0
        %6800 = vmatpush1.bf16.msra.mxu0 0
        %6801 = vmatprep.subr.bf16.mxu0 0
        %6802 = vmatpush1.bf16.msra.mxu0 0
        %6803 = vmatprep.subr.bf16.mxu0 0
        %6804 = vmatpush1.bf16.msra.mxu0 0
        %6805 = vmatprep.subr.bf16.mxu0 0
        %6806 = vmatpush1.bf16.msra.mxu0 0
        %6807 = vmatprep.subr.bf16.mxu0 0
        %6808 = vmatpush1.bf16.msra.mxu0 0
        %6809 = vmatprep.mubr.bf16.mxu0 0
        %6810 = vmatmul.mubr.bf16.gmra.mrb[0].mxu0 %v6763
        %v6811 = vpop.f32.mrb[0].mxu0
        %v6812 = vadd.f32 0.0, %v6811
        %v6813 = vpop.f32.mrb[0].mxu0
        %v6814 = vpop.f32.mrb[0].mxu0
        %v6815 = vadd.f32 0.0, %v6814
        %v6816 = vpop.f32.mrb[0].mxu0
        %6817 = vmatprep.mubr.bf16.mxu0 0
        %6818 = vmatmul.mubr.bf16.gmra.mrb[0].mxu0 %v6766
        %v6819 = vpop.f32.mrb[0].mxu0
        %v6820 = vadd.f32 0.0, %v6819
        %v6821 = vpop.f32.mrb[0].mxu0
        %v6822 = vpop.f32.mrb[0].mxu0
        %v6823 = vadd.f32 0.0, %v6822
        %v6824 = vpop.f32.mrb[0].mxu0
        %6825 = vmatprep.mubr.bf16.mxu0 0
        %6826 = vmatmul.mubr.bf16.gmra.mrb[0].mxu0 %v6769
        %v6827 = vpop.f32.mrb[0].mxu0
        %v6828 = vadd.f32 0.0, %v6827
        %v6829 = vpop.f32.mrb[0].mxu0
        %v6830 = vpop.f32.mrb[0].mxu0
        %v6831 = vadd.f32 0.0, %v6830
        %v6832 = vpop.f32.mrb[0].mxu0
        %6833 = vmatprep.mubr.bf16.mxu0 0
        %6834 = vmatmul.mubr.bf16.gmra.mrb[0].mxu0 %v6772
        %v6835 = vpop.f32.mrb[0].mxu0
        %v6836 = vadd.f32 0.0, %v6835
        %v6837 = vpop.f32.mrb[0].mxu0
        %v6838 = vpop.f32.mrb[0].mxu0
        %v6839 = vadd.f32 0.0, %v6838
        %v6840 = vpop.f32.mrb[0].mxu0
        %6841 = vdwg.mxu0
        %v6842 = vld [vmem:[%s8] sm:$0x1]
        %v6844 = vlaneseq
        %v6845 = vshrl.u32 %v6844, 7
        %v6846 = vsub.s32 0, %v6845
        %v6847 = vrot.slane %v6842, %v6846
        %v6849 = vmul.f32 %v6812, %v6847
        %v6850 = vmul.f32 %v6815, %v6847
        %v6851 = vmul.f32 %v6820, %v6847
        %v6852 = vmul.f32 %v6823, %v6847
        %v6853 = vmul.f32 %v6828, %v6847
        %v6854 = vmul.f32 %v6831, %v6847
        %v6855 = vmul.f32 %v6836, %v6847
        %v6856 = vmul.f32 %v6839, %v6847
        %v6857 = vld [vmem:[%s9] sm:$0x1]
        %v6859 = vlaneseq
        %v6860 = vshrl.u32 %v6859, 7
        %v6861 = vsub.s32 0, %v6860
        %v6862 = vrot.slane %v6857, %v6861
        %v6864 = vadd.f32 %v6849, %v6862
        %v6865 = vadd.f32 %v6850, %v6862
        %v6866 = vadd.f32 %v6851, %v6862
        %v6867 = vadd.f32 %v6852, %v6862
        %v6868 = vadd.f32 %v6853, %v6862
        %v6869 = vadd.f32 %v6854, %v6862
        %v6870 = vadd.f32 %v6855, %v6862
        %v6871 = vadd.f32 %v6856, %v6862
        %v6873 = vunpack.c.l.s4 1966171168
        %v6874 = vunpack.c.0.s8 %v6873
        %v6875 = vlaneseq
        %v6876 = vshrl.u32 %v6875, 7
        %v6877 = vsub.s32 %v6874, %v6876
        %v6878 = vrot.slane %v440, %v6877
        %v6879 = vcombine.high %v6878, %v6878
        %v6881 = vunpack.c.l.s4 1966171168
        %v6882 = vunpack.c.0.s8 %v6881
        %v6883 = vlaneseq
        %v6884 = vshrl.u32 %v6883, 7
        %v6885 = vsub.s32 %v6882, %v6884
        %v6886 = vrot.slane %v6878, %v6885
        %v6888 = vunpack.c.l.s4 1966171168
        %v6889 = vunpack.c.0.s8 %v6888
        %v6890 = vlaneseq
        %v6891 = vshrl.u32 %v6890, 7
        %v6892 = vsub.s32 %v6889, %v6891
        %v6893 = vrot.slane %v6879, %v6892
        %v6894 = vcombine.high %v6886, %v6886
        %v6895 = vcombine.high %v6893, %v6893
        %v6897 = vunpack.c.l.s4 1966171168
        %v6898 = vunpack.c.0.s8 %v6897
        %v6899 = vlaneseq
        %v6900 = vshrl.u32 %v6899, 7
        %v6901 = vsub.s32 %v6898, %v6900
        %v6902 = vrot.slane %v441, %v6901
        %v6903 = vcombine.high %v6902, %v6902
        %v6905 = vunpack.c.l.s4 1966171168
        %v6906 = vunpack.c.0.s8 %v6905
        %v6907 = vlaneseq
        %v6908 = vshrl.u32 %v6907, 7
        %v6909 = vsub.s32 %v6906, %v6908
        %v6910 = vrot.slane %v6902, %v6909
        %v6912 = vunpack.c.l.s4 1966171168
        %v6913 = vunpack.c.0.s8 %v6912
        %v6914 = vlaneseq
        %v6915 = vshrl.u32 %v6914, 7
        %v6916 = vsub.s32 %v6913, %v6915
        %v6917 = vrot.slane %v6903, %v6916
        %v6918 = vcombine.high %v6910, %v6910
        %v6919 = vcombine.high %v6917, %v6917
        %v6921 = vunpack.c.l.s4 1966171168
        %v6922 = vunpack.c.0.s8 %v6921
        %v6923 = vlaneseq
        %v6924 = vshrl.u32 %v6923, 7
        %v6925 = vsub.s32 %v6922, %v6924
        %v6926 = vrot.slane %v444, %v6925
        %v6927 = vcombine.high %v6926, %v6926
        %v6929 = vunpack.c.l.s4 1966171168
        %v6930 = vunpack.c.0.s8 %v6929
        %v6931 = vlaneseq
        %v6932 = vshrl.u32 %v6931, 7
        %v6933 = vsub.s32 %v6930, %v6932
        %v6934 = vrot.slane %v6926, %v6933
        %v6936 = vunpack.c.l.s4 1966171168
        %v6937 = vunpack.c.0.s8 %v6936
        %v6938 = vlaneseq
        %v6939 = vshrl.u32 %v6938, 7
        %v6940 = vsub.s32 %v6937, %v6939
        %v6941 = vrot.slane %v6927, %v6940
        %v6942 = vcombine.high %v6934, %v6934
        %v6943 = vcombine.high %v6941, %v6941
        %v6945 = vunpack.c.l.s4 1966171168
        %v6946 = vunpack.c.0.s8 %v6945
        %v6947 = vlaneseq
        %v6948 = vshrl.u32 %v6947, 7
        %v6949 = vsub.s32 %v6946, %v6948
        %v6950 = vrot.slane %v445, %v6949
        %v6951 = vcombine.high %v6950, %v6950
        %v6953 = vunpack.c.l.s4 1966171168
        %v6954 = vunpack.c.0.s8 %v6953
        %v6955 = vlaneseq
        %v6956 = vshrl.u32 %v6955, 7
        %v6957 = vsub.s32 %v6954, %v6956
        %v6958 = vrot.slane %v6950, %v6957
        %v6960 = vunpack.c.l.s4 1966171168
        %v6961 = vunpack.c.0.s8 %v6960
        %v6962 = vlaneseq
        %v6963 = vshrl.u32 %v6962, 7
        %v6964 = vsub.s32 %v6961, %v6963
        %v6965 = vrot.slane %v6951, %v6964
        %v6966 = vcombine.high %v6958, %v6958
        %v6967 = vcombine.high %v6965, %v6965
        %v6969 = vunpack.c.l.s4 1966171168
        %v6970 = vunpack.c.0.s8 %v6969
        %v6971 = vlaneseq
        %v6972 = vshrl.u32 %v6971, 7
        %v6973 = vsub.s32 %v6970, %v6972
        %v6974 = vrot.slane %v448, %v6973
        %v6975 = vcombine.high %v6974, %v6974
        %v6977 = vunpack.c.l.s4 1966171168
        %v6978 = vunpack.c.0.s8 %v6977
        %v6979 = vlaneseq
        %v6980 = vshrl.u32 %v6979, 7
        %v6981 = vsub.s32 %v6978, %v6980
        %v6982 = vrot.slane %v6974, %v6981
        %v6984 = vunpack.c.l.s4 1966171168
        %v6985 = vunpack.c.0.s8 %v6984
        %v6986 = vlaneseq
        %v6987 = vshrl.u32 %v6986, 7
        %v6988 = vsub.s32 %v6985, %v6987
        %v6989 = vrot.slane %v6975, %v6988
        %v6990 = vcombine.high %v6982, %v6982
        %v6991 = vcombine.high %v6989, %v6989
        %v6993 = vunpack.c.l.s4 1966171168
        %v6994 = vunpack.c.0.s8 %v6993
        %v6995 = vlaneseq
        %v6996 = vshrl.u32 %v6995, 7
        %v6997 = vsub.s32 %v6994, %v6996
        %v6998 = vrot.slane %v449, %v6997
        %v6999 = vcombine.high %v6998, %v6998
        %v7001 = vunpack.c.l.s4 1966171168
        %v7002 = vunpack.c.0.s8 %v7001
        %v7003 = vlaneseq
        %v7004 = vshrl.u32 %v7003, 7
        %v7005 = vsub.s32 %v7002, %v7004
        %v7006 = vrot.slane %v6998, %v7005
        %v7008 = vunpack.c.l.s4 1966171168
        %v7009 = vunpack.c.0.s8 %v7008
        %v7010 = vlaneseq
        %v7011 = vshrl.u32 %v7010, 7
        %v7012 = vsub.s32 %v7009, %v7011
        %v7013 = vrot.slane %v6999, %v7012
        %v7014 = vcombine.high %v7006, %v7006
        %v7015 = vcombine.high %v7013, %v7013
        %v7017 = vunpack.c.l.s4 1966171168
        %v7018 = vunpack.c.0.s8 %v7017
        %v7019 = vlaneseq
        %v7020 = vshrl.u32 %v7019, 7
        %v7021 = vsub.s32 %v7018, %v7020
        %v7022 = vrot.slane %v452, %v7021
        %v7023 = vcombine.high %v7022, %v7022
        %v7025 = vunpack.c.l.s4 1966171168
        %v7026 = vunpack.c.0.s8 %v7025
        %v7027 = vlaneseq
        %v7028 = vshrl.u32 %v7027, 7
        %v7029 = vsub.s32 %v7026, %v7028
        %v7030 = vrot.slane %v7022, %v7029
        %v7032 = vunpack.c.l.s4 1966171168
        %v7033 = vunpack.c.0.s8 %v7032
        %v7034 = vlaneseq
        %v7035 = vshrl.u32 %v7034, 7
        %v7036 = vsub.s32 %v7033, %v7035
        %v7037 = vrot.slane %v7023, %v7036
        %v7038 = vcombine.high %v7030, %v7030
        %v7039 = vcombine.high %v7037, %v7037
        %v7041 = vunpack.c.l.s4 1966171168
        %v7042 = vunpack.c.0.s8 %v7041
        %v7043 = vlaneseq
        %v7044 = vshrl.u32 %v7043, 7
        %v7045 = vsub.s32 %v7042, %v7044
        %v7046 = vrot.slane %v453, %v7045
        %v7047 = vcombine.high %v7046, %v7046
        %v7049 = vunpack.c.l.s4 1966171168
        %v7050 = vunpack.c.0.s8 %v7049
        %v7051 = vlaneseq
        %v7052 = vshrl.u32 %v7051, 7
        %v7053 = vsub.s32 %v7050, %v7052
        %v7054 = vrot.slane %v7046, %v7053
        %v7056 = vunpack.c.l.s4 1966171168
        %v7057 = vunpack.c.0.s8 %v7056
        %v7058 = vlaneseq
        %v7059 = vshrl.u32 %v7058, 7
        %v7060 = vsub.s32 %v7057, %v7059
        %v7061 = vrot.slane %v7047, %v7060
        %v7062 = vcombine.high %v7054, %v7054
        %v7063 = vcombine.high %v7061, %v7061
        %v7065 = vunpack.c.l.s4 1966171168
        %v7066 = vunpack.c.0.s8 %v7065
        %v7067 = vlaneseq
        %v7068 = vshrl.u32 %v7067, 7
        %v7069 = vsub.s32 %v7066, %v7068
        %v7070 = vrot.slane %v456, %v7069
        %v7071 = vcombine.high %v7070, %v7070
        %v7073 = vunpack.c.l.s4 1966171168
        %v7074 = vunpack.c.0.s8 %v7073
        %v7075 = vlaneseq
        %v7076 = vshrl.u32 %v7075, 7
        %v7077 = vsub.s32 %v7074, %v7076
        %v7078 = vrot.slane %v7070, %v7077
        %v7080 = vunpack.c.l.s4 1966171168
        %v7081 = vunpack.c.0.s8 %v7080
        %v7082 = vlaneseq
        %v7083 = vshrl.u32 %v7082, 7
        %v7084 = vsub.s32 %v7081, %v7083
        %v7085 = vrot.slane %v7071, %v7084
        %v7086 = vcombine.high %v7078, %v7078
        %v7087 = vcombine.high %v7085, %v7085
        %v7089 = vunpack.c.l.s4 1966171168
        %v7090 = vunpack.c.0.s8 %v7089
        %v7091 = vlaneseq
        %v7092 = vshrl.u32 %v7091, 7
        %v7093 = vsub.s32 %v7090, %v7092
        %v7094 = vrot.slane %v457, %v7093
        %v7095 = vcombine.high %v7094, %v7094
        %v7097 = vunpack.c.l.s4 1966171168
        %v7098 = vunpack.c.0.s8 %v7097
        %v7099 = vlaneseq
        %v7100 = vshrl.u32 %v7099, 7
        %v7101 = vsub.s32 %v7098, %v7100
        %v7102 = vrot.slane %v7094, %v7101
        %v7104 = vunpack.c.l.s4 1966171168
        %v7105 = vunpack.c.0.s8 %v7104
        %v7106 = vlaneseq
        %v7107 = vshrl.u32 %v7106, 7
        %v7108 = vsub.s32 %v7105, %v7107
        %v7109 = vrot.slane %v7095, %v7108
        %v7110 = vcombine.high %v7102, %v7102
        %v7111 = vcombine.high %v7109, %v7109
        %v7113 = vunpack.c.l.s4 1966171168
        %v7114 = vunpack.c.0.s8 %v7113
        %v7115 = vlaneseq
        %v7116 = vshrl.u32 %v7115, 7
        %v7117 = vsub.s32 %v7114, %v7116
        %v7118 = vrot.slane %v460, %v7117
        %v7119 = vcombine.high %v7118, %v7118
        %v7121 = vunpack.c.l.s4 1966171168
        %v7122 = vunpack.c.0.s8 %v7121
        %v7123 = vlaneseq
        %v7124 = vshrl.u32 %v7123, 7
        %v7125 = vsub.s32 %v7122, %v7124
        %v7126 = vrot.slane %v7118, %v7125
        %v7128 = vunpack.c.l.s4 1966171168
        %v7129 = vunpack.c.0.s8 %v7128
        %v7130 = vlaneseq
        %v7131 = vshrl.u32 %v7130, 7
        %v7132 = vsub.s32 %v7129, %v7131
        %v7133 = vrot.slane %v7119, %v7132
        %v7134 = vcombine.high %v7126, %v7126
        %v7135 = vcombine.high %v7133, %v7133
        %v7137 = vunpack.c.l.s4 1966171168
        %v7138 = vunpack.c.0.s8 %v7137
        %v7139 = vlaneseq
        %v7140 = vshrl.u32 %v7139, 7
        %v7141 = vsub.s32 %v7138, %v7140
        %v7142 = vrot.slane %v461, %v7141
        %v7143 = vcombine.high %v7142, %v7142
        %v7145 = vunpack.c.l.s4 1966171168
        %v7146 = vunpack.c.0.s8 %v7145
        %v7147 = vlaneseq
        %v7148 = vshrl.u32 %v7147, 7
        %v7149 = vsub.s32 %v7146, %v7148
        %v7150 = vrot.slane %v7142, %v7149
        %v7152 = vunpack.c.l.s4 1966171168
        %v7153 = vunpack.c.0.s8 %v7152
        %v7154 = vlaneseq
        %v7155 = vshrl.u32 %v7154, 7
        %v7156 = vsub.s32 %v7153, %v7155
        %v7157 = vrot.slane %v7143, %v7156
        %v7158 = vcombine.high %v7150, %v7150
        %v7159 = vcombine.high %v7157, %v7157
        %v7161 = vunpack.c.l.s4 1966171168
        %v7162 = vunpack.c.0.s8 %v7161
        %v7163 = vlaneseq
        %v7164 = vshrl.u32 %v7163, 7
        %v7165 = vsub.s32 %v7162, %v7164
        %v7166 = vrot.slane %v464, %v7165
        %v7167 = vcombine.high %v7166, %v7166
        %v7169 = vunpack.c.l.s4 1966171168
        %v7170 = vunpack.c.0.s8 %v7169
        %v7171 = vlaneseq
        %v7172 = vshrl.u32 %v7171, 7
        %v7173 = vsub.s32 %v7170, %v7172
        %v7174 = vrot.slane %v7166, %v7173
        %v7176 = vunpack.c.l.s4 1966171168
        %v7177 = vunpack.c.0.s8 %v7176
        %v7178 = vlaneseq
        %v7179 = vshrl.u32 %v7178, 7
        %v7180 = vsub.s32 %v7177, %v7179
        %v7181 = vrot.slane %v7167, %v7180
        %v7182 = vcombine.high %v7174, %v7174
        %v7183 = vcombine.high %v7181, %v7181
        %v7185 = vunpack.c.l.s4 1966171168
        %v7186 = vunpack.c.0.s8 %v7185
        %v7187 = vlaneseq
        %v7188 = vshrl.u32 %v7187, 7
        %v7189 = vsub.s32 %v7186, %v7188
        %v7190 = vrot.slane %v465, %v7189
        %v7191 = vcombine.high %v7190, %v7190
        %v7193 = vunpack.c.l.s4 1966171168
        %v7194 = vunpack.c.0.s8 %v7193
        %v7195 = vlaneseq
        %v7196 = vshrl.u32 %v7195, 7
        %v7197 = vsub.s32 %v7194, %v7196
        %v7198 = vrot.slane %v7190, %v7197
        %v7200 = vunpack.c.l.s4 1966171168
        %v7201 = vunpack.c.0.s8 %v7200
        %v7202 = vlaneseq
        %v7203 = vshrl.u32 %v7202, 7
        %v7204 = vsub.s32 %v7201, %v7203
        %v7205 = vrot.slane %v7191, %v7204
        %v7206 = vcombine.high %v7198, %v7198
        %v7207 = vcombine.high %v7205, %v7205
        %v7209 = vunpack.c.l.s4 1966171168
        %v7210 = vunpack.c.0.s8 %v7209
        %v7211 = vlaneseq
        %v7212 = vshrl.u32 %v7211, 7
        %v7213 = vsub.s32 %v7210, %v7212
        %v7214 = vrot.slane %v468, %v7213
        %v7215 = vcombine.high %v7214, %v7214
        %v7217 = vunpack.c.l.s4 1966171168
        %v7218 = vunpack.c.0.s8 %v7217
        %v7219 = vlaneseq
        %v7220 = vshrl.u32 %v7219, 7
        %v7221 = vsub.s32 %v7218, %v7220
        %v7222 = vrot.slane %v7214, %v7221
        %v7224 = vunpack.c.l.s4 1966171168
        %v7225 = vunpack.c.0.s8 %v7224
        %v7226 = vlaneseq
        %v7227 = vshrl.u32 %v7226, 7
        %v7228 = vsub.s32 %v7225, %v7227
        %v7229 = vrot.slane %v7215, %v7228
        %v7230 = vcombine.high %v7222, %v7222
        %v7231 = vcombine.high %v7229, %v7229
        %v7233 = vunpack.c.l.s4 1966171168
        %v7234 = vunpack.c.0.s8 %v7233
        %v7235 = vlaneseq
        %v7236 = vshrl.u32 %v7235, 7
        %v7237 = vsub.s32 %v7234, %v7236
        %v7238 = vrot.slane %v469, %v7237
        %v7239 = vcombine.high %v7238, %v7238
        %v7241 = vunpack.c.l.s4 1966171168
        %v7242 = vunpack.c.0.s8 %v7241
        %v7243 = vlaneseq
        %v7244 = vshrl.u32 %v7243, 7
        %v7245 = vsub.s32 %v7242, %v7244
        %v7246 = vrot.slane %v7238, %v7245
        %v7248 = vunpack.c.l.s4 1966171168
        %v7249 = vunpack.c.0.s8 %v7248
        %v7250 = vlaneseq
        %v7251 = vshrl.u32 %v7250, 7
        %v7252 = vsub.s32 %v7249, %v7251
        %v7253 = vrot.slane %v7239, %v7252
        %v7254 = vcombine.high %v7246, %v7246
        %v7255 = vcombine.high %v7253, %v7253
        %v7256 = vld [vmem:[%s10] sm:$0xf]
        %v7258 = vunpack.c.l.s4 1966171168
        %v7259 = vunpack.c.0.s8 %v7258
        %v7260 = vlaneseq
        %v7261 = vshrl.u32 %v7260, 7
        %v7262 = vsub.s32 %v7259, %v7261
        %v7263 = vrot.slane %v6886, %v7262
        %v7265 = vunpack.c.l.s4 1966171168
        %v7266 = vunpack.c.0.s8 %v7265
        %v7267 = vlaneseq
        %v7268 = vshrl.u32 %v7267, 7
        %v7269 = vsub.s32 %v7266, %v7268
        %v7270 = vrot.slane %v7263, %v7269
        %v7272 = vunpack.c.l.s4 1966171168
        %v7273 = vunpack.c.0.s8 %v7272
        %v7274 = vlaneseq
        %v7275 = vshrl.u32 %v7274, 7
        %v7276 = vsub.s32 %v7273, %v7275
        %v7277 = vrot.slane %v6893, %v7276
        %v7279 = vunpack.c.l.s4 1966171168
        %v7280 = vunpack.c.0.s8 %v7279
        %v7281 = vlaneseq
        %v7282 = vshrl.u32 %v7281, 7
        %v7283 = vsub.s32 %v7280, %v7282
        %v7284 = vrot.slane %v7277, %v7283
        %v7286 = vunpack.c.l.s4 1966171168
        %v7287 = vunpack.c.0.s8 %v7286
        %v7288 = vlaneseq
        %v7289 = vshrl.u32 %v7288, 7
        %v7290 = vsub.s32 %v7287, %v7289
        %v7291 = vrot.slane %v6894, %v7290
        %v7293 = vunpack.c.l.s4 1966171168
        %v7294 = vunpack.c.0.s8 %v7293
        %v7295 = vlaneseq
        %v7296 = vshrl.u32 %v7295, 7
        %v7297 = vsub.s32 %v7294, %v7296
        %v7298 = vrot.slane %v7291, %v7297
        %v7300 = vunpack.c.l.s4 1966171168
        %v7301 = vunpack.c.0.s8 %v7300
        %v7302 = vlaneseq
        %v7303 = vshrl.u32 %v7302, 7
        %v7304 = vsub.s32 %v7301, %v7303
        %v7305 = vrot.slane %v6895, %v7304
        %v7307 = vunpack.c.l.s4 1966171168
        %v7308 = vunpack.c.0.s8 %v7307
        %v7309 = vlaneseq
        %v7310 = vshrl.u32 %v7309, 7
        %v7311 = vsub.s32 %v7308, %v7310
        %v7312 = vrot.slane %v7305, %v7311
        %v7314 = vunpack.c.l.s4 1966171168
        %v7315 = vunpack.c.0.s8 %v7314
        %v7316 = vlaneseq
        %v7317 = vshrl.u32 %v7316, 7
        %v7318 = vsub.s32 %v7315, %v7317
        %v7319 = vrot.slane %v6910, %v7318
        %v7321 = vunpack.c.l.s4 1966171168
        %v7322 = vunpack.c.0.s8 %v7321
        %v7323 = vlaneseq
        %v7324 = vshrl.u32 %v7323, 7
        %v7325 = vsub.s32 %v7322, %v7324
        %v7326 = vrot.slane %v7319, %v7325
        %v7328 = vunpack.c.l.s4 1966171168
        %v7329 = vunpack.c.0.s8 %v7328
        %v7330 = vlaneseq
        %v7331 = vshrl.u32 %v7330, 7
        %v7332 = vsub.s32 %v7329, %v7331
        %v7333 = vrot.slane %v6917, %v7332
        %v7335 = vunpack.c.l.s4 1966171168
        %v7336 = vunpack.c.0.s8 %v7335
        %v7337 = vlaneseq
        %v7338 = vshrl.u32 %v7337, 7
        %v7339 = vsub.s32 %v7336, %v7338
        %v7340 = vrot.slane %v7333, %v7339
        %v7342 = vunpack.c.l.s4 1966171168
        %v7343 = vunpack.c.0.s8 %v7342
        %v7344 = vlaneseq
        %v7345 = vshrl.u32 %v7344, 7
        %v7346 = vsub.s32 %v7343, %v7345
        %v7347 = vrot.slane %v6918, %v7346
        %v7349 = vunpack.c.l.s4 1966171168
        %v7350 = vunpack.c.0.s8 %v7349
        %v7351 = vlaneseq
        %v7352 = vshrl.u32 %v7351, 7
        %v7353 = vsub.s32 %v7350, %v7352
        %v7354 = vrot.slane %v7347, %v7353
        %v7356 = vunpack.c.l.s4 1966171168
        %v7357 = vunpack.c.0.s8 %v7356
        %v7358 = vlaneseq
        %v7359 = vshrl.u32 %v7358, 7
        %v7360 = vsub.s32 %v7357, %v7359
        %v7361 = vrot.slane %v6919, %v7360
        %v7363 = vunpack.c.l.s4 1966171168
        %v7364 = vunpack.c.0.s8 %v7363
        %v7365 = vlaneseq
        %v7366 = vshrl.u32 %v7365, 7
        %v7367 = vsub.s32 %v7364, %v7366
        %v7368 = vrot.slane %v7361, %v7367
        %v7370 = vunpack.c.l.s4 1966171168
        %v7371 = vunpack.c.0.s8 %v7370
        %v7372 = vlaneseq
        %v7373 = vshrl.u32 %v7372, 7
        %v7374 = vsub.s32 %v7371, %v7373
        %v7375 = vrot.slane %v6934, %v7374
        %v7377 = vunpack.c.l.s4 1966171168
        %v7378 = vunpack.c.0.s8 %v7377
        %v7379 = vlaneseq
        %v7380 = vshrl.u32 %v7379, 7
        %v7381 = vsub.s32 %v7378, %v7380
        %v7382 = vrot.slane %v7375, %v7381
        %v7384 = vunpack.c.l.s4 1966171168
        %v7385 = vunpack.c.0.s8 %v7384
        %v7386 = vlaneseq
        %v7387 = vshrl.u32 %v7386, 7
        %v7388 = vsub.s32 %v7385, %v7387
        %v7389 = vrot.slane %v6941, %v7388
        %v7391 = vunpack.c.l.s4 1966171168
        %v7392 = vunpack.c.0.s8 %v7391
        %v7393 = vlaneseq
        %v7394 = vshrl.u32 %v7393, 7
        %v7395 = vsub.s32 %v7392, %v7394
        %v7396 = vrot.slane %v7389, %v7395
        %v7398 = vunpack.c.l.s4 1966171168
        %v7399 = vunpack.c.0.s8 %v7398
        %v7400 = vlaneseq
        %v7401 = vshrl.u32 %v7400, 7
        %v7402 = vsub.s32 %v7399, %v7401
        %v7403 = vrot.slane %v6942, %v7402
        %v7405 = vunpack.c.l.s4 1966171168
        %v7406 = vunpack.c.0.s8 %v7405
        %v7407 = vlaneseq
        %v7408 = vshrl.u32 %v7407, 7
        %v7409 = vsub.s32 %v7406, %v7408
        %v7410 = vrot.slane %v7403, %v7409
        %v7412 = vunpack.c.l.s4 1966171168
        %v7413 = vunpack.c.0.s8 %v7412
        %v7414 = vlaneseq
        %v7415 = vshrl.u32 %v7414, 7
        %v7416 = vsub.s32 %v7413, %v7415
        %v7417 = vrot.slane %v6943, %v7416
        %v7419 = vunpack.c.l.s4 1966171168
        %v7420 = vunpack.c.0.s8 %v7419
        %v7421 = vlaneseq
        %v7422 = vshrl.u32 %v7421, 7
        %v7423 = vsub.s32 %v7420, %v7422
        %v7424 = vrot.slane %v7417, %v7423
        %v7426 = vunpack.c.l.s4 1966171168
        %v7427 = vunpack.c.0.s8 %v7426
        %v7428 = vlaneseq
        %v7429 = vshrl.u32 %v7428, 7
        %v7430 = vsub.s32 %v7427, %v7429
        %v7431 = vrot.slane %v6958, %v7430
        %v7433 = vunpack.c.l.s4 1966171168
        %v7434 = vunpack.c.0.s8 %v7433
        %v7435 = vlaneseq
        %v7436 = vshrl.u32 %v7435, 7
        %v7437 = vsub.s32 %v7434, %v7436
        %v7438 = vrot.slane %v7431, %v7437
        %v7440 = vunpack.c.l.s4 1966171168
        %v7441 = vunpack.c.0.s8 %v7440
        %v7442 = vlaneseq
        %v7443 = vshrl.u32 %v7442, 7
        %v7444 = vsub.s32 %v7441, %v7443
        %v7445 = vrot.slane %v6965, %v7444
        %v7447 = vunpack.c.l.s4 1966171168
        %v7448 = vunpack.c.0.s8 %v7447
        %v7449 = vlaneseq
        %v7450 = vshrl.u32 %v7449, 7
        %v7451 = vsub.s32 %v7448, %v7450
        %v7452 = vrot.slane %v7445, %v7451
        %v7454 = vunpack.c.l.s4 1966171168
        %v7455 = vunpack.c.0.s8 %v7454
        %v7456 = vlaneseq
        %v7457 = vshrl.u32 %v7456, 7
        %v7458 = vsub.s32 %v7455, %v7457
        %v7459 = vrot.slane %v6966, %v7458
        %v7461 = vunpack.c.l.s4 1966171168
        %v7462 = vunpack.c.0.s8 %v7461
        %v7463 = vlaneseq
        %v7464 = vshrl.u32 %v7463, 7
        %v7465 = vsub.s32 %v7462, %v7464
        %v7466 = vrot.slane %v7459, %v7465
        %v7468 = vunpack.c.l.s4 1966171168
        %v7469 = vunpack.c.0.s8 %v7468
        %v7470 = vlaneseq
        %v7471 = vshrl.u32 %v7470, 7
        %v7472 = vsub.s32 %v7469, %v7471
        %v7473 = vrot.slane %v6967, %v7472
        %v7475 = vunpack.c.l.s4 1966171168
        %v7476 = vunpack.c.0.s8 %v7475
        %v7477 = vlaneseq
        %v7478 = vshrl.u32 %v7477, 7
        %v7479 = vsub.s32 %v7476, %v7478
        %v7480 = vrot.slane %v7473, %v7479
        %v7482 = vunpack.c.l.s4 1966171168
        %v7483 = vunpack.c.0.s8 %v7482
        %v7484 = vlaneseq
        %v7485 = vshrl.u32 %v7484, 7
        %v7486 = vsub.s32 %v7483, %v7485
        %v7487 = vrot.slane %v6982, %v7486
        %v7489 = vunpack.c.l.s4 1966171168
        %v7490 = vunpack.c.0.s8 %v7489
        %v7491 = vlaneseq
        %v7492 = vshrl.u32 %v7491, 7
        %v7493 = vsub.s32 %v7490, %v7492
        %v7494 = vrot.slane %v7487, %v7493
        %v7496 = vunpack.c.l.s4 1966171168
        %v7497 = vunpack.c.0.s8 %v7496
        %v7498 = vlaneseq
        %v7499 = vshrl.u32 %v7498, 7
        %v7500 = vsub.s32 %v7497, %v7499
        %v7501 = vrot.slane %v6989, %v7500
        %v7503 = vunpack.c.l.s4 1966171168
        %v7504 = vunpack.c.0.s8 %v7503
        %v7505 = vlaneseq
        %v7506 = vshrl.u32 %v7505, 7
        %v7507 = vsub.s32 %v7504, %v7506
        %v7508 = vrot.slane %v7501, %v7507
        %v7510 = vunpack.c.l.s4 1966171168
        %v7511 = vunpack.c.0.s8 %v7510
        %v7512 = vlaneseq
        %v7513 = vshrl.u32 %v7512, 7
        %v7514 = vsub.s32 %v7511, %v7513
        %v7515 = vrot.slane %v6990, %v7514
        %v7517 = vunpack.c.l.s4 1966171168
        %v7518 = vunpack.c.0.s8 %v7517
        %v7519 = vlaneseq
        %v7520 = vshrl.u32 %v7519, 7
        %v7521 = vsub.s32 %v7518, %v7520
        %v7522 = vrot.slane %v7515, %v7521
        %v7524 = vunpack.c.l.s4 1966171168
        %v7525 = vunpack.c.0.s8 %v7524
        %v7526 = vlaneseq
        %v7527 = vshrl.u32 %v7526, 7
        %v7528 = vsub.s32 %v7525, %v7527
        %v7529 = vrot.slane %v6991, %v7528
        %v7531 = vunpack.c.l.s4 1966171168
        %v7532 = vunpack.c.0.s8 %v7531
        %v7533 = vlaneseq
        %v7534 = vshrl.u32 %v7533, 7
        %v7535 = vsub.s32 %v7532, %v7534
        %v7536 = vrot.slane %v7529, %v7535
        %v7538 = vunpack.c.l.s4 1966171168
        %v7539 = vunpack.c.0.s8 %v7538
        %v7540 = vlaneseq
        %v7541 = vshrl.u32 %v7540, 7
        %v7542 = vsub.s32 %v7539, %v7541
        %v7543 = vrot.slane %v7006, %v7542
        %v7545 = vunpack.c.l.s4 1966171168
        %v7546 = vunpack.c.0.s8 %v7545
        %v7547 = vlaneseq
        %v7548 = vshrl.u32 %v7547, 7
        %v7549 = vsub.s32 %v7546, %v7548
        %v7550 = vrot.slane %v7543, %v7549
        %v7552 = vunpack.c.l.s4 1966171168
        %v7553 = vunpack.c.0.s8 %v7552
        %v7554 = vlaneseq
        %v7555 = vshrl.u32 %v7554, 7
        %v7556 = vsub.s32 %v7553, %v7555
        %v7557 = vrot.slane %v7013, %v7556
        %v7559 = vunpack.c.l.s4 1966171168
        %v7560 = vunpack.c.0.s8 %v7559
        %v7561 = vlaneseq
        %v7562 = vshrl.u32 %v7561, 7
        %v7563 = vsub.s32 %v7560, %v7562
        %v7564 = vrot.slane %v7557, %v7563
        %v7566 = vunpack.c.l.s4 1966171168
        %v7567 = vunpack.c.0.s8 %v7566
        %v7568 = vlaneseq
        %v7569 = vshrl.u32 %v7568, 7
        %v7570 = vsub.s32 %v7567, %v7569
        %v7571 = vrot.slane %v7014, %v7570
        %v7573 = vunpack.c.l.s4 1966171168
        %v7574 = vunpack.c.0.s8 %v7573
        %v7575 = vlaneseq
        %v7576 = vshrl.u32 %v7575, 7
        %v7577 = vsub.s32 %v7574, %v7576
        %v7578 = vrot.slane %v7571, %v7577
        %v7580 = vunpack.c.l.s4 1966171168
        %v7581 = vunpack.c.0.s8 %v7580
        %v7582 = vlaneseq
        %v7583 = vshrl.u32 %v7582, 7
        %v7584 = vsub.s32 %v7581, %v7583
        %v7585 = vrot.slane %v7015, %v7584
        %v7587 = vunpack.c.l.s4 1966171168
        %v7588 = vunpack.c.0.s8 %v7587
        %v7589 = vlaneseq
        %v7590 = vshrl.u32 %v7589, 7
        %v7591 = vsub.s32 %v7588, %v7590
        %v7592 = vrot.slane %v7585, %v7591
        %v7594 = vunpack.c.l.s4 1966171168
        %v7595 = vunpack.c.0.s8 %v7594
        %v7596 = vlaneseq
        %v7597 = vshrl.u32 %v7596, 7
        %v7598 = vsub.s32 %v7595, %v7597
        %v7599 = vrot.slane %v7030, %v7598
        %v7601 = vunpack.c.l.s4 1966171168
        %v7602 = vunpack.c.0.s8 %v7601
        %v7603 = vlaneseq
        %v7604 = vshrl.u32 %v7603, 7
        %v7605 = vsub.s32 %v7602, %v7604
        %v7606 = vrot.slane %v7599, %v7605
        %v7608 = vunpack.c.l.s4 1966171168
        %v7609 = vunpack.c.0.s8 %v7608
        %v7610 = vlaneseq
        %v7611 = vshrl.u32 %v7610, 7
        %v7612 = vsub.s32 %v7609, %v7611
        %v7613 = vrot.slane %v7037, %v7612
        %v7615 = vunpack.c.l.s4 1966171168
        %v7616 = vunpack.c.0.s8 %v7615
        %v7617 = vlaneseq
        %v7618 = vshrl.u32 %v7617, 7
        %v7619 = vsub.s32 %v7616, %v7618
        %v7620 = vrot.slane %v7613, %v7619
        %v7622 = vunpack.c.l.s4 1966171168
        %v7623 = vunpack.c.0.s8 %v7622
        %v7624 = vlaneseq
        %v7625 = vshrl.u32 %v7624, 7
        %v7626 = vsub.s32 %v7623, %v7625
        %v7627 = vrot.slane %v7038, %v7626
        %v7629 = vunpack.c.l.s4 1966171168
        %v7630 = vunpack.c.0.s8 %v7629
        %v7631 = vlaneseq
        %v7632 = vshrl.u32 %v7631, 7
        %v7633 = vsub.s32 %v7630, %v7632
        %v7634 = vrot.slane %v7627, %v7633
        %v7636 = vunpack.c.l.s4 1966171168
        %v7637 = vunpack.c.0.s8 %v7636
        %v7638 = vlaneseq
        %v7639 = vshrl.u32 %v7638, 7
        %v7640 = vsub.s32 %v7637, %v7639
        %v7641 = vrot.slane %v7039, %v7640
        %v7643 = vunpack.c.l.s4 1966171168
        %v7644 = vunpack.c.0.s8 %v7643
        %v7645 = vlaneseq
        %v7646 = vshrl.u32 %v7645, 7
        %v7647 = vsub.s32 %v7644, %v7646
        %v7648 = vrot.slane %v7641, %v7647
        %v7650 = vunpack.c.l.s4 1966171168
        %v7651 = vunpack.c.0.s8 %v7650
        %v7652 = vlaneseq
        %v7653 = vshrl.u32 %v7652, 7
        %v7654 = vsub.s32 %v7651, %v7653
        %v7655 = vrot.slane %v7054, %v7654
        %v7657 = vunpack.c.l.s4 1966171168
        %v7658 = vunpack.c.0.s8 %v7657
        %v7659 = vlaneseq
        %v7660 = vshrl.u32 %v7659, 7
        %v7661 = vsub.s32 %v7658, %v7660
        %v7662 = vrot.slane %v7655, %v7661
        %v7664 = vunpack.c.l.s4 1966171168
        %v7665 = vunpack.c.0.s8 %v7664
        %v7666 = vlaneseq
        %v7667 = vshrl.u32 %v7666, 7
        %v7668 = vsub.s32 %v7665, %v7667
        %v7669 = vrot.slane %v7061, %v7668
        %v7671 = vunpack.c.l.s4 1966171168
        %v7672 = vunpack.c.0.s8 %v7671
        %v7673 = vlaneseq
        %v7674 = vshrl.u32 %v7673, 7
        %v7675 = vsub.s32 %v7672, %v7674
        %v7676 = vrot.slane %v7669, %v7675
        %v7678 = vunpack.c.l.s4 1966171168
        %v7679 = vunpack.c.0.s8 %v7678
        %v7680 = vlaneseq
        %v7681 = vshrl.u32 %v7680, 7
        %v7682 = vsub.s32 %v7679, %v7681
        %v7683 = vrot.slane %v7062, %v7682
        %v7685 = vunpack.c.l.s4 1966171168
        %v7686 = vunpack.c.0.s8 %v7685
        %v7687 = vlaneseq
        %v7688 = vshrl.u32 %v7687, 7
        %v7689 = vsub.s32 %v7686, %v7688
        %v7690 = vrot.slane %v7683, %v7689
        %v7692 = vunpack.c.l.s4 1966171168
        %v7693 = vunpack.c.0.s8 %v7692
        %v7694 = vlaneseq
        %v7695 = vshrl.u32 %v7694, 7
        %v7696 = vsub.s32 %v7693, %v7695
        %v7697 = vrot.slane %v7063, %v7696
        %v7699 = vunpack.c.l.s4 1966171168
        %v7700 = vunpack.c.0.s8 %v7699
        %v7701 = vlaneseq
        %v7702 = vshrl.u32 %v7701, 7
        %v7703 = vsub.s32 %v7700, %v7702
        %v7704 = vrot.slane %v7697, %v7703
        %v7706 = vunpack.c.l.s4 1966171168
        %v7707 = vunpack.c.0.s8 %v7706
        %v7708 = vlaneseq
        %v7709 = vshrl.u32 %v7708, 7
        %v7710 = vsub.s32 %v7707, %v7709
        %v7711 = vrot.slane %v7078, %v7710
        %v7713 = vunpack.c.l.s4 1966171168
        %v7714 = vunpack.c.0.s8 %v7713
        %v7715 = vlaneseq
        %v7716 = vshrl.u32 %v7715, 7
        %v7717 = vsub.s32 %v7714, %v7716
        %v7718 = vrot.slane %v7711, %v7717
        %v7720 = vunpack.c.l.s4 1966171168
        %v7721 = vunpack.c.0.s8 %v7720
        %v7722 = vlaneseq
        %v7723 = vshrl.u32 %v7722, 7
        %v7724 = vsub.s32 %v7721, %v7723
        %v7725 = vrot.slane %v7085, %v7724
        %v7727 = vunpack.c.l.s4 1966171168
        %v7728 = vunpack.c.0.s8 %v7727
        %v7729 = vlaneseq
        %v7730 = vshrl.u32 %v7729, 7
        %v7731 = vsub.s32 %v7728, %v7730
        %v7732 = vrot.slane %v7725, %v7731
        %v7734 = vunpack.c.l.s4 1966171168
        %v7735 = vunpack.c.0.s8 %v7734
        %v7736 = vlaneseq
        %v7737 = vshrl.u32 %v7736, 7
        %v7738 = vsub.s32 %v7735, %v7737
        %v7739 = vrot.slane %v7086, %v7738
        %v7741 = vunpack.c.l.s4 1966171168
        %v7742 = vunpack.c.0.s8 %v7741
        %v7743 = vlaneseq
        %v7744 = vshrl.u32 %v7743, 7
        %v7745 = vsub.s32 %v7742, %v7744
        %v7746 = vrot.slane %v7739, %v7745
        %v7748 = vunpack.c.l.s4 1966171168
        %v7749 = vunpack.c.0.s8 %v7748
        %v7750 = vlaneseq
        %v7751 = vshrl.u32 %v7750, 7
        %v7752 = vsub.s32 %v7749, %v7751
        %v7753 = vrot.slane %v7087, %v7752
        %v7755 = vunpack.c.l.s4 1966171168
        %v7756 = vunpack.c.0.s8 %v7755
        %v7757 = vlaneseq
        %v7758 = vshrl.u32 %v7757, 7
        %v7759 = vsub.s32 %v7756, %v7758
        %v7760 = vrot.slane %v7753, %v7759
        %v7762 = vunpack.c.l.s4 1966171168
        %v7763 = vunpack.c.0.s8 %v7762
        %v7764 = vlaneseq
        %v7765 = vshrl.u32 %v7764, 7
        %v7766 = vsub.s32 %v7763, %v7765
        %v7767 = vrot.slane %v7102, %v7766
        %v7769 = vunpack.c.l.s4 1966171168
        %v7770 = vunpack.c.0.s8 %v7769
        %v7771 = vlaneseq
        %v7772 = vshrl.u32 %v7771, 7
        %v7773 = vsub.s32 %v7770, %v7772
        %v7774 = vrot.slane %v7767, %v7773
        %v7776 = vunpack.c.l.s4 1966171168
        %v7777 = vunpack.c.0.s8 %v7776
        %v7778 = vlaneseq
        %v7779 = vshrl.u32 %v7778, 7
        %v7780 = vsub.s32 %v7777, %v7779
        %v7781 = vrot.slane %v7109, %v7780
        %v7783 = vunpack.c.l.s4 1966171168
        %v7784 = vunpack.c.0.s8 %v7783
        %v7785 = vlaneseq
        %v7786 = vshrl.u32 %v7785, 7
        %v7787 = vsub.s32 %v7784, %v7786
        %v7788 = vrot.slane %v7781, %v7787
        %v7790 = vunpack.c.l.s4 1966171168
        %v7791 = vunpack.c.0.s8 %v7790
        %v7792 = vlaneseq
        %v7793 = vshrl.u32 %v7792, 7
        %v7794 = vsub.s32 %v7791, %v7793
        %v7795 = vrot.slane %v7110, %v7794
        %v7797 = vunpack.c.l.s4 1966171168
        %v7798 = vunpack.c.0.s8 %v7797
        %v7799 = vlaneseq
        %v7800 = vshrl.u32 %v7799, 7
        %v7801 = vsub.s32 %v7798, %v7800
        %v7802 = vrot.slane %v7795, %v7801
        %v7804 = vunpack.c.l.s4 1966171168
        %v7805 = vunpack.c.0.s8 %v7804
        %v7806 = vlaneseq
        %v7807 = vshrl.u32 %v7806, 7
        %v7808 = vsub.s32 %v7805, %v7807
        %v7809 = vrot.slane %v7111, %v7808
        %v7811 = vunpack.c.l.s4 1966171168
        %v7812 = vunpack.c.0.s8 %v7811
        %v7813 = vlaneseq
        %v7814 = vshrl.u32 %v7813, 7
        %v7815 = vsub.s32 %v7812, %v7814
        %v7816 = vrot.slane %v7809, %v7815
        %v7818 = vunpack.c.l.s4 1966171168
        %v7819 = vunpack.c.0.s8 %v7818
        %v7820 = vlaneseq
        %v7821 = vshrl.u32 %v7820, 7
        %v7822 = vsub.s32 %v7819, %v7821
        %v7823 = vrot.slane %v7126, %v7822
        %v7825 = vunpack.c.l.s4 1966171168
        %v7826 = vunpack.c.0.s8 %v7825
        %v7827 = vlaneseq
        %v7828 = vshrl.u32 %v7827, 7
        %v7829 = vsub.s32 %v7826, %v7828
        %v7830 = vrot.slane %v7823, %v7829
        %v7832 = vunpack.c.l.s4 1966171168
        %v7833 = vunpack.c.0.s8 %v7832
        %v7834 = vlaneseq
        %v7835 = vshrl.u32 %v7834, 7
        %v7836 = vsub.s32 %v7833, %v7835
        %v7837 = vrot.slane %v7133, %v7836
        %v7839 = vunpack.c.l.s4 1966171168
        %v7840 = vunpack.c.0.s8 %v7839
        %v7841 = vlaneseq
        %v7842 = vshrl.u32 %v7841, 7
        %v7843 = vsub.s32 %v7840, %v7842
        %v7844 = vrot.slane %v7837, %v7843
        %v7846 = vunpack.c.l.s4 1966171168
        %v7847 = vunpack.c.0.s8 %v7846
        %v7848 = vlaneseq
        %v7849 = vshrl.u32 %v7848, 7
        %v7850 = vsub.s32 %v7847, %v7849
        %v7851 = vrot.slane %v7134, %v7850
        %v7853 = vunpack.c.l.s4 1966171168
        %v7854 = vunpack.c.0.s8 %v7853
        %v7855 = vlaneseq
        %v7856 = vshrl.u32 %v7855, 7
        %v7857 = vsub.s32 %v7854, %v7856
        %v7858 = vrot.slane %v7851, %v7857
        %v7860 = vunpack.c.l.s4 1966171168
        %v7861 = vunpack.c.0.s8 %v7860
        %v7862 = vlaneseq
        %v7863 = vshrl.u32 %v7862, 7
        %v7864 = vsub.s32 %v7861, %v7863
        %v7865 = vrot.slane %v7135, %v7864
        %v7867 = vunpack.c.l.s4 1966171168
        %v7868 = vunpack.c.0.s8 %v7867
        %v7869 = vlaneseq
        %v7870 = vshrl.u32 %v7869, 7
        %v7871 = vsub.s32 %v7868, %v7870
        %v7872 = vrot.slane %v7865, %v7871
        %v7874 = vunpack.c.l.s4 1966171168
        %v7875 = vunpack.c.0.s8 %v7874
        %v7876 = vlaneseq
        %v7877 = vshrl.u32 %v7876, 7
        %v7878 = vsub.s32 %v7875, %v7877
        %v7879 = vrot.slane %v7150, %v7878
        %v7881 = vunpack.c.l.s4 1966171168
        %v7882 = vunpack.c.0.s8 %v7881
        %v7883 = vlaneseq
        %v7884 = vshrl.u32 %v7883, 7
        %v7885 = vsub.s32 %v7882, %v7884
        %v7886 = vrot.slane %v7879, %v7885
        %v7888 = vunpack.c.l.s4 1966171168
        %v7889 = vunpack.c.0.s8 %v7888
        %v7890 = vlaneseq
        %v7891 = vshrl.u32 %v7890, 7
        %v7892 = vsub.s32 %v7889, %v7891
        %v7893 = vrot.slane %v7157, %v7892
        %v7895 = vunpack.c.l.s4 1966171168
        %v7896 = vunpack.c.0.s8 %v7895
        %v7897 = vlaneseq
        %v7898 = vshrl.u32 %v7897, 7
        %v7899 = vsub.s32 %v7896, %v7898
        %v7900 = vrot.slane %v7893, %v7899
        %v7902 = vunpack.c.l.s4 1966171168
        %v7903 = vunpack.c.0.s8 %v7902
        %v7904 = vlaneseq
        %v7905 = vshrl.u32 %v7904, 7
        %v7906 = vsub.s32 %v7903, %v7905
        %v7907 = vrot.slane %v7158, %v7906
        %v7909 = vunpack.c.l.s4 1966171168
        %v7910 = vunpack.c.0.s8 %v7909
        %v7911 = vlaneseq
        %v7912 = vshrl.u32 %v7911, 7
        %v7913 = vsub.s32 %v7910, %v7912
        %v7914 = vrot.slane %v7907, %v7913
        %v7916 = vunpack.c.l.s4 1966171168
        %v7917 = vunpack.c.0.s8 %v7916
        %v7918 = vlaneseq
        %v7919 = vshrl.u32 %v7918, 7
        %v7920 = vsub.s32 %v7917, %v7919
        %v7921 = vrot.slane %v7159, %v7920
        %v7923 = vunpack.c.l.s4 1966171168
        %v7924 = vunpack.c.0.s8 %v7923
        %v7925 = vlaneseq
        %v7926 = vshrl.u32 %v7925, 7
        %v7927 = vsub.s32 %v7924, %v7926
        %v7928 = vrot.slane %v7921, %v7927
        %v7930 = vunpack.c.l.s4 1966171168
        %v7931 = vunpack.c.0.s8 %v7930
        %v7932 = vlaneseq
        %v7933 = vshrl.u32 %v7932, 7
        %v7934 = vsub.s32 %v7931, %v7933
        %v7935 = vrot.slane %v7174, %v7934
        %v7937 = vunpack.c.l.s4 1966171168
        %v7938 = vunpack.c.0.s8 %v7937
        %v7939 = vlaneseq
        %v7940 = vshrl.u32 %v7939, 7
        %v7941 = vsub.s32 %v7938, %v7940
        %v7942 = vrot.slane %v7935, %v7941
        %v7944 = vunpack.c.l.s4 1966171168
        %v7945 = vunpack.c.0.s8 %v7944
        %v7946 = vlaneseq
        %v7947 = vshrl.u32 %v7946, 7
        %v7948 = vsub.s32 %v7945, %v7947
        %v7949 = vrot.slane %v7181, %v7948
        %v7951 = vunpack.c.l.s4 1966171168
        %v7952 = vunpack.c.0.s8 %v7951
        %v7953 = vlaneseq
        %v7954 = vshrl.u32 %v7953, 7
        %v7955 = vsub.s32 %v7952, %v7954
        %v7956 = vrot.slane %v7949, %v7955
        %v7958 = vunpack.c.l.s4 1966171168
        %v7959 = vunpack.c.0.s8 %v7958
        %v7960 = vlaneseq
        %v7961 = vshrl.u32 %v7960, 7
        %v7962 = vsub.s32 %v7959, %v7961
        %v7963 = vrot.slane %v7182, %v7962
        %v7965 = vunpack.c.l.s4 1966171168
        %v7966 = vunpack.c.0.s8 %v7965
        %v7967 = vlaneseq
        %v7968 = vshrl.u32 %v7967, 7
        %v7969 = vsub.s32 %v7966, %v7968
        %v7970 = vrot.slane %v7963, %v7969
        %v7972 = vunpack.c.l.s4 1966171168
        %v7973 = vunpack.c.0.s8 %v7972
        %v7974 = vlaneseq
        %v7975 = vshrl.u32 %v7974, 7
        %v7976 = vsub.s32 %v7973, %v7975
        %v7977 = vrot.slane %v7183, %v7976
        %v7979 = vunpack.c.l.s4 1966171168
        %v7980 = vunpack.c.0.s8 %v7979
        %v7981 = vlaneseq
        %v7982 = vshrl.u32 %v7981, 7
        %v7983 = vsub.s32 %v7980, %v7982
        %v7984 = vrot.slane %v7977, %v7983
        %v7986 = vunpack.c.l.s4 1966171168
        %v7987 = vunpack.c.0.s8 %v7986
        %v7988 = vlaneseq
        %v7989 = vshrl.u32 %v7988, 7
        %v7990 = vsub.s32 %v7987, %v7989
        %v7991 = vrot.slane %v7198, %v7990
        %v7993 = vunpack.c.l.s4 1966171168
        %v7994 = vunpack.c.0.s8 %v7993
        %v7995 = vlaneseq
        %v7996 = vshrl.u32 %v7995, 7
        %v7997 = vsub.s32 %v7994, %v7996
        %v7998 = vrot.slane %v7991, %v7997
        %v8000 = vunpack.c.l.s4 1966171168
        %v8001 = vunpack.c.0.s8 %v8000
        %v8002 = vlaneseq
        %v8003 = vshrl.u32 %v8002, 7
        %v8004 = vsub.s32 %v8001, %v8003
        %v8005 = vrot.slane %v7205, %v8004
        %v8007 = vunpack.c.l.s4 1966171168
        %v8008 = vunpack.c.0.s8 %v8007
        %v8009 = vlaneseq
        %v8010 = vshrl.u32 %v8009, 7
        %v8011 = vsub.s32 %v8008, %v8010
        %v8012 = vrot.slane %v8005, %v8011
        %v8014 = vunpack.c.l.s4 1966171168
        %v8015 = vunpack.c.0.s8 %v8014
        %v8016 = vlaneseq
        %v8017 = vshrl.u32 %v8016, 7
        %v8018 = vsub.s32 %v8015, %v8017
        %v8019 = vrot.slane %v7206, %v8018
        %v8021 = vunpack.c.l.s4 1966171168
        %v8022 = vunpack.c.0.s8 %v8021
        %v8023 = vlaneseq
        %v8024 = vshrl.u32 %v8023, 7
        %v8025 = vsub.s32 %v8022, %v8024
        %v8026 = vrot.slane %v8019, %v8025
        %v8028 = vunpack.c.l.s4 1966171168
        %v8029 = vunpack.c.0.s8 %v8028
        %v8030 = vlaneseq
        %v8031 = vshrl.u32 %v8030, 7
        %v8032 = vsub.s32 %v8029, %v8031
        %v8033 = vrot.slane %v7207, %v8032
        %v8035 = vunpack.c.l.s4 1966171168
        %v8036 = vunpack.c.0.s8 %v8035
        %v8037 = vlaneseq
        %v8038 = vshrl.u32 %v8037, 7
        %v8039 = vsub.s32 %v8036, %v8038
        %v8040 = vrot.slane %v8033, %v8039
        %v8042 = vunpack.c.l.s4 1966171168
        %v8043 = vunpack.c.0.s8 %v8042
        %v8044 = vlaneseq
        %v8045 = vshrl.u32 %v8044, 7
        %v8046 = vsub.s32 %v8043, %v8045
        %v8047 = vrot.slane %v7222, %v8046
        %v8049 = vunpack.c.l.s4 1966171168
        %v8050 = vunpack.c.0.s8 %v8049
        %v8051 = vlaneseq
        %v8052 = vshrl.u32 %v8051, 7
        %v8053 = vsub.s32 %v8050, %v8052
        %v8054 = vrot.slane %v8047, %v8053
        %v8056 = vunpack.c.l.s4 1966171168
        %v8057 = vunpack.c.0.s8 %v8056
        %v8058 = vlaneseq
        %v8059 = vshrl.u32 %v8058, 7
        %v8060 = vsub.s32 %v8057, %v8059
        %v8061 = vrot.slane %v7229, %v8060
        %v8063 = vunpack.c.l.s4 1966171168
        %v8064 = vunpack.c.0.s8 %v8063
        %v8065 = vlaneseq
        %v8066 = vshrl.u32 %v8065, 7
        %v8067 = vsub.s32 %v8064, %v8066
        %v8068 = vrot.slane %v8061, %v8067
        %v8070 = vunpack.c.l.s4 1966171168
        %v8071 = vunpack.c.0.s8 %v8070
        %v8072 = vlaneseq
        %v8073 = vshrl.u32 %v8072, 7
        %v8074 = vsub.s32 %v8071, %v8073
        %v8075 = vrot.slane %v7230, %v8074
        %v8077 = vunpack.c.l.s4 1966171168
        %v8078 = vunpack.c.0.s8 %v8077
        %v8079 = vlaneseq
        %v8080 = vshrl.u32 %v8079, 7
        %v8081 = vsub.s32 %v8078, %v8080
        %v8082 = vrot.slane %v8075, %v8081
        %v8084 = vunpack.c.l.s4 1966171168
        %v8085 = vunpack.c.0.s8 %v8084
        %v8086 = vlaneseq
        %v8087 = vshrl.u32 %v8086, 7
        %v8088 = vsub.s32 %v8085, %v8087
        %v8089 = vrot.slane %v7231, %v8088
        %v8091 = vunpack.c.l.s4 1966171168
        %v8092 = vunpack.c.0.s8 %v8091
        %v8093 = vlaneseq
        %v8094 = vshrl.u32 %v8093, 7
        %v8095 = vsub.s32 %v8092, %v8094
        %v8096 = vrot.slane %v8089, %v8095
        %v8098 = vunpack.c.l.s4 1966171168
        %v8099 = vunpack.c.0.s8 %v8098
        %v8100 = vlaneseq
        %v8101 = vshrl.u32 %v8100, 7
        %v8102 = vsub.s32 %v8099, %v8101
        %v8103 = vrot.slane %v7246, %v8102
        %v8105 = vunpack.c.l.s4 1966171168
        %v8106 = vunpack.c.0.s8 %v8105
        %v8107 = vlaneseq
        %v8108 = vshrl.u32 %v8107, 7
        %v8109 = vsub.s32 %v8106, %v8108
        %v8110 = vrot.slane %v8103, %v8109
        %v8112 = vunpack.c.l.s4 1966171168
        %v8113 = vunpack.c.0.s8 %v8112
        %v8114 = vlaneseq
        %v8115 = vshrl.u32 %v8114, 7
        %v8116 = vsub.s32 %v8113, %v8115
        %v8117 = vrot.slane %v7253, %v8116
        %v8119 = vunpack.c.l.s4 1966171168
        %v8120 = vunpack.c.0.s8 %v8119
        %v8121 = vlaneseq
        %v8122 = vshrl.u32 %v8121, 7
        %v8123 = vsub.s32 %v8120, %v8122
        %v8124 = vrot.slane %v8117, %v8123
        %v8126 = vunpack.c.l.s4 1966171168
        %v8127 = vunpack.c.0.s8 %v8126
        %v8128 = vlaneseq
        %v8129 = vshrl.u32 %v8128, 7
        %v8130 = vsub.s32 %v8127, %v8129
        %v8131 = vrot.slane %v7254, %v8130
        %v8133 = vunpack.c.l.s4 1966171168
        %v8134 = vunpack.c.0.s8 %v8133
        %v8135 = vlaneseq
        %v8136 = vshrl.u32 %v8135, 7
        %v8137 = vsub.s32 %v8134, %v8136
        %v8138 = vrot.slane %v8131, %v8137
        %v8140 = vunpack.c.l.s4 1966171168
        %v8141 = vunpack.c.0.s8 %v8140
        %v8142 = vlaneseq
        %v8143 = vshrl.u32 %v8142, 7
        %v8144 = vsub.s32 %v8141, %v8143
        %v8145 = vrot.slane %v7255, %v8144
        %v8147 = vunpack.c.l.s4 1966171168
        %v8148 = vunpack.c.0.s8 %v8147
        %v8149 = vlaneseq
        %v8150 = vshrl.u32 %v8149, 7
        %v8151 = vsub.s32 %v8148, %v8150
        %v8152 = vrot.slane %v8145, %v8151
        %v8153 = vunpack.c.l.b16 %v7270
        %v8154 = vunpack.c.l.b16 %v7284
        %v8155 = vunpack.c.l.b16 %v7298
        %v8156 = vunpack.c.l.b16 %v7312
        %v8157 = vunpack.c.l.b16 %v7326
        %v8158 = vunpack.c.l.b16 %v7340
        %v8159 = vunpack.c.l.b16 %v7354
        %v8160 = vunpack.c.l.b16 %v7368
        %v8161 = vunpack.c.l.b16 %v7382
        %v8162 = vunpack.c.l.b16 %v7396
        %v8163 = vunpack.c.l.b16 %v7410
        %v8164 = vunpack.c.l.b16 %v7424
        %v8165 = vunpack.c.l.b16 %v7438
        %v8166 = vunpack.c.l.b16 %v7452
        %v8167 = vunpack.c.l.b16 %v7466
        %v8168 = vunpack.c.l.b16 %v7480
        %v8169 = vunpack.c.l.b16 %v7494
        %v8170 = vunpack.c.l.b16 %v7508
        %v8171 = vunpack.c.l.b16 %v7522
        %v8172 = vunpack.c.l.b16 %v7536
        %v8173 = vunpack.c.l.b16 %v7550
        %v8174 = vunpack.c.l.b16 %v7564
        %v8175 = vunpack.c.l.b16 %v7578
        %v8176 = vunpack.c.l.b16 %v7592
        %v8177 = vunpack.c.l.b16 %v7606
        %v8178 = vunpack.c.l.b16 %v7620
        %v8179 = vunpack.c.l.b16 %v7634
        %v8180 = vunpack.c.l.b16 %v7648
        %v8181 = vunpack.c.l.b16 %v7662
        %v8182 = vunpack.c.l.b16 %v7676
        %v8183 = vunpack.c.l.b16 %v7690
        %v8184 = vunpack.c.l.b16 %v7704
        %v8185 = vunpack.c.l.b16 %v7718
        %v8186 = vunpack.c.l.b16 %v7732
        %v8187 = vunpack.c.l.b16 %v7746
        %v8188 = vunpack.c.l.b16 %v7760
        %v8189 = vunpack.c.l.b16 %v7774
        %v8190 = vunpack.c.l.b16 %v7788
        %v8191 = vunpack.c.l.b16 %v7802
        %v8192 = vunpack.c.l.b16 %v7816
        %v8193 = vunpack.c.l.b16 %v7830
        %v8194 = vunpack.c.l.b16 %v7844
        %v8195 = vunpack.c.l.b16 %v7858
        %v8196 = vunpack.c.l.b16 %v7872
        %v8197 = vunpack.c.l.b16 %v7886
        %v8198 = vunpack.c.l.b16 %v7900
        %v8199 = vunpack.c.l.b16 %v7914
        %v8200 = vunpack.c.l.b16 %v7928
        %v8201 = vunpack.c.l.b16 %v7942
        %v8202 = vunpack.c.l.b16 %v7956
        %v8203 = vunpack.c.l.b16 %v7970
        %v8204 = vunpack.c.l.b16 %v7984
        %v8205 = vunpack.c.l.b16 %v7998
        %v8206 = vunpack.c.l.b16 %v8012
        %v8207 = vunpack.c.l.b16 %v8026
        %v8208 = vunpack.c.l.b16 %v8040
        %v8209 = vunpack.c.l.b16 %v8054
        %v8210 = vunpack.c.l.b16 %v8068
        %v8211 = vunpack.c.l.b16 %v8082
        %v8212 = vunpack.c.l.b16 %v8096
        %v8213 = vunpack.c.l.b16 %v8110
        %v8214 = vunpack.c.l.b16 %v8124
        %v8215 = vunpack.c.l.b16 %v8138
        %v8216 = vunpack.c.l.b16 %v8152
        %v8217 = vrot.slane %v8154, 7
        %v8218 = vsel %vm6640, %v8217, %v8153
        %v8219 = vrot.slane %v8155, 6
        %v8220 = vsel %vm6643, %v8219, %v8218
        %v8221 = vrot.slane %v8156, 5
        %v8222 = vsel %vm6646, %v8221, %v8220
        %v8223 = vrot.slane %v8157, 4
        %v8224 = vsel %vm6649, %v8223, %v8222
        %v8225 = vrot.slane %v8158, 3
        %v8226 = vsel %vm6652, %v8225, %v8224
        %v8227 = vrot.slane %v8159, 2
        %v8228 = vsel %vm6655, %v8227, %v8226
        %v8229 = vrot.slane %v8160, 1
        %v8230 = vsel %vm6658, %v8229, %v8228
        %v8231 = vrot.slane %v8162, 7
        %v8232 = vsel %vm6640, %v8231, %v8161
        %v8233 = vrot.slane %v8163, 6
        %v8234 = vsel %vm6643, %v8233, %v8232
        %v8235 = vrot.slane %v8164, 5
        %v8236 = vsel %vm6646, %v8235, %v8234
        %v8237 = vrot.slane %v8165, 4
        %v8238 = vsel %vm6649, %v8237, %v8236
        %v8239 = vrot.slane %v8166, 3
        %v8240 = vsel %vm6652, %v8239, %v8238
        %v8241 = vrot.slane %v8167, 2
        %v8242 = vsel %vm6655, %v8241, %v8240
        %v8243 = vrot.slane %v8168, 1
        %v8244 = vsel %vm6658, %v8243, %v8242
        %v8245 = vrot.slane %v8170, 7
        %v8246 = vsel %vm6640, %v8245, %v8169
        %v8247 = vrot.slane %v8171, 6
        %v8248 = vsel %vm6643, %v8247, %v8246
        %v8249 = vrot.slane %v8172, 5
        %v8250 = vsel %vm6646, %v8249, %v8248
        %v8251 = vrot.slane %v8173, 4
        %v8252 = vsel %vm6649, %v8251, %v8250
        %v8253 = vrot.slane %v8174, 3
        %v8254 = vsel %vm6652, %v8253, %v8252
        %v8255 = vrot.slane %v8175, 2
        %v8256 = vsel %vm6655, %v8255, %v8254
        %v8257 = vrot.slane %v8176, 1
        %v8258 = vsel %vm6658, %v8257, %v8256
        %v8259 = vrot.slane %v8178, 7
        %v8260 = vsel %vm6640, %v8259, %v8177
        %v8261 = vrot.slane %v8179, 6
        %v8262 = vsel %vm6643, %v8261, %v8260
        %v8263 = vrot.slane %v8180, 5
        %v8264 = vsel %vm6646, %v8263, %v8262
        %v8265 = vrot.slane %v8181, 4
        %v8266 = vsel %vm6649, %v8265, %v8264
        %v8267 = vrot.slane %v8182, 3
        %v8268 = vsel %vm6652, %v8267, %v8266
        %v8269 = vrot.slane %v8183, 2
        %v8270 = vsel %vm6655, %v8269, %v8268
        %v8271 = vrot.slane %v8184, 1
        %v8272 = vsel %vm6658, %v8271, %v8270
        %v8273 = vrot.slane %v8186, 7
        %v8274 = vsel %vm6640, %v8273, %v8185
        %v8275 = vrot.slane %v8187, 6
        %v8276 = vsel %vm6643, %v8275, %v8274
        %v8277 = vrot.slane %v8188, 5
        %v8278 = vsel %vm6646, %v8277, %v8276
        %v8279 = vrot.slane %v8189, 4
        %v8280 = vsel %vm6649, %v8279, %v8278
        %v8281 = vrot.slane %v8190, 3
        %v8282 = vsel %vm6652, %v8281, %v8280
        %v8283 = vrot.slane %v8191, 2
        %v8284 = vsel %vm6655, %v8283, %v8282
        %v8285 = vrot.slane %v8192, 1
        %v8286 = vsel %vm6658, %v8285, %v8284
        %v8287 = vrot.slane %v8194, 7
        %v8288 = vsel %vm6640, %v8287, %v8193
        %v8289 = vrot.slane %v8195, 6
        %v8290 = vsel %vm6643, %v8289, %v8288
        %v8291 = vrot.slane %v8196, 5
        %v8292 = vsel %vm6646, %v8291, %v8290
        %v8293 = vrot.slane %v8197, 4
        %v8294 = vsel %vm6649, %v8293, %v8292
        %v8295 = vrot.slane %v8198, 3
        %v8296 = vsel %vm6652, %v8295, %v8294
        %v8297 = vrot.slane %v8199, 2
        %v8298 = vsel %vm6655, %v8297, %v8296
        %v8299 = vrot.slane %v8200, 1
        %v8300 = vsel %vm6658, %v8299, %v8298
        %v8301 = vrot.slane %v8202, 7
        %v8302 = vsel %vm6640, %v8301, %v8201
        %v8303 = vrot.slane %v8203, 6
        %v8304 = vsel %vm6643, %v8303, %v8302
        %v8305 = vrot.slane %v8204, 5
        %v8306 = vsel %vm6646, %v8305, %v8304
        %v8307 = vrot.slane %v8205, 4
        %v8308 = vsel %vm6649, %v8307, %v8306
        %v8309 = vrot.slane %v8206, 3
        %v8310 = vsel %vm6652, %v8309, %v8308
        %v8311 = vrot.slane %v8207, 2
        %v8312 = vsel %vm6655, %v8311, %v8310
        %v8313 = vrot.slane %v8208, 1
        %v8314 = vsel %vm6658, %v8313, %v8312
        %v8315 = vrot.slane %v8210, 7
        %v8316 = vsel %vm6640, %v8315, %v8209
        %v8317 = vrot.slane %v8211, 6
        %v8318 = vsel %vm6643, %v8317, %v8316
        %v8319 = vrot.slane %v8212, 5
        %v8320 = vsel %vm6646, %v8319, %v8318
        %v8321 = vrot.slane %v8213, 4
        %v8322 = vsel %vm6649, %v8321, %v8320
        %v8323 = vrot.slane %v8214, 3
        %v8324 = vsel %vm6652, %v8323, %v8322
        %v8325 = vrot.slane %v8215, 2
        %v8326 = vsel %vm6655, %v8325, %v8324
        %v8327 = vrot.slane %v8216, 1
        %v8328 = vsel %vm6658, %v8327, %v8326
        %v8329 = vpack.c.b16 %v8244, %v8230
        %v8330 = vpack.c.b16 %v8272, %v8258
        %v8331 = vpack.c.b16 %v8300, %v8286
        %v8332 = vpack.c.b16 %v8328, %v8314
        %v8334 = vsel %vm553, %v8329, 0
        %v8337 = vsel %vm553, %v8330, 0
        %v8340 = vsel %vm553, %v8331, 0
        %v8343 = vsel %vm553, %v8332, 0
        %v8346 = vsel %vm602, %v7256, 0
        %8348 = vmatprep.subr.bf16.mxu0 0
        %8349 = vmatpush1.bf16.msra.mxu0 %v8346
        %8350 = vmatprep.subr.bf16.mxu0 0
        %8351 = vmatpush1.bf16.msra.mxu0 0
        %8352 = vmatprep.subr.bf16.mxu0 0
        %8353 = vmatpush1.bf16.msra.mxu0 0
        %8354 = vmatprep.subr.bf16.mxu0 0
        %8355 = vmatpush1.bf16.msra.mxu0 0
        %8356 = vmatprep.subr.bf16.mxu0 0
        %8357 = vmatpush1.bf16.msra.mxu0 0
        %8358 = vmatprep.subr.bf16.mxu0 0
        %8359 = vmatpush1.bf16.msra.mxu0 0
        %8360 = vmatprep.subr.bf16.mxu0 0
        %8361 = vmatpush1.bf16.msra.mxu0 0
        %8362 = vmatprep.subr.bf16.mxu0 0
        %8363 = vmatpush1.bf16.msra.mxu0 0
        %8364 = vmatprep.subr.bf16.mxu0 0
        %8365 = vmatpush1.bf16.msra.mxu0 0
        %8366 = vmatprep.subr.bf16.mxu0 0
        %8367 = vmatpush1.bf16.msra.mxu0 0
        %8368 = vmatprep.subr.bf16.mxu0 0
        %8369 = vmatpush1.bf16.msra.mxu0 0
        %8370 = vmatprep.subr.bf16.mxu0 0
        %8371 = vmatpush1.bf16.msra.mxu0 0
        %8372 = vmatprep.subr.bf16.mxu0 0
        %8373 = vmatpush1.bf16.msra.mxu0 0
        %8374 = vmatprep.subr.bf16.mxu0 0
        %8375 = vmatpush1.bf16.msra.mxu0 0
        %8376 = vmatprep.subr.bf16.mxu0 0
        %8377 = vmatpush1.bf16.msra.mxu0 0
        %8378 = vmatprep.subr.bf16.mxu0 0
        %8379 = vmatpush1.bf16.msra.mxu0 0
        %8380 = vmatprep.mubr.bf16.mxu0 0
        %8381 = vmatmul.mubr.bf16.gmra.mrb[0].mxu0 %v8334
        %v8382 = vpop.f32.mrb[0].mxu0
        %v8383 = vadd.f32 0.0, %v8382
        %v8384 = vpop.f32.mrb[0].mxu0
        %v8385 = vpop.f32.mrb[0].mxu0
        %v8386 = vadd.f32 0.0, %v8385
        %v8387 = vpop.f32.mrb[0].mxu0
        %8388 = vmatprep.mubr.bf16.mxu0 0
        %8389 = vmatmul.mubr.bf16.gmra.mrb[0].mxu0 %v8337
        %v8390 = vpop.f32.mrb[0].mxu0
        %v8391 = vadd.f32 0.0, %v8390
        %v8392 = vpop.f32.mrb[0].mxu0
        %v8393 = vpop.f32.mrb[0].mxu0
        %v8394 = vadd.f32 0.0, %v8393
        %v8395 = vpop.f32.mrb[0].mxu0
        %8396 = vmatprep.mubr.bf16.mxu0 0
        %8397 = vmatmul.mubr.bf16.gmra.mrb[0].mxu0 %v8340
        %v8398 = vpop.f32.mrb[0].mxu0
        %v8399 = vadd.f32 0.0, %v8398
        %v8400 = vpop.f32.mrb[0].mxu0
        %v8401 = vpop.f32.mrb[0].mxu0
        %v8402 = vadd.f32 0.0, %v8401
        %v8403 = vpop.f32.mrb[0].mxu0
        %8404 = vmatprep.mubr.bf16.mxu0 0
        %8405 = vmatmul.mubr.bf16.gmra.mrb[0].mxu0 %v8343
        %v8406 = vpop.f32.mrb[0].mxu0
        %v8407 = vadd.f32 0.0, %v8406
        %v8408 = vpop.f32.mrb[0].mxu0
        %v8409 = vpop.f32.mrb[0].mxu0
        %v8410 = vadd.f32 0.0, %v8409
        %v8411 = vpop.f32.mrb[0].mxu0
        %8412 = vdwg.mxu0
        %v8413 = vld [vmem:[%s11] sm:$0x1]
        %v8415 = vlaneseq
        %v8416 = vshrl.u32 %v8415, 7
        %v8417 = vsub.s32 0, %v8416
        %v8418 = vrot.slane %v8413, %v8417
        %v8420 = vmul.f32 %v8383, %v8418
        %v8421 = vmul.f32 %v8386, %v8418
        %v8422 = vmul.f32 %v8391, %v8418
        %v8423 = vmul.f32 %v8394, %v8418
        %v8424 = vmul.f32 %v8399, %v8418
        %v8425 = vmul.f32 %v8402, %v8418
        %v8426 = vmul.f32 %v8407, %v8418
        %v8427 = vmul.f32 %v8410, %v8418
        %v8428 = vld [vmem:[%s12] sm:$0x1]
        %v8430 = vlaneseq
        %v8431 = vshrl.u32 %v8430, 7
        %v8432 = vsub.s32 0, %v8431
        %v8433 = vrot.slane %v8428, %v8432
        %v8435 = vadd.f32 %v8420, %v8433
        %v8436 = vadd.f32 %v8421, %v8433
        %v8437 = vadd.f32 %v8422, %v8433
        %v8438 = vadd.f32 %v8423, %v8433
        %v8439 = vadd.f32 %v8424, %v8433
        %v8440 = vadd.f32 %v8425, %v8433
        %v8441 = vadd.f32 %v8426, %v8433
        %v8442 = vadd.f32 %v8427, %v8433
        %v8443 = vadd.f32 %v6864, %v8435
        %v8444 = vadd.f32 %v6865, %v8436
        %v8445 = vadd.f32 %v6866, %v8437
        %v8446 = vadd.f32 %v6867, %v8438
        %v8447 = vadd.f32 %v6868, %v8439
        %v8448 = vadd.f32 %v6869, %v8440
        %v8449 = vadd.f32 %v6870, %v8441
        %v8450 = vadd.f32 %v6871, %v8442
        %v8451 = vmax.f32 %v8443, 0.0
        %v8452 = vmax.f32 %v8444, 0.0
        %v8453 = vmax.f32 %v8445, 0.0
        %v8454 = vmax.f32 %v8446, 0.0
        %v8455 = vmax.f32 %v8447, 0.0
        %v8456 = vmax.f32 %v8448, 0.0
        %v8457 = vmax.f32 %v8449, 0.0
        %v8458 = vmax.f32 %v8450, 0.0
        %vm8459 = vcmask 130048
        %8460 = vst.msk [vmem:[%s433] sm:$0xff] %vm8459, %v8451
        %8461 = vst.msk [vmem:[%s433 + $0x8] sm:$0xff] %vm8459, %v8452
        %8462 = vst.msk [vmem:[%s433 + $0x10] sm:$0xff] %vm8459, %v8453
        %8463 = vst.msk [vmem:[%s433 + $0x18] sm:$0xff] %vm8459, %v8454
        %8464 = vst.msk [vmem:[%s433 + $0x20] sm:$0xff] %vm8459, %v8455
        %8465 = vst.msk [vmem:[%s433 + $0x28] sm:$0xff] %vm8459, %v8456
        %8466 = vst.msk [vmem:[%s433 + $0x30] sm:$0xff] %vm8459, %v8457
        %8467 = vst.msk [vmem:[%s433 + $0x38] sm:$0xff] %vm8459, %v8458
        %s8468 = sand.u32 %s313, 1
        %s8469 = scalar_lea.sflag [#allocation4], %s8468
        %s8470 = sand.u32 %s313, 1
        %s8471 = smul.addr %s8470, 64
        %s8472 = scalar_lea.vmem [#allocation3], %s8471
        // Predicated region
        $region73: #{tpu_custom_call.1} parent=71 // pred_check
          %p8473 = pneg %p323
        $region74: #{tpu_custom_call.1} parent=71 // pred_check_branch
          %8475 = sbr.rel (%p8473) target = $region76
        $region75: #{tpu_custom_call.1} parent=71 // pred_region
          %s8477 = ssub.s32 1024, 1024
          %8478 = vsyncadd %s8469, %s8477
          %s8479 = smul.addr %s27, 8
          %s8480 = smul.addr %s8479, 128
          %s8481 = scalar_lea.hbm %s13, %s8480
          %s8482 = sshll.u32 %s8472, 4
          %s8483 = int_to_ptr.vmem [resolvable:$true] %s8482
          %8488 = dma.vmem_to_hbm [thread:$0]  %s8483, 1024, %s8481, %s8469, 128, 128, 8
        $region76: #{tpu_custom_call.1} parent=71 // pred_fallthru
          _
      $region72: #{tpu_custom_call.1} parent=5 // pred_fallthru
        _
      %p8489 = scmp.le.s32.totalorder 2, %s22
      // Predicated region
      $region77: #{tpu_custom_call.1} parent=5 // pred_check
        %p8490 = pneg %p8489
      $region78: #{tpu_custom_call.1} parent=5 // pred_check_branch
        %8492 = sbr.rel (%p8490) target = $region80
      $region79: #{tpu_custom_call.1} parent=5 // pred_region
        %s8493 = ssub.s32 %s22, 2
        // Predicated region
        $region81: #{tpu_custom_call.1} parent=79 // pred_check
          %p8494 = pneg %p329
        $region82: #{tpu_custom_call.1} parent=79 // pred_check_branch
          %8496 = sbr.rel (%p8494) target = $region84
        $region83: #{tpu_custom_call.1} parent=79 // pred_region
          %s8497 = sand.u32 %s314, 1
          %s8498 = scalar_lea.sflag [#allocation4], %s8497
          %s8499 = sand.u32 %s314, 1
          %s8500 = smul.addr %s8499, 64
          %s8501 = scalar_lea.vmem [#allocation3], %s8500
          %8502 = dma.done %s8498, 1024
        $region84: #{tpu_custom_call.1} parent=79 // pred_fallthru
          _
      $region80: #{tpu_custom_call.1} parent=5 // pred_fallthru
        _
    $region6: #{tpu_custom_call.1} parent=1 // loop_footer
      %s26 = sadd.s32 1, %s22
    $region7: #{tpu_custom_call.1} parent=1 // loop_footer_branch
      %21 = sbr.rel target = $region3
    $region8: #{tpu_custom_call.1} parent=1 // loop_exit
      _
    %8503 = vsyncpa [#allocation4], 1
    %s8504 = scalar_lea.sflag [#allocation4], 1
    %8505 = vsyncpa %s8504, 1

</llo_original>
